<compile_context>
chip_gen: v7x
topology: tpu7x:2x2x1
jax: 0.10.0
libtpu: 0.0.40
codegen_flags: <defaults>
</compile_context>

<pallas_src>
import jax
import jax.numpy as jnp
from jax import lax
from jax.experimental import pallas as pl
from jax.experimental.pallas import tpu as pltpu
import numpy as np

HIDDEN = 100   # PackedEncoderRNN hidden size in the reference module
HPAD = 128     # lane-padded hidden size
NENC = 4       # look / inv / ob / prev-action
BPAD = 8       # sublane-padded batch


def _encoder_splits():
    """2 splits (one per TensorCore) on v7x, else 1 (single serial chain)."""
    try:
        kind = jax.devices()[0].device_kind.lower()
    except Exception:
        return 1
    return 2 if ("v7" in kind or "7x" in kind) else 1


# ----------------------------- Pallas kernel -------------------------------

def fused_actiondrqa_kernel(gi_ref, len_ref, h0_ref, whh_ref, bhn_ref,
                            wfch_ref, hout_ref, fpart_ref):
    """Per-encoder GRU recurrence (batched over encoders) + partial fch dot.

    gi_ref   : (T, Ep, Bp, 3*Hp) bf16  pre-gathered input projections+biases
    len_ref  : (Ep, Bp, Hp) int32      per-row sequence lengths (broadcast)
    h0_ref   : (Ep, Bp, Hp) f32        initial hiddens (zero in pad lanes/rows)
    whh_ref  : (Ep, Hp, 3*Hp) bf16     dense per-encoder recurrent weights [r|z|n]
    bhn_ref  : (Ep, 1, Hp) f32         hidden bias of the n gate (inside r*(..))
    wfch_ref : (Ep, Hp, Hp) bf16       per-encoder slice of the fch weight
    hout_ref : (Ep, Bp, Hp) f32        final hiddens
    fpart_ref: (1, Bp, Hp) f32         partial fch product for this split
    """
    T = gi_ref.shape[0]
    Ep, Bp, Hp = h0_ref.shape
    G = Hp

    whh = whh_ref[...]                                           # bf16
    bhn = jnp.broadcast_to(bhn_ref[...], (Ep, Bp, G))            # hoisted
    len_b = len_ref[...]                                         # int32

    def step(t, h):
        gi = gi_ref[t]                                           # (Ep,Bp,3G) bf16
        gh = jnp.einsum('ebk,ekg->ebg', h.astype(jnp.bfloat16), whh,
                        preferred_element_type=jnp.float32)      # (Ep,Bp,3G) f32
        rz = jax.nn.sigmoid(gi[..., :2 * G] + gh[..., :2 * G])
        r = rz[..., :G]
        z = rz[..., G:]
        n = jnp.tanh(gi[..., 2 * G:] + r * (gh[..., 2 * G:] + bhn))
        delta = (1.0 - z) * (n - h)
        # packed-sequence semantics: freeze hidden once t >= length
        return h + jnp.where(t < len_b, delta, 0.0)

    h_final = lax.fori_loop(0, T, step, h0_ref[...], unroll=True)
    hout_ref[...] = h_final

    # Partial fch product for this encoder split (bias + ReLU applied outside,
    # after summing the per-split partials).
    h_bf = h_final.astype(jnp.bfloat16)
    wf = wfch_ref[...]
    f = jnp.zeros((Bp, Hp), jnp.float32)
    for e in range(Ep):                       # static unrolled loop (Ep <= 4)
        f = f + jnp.dot(h_bf[e], wf[e], preferred_element_type=jnp.float32)
    fpart_ref[0] = f


def run_fused(gi, len_bcast, h0, pk, splits):
    T, E, Bp, G3 = gi.shape
    Hp = HPAD
    Ep = E // splits
    return pl.pallas_call(
        fused_actiondrqa_kernel,
        out_shape=(jax.ShapeDtypeStruct((E, Bp, Hp), jnp.float32),
                   jax.ShapeDtypeStruct((splits, Bp, Hp), jnp.float32)),
        grid=(splits,),
        in_specs=[
            pl.BlockSpec((T, Ep, Bp, G3), lambda i: (0, i, 0, 0)),
            pl.BlockSpec((Ep, Bp, Hp), lambda i: (i, 0, 0)),
            pl.BlockSpec((Ep, Bp, Hp), lambda i: (i, 0, 0)),
            pl.BlockSpec((Ep, Hp, G3), lambda i: (i, 0, 0)),
            pl.BlockSpec((Ep, 1, Hp), lambda i: (i, 0, 0)),
            pl.BlockSpec((Ep, Hp, Hp), lambda i: (i, 0, 0)),
        ],
        out_specs=[pl.BlockSpec((Ep, Bp, Hp), lambda i: (i, 0, 0)),
                   pl.BlockSpec((1, Bp, Hp), lambda i: (i, 0, 0))],
        compiler_params=pltpu.CompilerParams(
            dimension_semantics=("parallel",)),
    )(gi, len_bcast, h0, pk["w_hh"], pk["b_hn"], pk["w_fch"])


# --------------------------- Host-side packing ------------------------------

def pack_params(params):
    """Fold W_ih+biases into the embedding table; pack dense per-enc weights."""
    E, V, H = params["emb"].shape
    Hp = HPAD
    f32 = jnp.float32

    # Folded gather table: tab[e, v, g*Hp:g*Hp+H] = emb[e,v] @ W_ih[e,g] + bias
    # bias_r = b_ih_r + b_hh_r ; bias_z = b_ih_z + b_hh_z ; bias_n = b_ih_n
    tab = jnp.zeros((E, V, 3 * Hp), f32)
    for g in range(3):
        proj = jnp.einsum('evh,ehk->evk', params["emb"], params["w_ih"][:, g])
        if g < 2:
            b = params["b_ih"][:, g] + params["b_hh"][:, g]
        else:
            b = params["b_ih"][:, g]
        tab = tab.at[:, :, g * Hp:g * Hp + H].set(proj + b[:, None, :])

    # Dense per-encoder recurrent weights, gate layout [r | z | n] per encoder.
    w_hh = jnp.zeros((E, Hp, 3 * Hp), f32)
    for g in range(3):
        w_hh = w_hh.at[:, :H, g * Hp:g * Hp + H].set(params["w_hh"][:, g])

    b_hn = jnp.zeros((E, 1, Hp), f32).at[:, 0, :H].set(params["b_hh"][:, 2])

    w_f = jnp.zeros((E, Hp, Hp), f32).at[:, :H, :H].set(
        params["fch_w"].reshape(E, H, H))
    b_f = jnp.zeros((1, Hp), f32).at[0, :H].set(params["fch_b"][0])

    return {
        "tab": tab.astype(jnp.bfloat16),
        "w_hh": w_hh.astype(jnp.bfloat16),
        "b_hn": b_hn,
        "w_fch": w_f.astype(jnp.bfloat16),
        "b_fch": b_f,
    }


# ------------------------------ Forward pass --------------------------------

def action_drqa_forward(obs, packed, hiddens, splits=1):
    """obs: (B, 4, T) int32 token ids.  hiddens: (4, B, H) current GRU hiddens.

    Returns (x_l, x_i, x_o, x_p, h, new_hiddens) matching the PyTorch forward:
    x_* are (B, H), h is (1, B, H).
    """
    B, E, T = obs.shape
    H, Hp, Bp = HIDDEN, HPAD, BPAD
    assert E % splits == 0

    # Input projection = pure gather from the folded (E, V, 3*Hp) bf16 table.
    tok_teb = jnp.transpose(obs, (2, 1, 0))                        # (T, E, B)
    e_idx = jnp.arange(E)[None, :, None]
    gi = packed["tab"][e_idx, tok_teb]                             # (T,E,B,3Hp) bf16
    gi_pad = jnp.zeros((T, E, Bp, 3 * Hp), jnp.bfloat16).at[:, :, :B].set(gi)

    # Packed-sequence lengths: last nonzero index + 1 (>= 1).  Padded batch
    # rows get length 0 so they stay frozen at zero.
    idx = jnp.arange(T)
    last_nz = jnp.max(jnp.where(obs != 0, idx[None, None, :] + 1, 0), axis=-1)
    lengths = jnp.maximum(last_nz, 1).astype(jnp.int32)            # (B, E)
    len_eb = jnp.transpose(lengths, (1, 0))                        # (E, B)
    len_bcast = jnp.zeros((E, Bp, Hp), jnp.int32).at[:, :B].set(
        jnp.broadcast_to(len_eb[:, :, None], (E, B, Hp)))

    # Current hiddens (E, B, H) -> padded (E, Bp, Hp), zero pad lanes/rows.
    h0 = jnp.zeros((E, Bp, Hp), jnp.float32).at[:, :B, :H].set(hiddens)

    h_out, f_part = run_fused(gi_pad, len_bcast, h0, packed, splits)

    h_new = h_out[:, :B, :H]                                       # (E, B, H)
    fch = jnp.maximum(jnp.sum(f_part, axis=0) + packed["b_fch"], 0.0)
    h = fch[:B, :H][None]                                          # (1, B, H)
    x_l, x_i, x_o, x_p = h_new[0], h_new[1], h_new[2], h_new[3]
    return x_l, x_i, x_o, x_p, h, h_new


# --------------------------- Pure-JAX reference -----------------------------

def reference_forward(obs, params, hiddens):
    B, E, T = obs.shape
    tok = jnp.transpose(obs, (1, 0, 2))
    emb = jax.vmap(lambda table, t: table[t])(params["emb"], tok)  # (4,B,T,H)
    idx = jnp.arange(T)
    last_nz = jnp.max(jnp.where(tok != 0, idx[None, None, :] + 1, 0), axis=-1)
    lengths = jnp.maximum(last_nz, 1)

    def enc(e):
        def step(h, t):
            x = emb[e, :, t, :]
            m = (t < lengths[e])[:, None].astype(jnp.float32)
            r = jax.nn.sigmoid(x @ params["w_ih"][e, 0] + params["b_ih"][e, 0]
                               + h @ params["w_hh"][e, 0] + params["b_hh"][e, 0])
            z = jax.nn.sigmoid(x @ params["w_ih"][e, 1] + params["b_ih"][e, 1]
                               + h @ params["w_hh"][e, 1] + params["b_hh"][e, 1])
            n = jnp.tanh(x @ params["w_ih"][e, 2] + params["b_ih"][e, 2]
                         + r * (h @ params["w_hh"][e, 2] + params["b_hh"][e, 2]))
            h_new = (1 - z) * n + z * h
            return m * h_new + (1 - m) * h, None
        h_f, _ = lax.scan(step, hiddens[e], jnp.arange(T))
        return h_f

    h_new = jnp.stack([enc(e) for e in range(E)], axis=0)
    hcat = jnp.transpose(h_new, (1, 0, 2)).reshape(B, E * HIDDEN)
    h = jnp.maximum(hcat @ params["fch_w"] + params["fch_b"], 0.0)[None]
    return h_new, h


# --------------------------------- Main -------------------------------------

if __name__ == "__main__":
    B, E, T, V, H = 2, 4, 16, 48, HIDDEN
    key = jax.random.PRNGKey(0)
    k = jax.random.split(key, 8)

    params = {
        "emb":   0.1 * jax.random.normal(k[0], (E, V, H), jnp.float32),
        "w_ih":  0.1 * jax.random.normal(k[1], (E, 3, H, H), jnp.float32),
        "w_hh":  0.1 * jax.random.normal(k[2], (E, 3, H, H), jnp.float32),
        "b_ih":  0.1 * jax.random.normal(k[3], (E, 3, H), jnp.float32),
        "b_hh":  0.1 * jax.random.normal(k[4], (E, 3, H), jnp.float32),
        "fch_w": 0.1 * jax.random.normal(k[5], (E * H, H), jnp.float32),
        "fch_b": 0.1 * jax.random.normal(k[6], (1, H), jnp.float32),
    }
    packed = jax.tree_util.tree_map(jax.block_until_ready, pack_params(params))

    obs = jax.random.randint(k[7], (B, E, T), 0, V, dtype=jnp.int32)
    obs = obs.at[:, :, 0].set(jnp.maximum(obs[:, :, 0], 1))  # length >= 1
    hiddens = jnp.zeros((E, B, H), jnp.float32)              # initHidden

    SPLITS = _encoder_splits()
    fwd = jax.jit(lambda o, p, hh: action_drqa_forward(o, p, hh, splits=SPLITS))
    x_l, x_i, x_o, x_p, h, h_new = jax.block_until_ready(
        fwd(obs, packed, hiddens))

    # sanity check against pure-JAX f32 reference (bf16 operands in kernel)
    h_ref, h_out_ref = reference_forward(obs, params, hiddens)
    np.testing.assert_allclose(np.asarray(h_new), np.asarray(h_ref),
                               rtol=5e-2, atol=5e-2)
    np.testing.assert_allclose(np.asarray(h), np.asarray(h_out_ref),
                               rtol=5e-2, atol=5e-2)
    assert x_l.shape == (B, H) and h.shape == (1, B, H)

    print("KERNEL_OK")
</pallas_src>

<mosaic_0001>
module attributes {stable_mosaic.version = 11 : i64} {
  func.func @fused_actiondrqa_kernel(%arg0: i32, %arg1: memref<16x4x8x384xbf16, #tpu.memory_space<vmem>>, %arg2: memref<4x8x128xi32, #tpu.memory_space<vmem>>, %arg3: memref<4x8x128xf32, #tpu.memory_space<vmem>>, %arg4: memref<4x128x384xbf16, #tpu.memory_space<vmem>>, %arg5: memref<4x1x128xf32, #tpu.memory_space<vmem>>, %arg6: memref<4x128x128xbf16, #tpu.memory_space<vmem>>, %arg7: memref<4x8x128xf32, #tpu.memory_space<vmem>>, %arg8: memref<1x8x128xf32, #tpu.memory_space<vmem>>) attributes {dimension_semantics = [#tpu.dimension_semantics<parallel>], iteration_bounds = array<i64: 1>, scalar_prefetch = 0 : i64, scratch_operands = 0 : i64, tpu.core_type = #tpu.core_type<tc>, window_params = [{transform_indices = @transform_0, window_bounds = array<i64: 16, 4, 8, 384>}, {transform_indices = @transform_1, window_bounds = array<i64: 4, 8, 128>}, {transform_indices = @transform_2, window_bounds = array<i64: 4, 8, 128>}, {transform_indices = @transform_3, window_bounds = array<i64: 4, 128, 384>}, {transform_indices = @transform_4, window_bounds = array<i64: 4, 1, 128>}, {transform_indices = @transform_5, window_bounds = array<i64: 4, 128, 128>}, {transform_indices = @transform_6, window_bounds = array<i64: 4, 8, 128>}, {transform_indices = @transform_7, window_bounds = array<i64: 1, 8, 128>}]} {
    %c0 = arith.constant 0 : index
    %c0_0 = arith.constant 0 : index
    %c0_1 = arith.constant 0 : index
    %0 = vector.load %arg4[%c0, %c0_0, %c0_1] : memref<4x128x384xbf16, #tpu.memory_space<vmem>>, vector<4x128x384xbf16>
    %c0_2 = arith.constant 0 : index
    %c0_3 = arith.constant 0 : index
    %c0_4 = arith.constant 0 : index
    %1 = vector.load %arg5[%c0_2, %c0_3, %c0_4] : memref<4x1x128xf32, #tpu.memory_space<vmem>>, vector<4x1x128xf32>
    %2 = vector.shape_cast %1 : vector<4x1x128xf32> to vector<4x1x128xf32>
    %3 = vector.broadcast %2 : vector<4x1x128xf32> to vector<4x8x128xf32>
    %c0_5 = arith.constant 0 : index
    %c0_6 = arith.constant 0 : index
    %c0_7 = arith.constant 0 : index
    %4 = vector.load %arg2[%c0_5, %c0_6, %c0_7] : memref<4x8x128xi32, #tpu.memory_space<vmem>>, vector<4x8x128xi32>
    %c0_8 = arith.constant 0 : index
    %c0_9 = arith.constant 0 : index
    %c0_10 = arith.constant 0 : index
    %5 = vector.load %arg3[%c0_8, %c0_9, %c0_10] : memref<4x8x128xf32, #tpu.memory_space<vmem>>, vector<4x8x128xf32>
    %c0_i32 = arith.constant 0 : i32
    %6 = arith.index_cast %c0_i32 : i32 to index
    %c0_11 = arith.constant 0 : index
    %c0_12 = arith.constant 0 : index
    %c0_13 = arith.constant 0 : index
    %7 = vector.load %arg1[%6, %c0_11, %c0_12, %c0_13] : memref<16x4x8x384xbf16, #tpu.memory_space<vmem>>, vector<1x4x8x384xbf16>
    %8 = vector.shape_cast %7 : vector<1x4x8x384xbf16> to vector<4x8x384xbf16>
    %9 = arith.truncf %5 : vector<4x8x128xf32> to vector<4x8x128xbf16>
    "tpu.trace_start"() <{level = 10 : i32, message = "ebk,ekg->ebg"}> : () -> ()
    %cst = arith.constant dense<0.000000e+00> : vector<4x8x384xf32>
    %10 = tpu.matmul %9, %0, %cst {dimension_numbers = #tpu.dot_dimension_numbers<[2], [1], [1], [2], [0, 0, 0, 1, 1, 2], [0], [0]>} : vector<4x8x128xbf16>, vector<4x128x384xbf16>, vector<4x8x384xf32> -> vector<4x8x384xf32>
    "tpu.trace_stop"() : () -> ()
    %11 = vector.extract_strided_slice %8 {offsets = [0, 0, 0], sizes = [4, 8, 256], strides = [1, 1, 1]} : vector<4x8x384xbf16> to vector<4x8x256xbf16>
    %12 = vector.extract_strided_slice %10 {offsets = [0, 0, 0], sizes = [4, 8, 256], strides = [1, 1, 1]} : vector<4x8x384xf32> to vector<4x8x256xf32>
    %13 = arith.extf %11 : vector<4x8x256xbf16> to vector<4x8x256xf32>
    %14 = arith.addf %13, %12 : vector<4x8x256xf32>
    %15 = arith.negf %14 : vector<4x8x256xf32>
    %16 = math.exp %15 : vector<4x8x256xf32>
    %cst_14 = arith.constant 1.000000e+00 : f32
    %17 = vector.broadcast %cst_14 : f32 to vector<4x8x256xf32>
    %18 = arith.addf %17, %16 : vector<4x8x256xf32>
    %19 = arith.divf %17, %18 : vector<4x8x256xf32>
    %20 = vector.extract_strided_slice %19 {offsets = [0, 0, 0], sizes = [4, 8, 128], strides = [1, 1, 1]} : vector<4x8x256xf32> to vector<4x8x128xf32>
    %21 = vector.extract_strided_slice %19 {offsets = [0, 0, 128], sizes = [4, 8, 128], strides = [1, 1, 1]} : vector<4x8x256xf32> to vector<4x8x128xf32>
    %22 = vector.extract_strided_slice %8 {offsets = [0, 0, 256], sizes = [4, 8, 128], strides = [1, 1, 1]} : vector<4x8x384xbf16> to vector<4x8x128xbf16>
    %23 = vector.extract_strided_slice %10 {offsets = [0, 0, 256], sizes = [4, 8, 128], strides = [1, 1, 1]} : vector<4x8x384xf32> to vector<4x8x128xf32>
    %24 = arith.addf %23, %3 : vector<4x8x128xf32>
    %25 = arith.mulf %20, %24 : vector<4x8x128xf32>
    %26 = arith.extf %22 : vector<4x8x128xbf16> to vector<4x8x128xf32>
    %27 = arith.addf %26, %25 : vector<4x8x128xf32>
    %28 = math.tanh %27 : vector<4x8x128xf32>
    %cst_15 = arith.constant 1.000000e+00 : f32
    %29 = vector.broadcast %cst_15 : f32 to vector<4x8x128xf32>
    %30 = arith.subf %29, %21 : vector<4x8x128xf32>
    %31 = arith.subf %28, %5 : vector<4x8x128xf32>
    %32 = arith.mulf %30, %31 : vector<4x8x128xf32>
    %33 = vector.broadcast %c0_i32 : i32 to vector<4x8x128xi32>
    %34 = arith.cmpi slt, %33, %4 : vector<4x8x128xi32>
    %cst_16 = arith.constant 0.000000e+00 : f32
    %35 = vector.broadcast %cst_16 : f32 to vector<4x8x128xf32>
    %36 = arith.select %34, %32, %35 : vector<4x8x128xi1>, vector<4x8x128xf32>
    %37 = arith.addf %5, %36 : vector<4x8x128xf32>
    %c1_i32 = arith.constant 1 : i32
    %38 = arith.index_cast %c1_i32 : i32 to index
    %c0_17 = arith.constant 0 : index
    %c0_18 = arith.constant 0 : index
    %c0_19 = arith.constant 0 : index
    %39 = vector.load %arg1[%38, %c0_17, %c0_18, %c0_19] : memref<16x4x8x384xbf16, #tpu.memory_space<vmem>>, vector<1x4x8x384xbf16>
    %40 = vector.shape_cast %39 : vector<1x4x8x384xbf16> to vector<4x8x384xbf16>
    %41 = arith.truncf %37 : vector<4x8x128xf32> to vector<4x8x128xbf16>
    "tpu.trace_start"() <{level = 10 : i32, message = "ebk,ekg->ebg"}> : () -> ()
    %cst_20 = arith.constant dense<0.000000e+00> : vector<4x8x384xf32>
    %42 = tpu.matmul %41, %0, %cst_20 {dimension_numbers = #tpu.dot_dimension_numbers<[2], [1], [1], [2], [0, 0, 0, 1, 1, 2], [0], [0]>} : vector<4x8x128xbf16>, vector<4x128x384xbf16>, vector<4x8x384xf32> -> vector<4x8x384xf32>
    "tpu.trace_stop"() : () -> ()
    %43 = vector.extract_strided_slice %40 {offsets = [0, 0, 0], sizes = [4, 8, 256], strides = [1, 1, 1]} : vector<4x8x384xbf16> to vector<4x8x256xbf16>
    %44 = vector.extract_strided_slice %42 {offsets = [0, 0, 0], sizes = [4, 8, 256], strides = [1, 1, 1]} : vector<4x8x384xf32> to vector<4x8x256xf32>
    %45 = arith.extf %43 : vector<4x8x256xbf16> to vector<4x8x256xf32>
    %46 = arith.addf %45, %44 : vector<4x8x256xf32>
    %47 = arith.negf %46 : vector<4x8x256xf32>
    %48 = math.exp %47 : vector<4x8x256xf32>
    %cst_21 = arith.constant 1.000000e+00 : f32
    %49 = vector.broadcast %cst_21 : f32 to vector<4x8x256xf32>
    %50 = arith.addf %49, %48 : vector<4x8x256xf32>
    %51 = arith.divf %49, %50 : vector<4x8x256xf32>
    %52 = vector.extract_strided_slice %51 {offsets = [0, 0, 0], sizes = [4, 8, 128], strides = [1, 1, 1]} : vector<4x8x256xf32> to vector<4x8x128xf32>
    %53 = vector.extract_strided_slice %51 {offsets = [0, 0, 128], sizes = [4, 8, 128], strides = [1, 1, 1]} : vector<4x8x256xf32> to vector<4x8x128xf32>
    %54 = vector.extract_strided_slice %40 {offsets = [0, 0, 256], sizes = [4, 8, 128], strides = [1, 1, 1]} : vector<4x8x384xbf16> to vector<4x8x128xbf16>
    %55 = vector.extract_strided_slice %42 {offsets = [0, 0, 256], sizes = [4, 8, 128], strides = [1, 1, 1]} : vector<4x8x384xf32> to vector<4x8x128xf32>
    %56 = arith.addf %55, %3 : vector<4x8x128xf32>
    %57 = arith.mulf %52, %56 : vector<4x8x128xf32>
    %58 = arith.extf %54 : vector<4x8x128xbf16> to vector<4x8x128xf32>
    %59 = arith.addf %58, %57 : vector<4x8x128xf32>
    %60 = math.tanh %59 : vector<4x8x128xf32>
    %cst_22 = arith.constant 1.000000e+00 : f32
    %61 = vector.broadcast %cst_22 : f32 to vector<4x8x128xf32>
    %62 = arith.subf %61, %53 : vector<4x8x128xf32>
    %63 = arith.subf %60, %37 : vector<4x8x128xf32>
    %64 = arith.mulf %62, %63 : vector<4x8x128xf32>
    %65 = vector.broadcast %c1_i32 : i32 to vector<4x8x128xi32>
    %66 = arith.cmpi slt, %65, %4 : vector<4x8x128xi32>
    %cst_23 = arith.constant 0.000000e+00 : f32
    %67 = vector.broadcast %cst_23 : f32 to vector<4x8x128xf32>
    %68 = arith.select %66, %64, %67 : vector<4x8x128xi1>, vector<4x8x128xf32>
    %69 = arith.addf %37, %68 : vector<4x8x128xf32>
    %c2_i32 = arith.constant 2 : i32
    %70 = arith.index_cast %c2_i32 : i32 to index
    %c0_24 = arith.constant 0 : index
    %c0_25 = arith.constant 0 : index
    %c0_26 = arith.constant 0 : index
    %71 = vector.load %arg1[%70, %c0_24, %c0_25, %c0_26] : memref<16x4x8x384xbf16, #tpu.memory_space<vmem>>, vector<1x4x8x384xbf16>
    %72 = vector.shape_cast %71 : vector<1x4x8x384xbf16> to vector<4x8x384xbf16>
    %73 = arith.truncf %69 : vector<4x8x128xf32> to vector<4x8x128xbf16>
    "tpu.trace_start"() <{level = 10 : i32, message = "ebk,ekg->ebg"}> : () -> ()
    %cst_27 = arith.constant dense<0.000000e+00> : vector<4x8x384xf32>
    %74 = tpu.matmul %73, %0, %cst_27 {dimension_numbers = #tpu.dot_dimension_numbers<[2], [1], [1], [2], [0, 0, 0, 1, 1, 2], [0], [0]>} : vector<4x8x128xbf16>, vector<4x128x384xbf16>, vector<4x8x384xf32> -> vector<4x8x384xf32>
    "tpu.trace_stop"() : () -> ()
    %75 = vector.extract_strided_slice %72 {offsets = [0, 0, 0], sizes = [4, 8, 256], strides = [1, 1, 1]} : vector<4x8x384xbf16> to vector<4x8x256xbf16>
    %76 = vector.extract_strided_slice %74 {offsets = [0, 0, 0], sizes = [4, 8, 256], strides = [1, 1, 1]} : vector<4x8x384xf32> to vector<4x8x256xf32>
    %77 = arith.extf %75 : vector<4x8x256xbf16> to vector<4x8x256xf32>
    %78 = arith.addf %77, %76 : vector<4x8x256xf32>
    %79 = arith.negf %78 : vector<4x8x256xf32>
    %80 = math.exp %79 : vector<4x8x256xf32>
    %cst_28 = arith.constant 1.000000e+00 : f32
    %81 = vector.broadcast %cst_28 : f32 to vector<4x8x256xf32>
    %82 = arith.addf %81, %80 : vector<4x8x256xf32>
    %83 = arith.divf %81, %82 : vector<4x8x256xf32>
    %84 = vector.extract_strided_slice %83 {offsets = [0, 0, 0], sizes = [4, 8, 128], strides = [1, 1, 1]} : vector<4x8x256xf32> to vector<4x8x128xf32>
    %85 = vector.extract_strided_slice %83 {offsets = [0, 0, 128], sizes = [4, 8, 128], strides = [1, 1, 1]} : vector<4x8x256xf32> to vector<4x8x128xf32>
    %86 = vector.extract_strided_slice %72 {offsets = [0, 0, 256], sizes = [4, 8, 128], strides = [1, 1, 1]} : vector<4x8x384xbf16> to vector<4x8x128xbf16>
    %87 = vector.extract_strided_slice %74 {offsets = [0, 0, 256], sizes = [4, 8, 128], strides = [1, 1, 1]} : vector<4x8x384xf32> to vector<4x8x128xf32>
    %88 = arith.addf %87, %3 : vector<4x8x128xf32>
    %89 = arith.mulf %84, %88 : vector<4x8x128xf32>
    %90 = arith.extf %86 : vector<4x8x128xbf16> to vector<4x8x128xf32>
    %91 = arith.addf %90, %89 : vector<4x8x128xf32>
    %92 = math.tanh %91 : vector<4x8x128xf32>
    %cst_29 = arith.constant 1.000000e+00 : f32
    %93 = vector.broadcast %cst_29 : f32 to vector<4x8x128xf32>
    %94 = arith.subf %93, %85 : vector<4x8x128xf32>
    %95 = arith.subf %92, %69 : vector<4x8x128xf32>
    %96 = arith.mulf %94, %95 : vector<4x8x128xf32>
    %97 = vector.broadcast %c2_i32 : i32 to vector<4x8x128xi32>
    %98 = arith.cmpi slt, %97, %4 : vector<4x8x128xi32>
    %cst_30 = arith.constant 0.000000e+00 : f32
    %99 = vector.broadcast %cst_30 : f32 to vector<4x8x128xf32>
    %100 = arith.select %98, %96, %99 : vector<4x8x128xi1>, vector<4x8x128xf32>
    %101 = arith.addf %69, %100 : vector<4x8x128xf32>
    %c3_i32 = arith.constant 3 : i32
    %102 = arith.index_cast %c3_i32 : i32 to index
    %c0_31 = arith.constant 0 : index
    %c0_32 = arith.constant 0 : index
    %c0_33 = arith.constant 0 : index
    %103 = vector.load %arg1[%102, %c0_31, %c0_32, %c0_33] : memref<16x4x8x384xbf16, #tpu.memory_space<vmem>>, vector<1x4x8x384xbf16>
    %104 = vector.shape_cast %103 : vector<1x4x8x384xbf16> to vector<4x8x384xbf16>
    %105 = arith.truncf %101 : vector<4x8x128xf32> to vector<4x8x128xbf16>
    "tpu.trace_start"() <{level = 10 : i32, message = "ebk,ekg->ebg"}> : () -> ()
    %cst_34 = arith.constant dense<0.000000e+00> : vector<4x8x384xf32>
    %106 = tpu.matmul %105, %0, %cst_34 {dimension_numbers = #tpu.dot_dimension_numbers<[2], [1], [1], [2], [0, 0, 0, 1, 1, 2], [0], [0]>} : vector<4x8x128xbf16>, vector<4x128x384xbf16>, vector<4x8x384xf32> -> vector<4x8x384xf32>
    "tpu.trace_stop"() : () -> ()
    %107 = vector.extract_strided_slice %104 {offsets = [0, 0, 0], sizes = [4, 8, 256], strides = [1, 1, 1]} : vector<4x8x384xbf16> to vector<4x8x256xbf16>
    %108 = vector.extract_strided_slice %106 {offsets = [0, 0, 0], sizes = [4, 8, 256], strides = [1, 1, 1]} : vector<4x8x384xf32> to vector<4x8x256xf32>
    %109 = arith.extf %107 : vector<4x8x256xbf16> to vector<4x8x256xf32>
    %110 = arith.addf %109, %108 : vector<4x8x256xf32>
    %111 = arith.negf %110 : vector<4x8x256xf32>
    %112 = math.exp %111 : vector<4x8x256xf32>
    %cst_35 = arith.constant 1.000000e+00 : f32
    %113 = vector.broadcast %cst_35 : f32 to vector<4x8x256xf32>
    %114 = arith.addf %113, %112 : vector<4x8x256xf32>
    %115 = arith.divf %113, %114 : vector<4x8x256xf32>
    %116 = vector.extract_strided_slice %115 {offsets = [0, 0, 0], sizes = [4, 8, 128], strides = [1, 1, 1]} : vector<4x8x256xf32> to vector<4x8x128xf32>
    %117 = vector.extract_strided_slice %115 {offsets = [0, 0, 128], sizes = [4, 8, 128], strides = [1, 1, 1]} : vector<4x8x256xf32> to vector<4x8x128xf32>
    %118 = vector.extract_strided_slice %104 {offsets = [0, 0, 256], sizes = [4, 8, 128], strides = [1, 1, 1]} : vector<4x8x384xbf16> to vector<4x8x128xbf16>
    %119 = vector.extract_strided_slice %106 {offsets = [0, 0, 256], sizes = [4, 8, 128], strides = [1, 1, 1]} : vector<4x8x384xf32> to vector<4x8x128xf32>
    %120 = arith.addf %119, %3 : vector<4x8x128xf32>
    %121 = arith.mulf %116, %120 : vector<4x8x128xf32>
    %122 = arith.extf %118 : vector<4x8x128xbf16> to vector<4x8x128xf32>
    %123 = arith.addf %122, %121 : vector<4x8x128xf32>
    %124 = math.tanh %123 : vector<4x8x128xf32>
    %cst_36 = arith.constant 1.000000e+00 : f32
    %125 = vector.broadcast %cst_36 : f32 to vector<4x8x128xf32>
    %126 = arith.subf %125, %117 : vector<4x8x128xf32>
    %127 = arith.subf %124, %101 : vector<4x8x128xf32>
    %128 = arith.mulf %126, %127 : vector<4x8x128xf32>
    %129 = vector.broadcast %c3_i32 : i32 to vector<4x8x128xi32>
    %130 = arith.cmpi slt, %129, %4 : vector<4x8x128xi32>
    %cst_37 = arith.constant 0.000000e+00 : f32
    %131 = vector.broadcast %cst_37 : f32 to vector<4x8x128xf32>
    %132 = arith.select %130, %128, %131 : vector<4x8x128xi1>, vector<4x8x128xf32>
    %133 = arith.addf %101, %132 : vector<4x8x128xf32>
    %c4_i32 = arith.constant 4 : i32
    %134 = arith.index_cast %c4_i32 : i32 to index
    %c0_38 = arith.constant 0 : index
    %c0_39 = arith.constant 0 : index
    %c0_40 = arith.constant 0 : index
    %135 = vector.load %arg1[%134, %c0_38, %c0_39, %c0_40] : memref<16x4x8x384xbf16, #tpu.memory_space<vmem>>, vector<1x4x8x384xbf16>
    %136 = vector.shape_cast %135 : vector<1x4x8x384xbf16> to vector<4x8x384xbf16>
    %137 = arith.truncf %133 : vector<4x8x128xf32> to vector<4x8x128xbf16>
    "tpu.trace_start"() <{level = 10 : i32, message = "ebk,ekg->ebg"}> : () -> ()
    %cst_41 = arith.constant dense<0.000000e+00> : vector<4x8x384xf32>
    %138 = tpu.matmul %137, %0, %cst_41 {dimension_numbers = #tpu.dot_dimension_numbers<[2], [1], [1], [2], [0, 0, 0, 1, 1, 2], [0], [0]>} : vector<4x8x128xbf16>, vector<4x128x384xbf16>, vector<4x8x384xf32> -> vector<4x8x384xf32>
    "tpu.trace_stop"() : () -> ()
    %139 = vector.extract_strided_slice %136 {offsets = [0, 0, 0], sizes = [4, 8, 256], strides = [1, 1, 1]} : vector<4x8x384xbf16> to vector<4x8x256xbf16>
    %140 = vector.extract_strided_slice %138 {offsets = [0, 0, 0], sizes = [4, 8, 256], strides = [1, 1, 1]} : vector<4x8x384xf32> to vector<4x8x256xf32>
    %141 = arith.extf %139 : vector<4x8x256xbf16> to vector<4x8x256xf32>
    %142 = arith.addf %141, %140 : vector<4x8x256xf32>
    %143 = arith.negf %142 : vector<4x8x256xf32>
    %144 = math.exp %143 : vector<4x8x256xf32>
    %cst_42 = arith.constant 1.000000e+00 : f32
    %145 = vector.broadcast %cst_42 : f32 to vector<4x8x256xf32>
    %146 = arith.addf %145, %144 : vector<4x8x256xf32>
    %147 = arith.divf %145, %146 : vector<4x8x256xf32>
    %148 = vector.extract_strided_slice %147 {offsets = [0, 0, 0], sizes = [4, 8, 128], strides = [1, 1, 1]} : vector<4x8x256xf32> to vector<4x8x128xf32>
    %149 = vector.extract_strided_slice %147 {offsets = [0, 0, 128], sizes = [4, 8, 128], strides = [1, 1, 1]} : vector<4x8x256xf32> to vector<4x8x128xf32>
    %150 = vector.extract_strided_slice %136 {offsets = [0, 0, 256], sizes = [4, 8, 128], strides = [1, 1, 1]} : vector<4x8x384xbf16> to vector<4x8x128xbf16>
    %151 = vector.extract_strided_slice %138 {offsets = [0, 0, 256], sizes = [4, 8, 128], strides = [1, 1, 1]} : vector<4x8x384xf32> to vector<4x8x128xf32>
    %152 = arith.addf %151, %3 : vector<4x8x128xf32>
    %153 = arith.mulf %148, %152 : vector<4x8x128xf32>
    %154 = arith.extf %150 : vector<4x8x128xbf16> to vector<4x8x128xf32>
    %155 = arith.addf %154, %153 : vector<4x8x128xf32>
    %156 = math.tanh %155 : vector<4x8x128xf32>
    %cst_43 = arith.constant 1.000000e+00 : f32
    %157 = vector.broadcast %cst_43 : f32 to vector<4x8x128xf32>
    %158 = arith.subf %157, %149 : vector<4x8x128xf32>
    %159 = arith.subf %156, %133 : vector<4x8x128xf32>
    %160 = arith.mulf %158, %159 : vector<4x8x128xf32>
    %161 = vector.broadcast %c4_i32 : i32 to vector<4x8x128xi32>
    %162 = arith.cmpi slt, %161, %4 : vector<4x8x128xi32>
    %cst_44 = arith.constant 0.000000e+00 : f32
    %163 = vector.broadcast %cst_44 : f32 to vector<4x8x128xf32>
    %164 = arith.select %162, %160, %163 : vector<4x8x128xi1>, vector<4x8x128xf32>
    %165 = arith.addf %133, %164 : vector<4x8x128xf32>
    %c5_i32 = arith.constant 5 : i32
    %166 = arith.index_cast %c5_i32 : i32 to index
    %c0_45 = arith.constant 0 : index
    %c0_46 = arith.constant 0 : index
    %c0_47 = arith.constant 0 : index
    %167 = vector.load %arg1[%166, %c0_45, %c0_46, %c0_47] : memref<16x4x8x384xbf16, #tpu.memory_space<vmem>>, vector<1x4x8x384xbf16>
    %168 = vector.shape_cast %167 : vector<1x4x8x384xbf16> to vector<4x8x384xbf16>
    %169 = arith.truncf %165 : vector<4x8x128xf32> to vector<4x8x128xbf16>
    "tpu.trace_start"() <{level = 10 : i32, message = "ebk,ekg->ebg"}> : () -> ()
    %cst_48 = arith.constant dense<0.000000e+00> : vector<4x8x384xf32>
    %170 = tpu.matmul %169, %0, %cst_48 {dimension_numbers = #tpu.dot_dimension_numbers<[2], [1], [1], [2], [0, 0, 0, 1, 1, 2], [0], [0]>} : vector<4x8x128xbf16>, vector<4x128x384xbf16>, vector<4x8x384xf32> -> vector<4x8x384xf32>
    "tpu.trace_stop"() : () -> ()
    %171 = vector.extract_strided_slice %168 {offsets = [0, 0, 0], sizes = [4, 8, 256], strides = [1, 1, 1]} : vector<4x8x384xbf16> to vector<4x8x256xbf16>
    %172 = vector.extract_strided_slice %170 {offsets = [0, 0, 0], sizes = [4, 8, 256], strides = [1, 1, 1]} : vector<4x8x384xf32> to vector<4x8x256xf32>
    %173 = arith.extf %171 : vector<4x8x256xbf16> to vector<4x8x256xf32>
    %174 = arith.addf %173, %172 : vector<4x8x256xf32>
    %175 = arith.negf %174 : vector<4x8x256xf32>
    %176 = math.exp %175 : vector<4x8x256xf32>
    %cst_49 = arith.constant 1.000000e+00 : f32
    %177 = vector.broadcast %cst_49 : f32 to vector<4x8x256xf32>
    %178 = arith.addf %177, %176 : vector<4x8x256xf32>
    %179 = arith.divf %177, %178 : vector<4x8x256xf32>
    %180 = vector.extract_strided_slice %179 {offsets = [0, 0, 0], sizes = [4, 8, 128], strides = [1, 1, 1]} : vector<4x8x256xf32> to vector<4x8x128xf32>
    %181 = vector.extract_strided_slice %179 {offsets = [0, 0, 128], sizes = [4, 8, 128], strides = [1, 1, 1]} : vector<4x8x256xf32> to vector<4x8x128xf32>
    %182 = vector.extract_strided_slice %168 {offsets = [0, 0, 256], sizes = [4, 8, 128], strides = [1, 1, 1]} : vector<4x8x384xbf16> to vector<4x8x128xbf16>
    %183 = vector.extract_strided_slice %170 {offsets = [0, 0, 256], sizes = [4, 8, 128], strides = [1, 1, 1]} : vector<4x8x384xf32> to vector<4x8x128xf32>
    %184 = arith.addf %183, %3 : vector<4x8x128xf32>
    %185 = arith.mulf %180, %184 : vector<4x8x128xf32>
    %186 = arith.extf %182 : vector<4x8x128xbf16> to vector<4x8x128xf32>
    %187 = arith.addf %186, %185 : vector<4x8x128xf32>
    %188 = math.tanh %187 : vector<4x8x128xf32>
    %cst_50 = arith.constant 1.000000e+00 : f32
    %189 = vector.broadcast %cst_50 : f32 to vector<4x8x128xf32>
    %190 = arith.subf %189, %181 : vector<4x8x128xf32>
    %191 = arith.subf %188, %165 : vector<4x8x128xf32>
    %192 = arith.mulf %190, %191 : vector<4x8x128xf32>
    %193 = vector.broadcast %c5_i32 : i32 to vector<4x8x128xi32>
    %194 = arith.cmpi slt, %193, %4 : vector<4x8x128xi32>
    %cst_51 = arith.constant 0.000000e+00 : f32
    %195 = vector.broadcast %cst_51 : f32 to vector<4x8x128xf32>
    %196 = arith.select %194, %192, %195 : vector<4x8x128xi1>, vector<4x8x128xf32>
    %197 = arith.addf %165, %196 : vector<4x8x128xf32>
    %c6_i32 = arith.constant 6 : i32
    %198 = arith.index_cast %c6_i32 : i32 to index
    %c0_52 = arith.constant 0 : index
    %c0_53 = arith.constant 0 : index
    %c0_54 = arith.constant 0 : index
    %199 = vector.load %arg1[%198, %c0_52, %c0_53, %c0_54] : memref<16x4x8x384xbf16, #tpu.memory_space<vmem>>, vector<1x4x8x384xbf16>
    %200 = vector.shape_cast %199 : vector<1x4x8x384xbf16> to vector<4x8x384xbf16>
    %201 = arith.truncf %197 : vector<4x8x128xf32> to vector<4x8x128xbf16>
    "tpu.trace_start"() <{level = 10 : i32, message = "ebk,ekg->ebg"}> : () -> ()
    %cst_55 = arith.constant dense<0.000000e+00> : vector<4x8x384xf32>
    %202 = tpu.matmul %201, %0, %cst_55 {dimension_numbers = #tpu.dot_dimension_numbers<[2], [1], [1], [2], [0, 0, 0, 1, 1, 2], [0], [0]>} : vector<4x8x128xbf16>, vector<4x128x384xbf16>, vector<4x8x384xf32> -> vector<4x8x384xf32>
    "tpu.trace_stop"() : () -> ()
    %203 = vector.extract_strided_slice %200 {offsets = [0, 0, 0], sizes = [4, 8, 256], strides = [1, 1, 1]} : vector<4x8x384xbf16> to vector<4x8x256xbf16>
    %204 = vector.extract_strided_slice %202 {offsets = [0, 0, 0], sizes = [4, 8, 256], strides = [1, 1, 1]} : vector<4x8x384xf32> to vector<4x8x256xf32>
    %205 = arith.extf %203 : vector<4x8x256xbf16> to vector<4x8x256xf32>
    %206 = arith.addf %205, %204 : vector<4x8x256xf32>
    %207 = arith.negf %206 : vector<4x8x256xf32>
    %208 = math.exp %207 : vector<4x8x256xf32>
    %cst_56 = arith.constant 1.000000e+00 : f32
    %209 = vector.broadcast %cst_56 : f32 to vector<4x8x256xf32>
    %210 = arith.addf %209, %208 : vector<4x8x256xf32>
    %211 = arith.divf %209, %210 : vector<4x8x256xf32>
    %212 = vector.extract_strided_slice %211 {offsets = [0, 0, 0], sizes = [4, 8, 128], strides = [1, 1, 1]} : vector<4x8x256xf32> to vector<4x8x128xf32>
    %213 = vector.extract_strided_slice %211 {offsets = [0, 0, 128], sizes = [4, 8, 128], strides = [1, 1, 1]} : vector<4x8x256xf32> to vector<4x8x128xf32>
    %214 = vector.extract_strided_slice %200 {offsets = [0, 0, 256], sizes = [4, 8, 128], strides = [1, 1, 1]} : vector<4x8x384xbf16> to vector<4x8x128xbf16>
    %215 = vector.extract_strided_slice %202 {offsets = [0, 0, 256], sizes = [4, 8, 128], strides = [1, 1, 1]} : vector<4x8x384xf32> to vector<4x8x128xf32>
    %216 = arith.addf %215, %3 : vector<4x8x128xf32>
    %217 = arith.mulf %212, %216 : vector<4x8x128xf32>
    %218 = arith.extf %214 : vector<4x8x128xbf16> to vector<4x8x128xf32>
    %219 = arith.addf %218, %217 : vector<4x8x128xf32>
    %220 = math.tanh %219 : vector<4x8x128xf32>
    %cst_57 = arith.constant 1.000000e+00 : f32
    %221 = vector.broadcast %cst_57 : f32 to vector<4x8x128xf32>
    %222 = arith.subf %221, %213 : vector<4x8x128xf32>
    %223 = arith.subf %220, %197 : vector<4x8x128xf32>
    %224 = arith.mulf %222, %223 : vector<4x8x128xf32>
    %225 = vector.broadcast %c6_i32 : i32 to vector<4x8x128xi32>
    %226 = arith.cmpi slt, %225, %4 : vector<4x8x128xi32>
    %cst_58 = arith.constant 0.000000e+00 : f32
    %227 = vector.broadcast %cst_58 : f32 to vector<4x8x128xf32>
    %228 = arith.select %226, %224, %227 : vector<4x8x128xi1>, vector<4x8x128xf32>
    %229 = arith.addf %197, %228 : vector<4x8x128xf32>
    %c7_i32 = arith.constant 7 : i32
    %230 = arith.index_cast %c7_i32 : i32 to index
    %c0_59 = arith.constant 0 : index
    %c0_60 = arith.constant 0 : index
    %c0_61 = arith.constant 0 : index
    %231 = vector.load %arg1[%230, %c0_59, %c0_60, %c0_61] : memref<16x4x8x384xbf16, #tpu.memory_space<vmem>>, vector<1x4x8x384xbf16>
    %232 = vector.shape_cast %231 : vector<1x4x8x384xbf16> to vector<4x8x384xbf16>
    %233 = arith.truncf %229 : vector<4x8x128xf32> to vector<4x8x128xbf16>
    "tpu.trace_start"() <{level = 10 : i32, message = "ebk,ekg->ebg"}> : () -> ()
    %cst_62 = arith.constant dense<0.000000e+00> : vector<4x8x384xf32>
    %234 = tpu.matmul %233, %0, %cst_62 {dimension_numbers = #tpu.dot_dimension_numbers<[2], [1], [1], [2], [0, 0, 0, 1, 1, 2], [0], [0]>} : vector<4x8x128xbf16>, vector<4x128x384xbf16>, vector<4x8x384xf32> -> vector<4x8x384xf32>
    "tpu.trace_stop"() : () -> ()
    %235 = vector.extract_strided_slice %232 {offsets = [0, 0, 0], sizes = [4, 8, 256], strides = [1, 1, 1]} : vector<4x8x384xbf16> to vector<4x8x256xbf16>
    %236 = vector.extract_strided_slice %234 {offsets = [0, 0, 0], sizes = [4, 8, 256], strides = [1, 1, 1]} : vector<4x8x384xf32> to vector<4x8x256xf32>
    %237 = arith.extf %235 : vector<4x8x256xbf16> to vector<4x8x256xf32>
    %238 = arith.addf %237, %236 : vector<4x8x256xf32>
    %239 = arith.negf %238 : vector<4x8x256xf32>
    %240 = math.exp %239 : vector<4x8x256xf32>
    %cst_63 = arith.constant 1.000000e+00 : f32
    %241 = vector.broadcast %cst_63 : f32 to vector<4x8x256xf32>
    %242 = arith.addf %241, %240 : vector<4x8x256xf32>
    %243 = arith.divf %241, %242 : vector<4x8x256xf32>
    %244 = vector.extract_strided_slice %243 {offsets = [0, 0, 0], sizes = [4, 8, 128], strides = [1, 1, 1]} : vector<4x8x256xf32> to vector<4x8x128xf32>
    %245 = vector.extract_strided_slice %243 {offsets = [0, 0, 128], sizes = [4, 8, 128], strides = [1, 1, 1]} : vector<4x8x256xf32> to vector<4x8x128xf32>
    %246 = vector.extract_strided_slice %232 {offsets = [0, 0, 256], sizes = [4, 8, 128], strides = [1, 1, 1]} : vector<4x8x384xbf16> to vector<4x8x128xbf16>
    %247 = vector.extract_strided_slice %234 {offsets = [0, 0, 256], sizes = [4, 8, 128], strides = [1, 1, 1]} : vector<4x8x384xf32> to vector<4x8x128xf32>
    %248 = arith.addf %247, %3 : vector<4x8x128xf32>
    %249 = arith.mulf %244, %248 : vector<4x8x128xf32>
    %250 = arith.extf %246 : vector<4x8x128xbf16> to vector<4x8x128xf32>
    %251 = arith.addf %250, %249 : vector<4x8x128xf32>
    %252 = math.tanh %251 : vector<4x8x128xf32>
    %cst_64 = arith.constant 1.000000e+00 : f32
    %253 = vector.broadcast %cst_64 : f32 to vector<4x8x128xf32>
    %254 = arith.subf %253, %245 : vector<4x8x128xf32>
    %255 = arith.subf %252, %229 : vector<4x8x128xf32>
    %256 = arith.mulf %254, %255 : vector<4x8x128xf32>
    %257 = vector.broadcast %c7_i32 : i32 to vector<4x8x128xi32>
    %258 = arith.cmpi slt, %257, %4 : vector<4x8x128xi32>
    %cst_65 = arith.constant 0.000000e+00 : f32
    %259 = vector.broadcast %cst_65 : f32 to vector<4x8x128xf32>
    %260 = arith.select %258, %256, %259 : vector<4x8x128xi1>, vector<4x8x128xf32>
    %261 = arith.addf %229, %260 : vector<4x8x128xf32>
    %c8_i32 = arith.constant 8 : i32
    %262 = arith.index_cast %c8_i32 : i32 to index
    %c0_66 = arith.constant 0 : index
    %c0_67 = arith.constant 0 : index
    %c0_68 = arith.constant 0 : index
    %263 = vector.load %arg1[%262, %c0_66, %c0_67, %c0_68] : memref<16x4x8x384xbf16, #tpu.memory_space<vmem>>, vector<1x4x8x384xbf16>
    %264 = vector.shape_cast %263 : vector<1x4x8x384xbf16> to vector<4x8x384xbf16>
    %265 = arith.truncf %261 : vector<4x8x128xf32> to vector<4x8x128xbf16>
    "tpu.trace_start"() <{level = 10 : i32, message = "ebk,ekg->ebg"}> : () -> ()
    %cst_69 = arith.constant dense<0.000000e+00> : vector<4x8x384xf32>
    %266 = tpu.matmul %265, %0, %cst_69 {dimension_numbers = #tpu.dot_dimension_numbers<[2], [1], [1], [2], [0, 0, 0, 1, 1, 2], [0], [0]>} : vector<4x8x128xbf16>, vector<4x128x384xbf16>, vector<4x8x384xf32> -> vector<4x8x384xf32>
    "tpu.trace_stop"() : () -> ()
    %267 = vector.extract_strided_slice %264 {offsets = [0, 0, 0], sizes = [4, 8, 256], strides = [1, 1, 1]} : vector<4x8x384xbf16> to vector<4x8x256xbf16>
    %268 = vector.extract_strided_slice %266 {offsets = [0, 0, 0], sizes = [4, 8, 256], strides = [1, 1, 1]} : vector<4x8x384xf32> to vector<4x8x256xf32>
    %269 = arith.extf %267 : vector<4x8x256xbf16> to vector<4x8x256xf32>
    %270 = arith.addf %269, %268 : vector<4x8x256xf32>
    %271 = arith.negf %270 : vector<4x8x256xf32>
    %272 = math.exp %271 : vector<4x8x256xf32>
    %cst_70 = arith.constant 1.000000e+00 : f32
    %273 = vector.broadcast %cst_70 : f32 to vector<4x8x256xf32>
    %274 = arith.addf %273, %272 : vector<4x8x256xf32>
    %275 = arith.divf %273, %274 : vector<4x8x256xf32>
    %276 = vector.extract_strided_slice %275 {offsets = [0, 0, 0], sizes = [4, 8, 128], strides = [1, 1, 1]} : vector<4x8x256xf32> to vector<4x8x128xf32>
    %277 = vector.extract_strided_slice %275 {offsets = [0, 0, 128], sizes = [4, 8, 128], strides = [1, 1, 1]} : vector<4x8x256xf32> to vector<4x8x128xf32>
    %278 = vector.extract_strided_slice %264 {offsets = [0, 0, 256], sizes = [4, 8, 128], strides = [1, 1, 1]} : vector<4x8x384xbf16> to vector<4x8x128xbf16>
    %279 = vector.extract_strided_slice %266 {offsets = [0, 0, 256], sizes = [4, 8, 128], strides = [1, 1, 1]} : vector<4x8x384xf32> to vector<4x8x128xf32>
    %280 = arith.addf %279, %3 : vector<4x8x128xf32>
    %281 = arith.mulf %276, %280 : vector<4x8x128xf32>
    %282 = arith.extf %278 : vector<4x8x128xbf16> to vector<4x8x128xf32>
    %283 = arith.addf %282, %281 : vector<4x8x128xf32>
    %284 = math.tanh %283 : vector<4x8x128xf32>
    %cst_71 = arith.constant 1.000000e+00 : f32
    %285 = vector.broadcast %cst_71 : f32 to vector<4x8x128xf32>
    %286 = arith.subf %285, %277 : vector<4x8x128xf32>
    %287 = arith.subf %284, %261 : vector<4x8x128xf32>
    %288 = arith.mulf %286, %287 : vector<4x8x128xf32>
    %289 = vector.broadcast %c8_i32 : i32 to vector<4x8x128xi32>
    %290 = arith.cmpi slt, %289, %4 : vector<4x8x128xi32>
    %cst_72 = arith.constant 0.000000e+00 : f32
    %291 = vector.broadcast %cst_72 : f32 to vector<4x8x128xf32>
    %292 = arith.select %290, %288, %291 : vector<4x8x128xi1>, vector<4x8x128xf32>
    %293 = arith.addf %261, %292 : vector<4x8x128xf32>
    %c9_i32 = arith.constant 9 : i32
    %294 = arith.index_cast %c9_i32 : i32 to index
    %c0_73 = arith.constant 0 : index
    %c0_74 = arith.constant 0 : index
    %c0_75 = arith.constant 0 : index
    %295 = vector.load %arg1[%294, %c0_73, %c0_74, %c0_75] : memref<16x4x8x384xbf16, #tpu.memory_space<vmem>>, vector<1x4x8x384xbf16>
    %296 = vector.shape_cast %295 : vector<1x4x8x384xbf16> to vector<4x8x384xbf16>
    %297 = arith.truncf %293 : vector<4x8x128xf32> to vector<4x8x128xbf16>
    "tpu.trace_start"() <{level = 10 : i32, message = "ebk,ekg->ebg"}> : () -> ()
    %cst_76 = arith.constant dense<0.000000e+00> : vector<4x8x384xf32>
    %298 = tpu.matmul %297, %0, %cst_76 {dimension_numbers = #tpu.dot_dimension_numbers<[2], [1], [1], [2], [0, 0, 0, 1, 1, 2], [0], [0]>} : vector<4x8x128xbf16>, vector<4x128x384xbf16>, vector<4x8x384xf32> -> vector<4x8x384xf32>
    "tpu.trace_stop"() : () -> ()
    %299 = vector.extract_strided_slice %296 {offsets = [0, 0, 0], sizes = [4, 8, 256], strides = [1, 1, 1]} : vector<4x8x384xbf16> to vector<4x8x256xbf16>
    %300 = vector.extract_strided_slice %298 {offsets = [0, 0, 0], sizes = [4, 8, 256], strides = [1, 1, 1]} : vector<4x8x384xf32> to vector<4x8x256xf32>
    %301 = arith.extf %299 : vector<4x8x256xbf16> to vector<4x8x256xf32>
    %302 = arith.addf %301, %300 : vector<4x8x256xf32>
    %303 = arith.negf %302 : vector<4x8x256xf32>
    %304 = math.exp %303 : vector<4x8x256xf32>
    %cst_77 = arith.constant 1.000000e+00 : f32
    %305 = vector.broadcast %cst_77 : f32 to vector<4x8x256xf32>
    %306 = arith.addf %305, %304 : vector<4x8x256xf32>
    %307 = arith.divf %305, %306 : vector<4x8x256xf32>
    %308 = vector.extract_strided_slice %307 {offsets = [0, 0, 0], sizes = [4, 8, 128], strides = [1, 1, 1]} : vector<4x8x256xf32> to vector<4x8x128xf32>
    %309 = vector.extract_strided_slice %307 {offsets = [0, 0, 128], sizes = [4, 8, 128], strides = [1, 1, 1]} : vector<4x8x256xf32> to vector<4x8x128xf32>
    %310 = vector.extract_strided_slice %296 {offsets = [0, 0, 256], sizes = [4, 8, 128], strides = [1, 1, 1]} : vector<4x8x384xbf16> to vector<4x8x128xbf16>
    %311 = vector.extract_strided_slice %298 {offsets = [0, 0, 256], sizes = [4, 8, 128], strides = [1, 1, 1]} : vector<4x8x384xf32> to vector<4x8x128xf32>
    %312 = arith.addf %311, %3 : vector<4x8x128xf32>
    %313 = arith.mulf %308, %312 : vector<4x8x128xf32>
    %314 = arith.extf %310 : vector<4x8x128xbf16> to vector<4x8x128xf32>
    %315 = arith.addf %314, %313 : vector<4x8x128xf32>
    %316 = math.tanh %315 : vector<4x8x128xf32>
    %cst_78 = arith.constant 1.000000e+00 : f32
    %317 = vector.broadcast %cst_78 : f32 to vector<4x8x128xf32>
    %318 = arith.subf %317, %309 : vector<4x8x128xf32>
    %319 = arith.subf %316, %293 : vector<4x8x128xf32>
    %320 = arith.mulf %318, %319 : vector<4x8x128xf32>
    %321 = vector.broadcast %c9_i32 : i32 to vector<4x8x128xi32>
    %322 = arith.cmpi slt, %321, %4 : vector<4x8x128xi32>
    %cst_79 = arith.constant 0.000000e+00 : f32
    %323 = vector.broadcast %cst_79 : f32 to vector<4x8x128xf32>
    %324 = arith.select %322, %320, %323 : vector<4x8x128xi1>, vector<4x8x128xf32>
    %325 = arith.addf %293, %324 : vector<4x8x128xf32>
    %c10_i32 = arith.constant 10 : i32
    %326 = arith.index_cast %c10_i32 : i32 to index
    %c0_80 = arith.constant 0 : index
    %c0_81 = arith.constant 0 : index
    %c0_82 = arith.constant 0 : index
    %327 = vector.load %arg1[%326, %c0_80, %c0_81, %c0_82] : memref<16x4x8x384xbf16, #tpu.memory_space<vmem>>, vector<1x4x8x384xbf16>
    %328 = vector.shape_cast %327 : vector<1x4x8x384xbf16> to vector<4x8x384xbf16>
    %329 = arith.truncf %325 : vector<4x8x128xf32> to vector<4x8x128xbf16>
    "tpu.trace_start"() <{level = 10 : i32, message = "ebk,ekg->ebg"}> : () -> ()
    %cst_83 = arith.constant dense<0.000000e+00> : vector<4x8x384xf32>
    %330 = tpu.matmul %329, %0, %cst_83 {dimension_numbers = #tpu.dot_dimension_numbers<[2], [1], [1], [2], [0, 0, 0, 1, 1, 2], [0], [0]>} : vector<4x8x128xbf16>, vector<4x128x384xbf16>, vector<4x8x384xf32> -> vector<4x8x384xf32>
    "tpu.trace_stop"() : () -> ()
    %331 = vector.extract_strided_slice %328 {offsets = [0, 0, 0], sizes = [4, 8, 256], strides = [1, 1, 1]} : vector<4x8x384xbf16> to vector<4x8x256xbf16>
    %332 = vector.extract_strided_slice %330 {offsets = [0, 0, 0], sizes = [4, 8, 256], strides = [1, 1, 1]} : vector<4x8x384xf32> to vector<4x8x256xf32>
    %333 = arith.extf %331 : vector<4x8x256xbf16> to vector<4x8x256xf32>
    %334 = arith.addf %333, %332 : vector<4x8x256xf32>
    %335 = arith.negf %334 : vector<4x8x256xf32>
    %336 = math.exp %335 : vector<4x8x256xf32>
    %cst_84 = arith.constant 1.000000e+00 : f32
    %337 = vector.broadcast %cst_84 : f32 to vector<4x8x256xf32>
    %338 = arith.addf %337, %336 : vector<4x8x256xf32>
    %339 = arith.divf %337, %338 : vector<4x8x256xf32>
    %340 = vector.extract_strided_slice %339 {offsets = [0, 0, 0], sizes = [4, 8, 128], strides = [1, 1, 1]} : vector<4x8x256xf32> to vector<4x8x128xf32>
    %341 = vector.extract_strided_slice %339 {offsets = [0, 0, 128], sizes = [4, 8, 128], strides = [1, 1, 1]} : vector<4x8x256xf32> to vector<4x8x128xf32>
    %342 = vector.extract_strided_slice %328 {offsets = [0, 0, 256], sizes = [4, 8, 128], strides = [1, 1, 1]} : vector<4x8x384xbf16> to vector<4x8x128xbf16>
    %343 = vector.extract_strided_slice %330 {offsets = [0, 0, 256], sizes = [4, 8, 128], strides = [1, 1, 1]} : vector<4x8x384xf32> to vector<4x8x128xf32>
    %344 = arith.addf %343, %3 : vector<4x8x128xf32>
    %345 = arith.mulf %340, %344 : vector<4x8x128xf32>
    %346 = arith.extf %342 : vector<4x8x128xbf16> to vector<4x8x128xf32>
    %347 = arith.addf %346, %345 : vector<4x8x128xf32>
    %348 = math.tanh %347 : vector<4x8x128xf32>
    %cst_85 = arith.constant 1.000000e+00 : f32
    %349 = vector.broadcast %cst_85 : f32 to vector<4x8x128xf32>
    %350 = arith.subf %349, %341 : vector<4x8x128xf32>
    %351 = arith.subf %348, %325 : vector<4x8x128xf32>
    %352 = arith.mulf %350, %351 : vector<4x8x128xf32>
    %353 = vector.broadcast %c10_i32 : i32 to vector<4x8x128xi32>
    %354 = arith.cmpi slt, %353, %4 : vector<4x8x128xi32>
    %cst_86 = arith.constant 0.000000e+00 : f32
    %355 = vector.broadcast %cst_86 : f32 to vector<4x8x128xf32>
    %356 = arith.select %354, %352, %355 : vector<4x8x128xi1>, vector<4x8x128xf32>
    %357 = arith.addf %325, %356 : vector<4x8x128xf32>
    %c11_i32 = arith.constant 11 : i32
    %358 = arith.index_cast %c11_i32 : i32 to index
    %c0_87 = arith.constant 0 : index
    %c0_88 = arith.constant 0 : index
    %c0_89 = arith.constant 0 : index
    %359 = vector.load %arg1[%358, %c0_87, %c0_88, %c0_89] : memref<16x4x8x384xbf16, #tpu.memory_space<vmem>>, vector<1x4x8x384xbf16>
    %360 = vector.shape_cast %359 : vector<1x4x8x384xbf16> to vector<4x8x384xbf16>
    %361 = arith.truncf %357 : vector<4x8x128xf32> to vector<4x8x128xbf16>
    "tpu.trace_start"() <{level = 10 : i32, message = "ebk,ekg->ebg"}> : () -> ()
    %cst_90 = arith.constant dense<0.000000e+00> : vector<4x8x384xf32>
    %362 = tpu.matmul %361, %0, %cst_90 {dimension_numbers = #tpu.dot_dimension_numbers<[2], [1], [1], [2], [0, 0, 0, 1, 1, 2], [0], [0]>} : vector<4x8x128xbf16>, vector<4x128x384xbf16>, vector<4x8x384xf32> -> vector<4x8x384xf32>
    "tpu.trace_stop"() : () -> ()
    %363 = vector.extract_strided_slice %360 {offsets = [0, 0, 0], sizes = [4, 8, 256], strides = [1, 1, 1]} : vector<4x8x384xbf16> to vector<4x8x256xbf16>
    %364 = vector.extract_strided_slice %362 {offsets = [0, 0, 0], sizes = [4, 8, 256], strides = [1, 1, 1]} : vector<4x8x384xf32> to vector<4x8x256xf32>
    %365 = arith.extf %363 : vector<4x8x256xbf16> to vector<4x8x256xf32>
    %366 = arith.addf %365, %364 : vector<4x8x256xf32>
    %367 = arith.negf %366 : vector<4x8x256xf32>
    %368 = math.exp %367 : vector<4x8x256xf32>
    %cst_91 = arith.constant 1.000000e+00 : f32
    %369 = vector.broadcast %cst_91 : f32 to vector<4x8x256xf32>
    %370 = arith.addf %369, %368 : vector<4x8x256xf32>
    %371 = arith.divf %369, %370 : vector<4x8x256xf32>
    %372 = vector.extract_strided_slice %371 {offsets = [0, 0, 0], sizes = [4, 8, 128], strides = [1, 1, 1]} : vector<4x8x256xf32> to vector<4x8x128xf32>
    %373 = vector.extract_strided_slice %371 {offsets = [0, 0, 128], sizes = [4, 8, 128], strides = [1, 1, 1]} : vector<4x8x256xf32> to vector<4x8x128xf32>
    %374 = vector.extract_strided_slice %360 {offsets = [0, 0, 256], sizes = [4, 8, 128], strides = [1, 1, 1]} : vector<4x8x384xbf16> to vector<4x8x128xbf16>
    %375 = vector.extract_strided_slice %362 {offsets = [0, 0, 256], sizes = [4, 8, 128], strides = [1, 1, 1]} : vector<4x8x384xf32> to vector<4x8x128xf32>
    %376 = arith.addf %375, %3 : vector<4x8x128xf32>
    %377 = arith.mulf %372, %376 : vector<4x8x128xf32>
    %378 = arith.extf %374 : vector<4x8x128xbf16> to vector<4x8x128xf32>
    %379 = arith.addf %378, %377 : vector<4x8x128xf32>
    %380 = math.tanh %379 : vector<4x8x128xf32>
    %cst_92 = arith.constant 1.000000e+00 : f32
    %381 = vector.broadcast %cst_92 : f32 to vector<4x8x128xf32>
    %382 = arith.subf %381, %373 : vector<4x8x128xf32>
    %383 = arith.subf %380, %357 : vector<4x8x128xf32>
    %384 = arith.mulf %382, %383 : vector<4x8x128xf32>
    %385 = vector.broadcast %c11_i32 : i32 to vector<4x8x128xi32>
    %386 = arith.cmpi slt, %385, %4 : vector<4x8x128xi32>
    %cst_93 = arith.constant 0.000000e+00 : f32
    %387 = vector.broadcast %cst_93 : f32 to vector<4x8x128xf32>
    %388 = arith.select %386, %384, %387 : vector<4x8x128xi1>, vector<4x8x128xf32>
    %389 = arith.addf %357, %388 : vector<4x8x128xf32>
    %c12_i32 = arith.constant 12 : i32
    %390 = arith.index_cast %c12_i32 : i32 to index
    %c0_94 = arith.constant 0 : index
    %c0_95 = arith.constant 0 : index
    %c0_96 = arith.constant 0 : index
    %391 = vector.load %arg1[%390, %c0_94, %c0_95, %c0_96] : memref<16x4x8x384xbf16, #tpu.memory_space<vmem>>, vector<1x4x8x384xbf16>
    %392 = vector.shape_cast %391 : vector<1x4x8x384xbf16> to vector<4x8x384xbf16>
    %393 = arith.truncf %389 : vector<4x8x128xf32> to vector<4x8x128xbf16>
    "tpu.trace_start"() <{level = 10 : i32, message = "ebk,ekg->ebg"}> : () -> ()
    %cst_97 = arith.constant dense<0.000000e+00> : vector<4x8x384xf32>
    %394 = tpu.matmul %393, %0, %cst_97 {dimension_numbers = #tpu.dot_dimension_numbers<[2], [1], [1], [2], [0, 0, 0, 1, 1, 2], [0], [0]>} : vector<4x8x128xbf16>, vector<4x128x384xbf16>, vector<4x8x384xf32> -> vector<4x8x384xf32>
    "tpu.trace_stop"() : () -> ()
    %395 = vector.extract_strided_slice %392 {offsets = [0, 0, 0], sizes = [4, 8, 256], strides = [1, 1, 1]} : vector<4x8x384xbf16> to vector<4x8x256xbf16>
    %396 = vector.extract_strided_slice %394 {offsets = [0, 0, 0], sizes = [4, 8, 256], strides = [1, 1, 1]} : vector<4x8x384xf32> to vector<4x8x256xf32>
    %397 = arith.extf %395 : vector<4x8x256xbf16> to vector<4x8x256xf32>
    %398 = arith.addf %397, %396 : vector<4x8x256xf32>
    %399 = arith.negf %398 : vector<4x8x256xf32>
    %400 = math.exp %399 : vector<4x8x256xf32>
    %cst_98 = arith.constant 1.000000e+00 : f32
    %401 = vector.broadcast %cst_98 : f32 to vector<4x8x256xf32>
    %402 = arith.addf %401, %400 : vector<4x8x256xf32>
    %403 = arith.divf %401, %402 : vector<4x8x256xf32>
    %404 = vector.extract_strided_slice %403 {offsets = [0, 0, 0], sizes = [4, 8, 128], strides = [1, 1, 1]} : vector<4x8x256xf32> to vector<4x8x128xf32>
    %405 = vector.extract_strided_slice %403 {offsets = [0, 0, 128], sizes = [4, 8, 128], strides = [1, 1, 1]} : vector<4x8x256xf32> to vector<4x8x128xf32>
    %406 = vector.extract_strided_slice %392 {offsets = [0, 0, 256], sizes = [4, 8, 128], strides = [1, 1, 1]} : vector<4x8x384xbf16> to vector<4x8x128xbf16>
    %407 = vector.extract_strided_slice %394 {offsets = [0, 0, 256], sizes = [4, 8, 128], strides = [1, 1, 1]} : vector<4x8x384xf32> to vector<4x8x128xf32>
    %408 = arith.addf %407, %3 : vector<4x8x128xf32>
    %409 = arith.mulf %404, %408 : vector<4x8x128xf32>
    %410 = arith.extf %406 : vector<4x8x128xbf16> to vector<4x8x128xf32>
    %411 = arith.addf %410, %409 : vector<4x8x128xf32>
    %412 = math.tanh %411 : vector<4x8x128xf32>
    %cst_99 = arith.constant 1.000000e+00 : f32
    %413 = vector.broadcast %cst_99 : f32 to vector<4x8x128xf32>
    %414 = arith.subf %413, %405 : vector<4x8x128xf32>
    %415 = arith.subf %412, %389 : vector<4x8x128xf32>
    %416 = arith.mulf %414, %415 : vector<4x8x128xf32>
    %417 = vector.broadcast %c12_i32 : i32 to vector<4x8x128xi32>
    %418 = arith.cmpi slt, %417, %4 : vector<4x8x128xi32>
    %cst_100 = arith.constant 0.000000e+00 : f32
    %419 = vector.broadcast %cst_100 : f32 to vector<4x8x128xf32>
    %420 = arith.select %418, %416, %419 : vector<4x8x128xi1>, vector<4x8x128xf32>
    %421 = arith.addf %389, %420 : vector<4x8x128xf32>
    %c13_i32 = arith.constant 13 : i32
    %422 = arith.index_cast %c13_i32 : i32 to index
    %c0_101 = arith.constant 0 : index
    %c0_102 = arith.constant 0 : index
    %c0_103 = arith.constant 0 : index
    %423 = vector.load %arg1[%422, %c0_101, %c0_102, %c0_103] : memref<16x4x8x384xbf16, #tpu.memory_space<vmem>>, vector<1x4x8x384xbf16>
    %424 = vector.shape_cast %423 : vector<1x4x8x384xbf16> to vector<4x8x384xbf16>
    %425 = arith.truncf %421 : vector<4x8x128xf32> to vector<4x8x128xbf16>
    "tpu.trace_start"() <{level = 10 : i32, message = "ebk,ekg->ebg"}> : () -> ()
    %cst_104 = arith.constant dense<0.000000e+00> : vector<4x8x384xf32>
    %426 = tpu.matmul %425, %0, %cst_104 {dimension_numbers = #tpu.dot_dimension_numbers<[2], [1], [1], [2], [0, 0, 0, 1, 1, 2], [0], [0]>} : vector<4x8x128xbf16>, vector<4x128x384xbf16>, vector<4x8x384xf32> -> vector<4x8x384xf32>
    "tpu.trace_stop"() : () -> ()
    %427 = vector.extract_strided_slice %424 {offsets = [0, 0, 0], sizes = [4, 8, 256], strides = [1, 1, 1]} : vector<4x8x384xbf16> to vector<4x8x256xbf16>
    %428 = vector.extract_strided_slice %426 {offsets = [0, 0, 0], sizes = [4, 8, 256], strides = [1, 1, 1]} : vector<4x8x384xf32> to vector<4x8x256xf32>
    %429 = arith.extf %427 : vector<4x8x256xbf16> to vector<4x8x256xf32>
    %430 = arith.addf %429, %428 : vector<4x8x256xf32>
    %431 = arith.negf %430 : vector<4x8x256xf32>
    %432 = math.exp %431 : vector<4x8x256xf32>
    %cst_105 = arith.constant 1.000000e+00 : f32
    %433 = vector.broadcast %cst_105 : f32 to vector<4x8x256xf32>
    %434 = arith.addf %433, %432 : vector<4x8x256xf32>
    %435 = arith.divf %433, %434 : vector<4x8x256xf32>
    %436 = vector.extract_strided_slice %435 {offsets = [0, 0, 0], sizes = [4, 8, 128], strides = [1, 1, 1]} : vector<4x8x256xf32> to vector<4x8x128xf32>
    %437 = vector.extract_strided_slice %435 {offsets = [0, 0, 128], sizes = [4, 8, 128], strides = [1, 1, 1]} : vector<4x8x256xf32> to vector<4x8x128xf32>
    %438 = vector.extract_strided_slice %424 {offsets = [0, 0, 256], sizes = [4, 8, 128], strides = [1, 1, 1]} : vector<4x8x384xbf16> to vector<4x8x128xbf16>
    %439 = vector.extract_strided_slice %426 {offsets = [0, 0, 256], sizes = [4, 8, 128], strides = [1, 1, 1]} : vector<4x8x384xf32> to vector<4x8x128xf32>
    %440 = arith.addf %439, %3 : vector<4x8x128xf32>
    %441 = arith.mulf %436, %440 : vector<4x8x128xf32>
    %442 = arith.extf %438 : vector<4x8x128xbf16> to vector<4x8x128xf32>
    %443 = arith.addf %442, %441 : vector<4x8x128xf32>
    %444 = math.tanh %443 : vector<4x8x128xf32>
    %cst_106 = arith.constant 1.000000e+00 : f32
    %445 = vector.broadcast %cst_106 : f32 to vector<4x8x128xf32>
    %446 = arith.subf %445, %437 : vector<4x8x128xf32>
    %447 = arith.subf %444, %421 : vector<4x8x128xf32>
    %448 = arith.mulf %446, %447 : vector<4x8x128xf32>
    %449 = vector.broadcast %c13_i32 : i32 to vector<4x8x128xi32>
    %450 = arith.cmpi slt, %449, %4 : vector<4x8x128xi32>
    %cst_107 = arith.constant 0.000000e+00 : f32
    %451 = vector.broadcast %cst_107 : f32 to vector<4x8x128xf32>
    %452 = arith.select %450, %448, %451 : vector<4x8x128xi1>, vector<4x8x128xf32>
    %453 = arith.addf %421, %452 : vector<4x8x128xf32>
    %c14_i32 = arith.constant 14 : i32
    %454 = arith.index_cast %c14_i32 : i32 to index
    %c0_108 = arith.constant 0 : index
    %c0_109 = arith.constant 0 : index
    %c0_110 = arith.constant 0 : index
    %455 = vector.load %arg1[%454, %c0_108, %c0_109, %c0_110] : memref<16x4x8x384xbf16, #tpu.memory_space<vmem>>, vector<1x4x8x384xbf16>
    %456 = vector.shape_cast %455 : vector<1x4x8x384xbf16> to vector<4x8x384xbf16>
    %457 = arith.truncf %453 : vector<4x8x128xf32> to vector<4x8x128xbf16>
    "tpu.trace_start"() <{level = 10 : i32, message = "ebk,ekg->ebg"}> : () -> ()
    %cst_111 = arith.constant dense<0.000000e+00> : vector<4x8x384xf32>
    %458 = tpu.matmul %457, %0, %cst_111 {dimension_numbers = #tpu.dot_dimension_numbers<[2], [1], [1], [2], [0, 0, 0, 1, 1, 2], [0], [0]>} : vector<4x8x128xbf16>, vector<4x128x384xbf16>, vector<4x8x384xf32> -> vector<4x8x384xf32>
    "tpu.trace_stop"() : () -> ()
    %459 = vector.extract_strided_slice %456 {offsets = [0, 0, 0], sizes = [4, 8, 256], strides = [1, 1, 1]} : vector<4x8x384xbf16> to vector<4x8x256xbf16>
    %460 = vector.extract_strided_slice %458 {offsets = [0, 0, 0], sizes = [4, 8, 256], strides = [1, 1, 1]} : vector<4x8x384xf32> to vector<4x8x256xf32>
    %461 = arith.extf %459 : vector<4x8x256xbf16> to vector<4x8x256xf32>
    %462 = arith.addf %461, %460 : vector<4x8x256xf32>
    %463 = arith.negf %462 : vector<4x8x256xf32>
    %464 = math.exp %463 : vector<4x8x256xf32>
    %cst_112 = arith.constant 1.000000e+00 : f32
    %465 = vector.broadcast %cst_112 : f32 to vector<4x8x256xf32>
    %466 = arith.addf %465, %464 : vector<4x8x256xf32>
    %467 = arith.divf %465, %466 : vector<4x8x256xf32>
    %468 = vector.extract_strided_slice %467 {offsets = [0, 0, 0], sizes = [4, 8, 128], strides = [1, 1, 1]} : vector<4x8x256xf32> to vector<4x8x128xf32>
    %469 = vector.extract_strided_slice %467 {offsets = [0, 0, 128], sizes = [4, 8, 128], strides = [1, 1, 1]} : vector<4x8x256xf32> to vector<4x8x128xf32>
    %470 = vector.extract_strided_slice %456 {offsets = [0, 0, 256], sizes = [4, 8, 128], strides = [1, 1, 1]} : vector<4x8x384xbf16> to vector<4x8x128xbf16>
    %471 = vector.extract_strided_slice %458 {offsets = [0, 0, 256], sizes = [4, 8, 128], strides = [1, 1, 1]} : vector<4x8x384xf32> to vector<4x8x128xf32>
    %472 = arith.addf %471, %3 : vector<4x8x128xf32>
    %473 = arith.mulf %468, %472 : vector<4x8x128xf32>
    %474 = arith.extf %470 : vector<4x8x128xbf16> to vector<4x8x128xf32>
    %475 = arith.addf %474, %473 : vector<4x8x128xf32>
    %476 = math.tanh %475 : vector<4x8x128xf32>
    %cst_113 = arith.constant 1.000000e+00 : f32
    %477 = vector.broadcast %cst_113 : f32 to vector<4x8x128xf32>
    %478 = arith.subf %477, %469 : vector<4x8x128xf32>
    %479 = arith.subf %476, %453 : vector<4x8x128xf32>
    %480 = arith.mulf %478, %479 : vector<4x8x128xf32>
    %481 = vector.broadcast %c14_i32 : i32 to vector<4x8x128xi32>
    %482 = arith.cmpi slt, %481, %4 : vector<4x8x128xi32>
    %cst_114 = arith.constant 0.000000e+00 : f32
    %483 = vector.broadcast %cst_114 : f32 to vector<4x8x128xf32>
    %484 = arith.select %482, %480, %483 : vector<4x8x128xi1>, vector<4x8x128xf32>
    %485 = arith.addf %453, %484 : vector<4x8x128xf32>
    %c15_i32 = arith.constant 15 : i32
    %486 = arith.index_cast %c15_i32 : i32 to index
    %c0_115 = arith.constant 0 : index
    %c0_116 = arith.constant 0 : index
    %c0_117 = arith.constant 0 : index
    %487 = vector.load %arg1[%486, %c0_115, %c0_116, %c0_117] : memref<16x4x8x384xbf16, #tpu.memory_space<vmem>>, vector<1x4x8x384xbf16>
    %488 = vector.shape_cast %487 : vector<1x4x8x384xbf16> to vector<4x8x384xbf16>
    %489 = arith.truncf %485 : vector<4x8x128xf32> to vector<4x8x128xbf16>
    "tpu.trace_start"() <{level = 10 : i32, message = "ebk,ekg->ebg"}> : () -> ()
    %cst_118 = arith.constant dense<0.000000e+00> : vector<4x8x384xf32>
    %490 = tpu.matmul %489, %0, %cst_118 {dimension_numbers = #tpu.dot_dimension_numbers<[2], [1], [1], [2], [0, 0, 0, 1, 1, 2], [0], [0]>} : vector<4x8x128xbf16>, vector<4x128x384xbf16>, vector<4x8x384xf32> -> vector<4x8x384xf32>
    "tpu.trace_stop"() : () -> ()
    %491 = vector.extract_strided_slice %488 {offsets = [0, 0, 0], sizes = [4, 8, 256], strides = [1, 1, 1]} : vector<4x8x384xbf16> to vector<4x8x256xbf16>
    %492 = vector.extract_strided_slice %490 {offsets = [0, 0, 0], sizes = [4, 8, 256], strides = [1, 1, 1]} : vector<4x8x384xf32> to vector<4x8x256xf32>
    %493 = arith.extf %491 : vector<4x8x256xbf16> to vector<4x8x256xf32>
    %494 = arith.addf %493, %492 : vector<4x8x256xf32>
    %495 = arith.negf %494 : vector<4x8x256xf32>
    %496 = math.exp %495 : vector<4x8x256xf32>
    %cst_119 = arith.constant 1.000000e+00 : f32
    %497 = vector.broadcast %cst_119 : f32 to vector<4x8x256xf32>
    %498 = arith.addf %497, %496 : vector<4x8x256xf32>
    %499 = arith.divf %497, %498 : vector<4x8x256xf32>
    %500 = vector.extract_strided_slice %499 {offsets = [0, 0, 0], sizes = [4, 8, 128], strides = [1, 1, 1]} : vector<4x8x256xf32> to vector<4x8x128xf32>
    %501 = vector.extract_strided_slice %499 {offsets = [0, 0, 128], sizes = [4, 8, 128], strides = [1, 1, 1]} : vector<4x8x256xf32> to vector<4x8x128xf32>
    %502 = vector.extract_strided_slice %488 {offsets = [0, 0, 256], sizes = [4, 8, 128], strides = [1, 1, 1]} : vector<4x8x384xbf16> to vector<4x8x128xbf16>
    %503 = vector.extract_strided_slice %490 {offsets = [0, 0, 256], sizes = [4, 8, 128], strides = [1, 1, 1]} : vector<4x8x384xf32> to vector<4x8x128xf32>
    %504 = arith.addf %503, %3 : vector<4x8x128xf32>
    %505 = arith.mulf %500, %504 : vector<4x8x128xf32>
    %506 = arith.extf %502 : vector<4x8x128xbf16> to vector<4x8x128xf32>
    %507 = arith.addf %506, %505 : vector<4x8x128xf32>
    %508 = math.tanh %507 : vector<4x8x128xf32>
    %cst_120 = arith.constant 1.000000e+00 : f32
    %509 = vector.broadcast %cst_120 : f32 to vector<4x8x128xf32>
    %510 = arith.subf %509, %501 : vector<4x8x128xf32>
    %511 = arith.subf %508, %485 : vector<4x8x128xf32>
    %512 = arith.mulf %510, %511 : vector<4x8x128xf32>
    %513 = vector.broadcast %c15_i32 : i32 to vector<4x8x128xi32>
    %514 = arith.cmpi slt, %513, %4 : vector<4x8x128xi32>
    %cst_121 = arith.constant 0.000000e+00 : f32
    %515 = vector.broadcast %cst_121 : f32 to vector<4x8x128xf32>
    %516 = arith.select %514, %512, %515 : vector<4x8x128xi1>, vector<4x8x128xf32>
    %517 = arith.addf %485, %516 : vector<4x8x128xf32>
    %c16_i32 = arith.constant 16 : i32
    %c0_122 = arith.constant 0 : index
    %c0_123 = arith.constant 0 : index
    %c0_124 = arith.constant 0 : index
    %518 = vector.load %arg7[%c0_122, %c0_123, %c0_124] : memref<4x8x128xf32, #tpu.memory_space<vmem>>, vector<4x8x128xf32>
    tpu.vector_store %arg7[%c0_122, %c0_123, %c0_124], %517 {strides = array<i32>} : memref<4x8x128xf32, #tpu.memory_space<vmem>>, vector<4x8x128xf32>,
    %519 = arith.truncf %517 : vector<4x8x128xf32> to vector<4x8x128xbf16>
    %c0_125 = arith.constant 0 : index
    %c0_126 = arith.constant 0 : index
    %c0_127 = arith.constant 0 : index
    %520 = vector.load %arg6[%c0_125, %c0_126, %c0_127] : memref<4x128x128xbf16, #tpu.memory_space<vmem>>, vector<4x128x128xbf16>
    %cst_128 = arith.constant 0.000000e+00 : f32
    %521 = vector.broadcast %cst_128 : f32 to vector<8x128xf32>
    %522 = vector.extract_strided_slice %519 {offsets = [0, 0, 0], sizes = [1, 8, 128], strides = [1, 1, 1]} : vector<4x8x128xbf16> to vector<1x8x128xbf16>
    %523 = vector.shape_cast %522 : vector<1x8x128xbf16> to vector<8x128xbf16>
    %524 = vector.extract_strided_slice %520 {offsets = [0, 0, 0], sizes = [1, 128, 128], strides = [1, 1, 1]} : vector<4x128x128xbf16> to vector<1x128x128xbf16>
    %525 = vector.shape_cast %524 : vector<1x128x128xbf16> to vector<128x128xbf16>
    %cst_129 = arith.constant dense<0.000000e+00> : vector<8x128xf32>
    %526 = tpu.matmul %523, %525, %cst_129 {dimension_numbers = #tpu.dot_dimension_numbers<[1], [0], [0], [1], [0, 0, 1, 1], [], []>} : vector<8x128xbf16>, vector<128x128xbf16>, vector<8x128xf32> -> vector<8x128xf32>
    %527 = arith.addf %521, %526 : vector<8x128xf32>
    %528 = vector.extract_strided_slice %519 {offsets = [1, 0, 0], sizes = [1, 8, 128], strides = [1, 1, 1]} : vector<4x8x128xbf16> to vector<1x8x128xbf16>
    %529 = vector.shape_cast %528 : vector<1x8x128xbf16> to vector<8x128xbf16>
    %530 = vector.extract_strided_slice %520 {offsets = [1, 0, 0], sizes = [1, 128, 128], strides = [1, 1, 1]} : vector<4x128x128xbf16> to vector<1x128x128xbf16>
    %531 = vector.shape_cast %530 : vector<1x128x128xbf16> to vector<128x128xbf16>
    %cst_130 = arith.constant dense<0.000000e+00> : vector<8x128xf32>
    %532 = tpu.matmul %529, %531, %cst_130 {dimension_numbers = #tpu.dot_dimension_numbers<[1], [0], [0], [1], [0, 0, 1, 1], [], []>} : vector<8x128xbf16>, vector<128x128xbf16>, vector<8x128xf32> -> vector<8x128xf32>
    %533 = arith.addf %527, %532 : vector<8x128xf32>
    %534 = vector.extract_strided_slice %519 {offsets = [2, 0, 0], sizes = [1, 8, 128], strides = [1, 1, 1]} : vector<4x8x128xbf16> to vector<1x8x128xbf16>
    %535 = vector.shape_cast %534 : vector<1x8x128xbf16> to vector<8x128xbf16>
    %536 = vector.extract_strided_slice %520 {offsets = [2, 0, 0], sizes = [1, 128, 128], strides = [1, 1, 1]} : vector<4x128x128xbf16> to vector<1x128x128xbf16>
    %537 = vector.shape_cast %536 : vector<1x128x128xbf16> to vector<128x128xbf16>
    %cst_131 = arith.constant dense<0.000000e+00> : vector<8x128xf32>
    %538 = tpu.matmul %535, %537, %cst_131 {dimension_numbers = #tpu.dot_dimension_numbers<[1], [0], [0], [1], [0, 0, 1, 1], [], []>} : vector<8x128xbf16>, vector<128x128xbf16>, vector<8x128xf32> -> vector<8x128xf32>
    %539 = arith.addf %533, %538 : vector<8x128xf32>
    %540 = vector.extract_strided_slice %519 {offsets = [3, 0, 0], sizes = [1, 8, 128], strides = [1, 1, 1]} : vector<4x8x128xbf16> to vector<1x8x128xbf16>
    %541 = vector.shape_cast %540 : vector<1x8x128xbf16> to vector<8x128xbf16>
    %542 = vector.extract_strided_slice %520 {offsets = [3, 0, 0], sizes = [1, 128, 128], strides = [1, 1, 1]} : vector<4x128x128xbf16> to vector<1x128x128xbf16>
    %543 = vector.shape_cast %542 : vector<1x128x128xbf16> to vector<128x128xbf16>
    %cst_132 = arith.constant dense<0.000000e+00> : vector<8x128xf32>
    %544 = tpu.matmul %541, %543, %cst_132 {dimension_numbers = #tpu.dot_dimension_numbers<[1], [0], [0], [1], [0, 0, 1, 1], [], []>} : vector<8x128xbf16>, vector<128x128xbf16>, vector<8x128xf32> -> vector<8x128xf32>
    %545 = arith.addf %539, %544 : vector<8x128xf32>
    %c0_133 = arith.constant 0 : index
    %c0_134 = arith.constant 0 : index
    %c0_135 = arith.constant 0 : index
    %546 = vector.load %arg8[%c0_133, %c0_134, %c0_135] : memref<1x8x128xf32, #tpu.memory_space<vmem>>, vector<1x8x128xf32>
    %547 = vector.shape_cast %546 : vector<1x8x128xf32> to vector<8x128xf32>
    %548 = vector.shape_cast %545 : vector<8x128xf32> to vector<1x8x128xf32>
    tpu.vector_store %arg8[%c0_133, %c0_134, %c0_135], %548 {strides = array<i32>} : memref<1x8x128xf32, #tpu.memory_space<vmem>>, vector<1x8x128xf32>,
    return
  }
  func.func @transform_0(%arg0: i32) -> (i32, i32, i32, i32) {
    %c0_i32 = arith.constant 0 : i32
    %c0_i32_0 = arith.constant 0 : i32
    %c0_i32_1 = arith.constant 0 : i32
    %c0_i32_2 = arith.constant 0 : i32
    return %c0_i32, %arg0, %c0_i32_0, %c0_i32_1 : i32, i32, i32, i32
  }
  func.func @transform_1(%arg0: i32) -> (i32, i32, i32) {
    %c0_i32 = arith.constant 0 : i32
    %c0_i32_0 = arith.constant 0 : i32
    %c0_i32_1 = arith.constant 0 : i32
    return %arg0, %c0_i32, %c0_i32_0 : i32, i32, i32
  }
  func.func @transform_2(%arg0: i32) -> (i32, i32, i32) {
    %c0_i32 = arith.constant 0 : i32
    %c0_i32_0 = arith.constant 0 : i32
    %c0_i32_1 = arith.constant 0 : i32
    return %arg0, %c0_i32, %c0_i32_0 : i32, i32, i32
  }
  func.func @transform_3(%arg0: i32) -> (i32, i32, i32) {
    %c0_i32 = arith.constant 0 : i32
    %c0_i32_0 = arith.constant 0 : i32
    %c0_i32_1 = arith.constant 0 : i32
    return %arg0, %c0_i32, %c0_i32_0 : i32, i32, i32
  }
  func.func @transform_4(%arg0: i32) -> (i32, i32, i32) {
    %c0_i32 = arith.constant 0 : i32
    %c0_i32_0 = arith.constant 0 : i32
    %c0_i32_1 = arith.constant 0 : i32
    return %arg0, %c0_i32, %c0_i32_0 : i32, i32, i32
  }
  func.func @transform_5(%arg0: i32) -> (i32, i32, i32) {
    %c0_i32 = arith.constant 0 : i32
    %c0_i32_0 = arith.constant 0 : i32
    %c0_i32_1 = arith.constant 0 : i32
    return %arg0, %c0_i32, %c0_i32_0 : i32, i32, i32
  }
  func.func @transform_6(%arg0: i32) -> (i32, i32, i32) {
    %c0_i32 = arith.constant 0 : i32
    %c0_i32_0 = arith.constant 0 : i32
    %c0_i32_1 = arith.constant 0 : i32
    return %arg0, %c0_i32, %c0_i32_0 : i32, i32, i32
  }
  func.func @transform_7(%arg0: i32) -> (i32, i32, i32) {
    %c0_i32 = arith.constant 0 : i32
    %c0_i32_0 = arith.constant 0 : i32
    %c0_i32_1 = arith.constant 0 : i32
    return %arg0, %c0_i32, %c0_i32_0 : i32, i32, i32
  }
}

</mosaic_0001>

<llo_original>
// kernel: _lambda_.1
$region0: #{_lambda_.1}
  #allocation0 [shape = 'u32[]', space=smem, size = 0x4, offset = 0x4, fixed_abs, tag = 'smem constant byte address 0x4 - core index']
  #allocation1 [shape = 'u32[144,128]{1,0:T(1,128)}', space=vmem, size = 0x12000, scoped, tag = 'internal scratch']
  %s0 = inlined_call_operand.vmem [shape: bf16[16,4,8,384], index: 0, kind: input, shape index: {}]
  %s1 = inlined_call_operand.vmem [shape: s32[4,8,128], index: 1, kind: input, shape index: {}]
  %s2 = inlined_call_operand.vmem [shape: f32[4,8,128], index: 2, kind: input, shape index: {}]
  %s3 = inlined_call_operand.vmem [shape: bf16[4,128,384], index: 3, kind: input, shape index: {}]
  %s4 = inlined_call_operand.vmem [shape: f32[4,1,128], index: 4, kind: input, shape index: {}]
  %s5 = inlined_call_operand.vmem [shape: bf16[4,128,128], index: 5, kind: input, shape index: {}]
  %s6 = inlined_call_operand.vmem [shape: f32[4,8,128], index: 6, kind: output, shape index: {0}]
  %s7 = inlined_call_operand.vmem [shape: f32[1,8,128], index: 7, kind: output, shape index: {1}]
  %8 = xla_tuple %s6, %s7
  %s9 = sld [smem:[#allocation0]]
  $region42: #{_lambda_.1} parent=0
    _
  %s11 = ssub.s32 1, %s9
  %s12 = scalar_select 0, %s11, %s9
  // Predicated region
  $region2: #{_lambda_.1} parent=0 // pred_check
    _
  $region3: #{_lambda_.1} parent=0 // pred_check_branch
    %14 = sbr.rel (0) target = $region5
  $region4: #{_lambda_.1} parent=0 // pred_region
    _
  $region5: #{_lambda_.1} parent=0 // pred_fallthru
    _
  // Predicated region
  $region6: #{_lambda_.1} parent=0 // pred_check
    _
  $region7: #{_lambda_.1} parent=0 // pred_check_branch
    %16 = sbr.rel (0) target = $region9
  $region8: #{_lambda_.1} parent=0 // pred_region
    _
  $region9: #{_lambda_.1} parent=0 // pred_fallthru
    _
  // Predicated region
  $region10: #{_lambda_.1} parent=0 // pred_check
    _
  $region11: #{_lambda_.1} parent=0 // pred_check_branch
    %18 = sbr.rel (0) target = $region13
  $region12: #{_lambda_.1} parent=0 // pred_region
    _
  $region13: #{_lambda_.1} parent=0 // pred_fallthru
    _
  // Predicated region
  $region14: #{_lambda_.1} parent=0 // pred_check
    _
  $region15: #{_lambda_.1} parent=0 // pred_check_branch
    %20 = sbr.rel (0) target = $region17
  $region16: #{_lambda_.1} parent=0 // pred_region
    _
  $region17: #{_lambda_.1} parent=0 // pred_fallthru
    _
  // Predicated region
  $region18: #{_lambda_.1} parent=0 // pred_check
    _
  $region19: #{_lambda_.1} parent=0 // pred_check_branch
    %22 = sbr.rel (0) target = $region21
  $region20: #{_lambda_.1} parent=0 // pred_region
    _
  $region21: #{_lambda_.1} parent=0 // pred_fallthru
    _
  // Predicated region
  $region22: #{_lambda_.1} parent=0 // pred_check
    _
  $region23: #{_lambda_.1} parent=0 // pred_check_branch
    %24 = sbr.rel (0) target = $region25
  $region24: #{_lambda_.1} parent=0 // pred_region
    _
  $region25: #{_lambda_.1} parent=0 // pred_fallthru
    _
  %v26 = vld [vmem:[%s3] sm:$0xff]
  %v27 = vld [vmem:[%s3 + $0x8] sm:$0xf]
  %v28 = vld [vmem:[%s3 + $0xc] sm:$0xff]
  %v29 = vld [vmem:[%s3 + $0x14] sm:$0xf]
  %v30 = vld [vmem:[%s3 + $0x18] sm:$0xff]
  %v31 = vld [vmem:[%s3 + $0x20] sm:$0xf]
  %v32 = vld [vmem:[%s3 + $0x24] sm:$0xff]
  %v33 = vld [vmem:[%s3 + $0x2c] sm:$0xf]
  %v34 = vld [vmem:[%s3 + $0x30] sm:$0xff]
  %v35 = vld [vmem:[%s3 + $0x38] sm:$0xf]
  %v36 = vld [vmem:[%s3 + $0x3c] sm:$0xff]
  %v37 = vld [vmem:[%s3 + $0x44] sm:$0xf]
  %v38 = vld [vmem:[%s3 + $0x48] sm:$0xff]
  %v39 = vld [vmem:[%s3 + $0x50] sm:$0xf]
  %v40 = vld [vmem:[%s3 + $0x54] sm:$0xff]
  %v41 = vld [vmem:[%s3 + $0x5c] sm:$0xf]
  %v42 = vld [vmem:[%s3 + $0x60] sm:$0xff]
  %v43 = vld [vmem:[%s3 + $0x68] sm:$0xf]
  %v44 = vld [vmem:[%s3 + $0x6c] sm:$0xff]
  %v45 = vld [vmem:[%s3 + $0x74] sm:$0xf]
  %v46 = vld [vmem:[%s3 + $0x78] sm:$0xff]
  %v47 = vld [vmem:[%s3 + $0x80] sm:$0xf]
  %v48 = vld [vmem:[%s3 + $0x84] sm:$0xff]
  %v49 = vld [vmem:[%s3 + $0x8c] sm:$0xf]
  %v50 = vld [vmem:[%s3 + $0x90] sm:$0xff]
  %v51 = vld [vmem:[%s3 + $0x98] sm:$0xf]
  %v52 = vld [vmem:[%s3 + $0x9c] sm:$0xff]
  %v53 = vld [vmem:[%s3 + $0xa4] sm:$0xf]
  %v54 = vld [vmem:[%s3 + $0xa8] sm:$0xff]
  %v55 = vld [vmem:[%s3 + $0xb0] sm:$0xf]
  %v56 = vld [vmem:[%s3 + $0xb4] sm:$0xff]
  %v57 = vld [vmem:[%s3 + $0xbc] sm:$0xf]
  %v58 = vld [vmem:[%s3 + $0xc0] sm:$0xff]
  %v59 = vld [vmem:[%s3 + $0xc8] sm:$0xf]
  %v60 = vld [vmem:[%s3 + $0xcc] sm:$0xff]
  %v61 = vld [vmem:[%s3 + $0xd4] sm:$0xf]
  %v62 = vld [vmem:[%s3 + $0xd8] sm:$0xff]
  %v63 = vld [vmem:[%s3 + $0xe0] sm:$0xf]
  %v64 = vld [vmem:[%s3 + $0xe4] sm:$0xff]
  %v65 = vld [vmem:[%s3 + $0xec] sm:$0xf]
  %v66 = vld [vmem:[%s3 + $0xf0] sm:$0xff]
  %v67 = vld [vmem:[%s3 + $0xf8] sm:$0xf]
  %v68 = vld [vmem:[%s3 + $0xfc] sm:$0xff]
  %v69 = vld [vmem:[%s3 + $0x104] sm:$0xf]
  %v70 = vld [vmem:[%s3 + $0x108] sm:$0xff]
  %v71 = vld [vmem:[%s3 + $0x110] sm:$0xf]
  %v72 = vld [vmem:[%s3 + $0x114] sm:$0xff]
  %v73 = vld [vmem:[%s3 + $0x11c] sm:$0xf]
  %v74 = vld [vmem:[%s3 + $0x120] sm:$0xff]
  %v75 = vld [vmem:[%s3 + $0x128] sm:$0xf]
  %v76 = vld [vmem:[%s3 + $0x12c] sm:$0xff]
  %v77 = vld [vmem:[%s3 + $0x134] sm:$0xf]
  %v78 = vld [vmem:[%s3 + $0x138] sm:$0xff]
  %v79 = vld [vmem:[%s3 + $0x140] sm:$0xf]
  %v80 = vld [vmem:[%s3 + $0x144] sm:$0xff]
  %v81 = vld [vmem:[%s3 + $0x14c] sm:$0xf]
  %v82 = vld [vmem:[%s3 + $0x150] sm:$0xff]
  %v83 = vld [vmem:[%s3 + $0x158] sm:$0xf]
  %v84 = vld [vmem:[%s3 + $0x15c] sm:$0xff]
  %v85 = vld [vmem:[%s3 + $0x164] sm:$0xf]
  %v86 = vld [vmem:[%s3 + $0x168] sm:$0xff]
  %v87 = vld [vmem:[%s3 + $0x170] sm:$0xf]
  %v88 = vld [vmem:[%s3 + $0x174] sm:$0xff]
  %v89 = vld [vmem:[%s3 + $0x17c] sm:$0xf]
  %v90 = vld [vmem:[%s3 + $0x180] sm:$0xff]
  %v91 = vld [vmem:[%s3 + $0x188] sm:$0xf]
  %v92 = vld [vmem:[%s3 + $0x18c] sm:$0xff]
  %v93 = vld [vmem:[%s3 + $0x194] sm:$0xf]
  %v94 = vld [vmem:[%s3 + $0x198] sm:$0xff]
  %v95 = vld [vmem:[%s3 + $0x1a0] sm:$0xf]
  %v96 = vld [vmem:[%s3 + $0x1a4] sm:$0xff]
  %v97 = vld [vmem:[%s3 + $0x1ac] sm:$0xf]
  %v98 = vld [vmem:[%s3 + $0x1b0] sm:$0xff]
  %v99 = vld [vmem:[%s3 + $0x1b8] sm:$0xf]
  %v100 = vld [vmem:[%s3 + $0x1bc] sm:$0xff]
  %v101 = vld [vmem:[%s3 + $0x1c4] sm:$0xf]
  %v102 = vld [vmem:[%s3 + $0x1c8] sm:$0xff]
  %v103 = vld [vmem:[%s3 + $0x1d0] sm:$0xf]
  %v104 = vld [vmem:[%s3 + $0x1d4] sm:$0xff]
  %v105 = vld [vmem:[%s3 + $0x1dc] sm:$0xf]
  %v106 = vld [vmem:[%s3 + $0x1e0] sm:$0xff]
  %v107 = vld [vmem:[%s3 + $0x1e8] sm:$0xf]
  %v108 = vld [vmem:[%s3 + $0x1ec] sm:$0xff]
  %v109 = vld [vmem:[%s3 + $0x1f4] sm:$0xf]
  %v110 = vld [vmem:[%s3 + $0x1f8] sm:$0xff]
  %v111 = vld [vmem:[%s3 + $0x200] sm:$0xf]
  %v112 = vld [vmem:[%s3 + $0x204] sm:$0xff]
  %v113 = vld [vmem:[%s3 + $0x20c] sm:$0xf]
  %v114 = vld [vmem:[%s3 + $0x210] sm:$0xff]
  %v115 = vld [vmem:[%s3 + $0x218] sm:$0xf]
  %v116 = vld [vmem:[%s3 + $0x21c] sm:$0xff]
  %v117 = vld [vmem:[%s3 + $0x224] sm:$0xf]
  %v118 = vld [vmem:[%s3 + $0x228] sm:$0xff]
  %v119 = vld [vmem:[%s3 + $0x230] sm:$0xf]
  %v120 = vld [vmem:[%s3 + $0x234] sm:$0xff]
  %v121 = vld [vmem:[%s3 + $0x23c] sm:$0xf]
  %v122 = vld [vmem:[%s3 + $0x240] sm:$0xff]
  %v123 = vld [vmem:[%s3 + $0x248] sm:$0xf]
  %v124 = vld [vmem:[%s3 + $0x24c] sm:$0xff]
  %v125 = vld [vmem:[%s3 + $0x254] sm:$0xf]
  %v126 = vld [vmem:[%s3 + $0x258] sm:$0xff]
  %v127 = vld [vmem:[%s3 + $0x260] sm:$0xf]
  %v128 = vld [vmem:[%s3 + $0x264] sm:$0xff]
  %v129 = vld [vmem:[%s3 + $0x26c] sm:$0xf]
  %v130 = vld [vmem:[%s3 + $0x270] sm:$0xff]
  %v131 = vld [vmem:[%s3 + $0x278] sm:$0xf]
  %v132 = vld [vmem:[%s3 + $0x27c] sm:$0xff]
  %v133 = vld [vmem:[%s3 + $0x284] sm:$0xf]
  %v134 = vld [vmem:[%s3 + $0x288] sm:$0xff]
  %v135 = vld [vmem:[%s3 + $0x290] sm:$0xf]
  %v136 = vld [vmem:[%s3 + $0x294] sm:$0xff]
  %v137 = vld [vmem:[%s3 + $0x29c] sm:$0xf]
  %v138 = vld [vmem:[%s3 + $0x2a0] sm:$0xff]
  %v139 = vld [vmem:[%s3 + $0x2a8] sm:$0xf]
  %v140 = vld [vmem:[%s3 + $0x2ac] sm:$0xff]
  %v141 = vld [vmem:[%s3 + $0x2b4] sm:$0xf]
  %v142 = vld [vmem:[%s3 + $0x2b8] sm:$0xff]
  %v143 = vld [vmem:[%s3 + $0x2c0] sm:$0xf]
  %v144 = vld [vmem:[%s3 + $0x2c4] sm:$0xff]
  %v145 = vld [vmem:[%s3 + $0x2cc] sm:$0xf]
  %v146 = vld [vmem:[%s3 + $0x2d0] sm:$0xff]
  %v147 = vld [vmem:[%s3 + $0x2d8] sm:$0xf]
  %v148 = vld [vmem:[%s3 + $0x2dc] sm:$0xff]
  %v149 = vld [vmem:[%s3 + $0x2e4] sm:$0xf]
  %v150 = vld [vmem:[%s3 + $0x2e8] sm:$0xff]
  %v151 = vld [vmem:[%s3 + $0x2f0] sm:$0xf]
  %v152 = vld [vmem:[%s3 + $0x2f4] sm:$0xff]
  %v153 = vld [vmem:[%s3 + $0x2fc] sm:$0xf]
  %v154 = vld [vmem:[%s4] sm:$0x1]
  %v155 = vld [vmem:[%s4 + $0x1] sm:$0x1]
  %v156 = vld [vmem:[%s4 + $0x2] sm:$0x1]
  %v157 = vld [vmem:[%s4 + $0x3] sm:$0x1]
  %v162 = vlaneseq
  %v163 = vshrl.u32 %v162, 7
  %v164 = vsub.s32 0, %v163
  %v165 = vrot.slane %v154, %v164
  %v166 = vlaneseq
  %v167 = vshrl.u32 %v166, 7
  %v168 = vsub.s32 0, %v167
  %v169 = vrot.slane %v155, %v168
  %v170 = vlaneseq
  %v171 = vshrl.u32 %v170, 7
  %v172 = vsub.s32 0, %v171
  %v173 = vrot.slane %v156, %v172
  %v174 = vlaneseq
  %v175 = vshrl.u32 %v174, 7
  %v176 = vsub.s32 0, %v175
  %v177 = vrot.slane %v157, %v176
  %v182 = vld [vmem:[%s1] sm:$0xff]
  %v183 = vld [vmem:[%s1 + $0x8] sm:$0xff]
  %v184 = vld [vmem:[%s1 + $0x10] sm:$0xff]
  %v185 = vld [vmem:[%s1 + $0x18] sm:$0xff]
  %v186 = vld [vmem:[%s2] sm:$0xff]
  %v187 = vld [vmem:[%s2 + $0x8] sm:$0xff]
  %v188 = vld [vmem:[%s2 + $0x10] sm:$0xff]
  %v189 = vld [vmem:[%s2 + $0x18] sm:$0xff]
  %v190 = vld [vmem:[%s0] sm:$0xff]
  %v191 = vld [vmem:[%s0 + $0x8] sm:$0xf]
  %v192 = vld [vmem:[%s0 + $0xc] sm:$0xff]
  %v193 = vld [vmem:[%s0 + $0x14] sm:$0xf]
  %v194 = vld [vmem:[%s0 + $0x18] sm:$0xff]
  %v195 = vld [vmem:[%s0 + $0x20] sm:$0xf]
  %v196 = vld [vmem:[%s0 + $0x24] sm:$0xff]
  %v197 = vld [vmem:[%s0 + $0x2c] sm:$0xf]
  %v198 = vpack.c.bf16 %v186, %v186
  %v199 = vpack.c.bf16 %v187, %v187
  %v200 = vpack.c.bf16 %v188, %v188
  %v201 = vpack.c.bf16 %v189, %v189
  %v234 = vunpack.c.l.b16 %v26
  %v235 = vunpack.c.h.b16 %v26
  %v236 = vunpack.c.l.b16 %v27
  %v237 = vunpack.c.l.b16 %v28
  %v238 = vunpack.c.h.b16 %v28
  %v239 = vunpack.c.l.b16 %v29
  %v240 = vunpack.c.l.b16 %v30
  %v241 = vunpack.c.h.b16 %v30
  %v242 = vunpack.c.l.b16 %v31
  %v243 = vunpack.c.l.b16 %v32
  %v244 = vunpack.c.h.b16 %v32
  %v245 = vunpack.c.l.b16 %v33
  %v246 = vunpack.c.l.b16 %v34
  %v247 = vunpack.c.h.b16 %v34
  %v248 = vunpack.c.l.b16 %v35
  %v249 = vunpack.c.l.b16 %v36
  %v250 = vunpack.c.h.b16 %v36
  %v251 = vunpack.c.l.b16 %v37
  %v252 = vunpack.c.l.b16 %v38
  %v253 = vunpack.c.h.b16 %v38
  %v254 = vunpack.c.l.b16 %v39
  %v255 = vunpack.c.l.b16 %v40
  %v256 = vunpack.c.h.b16 %v40
  %v257 = vunpack.c.l.b16 %v41
  %v258 = vunpack.c.l.b16 %v42
  %v259 = vunpack.c.h.b16 %v42
  %v260 = vunpack.c.l.b16 %v43
  %v261 = vunpack.c.l.b16 %v44
  %v262 = vunpack.c.h.b16 %v44
  %v263 = vunpack.c.l.b16 %v45
  %v264 = vunpack.c.l.b16 %v46
  %v265 = vunpack.c.h.b16 %v46
  %v266 = vunpack.c.l.b16 %v47
  %v267 = vunpack.c.l.b16 %v48
  %v268 = vunpack.c.h.b16 %v48
  %v269 = vunpack.c.l.b16 %v49
  %v270 = vunpack.c.l.b16 %v50
  %v271 = vunpack.c.h.b16 %v50
  %v272 = vunpack.c.l.b16 %v51
  %v273 = vunpack.c.l.b16 %v52
  %v274 = vunpack.c.h.b16 %v52
  %v275 = vunpack.c.l.b16 %v53
  %v276 = vunpack.c.l.b16 %v54
  %v277 = vunpack.c.h.b16 %v54
  %v278 = vunpack.c.l.b16 %v55
  %v279 = vunpack.c.l.b16 %v56
  %v280 = vunpack.c.h.b16 %v56
  %v281 = vunpack.c.l.b16 %v57
  %v282 = vpack.c.b16 %v237, %v234
  %v283 = vpack.c.b16 %v238, %v235
  %v284 = vpack.c.b16 %v239, %v236
  %v285 = vpack.c.b16 %v243, %v240
  %v286 = vpack.c.b16 %v244, %v241
  %v287 = vpack.c.b16 %v245, %v242
  %v288 = vpack.c.b16 %v249, %v246
  %v289 = vpack.c.b16 %v250, %v247
  %v290 = vpack.c.b16 %v251, %v248
  %v291 = vpack.c.b16 %v255, %v252
  %v292 = vpack.c.b16 %v256, %v253
  %v293 = vpack.c.b16 %v257, %v254
  %v294 = vpack.c.b16 %v261, %v258
  %v295 = vpack.c.b16 %v262, %v259
  %v296 = vpack.c.b16 %v263, %v260
  %v297 = vpack.c.b16 %v267, %v264
  %v298 = vpack.c.b16 %v268, %v265
  %v299 = vpack.c.b16 %v269, %v266
  %v300 = vpack.c.b16 %v273, %v270
  %v301 = vpack.c.b16 %v274, %v271
  %v302 = vpack.c.b16 %v275, %v272
  %v303 = vpack.c.b16 %v279, %v276
  %v304 = vpack.c.b16 %v280, %v277
  %v305 = vpack.c.b16 %v281, %v278
  %330 = vmatprep.subr.bf16.mxu0 %v283
  %331 = vmatpush1.bf16.msra.mxu0 %v282
  %332 = vmatprep.subr.bf16.mxu0 %v286
  %333 = vmatpush1.bf16.msra.mxu0 %v285
  %334 = vmatprep.subr.bf16.mxu0 %v289
  %335 = vmatpush1.bf16.msra.mxu0 %v288
  %336 = vmatprep.subr.bf16.mxu0 %v292
  %337 = vmatpush1.bf16.msra.mxu0 %v291
  %338 = vmatprep.subr.bf16.mxu0 %v295
  %339 = vmatpush1.bf16.msra.mxu0 %v294
  %340 = vmatprep.subr.bf16.mxu0 %v298
  %341 = vmatpush1.bf16.msra.mxu0 %v297
  %342 = vmatprep.subr.bf16.mxu0 %v301
  %343 = vmatpush1.bf16.msra.mxu0 %v300
  %344 = vmatprep.subr.bf16.mxu0 %v304
  %345 = vmatpush1.bf16.msra.mxu0 %v303
  %346 = vmatprep.subr.bf16.mxu0 0
  %347 = vmatpush1.bf16.msra.mxu0 0
  %348 = vmatprep.subr.bf16.mxu0 0
  %349 = vmatpush1.bf16.msra.mxu0 0
  %350 = vmatprep.subr.bf16.mxu0 0
  %351 = vmatpush1.bf16.msra.mxu0 0
  %352 = vmatprep.subr.bf16.mxu0 0
  %353 = vmatpush1.bf16.msra.mxu0 0
  %354 = vmatprep.subr.bf16.mxu0 0
  %355 = vmatpush1.bf16.msra.mxu0 0
  %356 = vmatprep.subr.bf16.mxu0 0
  %357 = vmatpush1.bf16.msra.mxu0 0
  %358 = vmatprep.subr.bf16.mxu0 0
  %359 = vmatpush1.bf16.msra.mxu0 0
  %360 = vmatprep.subr.bf16.mxu0 0
  %361 = vmatpush1.bf16.msra.mxu0 0
  %362 = vmatprep.mubr.bf16.mxu0 0
  %363 = vmatmul.mubr.bf16.gmra.mrb[0].mxu0 %v198
  %v364 = vpop.f32.mrb[0].mxu0
  %v365 = vadd.f32 0.0, %v364
  %v366 = vpop.f32.mrb[0].mxu0
  %v367 = vadd.f32 0.0, %v366
  %v368 = vpop.f32.mrb[0].mxu0
  %v369 = vpop.f32.mrb[0].mxu0
  %370 = vdwg.mxu0
  %371 = vmatprep.subr.bf16.mxu0 0
  %372 = vmatpush1.bf16.msra.mxu0 %v284
  %373 = vmatprep.subr.bf16.mxu0 0
  %374 = vmatpush1.bf16.msra.mxu0 %v287
  %375 = vmatprep.subr.bf16.mxu0 0
  %376 = vmatpush1.bf16.msra.mxu0 %v290
  %377 = vmatprep.subr.bf16.mxu0 0
  %378 = vmatpush1.bf16.msra.mxu0 %v293
  %379 = vmatprep.subr.bf16.mxu0 0
  %380 = vmatpush1.bf16.msra.mxu0 %v296
  %381 = vmatprep.subr.bf16.mxu0 0
  %382 = vmatpush1.bf16.msra.mxu0 %v299
  %383 = vmatprep.subr.bf16.mxu0 0
  %384 = vmatpush1.bf16.msra.mxu0 %v302
  %385 = vmatprep.subr.bf16.mxu0 0
  %386 = vmatpush1.bf16.msra.mxu0 %v305
  %387 = vmatprep.subr.bf16.mxu0 0
  %388 = vmatpush1.bf16.msra.mxu0 0
  %389 = vmatprep.subr.bf16.mxu0 0
  %390 = vmatpush1.bf16.msra.mxu0 0
  %391 = vmatprep.subr.bf16.mxu0 0
  %392 = vmatpush1.bf16.msra.mxu0 0
  %393 = vmatprep.subr.bf16.mxu0 0
  %394 = vmatpush1.bf16.msra.mxu0 0
  %395 = vmatprep.subr.bf16.mxu0 0
  %396 = vmatpush1.bf16.msra.mxu0 0
  %397 = vmatprep.subr.bf16.mxu0 0
  %398 = vmatpush1.bf16.msra.mxu0 0
  %399 = vmatprep.subr.bf16.mxu0 0
  %400 = vmatpush1.bf16.msra.mxu0 0
  %401 = vmatprep.subr.bf16.mxu0 0
  %402 = vmatpush1.bf16.msra.mxu0 0
  %403 = vmatprep.mubr.bf16.mxu0 0
  %404 = vmatmul.mubr.bf16.gmra.mrb[0].mxu0 %v198
  %v405 = vpop.f32.mrb[0].mxu0
  %v406 = vadd.f32 0.0, %v405
  %v407 = vpop.f32.mrb[0].mxu0
  %v408 = vpop.f32.mrb[0].mxu0
  %v409 = vpop.f32.mrb[0].mxu0
  %410 = vdwg.mxu0
  %v443 = vunpack.c.l.b16 %v58
  %v444 = vunpack.c.h.b16 %v58
  %v445 = vunpack.c.l.b16 %v59
  %v446 = vunpack.c.l.b16 %v60
  %v447 = vunpack.c.h.b16 %v60
  %v448 = vunpack.c.l.b16 %v61
  %v449 = vunpack.c.l.b16 %v62
  %v450 = vunpack.c.h.b16 %v62
  %v451 = vunpack.c.l.b16 %v63
  %v452 = vunpack.c.l.b16 %v64
  %v453 = vunpack.c.h.b16 %v64
  %v454 = vunpack.c.l.b16 %v65
  %v455 = vunpack.c.l.b16 %v66
  %v456 = vunpack.c.h.b16 %v66
  %v457 = vunpack.c.l.b16 %v67
  %v458 = vunpack.c.l.b16 %v68
  %v459 = vunpack.c.h.b16 %v68
  %v460 = vunpack.c.l.b16 %v69
  %v461 = vunpack.c.l.b16 %v70
  %v462 = vunpack.c.h.b16 %v70
  %v463 = vunpack.c.l.b16 %v71
  %v464 = vunpack.c.l.b16 %v72
  %v465 = vunpack.c.h.b16 %v72
  %v466 = vunpack.c.l.b16 %v73
  %v467 = vunpack.c.l.b16 %v74
  %v468 = vunpack.c.h.b16 %v74
  %v469 = vunpack.c.l.b16 %v75
  %v470 = vunpack.c.l.b16 %v76
  %v471 = vunpack.c.h.b16 %v76
  %v472 = vunpack.c.l.b16 %v77
  %v473 = vunpack.c.l.b16 %v78
  %v474 = vunpack.c.h.b16 %v78
  %v475 = vunpack.c.l.b16 %v79
  %v476 = vunpack.c.l.b16 %v80
  %v477 = vunpack.c.h.b16 %v80
  %v478 = vunpack.c.l.b16 %v81
  %v479 = vunpack.c.l.b16 %v82
  %v480 = vunpack.c.h.b16 %v82
  %v481 = vunpack.c.l.b16 %v83
  %v482 = vunpack.c.l.b16 %v84
  %v483 = vunpack.c.h.b16 %v84
  %v484 = vunpack.c.l.b16 %v85
  %v485 = vunpack.c.l.b16 %v86
  %v486 = vunpack.c.h.b16 %v86
  %v487 = vunpack.c.l.b16 %v87
  %v488 = vunpack.c.l.b16 %v88
  %v489 = vunpack.c.h.b16 %v88
  %v490 = vunpack.c.l.b16 %v89
  %v491 = vpack.c.b16 %v446, %v443
  %v492 = vpack.c.b16 %v447, %v444
  %v493 = vpack.c.b16 %v448, %v445
  %v494 = vpack.c.b16 %v452, %v449
  %v495 = vpack.c.b16 %v453, %v450
  %v496 = vpack.c.b16 %v454, %v451
  %v497 = vpack.c.b16 %v458, %v455
  %v498 = vpack.c.b16 %v459, %v456
  %v499 = vpack.c.b16 %v460, %v457
  %v500 = vpack.c.b16 %v464, %v461
  %v501 = vpack.c.b16 %v465, %v462
  %v502 = vpack.c.b16 %v466, %v463
  %v503 = vpack.c.b16 %v470, %v467
  %v504 = vpack.c.b16 %v471, %v468
  %v505 = vpack.c.b16 %v472, %v469
  %v506 = vpack.c.b16 %v476, %v473
  %v507 = vpack.c.b16 %v477, %v474
  %v508 = vpack.c.b16 %v478, %v475
  %v509 = vpack.c.b16 %v482, %v479
  %v510 = vpack.c.b16 %v483, %v480
  %v511 = vpack.c.b16 %v484, %v481
  %v512 = vpack.c.b16 %v488, %v485
  %v513 = vpack.c.b16 %v489, %v486
  %v514 = vpack.c.b16 %v490, %v487
  %539 = vmatprep.subr.bf16.mxu0 %v492
  %540 = vmatpush1.bf16.msra.mxu0 %v491
  %541 = vmatprep.subr.bf16.mxu0 %v495
  %542 = vmatpush1.bf16.msra.mxu0 %v494
  %543 = vmatprep.subr.bf16.mxu0 %v498
  %544 = vmatpush1.bf16.msra.mxu0 %v497
  %545 = vmatprep.subr.bf16.mxu0 %v501
  %546 = vmatpush1.bf16.msra.mxu0 %v500
  %547 = vmatprep.subr.bf16.mxu0 %v504
  %548 = vmatpush1.bf16.msra.mxu0 %v503
  %549 = vmatprep.subr.bf16.mxu0 %v507
  %550 = vmatpush1.bf16.msra.mxu0 %v506
  %551 = vmatprep.subr.bf16.mxu0 %v510
  %552 = vmatpush1.bf16.msra.mxu0 %v509
  %553 = vmatprep.subr.bf16.mxu0 %v513
  %554 = vmatpush1.bf16.msra.mxu0 %v512
  %555 = vmatprep.subr.bf16.mxu0 0
  %556 = vmatpush1.bf16.msra.mxu0 0
  %557 = vmatprep.subr.bf16.mxu0 0
  %558 = vmatpush1.bf16.msra.mxu0 0
  %559 = vmatprep.subr.bf16.mxu0 0
  %560 = vmatpush1.bf16.msra.mxu0 0
  %561 = vmatprep.subr.bf16.mxu0 0
  %562 = vmatpush1.bf16.msra.mxu0 0
  %563 = vmatprep.subr.bf16.mxu0 0
  %564 = vmatpush1.bf16.msra.mxu0 0
  %565 = vmatprep.subr.bf16.mxu0 0
  %566 = vmatpush1.bf16.msra.mxu0 0
  %567 = vmatprep.subr.bf16.mxu0 0
  %568 = vmatpush1.bf16.msra.mxu0 0
  %569 = vmatprep.subr.bf16.mxu0 0
  %570 = vmatpush1.bf16.msra.mxu0 0
  %571 = vmatprep.mubr.bf16.mxu0 0
  %572 = vmatmul.mubr.bf16.gmra.mrb[0].mxu0 %v199
  %v573 = vpop.f32.mrb[0].mxu0
  %v574 = vadd.f32 0.0, %v573
  %v575 = vpop.f32.mrb[0].mxu0
  %v576 = vadd.f32 0.0, %v575
  %v577 = vpop.f32.mrb[0].mxu0
  %v578 = vpop.f32.mrb[0].mxu0
  %579 = vdwg.mxu0
  %580 = vmatprep.subr.bf16.mxu0 0
  %581 = vmatpush1.bf16.msra.mxu0 %v493
  %582 = vmatprep.subr.bf16.mxu0 0
  %583 = vmatpush1.bf16.msra.mxu0 %v496
  %584 = vmatprep.subr.bf16.mxu0 0
  %585 = vmatpush1.bf16.msra.mxu0 %v499
  %586 = vmatprep.subr.bf16.mxu0 0
  %587 = vmatpush1.bf16.msra.mxu0 %v502
  %588 = vmatprep.subr.bf16.mxu0 0
  %589 = vmatpush1.bf16.msra.mxu0 %v505
  %590 = vmatprep.subr.bf16.mxu0 0
  %591 = vmatpush1.bf16.msra.mxu0 %v508
  %592 = vmatprep.subr.bf16.mxu0 0
  %593 = vmatpush1.bf16.msra.mxu0 %v511
  %594 = vmatprep.subr.bf16.mxu0 0
  %595 = vmatpush1.bf16.msra.mxu0 %v514
  %596 = vmatprep.subr.bf16.mxu0 0
  %597 = vmatpush1.bf16.msra.mxu0 0
  %598 = vmatprep.subr.bf16.mxu0 0
  %599 = vmatpush1.bf16.msra.mxu0 0
  %600 = vmatprep.subr.bf16.mxu0 0
  %601 = vmatpush1.bf16.msra.mxu0 0
  %602 = vmatprep.subr.bf16.mxu0 0
  %603 = vmatpush1.bf16.msra.mxu0 0
  %604 = vmatprep.subr.bf16.mxu0 0
  %605 = vmatpush1.bf16.msra.mxu0 0
  %606 = vmatprep.subr.bf16.mxu0 0
  %607 = vmatpush1.bf16.msra.mxu0 0
  %608 = vmatprep.subr.bf16.mxu0 0
  %609 = vmatpush1.bf16.msra.mxu0 0
  %610 = vmatprep.subr.bf16.mxu0 0
  %611 = vmatpush1.bf16.msra.mxu0 0
  %612 = vmatprep.mubr.bf16.mxu0 0
  %613 = vmatmul.mubr.bf16.gmra.mrb[0].mxu0 %v199
  %v614 = vpop.f32.mrb[0].mxu0
  %v615 = vadd.f32 0.0, %v614
  %v616 = vpop.f32.mrb[0].mxu0
  %v617 = vpop.f32.mrb[0].mxu0
  %v618 = vpop.f32.mrb[0].mxu0
  %619 = vdwg.mxu0
  %v652 = vunpack.c.l.b16 %v90
  %v653 = vunpack.c.h.b16 %v90
  %v654 = vunpack.c.l.b16 %v91
  %v655 = vunpack.c.l.b16 %v92
  %v656 = vunpack.c.h.b16 %v92
  %v657 = vunpack.c.l.b16 %v93
  %v658 = vunpack.c.l.b16 %v94
  %v659 = vunpack.c.h.b16 %v94
  %v660 = vunpack.c.l.b16 %v95
  %v661 = vunpack.c.l.b16 %v96
  %v662 = vunpack.c.h.b16 %v96
  %v663 = vunpack.c.l.b16 %v97
  %v664 = vunpack.c.l.b16 %v98
  %v665 = vunpack.c.h.b16 %v98
  %v666 = vunpack.c.l.b16 %v99
  %v667 = vunpack.c.l.b16 %v100
  %v668 = vunpack.c.h.b16 %v100
  %v669 = vunpack.c.l.b16 %v101
  %v670 = vunpack.c.l.b16 %v102
  %v671 = vunpack.c.h.b16 %v102
  %v672 = vunpack.c.l.b16 %v103
  %v673 = vunpack.c.l.b16 %v104
  %v674 = vunpack.c.h.b16 %v104
  %v675 = vunpack.c.l.b16 %v105
  %v676 = vunpack.c.l.b16 %v106
  %v677 = vunpack.c.h.b16 %v106
  %v678 = vunpack.c.l.b16 %v107
  %v679 = vunpack.c.l.b16 %v108
  %v680 = vunpack.c.h.b16 %v108
  %v681 = vunpack.c.l.b16 %v109
  %v682 = vunpack.c.l.b16 %v110
  %v683 = vunpack.c.h.b16 %v110
  %v684 = vunpack.c.l.b16 %v111
  %v685 = vunpack.c.l.b16 %v112
  %v686 = vunpack.c.h.b16 %v112
  %v687 = vunpack.c.l.b16 %v113
  %v688 = vunpack.c.l.b16 %v114
  %v689 = vunpack.c.h.b16 %v114
  %v690 = vunpack.c.l.b16 %v115
  %v691 = vunpack.c.l.b16 %v116
  %v692 = vunpack.c.h.b16 %v116
  %v693 = vunpack.c.l.b16 %v117
  %v694 = vunpack.c.l.b16 %v118
  %v695 = vunpack.c.h.b16 %v118
  %v696 = vunpack.c.l.b16 %v119
  %v697 = vunpack.c.l.b16 %v120
  %v698 = vunpack.c.h.b16 %v120
  %v699 = vunpack.c.l.b16 %v121
  %v700 = vpack.c.b16 %v655, %v652
  %v701 = vpack.c.b16 %v656, %v653
  %v702 = vpack.c.b16 %v657, %v654
  %v703 = vpack.c.b16 %v661, %v658
  %v704 = vpack.c.b16 %v662, %v659
  %v705 = vpack.c.b16 %v663, %v660
  %v706 = vpack.c.b16 %v667, %v664
  %v707 = vpack.c.b16 %v668, %v665
  %v708 = vpack.c.b16 %v669, %v666
  %v709 = vpack.c.b16 %v673, %v670
  %v710 = vpack.c.b16 %v674, %v671
  %v711 = vpack.c.b16 %v675, %v672
  %v712 = vpack.c.b16 %v679, %v676
  %v713 = vpack.c.b16 %v680, %v677
  %v714 = vpack.c.b16 %v681, %v678
  %v715 = vpack.c.b16 %v685, %v682
  %v716 = vpack.c.b16 %v686, %v683
  %v717 = vpack.c.b16 %v687, %v684
  %v718 = vpack.c.b16 %v691, %v688
  %v719 = vpack.c.b16 %v692, %v689
  %v720 = vpack.c.b16 %v693, %v690
  %v721 = vpack.c.b16 %v697, %v694
  %v722 = vpack.c.b16 %v698, %v695
  %v723 = vpack.c.b16 %v699, %v696
  %748 = vmatprep.subr.bf16.mxu0 %v701
  %749 = vmatpush1.bf16.msra.mxu0 %v700
  %750 = vmatprep.subr.bf16.mxu0 %v704
  %751 = vmatpush1.bf16.msra.mxu0 %v703
  %752 = vmatprep.subr.bf16.mxu0 %v707
  %753 = vmatpush1.bf16.msra.mxu0 %v706
  %754 = vmatprep.subr.bf16.mxu0 %v710
  %755 = vmatpush1.bf16.msra.mxu0 %v709
  %756 = vmatprep.subr.bf16.mxu0 %v713
  %757 = vmatpush1.bf16.msra.mxu0 %v712
  %758 = vmatprep.subr.bf16.mxu0 %v716
  %759 = vmatpush1.bf16.msra.mxu0 %v715
  %760 = vmatprep.subr.bf16.mxu0 %v719
  %761 = vmatpush1.bf16.msra.mxu0 %v718
  %762 = vmatprep.subr.bf16.mxu0 %v722
  %763 = vmatpush1.bf16.msra.mxu0 %v721
  %764 = vmatprep.subr.bf16.mxu0 0
  %765 = vmatpush1.bf16.msra.mxu0 0
  %766 = vmatprep.subr.bf16.mxu0 0
  %767 = vmatpush1.bf16.msra.mxu0 0
  %768 = vmatprep.subr.bf16.mxu0 0
  %769 = vmatpush1.bf16.msra.mxu0 0
  %770 = vmatprep.subr.bf16.mxu0 0
  %771 = vmatpush1.bf16.msra.mxu0 0
  %772 = vmatprep.subr.bf16.mxu0 0
  %773 = vmatpush1.bf16.msra.mxu0 0
  %774 = vmatprep.subr.bf16.mxu0 0
  %775 = vmatpush1.bf16.msra.mxu0 0
  %776 = vmatprep.subr.bf16.mxu0 0
  %777 = vmatpush1.bf16.msra.mxu0 0
  %778 = vmatprep.subr.bf16.mxu0 0
  %779 = vmatpush1.bf16.msra.mxu0 0
  %780 = vmatprep.mubr.bf16.mxu0 0
  %781 = vmatmul.mubr.bf16.gmra.mrb[0].mxu0 %v200
  %v782 = vpop.f32.mrb[0].mxu0
  %v783 = vadd.f32 0.0, %v782
  %v784 = vpop.f32.mrb[0].mxu0
  %v785 = vadd.f32 0.0, %v784
  %v786 = vpop.f32.mrb[0].mxu0
  %v787 = vpop.f32.mrb[0].mxu0
  %788 = vdwg.mxu0
  %789 = vmatprep.subr.bf16.mxu0 0
  %790 = vmatpush1.bf16.msra.mxu0 %v702
  %791 = vmatprep.subr.bf16.mxu0 0
  %792 = vmatpush1.bf16.msra.mxu0 %v705
  %793 = vmatprep.subr.bf16.mxu0 0
  %794 = vmatpush1.bf16.msra.mxu0 %v708
  %795 = vmatprep.subr.bf16.mxu0 0
  %796 = vmatpush1.bf16.msra.mxu0 %v711
  %797 = vmatprep.subr.bf16.mxu0 0
  %798 = vmatpush1.bf16.msra.mxu0 %v714
  %799 = vmatprep.subr.bf16.mxu0 0
  %800 = vmatpush1.bf16.msra.mxu0 %v717
  %801 = vmatprep.subr.bf16.mxu0 0
  %802 = vmatpush1.bf16.msra.mxu0 %v720
  %803 = vmatprep.subr.bf16.mxu0 0
  %804 = vmatpush1.bf16.msra.mxu0 %v723
  %805 = vmatprep.subr.bf16.mxu0 0
  %806 = vmatpush1.bf16.msra.mxu0 0
  %807 = vmatprep.subr.bf16.mxu0 0
  %808 = vmatpush1.bf16.msra.mxu0 0
  %809 = vmatprep.subr.bf16.mxu0 0
  %810 = vmatpush1.bf16.msra.mxu0 0
  %811 = vmatprep.subr.bf16.mxu0 0
  %812 = vmatpush1.bf16.msra.mxu0 0
  %813 = vmatprep.subr.bf16.mxu0 0
  %814 = vmatpush1.bf16.msra.mxu0 0
  %815 = vmatprep.subr.bf16.mxu0 0
  %816 = vmatpush1.bf16.msra.mxu0 0
  %817 = vmatprep.subr.bf16.mxu0 0
  %818 = vmatpush1.bf16.msra.mxu0 0
  %819 = vmatprep.subr.bf16.mxu0 0
  %820 = vmatpush1.bf16.msra.mxu0 0
  %821 = vmatprep.mubr.bf16.mxu0 0
  %822 = vmatmul.mubr.bf16.gmra.mrb[0].mxu0 %v200
  %v823 = vpop.f32.mrb[0].mxu0
  %v824 = vadd.f32 0.0, %v823
  %v825 = vpop.f32.mrb[0].mxu0
  %v826 = vpop.f32.mrb[0].mxu0
  %v827 = vpop.f32.mrb[0].mxu0
  %828 = vdwg.mxu0
  %v861 = vunpack.c.l.b16 %v122
  %v862 = vunpack.c.h.b16 %v122
  %v863 = vunpack.c.l.b16 %v123
  %v864 = vunpack.c.l.b16 %v124
  %v865 = vunpack.c.h.b16 %v124
  %v866 = vunpack.c.l.b16 %v125
  %v867 = vunpack.c.l.b16 %v126
  %v868 = vunpack.c.h.b16 %v126
  %v869 = vunpack.c.l.b16 %v127
  %v870 = vunpack.c.l.b16 %v128
  %v871 = vunpack.c.h.b16 %v128
  %v872 = vunpack.c.l.b16 %v129
  %v873 = vunpack.c.l.b16 %v130
  %v874 = vunpack.c.h.b16 %v130
  %v875 = vunpack.c.l.b16 %v131
  %v876 = vunpack.c.l.b16 %v132
  %v877 = vunpack.c.h.b16 %v132
  %v878 = vunpack.c.l.b16 %v133
  %v879 = vunpack.c.l.b16 %v134
  %v880 = vunpack.c.h.b16 %v134
  %v881 = vunpack.c.l.b16 %v135
  %v882 = vunpack.c.l.b16 %v136
  %v883 = vunpack.c.h.b16 %v136
  %v884 = vunpack.c.l.b16 %v137
  %v885 = vunpack.c.l.b16 %v138
  %v886 = vunpack.c.h.b16 %v138
  %v887 = vunpack.c.l.b16 %v139
  %v888 = vunpack.c.l.b16 %v140
  %v889 = vunpack.c.h.b16 %v140
  %v890 = vunpack.c.l.b16 %v141
  %v891 = vunpack.c.l.b16 %v142
  %v892 = vunpack.c.h.b16 %v142
  %v893 = vunpack.c.l.b16 %v143
  %v894 = vunpack.c.l.b16 %v144
  %v895 = vunpack.c.h.b16 %v144
  %v896 = vunpack.c.l.b16 %v145
  %v897 = vunpack.c.l.b16 %v146
  %v898 = vunpack.c.h.b16 %v146
  %v899 = vunpack.c.l.b16 %v147
  %v900 = vunpack.c.l.b16 %v148
  %v901 = vunpack.c.h.b16 %v148
  %v902 = vunpack.c.l.b16 %v149
  %v903 = vunpack.c.l.b16 %v150
  %v904 = vunpack.c.h.b16 %v150
  %v905 = vunpack.c.l.b16 %v151
  %v906 = vunpack.c.l.b16 %v152
  %v907 = vunpack.c.h.b16 %v152
  %v908 = vunpack.c.l.b16 %v153
  %v909 = vpack.c.b16 %v864, %v861
  %v910 = vpack.c.b16 %v865, %v862
  %v911 = vpack.c.b16 %v866, %v863
  %v912 = vpack.c.b16 %v870, %v867
  %v913 = vpack.c.b16 %v871, %v868
  %v914 = vpack.c.b16 %v872, %v869
  %v915 = vpack.c.b16 %v876, %v873
  %v916 = vpack.c.b16 %v877, %v874
  %v917 = vpack.c.b16 %v878, %v875
  %v918 = vpack.c.b16 %v882, %v879
  %v919 = vpack.c.b16 %v883, %v880
  %v920 = vpack.c.b16 %v884, %v881
  %v921 = vpack.c.b16 %v888, %v885
  %v922 = vpack.c.b16 %v889, %v886
  %v923 = vpack.c.b16 %v890, %v887
  %v924 = vpack.c.b16 %v894, %v891
  %v925 = vpack.c.b16 %v895, %v892
  %v926 = vpack.c.b16 %v896, %v893
  %v927 = vpack.c.b16 %v900, %v897
  %v928 = vpack.c.b16 %v901, %v898
  %v929 = vpack.c.b16 %v902, %v899
  %v930 = vpack.c.b16 %v906, %v903
  %v931 = vpack.c.b16 %v907, %v904
  %v932 = vpack.c.b16 %v908, %v905
  %957 = vmatprep.subr.bf16.mxu0 %v910
  %958 = vmatpush1.bf16.msra.mxu0 %v909
  %959 = vmatprep.subr.bf16.mxu0 %v913
  %960 = vmatpush1.bf16.msra.mxu0 %v912
  %961 = vmatprep.subr.bf16.mxu0 %v916
  %962 = vmatpush1.bf16.msra.mxu0 %v915
  %963 = vmatprep.subr.bf16.mxu0 %v919
  %964 = vmatpush1.bf16.msra.mxu0 %v918
  %965 = vmatprep.subr.bf16.mxu0 %v922
  %966 = vmatpush1.bf16.msra.mxu0 %v921
  %967 = vmatprep.subr.bf16.mxu0 %v925
  %968 = vmatpush1.bf16.msra.mxu0 %v924
  %969 = vmatprep.subr.bf16.mxu0 %v928
  %970 = vmatpush1.bf16.msra.mxu0 %v927
  %971 = vmatprep.subr.bf16.mxu0 %v931
  %972 = vmatpush1.bf16.msra.mxu0 %v930
  %973 = vmatprep.subr.bf16.mxu0 0
  %974 = vmatpush1.bf16.msra.mxu0 0
  %975 = vmatprep.subr.bf16.mxu0 0
  %976 = vmatpush1.bf16.msra.mxu0 0
  %977 = vmatprep.subr.bf16.mxu0 0
  %978 = vmatpush1.bf16.msra.mxu0 0
  %979 = vmatprep.subr.bf16.mxu0 0
  %980 = vmatpush1.bf16.msra.mxu0 0
  %981 = vmatprep.subr.bf16.mxu0 0
  %982 = vmatpush1.bf16.msra.mxu0 0
  %983 = vmatprep.subr.bf16.mxu0 0
  %984 = vmatpush1.bf16.msra.mxu0 0
  %985 = vmatprep.subr.bf16.mxu0 0
  %986 = vmatpush1.bf16.msra.mxu0 0
  %987 = vmatprep.subr.bf16.mxu0 0
  %988 = vmatpush1.bf16.msra.mxu0 0
  %989 = vmatprep.mubr.bf16.mxu0 0
  %990 = vmatmul.mubr.bf16.gmra.mrb[0].mxu0 %v201
  %v991 = vpop.f32.mrb[0].mxu0
  %v992 = vadd.f32 0.0, %v991
  %v993 = vpop.f32.mrb[0].mxu0
  %v994 = vadd.f32 0.0, %v993
  %v995 = vpop.f32.mrb[0].mxu0
  %v996 = vpop.f32.mrb[0].mxu0
  %997 = vdwg.mxu0
  %998 = vmatprep.subr.bf16.mxu0 0
  %999 = vmatpush1.bf16.msra.mxu0 %v911
  %1000 = vmatprep.subr.bf16.mxu0 0
  %1001 = vmatpush1.bf16.msra.mxu0 %v914
  %1002 = vmatprep.subr.bf16.mxu0 0
  %1003 = vmatpush1.bf16.msra.mxu0 %v917
  %1004 = vmatprep.subr.bf16.mxu0 0
  %1005 = vmatpush1.bf16.msra.mxu0 %v920
  %1006 = vmatprep.subr.bf16.mxu0 0
  %1007 = vmatpush1.bf16.msra.mxu0 %v923
  %1008 = vmatprep.subr.bf16.mxu0 0
  %1009 = vmatpush1.bf16.msra.mxu0 %v926
  %1010 = vmatprep.subr.bf16.mxu0 0
  %1011 = vmatpush1.bf16.msra.mxu0 %v929
  %1012 = vmatprep.subr.bf16.mxu0 0
  %1013 = vmatpush1.bf16.msra.mxu0 %v932
  %1014 = vmatprep.subr.bf16.mxu0 0
  %1015 = vmatpush1.bf16.msra.mxu0 0
  %1016 = vmatprep.subr.bf16.mxu0 0
  %1017 = vmatpush1.bf16.msra.mxu0 0
  %1018 = vmatprep.subr.bf16.mxu0 0
  %1019 = vmatpush1.bf16.msra.mxu0 0
  %1020 = vmatprep.subr.bf16.mxu0 0
  %1021 = vmatpush1.bf16.msra.mxu0 0
  %1022 = vmatprep.subr.bf16.mxu0 0
  %1023 = vmatpush1.bf16.msra.mxu0 0
  %1024 = vmatprep.subr.bf16.mxu0 0
  %1025 = vmatpush1.bf16.msra.mxu0 0
  %1026 = vmatprep.subr.bf16.mxu0 0
  %1027 = vmatpush1.bf16.msra.mxu0 0
  %1028 = vmatprep.subr.bf16.mxu0 0
  %1029 = vmatpush1.bf16.msra.mxu0 0
  %1030 = vmatprep.mubr.bf16.mxu0 0
  %1031 = vmatmul.mubr.bf16.gmra.mrb[0].mxu0 %v201
  %v1032 = vpop.f32.mrb[0].mxu0
  %v1033 = vadd.f32 0.0, %v1032
  %v1034 = vpop.f32.mrb[0].mxu0
  %v1035 = vpop.f32.mrb[0].mxu0
  %v1036 = vpop.f32.mrb[0].mxu0
  %1037 = vdwg.mxu0
  %v1038 = vunpack.c.l.bf16 %v190
  %v1039 = vunpack.c.h.bf16 %v190
  %v1040 = vunpack.c.l.bf16 %v192
  %v1041 = vunpack.c.h.bf16 %v192
  %v1042 = vunpack.c.l.bf16 %v194
  %v1043 = vunpack.c.h.bf16 %v194
  %v1044 = vunpack.c.l.bf16 %v196
  %v1045 = vunpack.c.h.bf16 %v196
  %v1046 = vadd.f32 %v1038, %v365
  %v1047 = vadd.f32 %v1039, %v367
  %v1048 = vadd.f32 %v1040, %v574
  %v1049 = vadd.f32 %v1041, %v576
  %v1050 = vadd.f32 %v1042, %v783
  %v1051 = vadd.f32 %v1043, %v785
  %v1052 = vadd.f32 %v1044, %v992
  %v1053 = vadd.f32 %v1045, %v994
  %v1054 = vxor.u32 %v1046, 2147483648
  %v1055 = vxor.u32 %v1047, 2147483648
  %v1056 = vxor.u32 %v1048, 2147483648
  %v1057 = vxor.u32 %v1049, 2147483648
  %v1058 = vxor.u32 %v1050, 2147483648
  %v1059 = vxor.u32 %v1051, 2147483648
  %v1060 = vxor.u32 %v1052, 2147483648
  %v1061 = vxor.u32 %v1053, 2147483648
  %v1062 = vmul.f32 %v1054, 1.442695
  %v1063 = vpow.pop %v1062
  %v1064 = vmul.f32 %v1055, 1.442695
  %v1065 = vpow.pop %v1064
  %v1066 = vmul.f32 %v1056, 1.442695
  %v1067 = vpow.pop %v1066
  %v1068 = vmul.f32 %v1057, 1.442695
  %v1069 = vpow.pop %v1068
  %v1070 = vmul.f32 %v1058, 1.442695
  %v1071 = vpow.pop %v1070
  %v1072 = vmul.f32 %v1059, 1.442695
  %v1073 = vpow.pop %v1072
  %v1074 = vmul.f32 %v1060, 1.442695
  %v1075 = vpow.pop %v1074
  %v1076 = vmul.f32 %v1061, 1.442695
  %v1077 = vpow.pop %v1076
  %v1078 = vadd.f32 %v1063, 1.0
  %v1079 = vadd.f32 %v1065, 1.0
  %v1080 = vadd.f32 %v1067, 1.0
  %v1081 = vadd.f32 %v1069, 1.0
  %v1082 = vadd.f32 %v1071, 1.0
  %v1083 = vadd.f32 %v1073, 1.0
  %v1084 = vadd.f32 %v1075, 1.0
  %v1085 = vadd.f32 %v1077, 1.0
  %v1086 = vrcp.pop %v1078
  %v1087 = vmul.f32 1.0, %v1086
  %v1088 = vrcp.pop %v1079
  %v1089 = vmul.f32 1.0, %v1088
  %v1090 = vrcp.pop %v1080
  %v1091 = vmul.f32 1.0, %v1090
  %v1092 = vrcp.pop %v1081
  %v1093 = vmul.f32 1.0, %v1092
  %v1094 = vrcp.pop %v1082
  %v1095 = vmul.f32 1.0, %v1094
  %v1096 = vrcp.pop %v1083
  %v1097 = vmul.f32 1.0, %v1096
  %v1098 = vrcp.pop %v1084
  %v1099 = vmul.f32 1.0, %v1098
  %v1100 = vrcp.pop %v1085
  %v1101 = vmul.f32 1.0, %v1100
  %v1102 = vadd.f32 %v406, %v165
  %v1103 = vadd.f32 %v615, %v169
  %v1104 = vadd.f32 %v824, %v173
  %v1105 = vadd.f32 %v1033, %v177
  %v1106 = vmul.f32 %v1087, %v1102
  %v1107 = vmul.f32 %v1091, %v1103
  %v1108 = vmul.f32 %v1095, %v1104
  %v1109 = vmul.f32 %v1099, %v1105
  %v1110 = vunpack.c.l.bf16 %v191
  %v1111 = vunpack.c.l.bf16 %v193
  %v1112 = vunpack.c.l.bf16 %v195
  %v1113 = vunpack.c.l.bf16 %v197
  %v1114 = vadd.f32 %v1110, %v1106
  %v1115 = vadd.f32 %v1111, %v1107
  %v1116 = vadd.f32 %v1112, %v1108
  %v1117 = vadd.f32 %v1113, %v1109
  %v1118 = vtanh.pop %v1114
  %v1119 = vtanh.pop %v1115
  %v1120 = vtanh.pop %v1116
  %v1121 = vtanh.pop %v1117
  %v1122 = vsub.f32 1.0, %v1089
  %v1123 = vsub.f32 1.0, %v1093
  %v1124 = vsub.f32 1.0, %v1097
  %v1125 = vsub.f32 1.0, %v1101
  %v1126 = vsub.f32 %v1118, %v186
  %v1127 = vsub.f32 %v1119, %v187
  %v1128 = vsub.f32 %v1120, %v188
  %v1129 = vsub.f32 %v1121, %v189
  %v1130 = vmul.f32 %v1122, %v1126
  %v1131 = vmul.f32 %v1123, %v1127
  %v1132 = vmul.f32 %v1124, %v1128
  %v1133 = vmul.f32 %v1125, %v1129
  %vm1134 = vcmp.gt.s32.totalorder %v182, 0
  %vm1135 = vcmp.gt.s32.totalorder %v183, 0
  %vm1136 = vcmp.gt.s32.totalorder %v184, 0
  %vm1137 = vcmp.gt.s32.totalorder %v185, 0
  %v1138 = vsel %vm1134, %v1130, 0.0
  %v1139 = vsel %vm1135, %v1131, 0.0
  %v1140 = vsel %vm1136, %v1132, 0.0
  %v1141 = vsel %vm1137, %v1133, 0.0
  %v1142 = vadd.f32 %v186, %v1138
  %v1143 = vadd.f32 %v187, %v1139
  %v1144 = vadd.f32 %v188, %v1140
  %v1145 = vadd.f32 %v189, %v1141
  %s1146 = scalar_lea.vmem %s0, 48
  %v1147 = vld [vmem:[%s1146] sm:$0xff]
  %v1148 = vld [vmem:[%s1146 + $0x8] sm:$0xf]
  %v1149 = vld [vmem:[%s1146 + $0xc] sm:$0xff]
  %v1150 = vld [vmem:[%s1146 + $0x14] sm:$0xf]
  %v1151 = vld [vmem:[%s1146 + $0x18] sm:$0xff]
  %v1152 = vld [vmem:[%s1146 + $0x20] sm:$0xf]
  %v1153 = vld [vmem:[%s1146 + $0x24] sm:$0xff]
  %v1154 = vld [vmem:[%s1146 + $0x2c] sm:$0xf]
  %v1155 = vpack.c.bf16 %v1142, %v1142
  %v1156 = vpack.c.bf16 %v1143, %v1143
  %v1157 = vpack.c.bf16 %v1144, %v1144
  %v1158 = vpack.c.bf16 %v1145, %v1145
  %1159 = vmatprep.subr.bf16.mxu0 %v283
  %1160 = vmatpush1.bf16.msra.mxu0 %v282
  %1161 = vmatprep.subr.bf16.mxu0 %v286
  %1162 = vmatpush1.bf16.msra.mxu0 %v285
  %1163 = vmatprep.subr.bf16.mxu0 %v289
  %1164 = vmatpush1.bf16.msra.mxu0 %v288
  %1165 = vmatprep.subr.bf16.mxu0 %v292
  %1166 = vmatpush1.bf16.msra.mxu0 %v291
  %1167 = vmatprep.subr.bf16.mxu0 %v295
  %1168 = vmatpush1.bf16.msra.mxu0 %v294
  %1169 = vmatprep.subr.bf16.mxu0 %v298
  %1170 = vmatpush1.bf16.msra.mxu0 %v297
  %1171 = vmatprep.subr.bf16.mxu0 %v301
  %1172 = vmatpush1.bf16.msra.mxu0 %v300
  %1173 = vmatprep.subr.bf16.mxu0 %v304
  %1174 = vmatpush1.bf16.msra.mxu0 %v303
  %1175 = vmatprep.subr.bf16.mxu0 0
  %1176 = vmatpush1.bf16.msra.mxu0 0
  %1177 = vmatprep.subr.bf16.mxu0 0
  %1178 = vmatpush1.bf16.msra.mxu0 0
  %1179 = vmatprep.subr.bf16.mxu0 0
  %1180 = vmatpush1.bf16.msra.mxu0 0
  %1181 = vmatprep.subr.bf16.mxu0 0
  %1182 = vmatpush1.bf16.msra.mxu0 0
  %1183 = vmatprep.subr.bf16.mxu0 0
  %1184 = vmatpush1.bf16.msra.mxu0 0
  %1185 = vmatprep.subr.bf16.mxu0 0
  %1186 = vmatpush1.bf16.msra.mxu0 0
  %1187 = vmatprep.subr.bf16.mxu0 0
  %1188 = vmatpush1.bf16.msra.mxu0 0
  %1189 = vmatprep.subr.bf16.mxu0 0
  %1190 = vmatpush1.bf16.msra.mxu0 0
  %1191 = vmatprep.mubr.bf16.mxu0 0
  %1192 = vmatmul.mubr.bf16.gmra.mrb[0].mxu0 %v1155
  %v1193 = vpop.f32.mrb[0].mxu0
  %v1194 = vadd.f32 0.0, %v1193
  %v1195 = vpop.f32.mrb[0].mxu0
  %v1196 = vadd.f32 0.0, %v1195
  %v1197 = vpop.f32.mrb[0].mxu0
  %v1198 = vpop.f32.mrb[0].mxu0
  %1199 = vdwg.mxu0
  %1200 = vmatprep.subr.bf16.mxu0 0
  %1201 = vmatpush1.bf16.msra.mxu0 %v284
  %1202 = vmatprep.subr.bf16.mxu0 0
  %1203 = vmatpush1.bf16.msra.mxu0 %v287
  %1204 = vmatprep.subr.bf16.mxu0 0
  %1205 = vmatpush1.bf16.msra.mxu0 %v290
  %1206 = vmatprep.subr.bf16.mxu0 0
  %1207 = vmatpush1.bf16.msra.mxu0 %v293
  %1208 = vmatprep.subr.bf16.mxu0 0
  %1209 = vmatpush1.bf16.msra.mxu0 %v296
  %1210 = vmatprep.subr.bf16.mxu0 0
  %1211 = vmatpush1.bf16.msra.mxu0 %v299
  %1212 = vmatprep.subr.bf16.mxu0 0
  %1213 = vmatpush1.bf16.msra.mxu0 %v302
  %1214 = vmatprep.subr.bf16.mxu0 0
  %1215 = vmatpush1.bf16.msra.mxu0 %v305
  %1216 = vmatprep.subr.bf16.mxu0 0
  %1217 = vmatpush1.bf16.msra.mxu0 0
  %1218 = vmatprep.subr.bf16.mxu0 0
  %1219 = vmatpush1.bf16.msra.mxu0 0
  %1220 = vmatprep.subr.bf16.mxu0 0
  %1221 = vmatpush1.bf16.msra.mxu0 0
  %1222 = vmatprep.subr.bf16.mxu0 0
  %1223 = vmatpush1.bf16.msra.mxu0 0
  %1224 = vmatprep.subr.bf16.mxu0 0
  %1225 = vmatpush1.bf16.msra.mxu0 0
  %1226 = vmatprep.subr.bf16.mxu0 0
  %1227 = vmatpush1.bf16.msra.mxu0 0
  %1228 = vmatprep.subr.bf16.mxu0 0
  %1229 = vmatpush1.bf16.msra.mxu0 0
  %1230 = vmatprep.subr.bf16.mxu0 0
  %1231 = vmatpush1.bf16.msra.mxu0 0
  %1232 = vmatprep.mubr.bf16.mxu0 0
  %1233 = vmatmul.mubr.bf16.gmra.mrb[0].mxu0 %v1155
  %v1234 = vpop.f32.mrb[0].mxu0
  %v1235 = vadd.f32 0.0, %v1234
  %v1236 = vpop.f32.mrb[0].mxu0
  %v1237 = vpop.f32.mrb[0].mxu0
  %v1238 = vpop.f32.mrb[0].mxu0
  %1239 = vdwg.mxu0
  %1240 = vmatprep.subr.bf16.mxu0 %v492
  %1241 = vmatpush1.bf16.msra.mxu0 %v491
  %1242 = vmatprep.subr.bf16.mxu0 %v495
  %1243 = vmatpush1.bf16.msra.mxu0 %v494
  %1244 = vmatprep.subr.bf16.mxu0 %v498
  %1245 = vmatpush1.bf16.msra.mxu0 %v497
  %1246 = vmatprep.subr.bf16.mxu0 %v501
  %1247 = vmatpush1.bf16.msra.mxu0 %v500
  %1248 = vmatprep.subr.bf16.mxu0 %v504
  %1249 = vmatpush1.bf16.msra.mxu0 %v503
  %1250 = vmatprep.subr.bf16.mxu0 %v507
  %1251 = vmatpush1.bf16.msra.mxu0 %v506
  %1252 = vmatprep.subr.bf16.mxu0 %v510
  %1253 = vmatpush1.bf16.msra.mxu0 %v509
  %1254 = vmatprep.subr.bf16.mxu0 %v513
  %1255 = vmatpush1.bf16.msra.mxu0 %v512
  %1256 = vmatprep.subr.bf16.mxu0 0
  %1257 = vmatpush1.bf16.msra.mxu0 0
  %1258 = vmatprep.subr.bf16.mxu0 0
  %1259 = vmatpush1.bf16.msra.mxu0 0
  %1260 = vmatprep.subr.bf16.mxu0 0
  %1261 = vmatpush1.bf16.msra.mxu0 0
  %1262 = vmatprep.subr.bf16.mxu0 0
  %1263 = vmatpush1.bf16.msra.mxu0 0
  %1264 = vmatprep.subr.bf16.mxu0 0
  %1265 = vmatpush1.bf16.msra.mxu0 0
  %1266 = vmatprep.subr.bf16.mxu0 0
  %1267 = vmatpush1.bf16.msra.mxu0 0
  %1268 = vmatprep.subr.bf16.mxu0 0
  %1269 = vmatpush1.bf16.msra.mxu0 0
  %1270 = vmatprep.subr.bf16.mxu0 0
  %1271 = vmatpush1.bf16.msra.mxu0 0
  %1272 = vmatprep.mubr.bf16.mxu0 0
  %1273 = vmatmul.mubr.bf16.gmra.mrb[0].mxu0 %v1156
  %v1274 = vpop.f32.mrb[0].mxu0
  %v1275 = vadd.f32 0.0, %v1274
  %v1276 = vpop.f32.mrb[0].mxu0
  %v1277 = vadd.f32 0.0, %v1276
  %v1278 = vpop.f32.mrb[0].mxu0
  %v1279 = vpop.f32.mrb[0].mxu0
  %1280 = vdwg.mxu0
  %1281 = vmatprep.subr.bf16.mxu0 0
  %1282 = vmatpush1.bf16.msra.mxu0 %v493
  %1283 = vmatprep.subr.bf16.mxu0 0
  %1284 = vmatpush1.bf16.msra.mxu0 %v496
  %1285 = vmatprep.subr.bf16.mxu0 0
  %1286 = vmatpush1.bf16.msra.mxu0 %v499
  %1287 = vmatprep.subr.bf16.mxu0 0
  %1288 = vmatpush1.bf16.msra.mxu0 %v502
  %1289 = vmatprep.subr.bf16.mxu0 0
  %1290 = vmatpush1.bf16.msra.mxu0 %v505
  %1291 = vmatprep.subr.bf16.mxu0 0
  %1292 = vmatpush1.bf16.msra.mxu0 %v508
  %1293 = vmatprep.subr.bf16.mxu0 0
  %1294 = vmatpush1.bf16.msra.mxu0 %v511
  %1295 = vmatprep.subr.bf16.mxu0 0
  %1296 = vmatpush1.bf16.msra.mxu0 %v514
  %1297 = vmatprep.subr.bf16.mxu0 0
  %1298 = vmatpush1.bf16.msra.mxu0 0
  %1299 = vmatprep.subr.bf16.mxu0 0
  %1300 = vmatpush1.bf16.msra.mxu0 0
  %1301 = vmatprep.subr.bf16.mxu0 0
  %1302 = vmatpush1.bf16.msra.mxu0 0
  %1303 = vmatprep.subr.bf16.mxu0 0
  %1304 = vmatpush1.bf16.msra.mxu0 0
  %1305 = vmatprep.subr.bf16.mxu0 0
  %1306 = vmatpush1.bf16.msra.mxu0 0
  %1307 = vmatprep.subr.bf16.mxu0 0
  %1308 = vmatpush1.bf16.msra.mxu0 0
  %1309 = vmatprep.subr.bf16.mxu0 0
  %1310 = vmatpush1.bf16.msra.mxu0 0
  %1311 = vmatprep.subr.bf16.mxu0 0
  %1312 = vmatpush1.bf16.msra.mxu0 0
  %1313 = vmatprep.mubr.bf16.mxu0 0
  %1314 = vmatmul.mubr.bf16.gmra.mrb[0].mxu0 %v1156
  %v1315 = vpop.f32.mrb[0].mxu0
  %v1316 = vadd.f32 0.0, %v1315
  %v1317 = vpop.f32.mrb[0].mxu0
  %v1318 = vpop.f32.mrb[0].mxu0
  %v1319 = vpop.f32.mrb[0].mxu0
  %1320 = vdwg.mxu0
  %1321 = vmatprep.subr.bf16.mxu0 %v701
  %1322 = vmatpush1.bf16.msra.mxu0 %v700
  %1323 = vmatprep.subr.bf16.mxu0 %v704
  %1324 = vmatpush1.bf16.msra.mxu0 %v703
  %1325 = vmatprep.subr.bf16.mxu0 %v707
  %1326 = vmatpush1.bf16.msra.mxu0 %v706
  %1327 = vmatprep.subr.bf16.mxu0 %v710
  %1328 = vmatpush1.bf16.msra.mxu0 %v709
  %1329 = vmatprep.subr.bf16.mxu0 %v713
  %1330 = vmatpush1.bf16.msra.mxu0 %v712
  %1331 = vmatprep.subr.bf16.mxu0 %v716
  %1332 = vmatpush1.bf16.msra.mxu0 %v715
  %1333 = vmatprep.subr.bf16.mxu0 %v719
  %1334 = vmatpush1.bf16.msra.mxu0 %v718
  %1335 = vmatprep.subr.bf16.mxu0 %v722
  %1336 = vmatpush1.bf16.msra.mxu0 %v721
  %1337 = vmatprep.subr.bf16.mxu0 0
  %1338 = vmatpush1.bf16.msra.mxu0 0
  %1339 = vmatprep.subr.bf16.mxu0 0
  %1340 = vmatpush1.bf16.msra.mxu0 0
  %1341 = vmatprep.subr.bf16.mxu0 0
  %1342 = vmatpush1.bf16.msra.mxu0 0
  %1343 = vmatprep.subr.bf16.mxu0 0
  %1344 = vmatpush1.bf16.msra.mxu0 0
  %1345 = vmatprep.subr.bf16.mxu0 0
  %1346 = vmatpush1.bf16.msra.mxu0 0
  %1347 = vmatprep.subr.bf16.mxu0 0
  %1348 = vmatpush1.bf16.msra.mxu0 0
  %1349 = vmatprep.subr.bf16.mxu0 0
  %1350 = vmatpush1.bf16.msra.mxu0 0
  %1351 = vmatprep.subr.bf16.mxu0 0
  %1352 = vmatpush1.bf16.msra.mxu0 0
  %1353 = vmatprep.mubr.bf16.mxu0 0
  %1354 = vmatmul.mubr.bf16.gmra.mrb[0].mxu0 %v1157
  %v1355 = vpop.f32.mrb[0].mxu0
  %v1356 = vadd.f32 0.0, %v1355
  %v1357 = vpop.f32.mrb[0].mxu0
  %v1358 = vadd.f32 0.0, %v1357
  %v1359 = vpop.f32.mrb[0].mxu0
  %v1360 = vpop.f32.mrb[0].mxu0
  %1361 = vdwg.mxu0
  %1362 = vmatprep.subr.bf16.mxu0 0
  %1363 = vmatpush1.bf16.msra.mxu0 %v702
  %1364 = vmatprep.subr.bf16.mxu0 0
  %1365 = vmatpush1.bf16.msra.mxu0 %v705
  %1366 = vmatprep.subr.bf16.mxu0 0
  %1367 = vmatpush1.bf16.msra.mxu0 %v708
  %1368 = vmatprep.subr.bf16.mxu0 0
  %1369 = vmatpush1.bf16.msra.mxu0 %v711
  %1370 = vmatprep.subr.bf16.mxu0 0
  %1371 = vmatpush1.bf16.msra.mxu0 %v714
  %1372 = vmatprep.subr.bf16.mxu0 0
  %1373 = vmatpush1.bf16.msra.mxu0 %v717
  %1374 = vmatprep.subr.bf16.mxu0 0
  %1375 = vmatpush1.bf16.msra.mxu0 %v720
  %1376 = vmatprep.subr.bf16.mxu0 0
  %1377 = vmatpush1.bf16.msra.mxu0 %v723
  %1378 = vmatprep.subr.bf16.mxu0 0
  %1379 = vmatpush1.bf16.msra.mxu0 0
  %1380 = vmatprep.subr.bf16.mxu0 0
  %1381 = vmatpush1.bf16.msra.mxu0 0
  %1382 = vmatprep.subr.bf16.mxu0 0
  %1383 = vmatpush1.bf16.msra.mxu0 0
  %1384 = vmatprep.subr.bf16.mxu0 0
  %1385 = vmatpush1.bf16.msra.mxu0 0
  %1386 = vmatprep.subr.bf16.mxu0 0
  %1387 = vmatpush1.bf16.msra.mxu0 0
  %1388 = vmatprep.subr.bf16.mxu0 0
  %1389 = vmatpush1.bf16.msra.mxu0 0
  %1390 = vmatprep.subr.bf16.mxu0 0
  %1391 = vmatpush1.bf16.msra.mxu0 0
  %1392 = vmatprep.subr.bf16.mxu0 0
  %1393 = vmatpush1.bf16.msra.mxu0 0
  %1394 = vmatprep.mubr.bf16.mxu0 0
  %1395 = vmatmul.mubr.bf16.gmra.mrb[0].mxu0 %v1157
  %v1396 = vpop.f32.mrb[0].mxu0
  %v1397 = vadd.f32 0.0, %v1396
  %v1398 = vpop.f32.mrb[0].mxu0
  %v1399 = vpop.f32.mrb[0].mxu0
  %v1400 = vpop.f32.mrb[0].mxu0
  %1401 = vdwg.mxu0
  %1402 = vmatprep.subr.bf16.mxu0 %v910
  %1403 = vmatpush1.bf16.msra.mxu0 %v909
  %1404 = vmatprep.subr.bf16.mxu0 %v913
  %1405 = vmatpush1.bf16.msra.mxu0 %v912
  %1406 = vmatprep.subr.bf16.mxu0 %v916
  %1407 = vmatpush1.bf16.msra.mxu0 %v915
  %1408 = vmatprep.subr.bf16.mxu0 %v919
  %1409 = vmatpush1.bf16.msra.mxu0 %v918
  %1410 = vmatprep.subr.bf16.mxu0 %v922
  %1411 = vmatpush1.bf16.msra.mxu0 %v921
  %1412 = vmatprep.subr.bf16.mxu0 %v925
  %1413 = vmatpush1.bf16.msra.mxu0 %v924
  %1414 = vmatprep.subr.bf16.mxu0 %v928
  %1415 = vmatpush1.bf16.msra.mxu0 %v927
  %1416 = vmatprep.subr.bf16.mxu0 %v931
  %1417 = vmatpush1.bf16.msra.mxu0 %v930
  %1418 = vmatprep.subr.bf16.mxu0 0
  %1419 = vmatpush1.bf16.msra.mxu0 0
  %1420 = vmatprep.subr.bf16.mxu0 0
  %1421 = vmatpush1.bf16.msra.mxu0 0
  %1422 = vmatprep.subr.bf16.mxu0 0
  %1423 = vmatpush1.bf16.msra.mxu0 0
  %1424 = vmatprep.subr.bf16.mxu0 0
  %1425 = vmatpush1.bf16.msra.mxu0 0
  %1426 = vmatprep.subr.bf16.mxu0 0
  %1427 = vmatpush1.bf16.msra.mxu0 0
  %1428 = vmatprep.subr.bf16.mxu0 0
  %1429 = vmatpush1.bf16.msra.mxu0 0
  %1430 = vmatprep.subr.bf16.mxu0 0
  %1431 = vmatpush1.bf16.msra.mxu0 0
  %1432 = vmatprep.subr.bf16.mxu0 0
  %1433 = vmatpush1.bf16.msra.mxu0 0
  %1434 = vmatprep.mubr.bf16.mxu0 0
  %1435 = vmatmul.mubr.bf16.gmra.mrb[0].mxu0 %v1158
  %v1436 = vpop.f32.mrb[0].mxu0
  %v1437 = vadd.f32 0.0, %v1436
  %v1438 = vpop.f32.mrb[0].mxu0
  %v1439 = vadd.f32 0.0, %v1438
  %v1440 = vpop.f32.mrb[0].mxu0
  %v1441 = vpop.f32.mrb[0].mxu0
  %1442 = vdwg.mxu0
  %1443 = vmatprep.subr.bf16.mxu0 0
  %1444 = vmatpush1.bf16.msra.mxu0 %v911
  %1445 = vmatprep.subr.bf16.mxu0 0
  %1446 = vmatpush1.bf16.msra.mxu0 %v914
  %1447 = vmatprep.subr.bf16.mxu0 0
  %1448 = vmatpush1.bf16.msra.mxu0 %v917
  %1449 = vmatprep.subr.bf16.mxu0 0
  %1450 = vmatpush1.bf16.msra.mxu0 %v920
  %1451 = vmatprep.subr.bf16.mxu0 0
  %1452 = vmatpush1.bf16.msra.mxu0 %v923
  %1453 = vmatprep.subr.bf16.mxu0 0
  %1454 = vmatpush1.bf16.msra.mxu0 %v926
  %1455 = vmatprep.subr.bf16.mxu0 0
  %1456 = vmatpush1.bf16.msra.mxu0 %v929
  %1457 = vmatprep.subr.bf16.mxu0 0
  %1458 = vmatpush1.bf16.msra.mxu0 %v932
  %1459 = vmatprep.subr.bf16.mxu0 0
  %1460 = vmatpush1.bf16.msra.mxu0 0
  %1461 = vmatprep.subr.bf16.mxu0 0
  %1462 = vmatpush1.bf16.msra.mxu0 0
  %1463 = vmatprep.subr.bf16.mxu0 0
  %1464 = vmatpush1.bf16.msra.mxu0 0
  %1465 = vmatprep.subr.bf16.mxu0 0
  %1466 = vmatpush1.bf16.msra.mxu0 0
  %1467 = vmatprep.subr.bf16.mxu0 0
  %1468 = vmatpush1.bf16.msra.mxu0 0
  %1469 = vmatprep.subr.bf16.mxu0 0
  %1470 = vmatpush1.bf16.msra.mxu0 0
  %1471 = vmatprep.subr.bf16.mxu0 0
  %1472 = vmatpush1.bf16.msra.mxu0 0
  %1473 = vmatprep.subr.bf16.mxu0 0
  %1474 = vmatpush1.bf16.msra.mxu0 0
  %1475 = vmatprep.mubr.bf16.mxu0 0
  %1476 = vmatmul.mubr.bf16.gmra.mrb[0].mxu0 %v1158
  %v1477 = vpop.f32.mrb[0].mxu0
  %v1478 = vadd.f32 0.0, %v1477
  %v1479 = vpop.f32.mrb[0].mxu0
  %v1480 = vpop.f32.mrb[0].mxu0
  %v1481 = vpop.f32.mrb[0].mxu0
  %1482 = vdwg.mxu0
  %v1483 = vunpack.c.l.bf16 %v1147
  %v1484 = vunpack.c.h.bf16 %v1147
  %v1485 = vunpack.c.l.bf16 %v1149
  %v1486 = vunpack.c.h.bf16 %v1149
  %v1487 = vunpack.c.l.bf16 %v1151
  %v1488 = vunpack.c.h.bf16 %v1151
  %v1489 = vunpack.c.l.bf16 %v1153
  %v1490 = vunpack.c.h.bf16 %v1153
  %v1491 = vadd.f32 %v1483, %v1194
  %v1492 = vadd.f32 %v1484, %v1196
  %v1493 = vadd.f32 %v1485, %v1275
  %v1494 = vadd.f32 %v1486, %v1277
  %v1495 = vadd.f32 %v1487, %v1356
  %v1496 = vadd.f32 %v1488, %v1358
  %v1497 = vadd.f32 %v1489, %v1437
  %v1498 = vadd.f32 %v1490, %v1439
  %v1499 = vxor.u32 %v1491, 2147483648
  %v1500 = vxor.u32 %v1492, 2147483648
  %v1501 = vxor.u32 %v1493, 2147483648
  %v1502 = vxor.u32 %v1494, 2147483648
  %v1503 = vxor.u32 %v1495, 2147483648
  %v1504 = vxor.u32 %v1496, 2147483648
  %v1505 = vxor.u32 %v1497, 2147483648
  %v1506 = vxor.u32 %v1498, 2147483648
  %v1507 = vmul.f32 %v1499, 1.442695
  %v1508 = vpow.pop %v1507
  %v1509 = vmul.f32 %v1500, 1.442695
  %v1510 = vpow.pop %v1509
  %v1511 = vmul.f32 %v1501, 1.442695
  %v1512 = vpow.pop %v1511
  %v1513 = vmul.f32 %v1502, 1.442695
  %v1514 = vpow.pop %v1513
  %v1515 = vmul.f32 %v1503, 1.442695
  %v1516 = vpow.pop %v1515
  %v1517 = vmul.f32 %v1504, 1.442695
  %v1518 = vpow.pop %v1517
  %v1519 = vmul.f32 %v1505, 1.442695
  %v1520 = vpow.pop %v1519
  %v1521 = vmul.f32 %v1506, 1.442695
  %v1522 = vpow.pop %v1521
  %v1523 = vadd.f32 %v1508, 1.0
  %v1524 = vadd.f32 %v1510, 1.0
  %v1525 = vadd.f32 %v1512, 1.0
  %v1526 = vadd.f32 %v1514, 1.0
  %v1527 = vadd.f32 %v1516, 1.0
  %v1528 = vadd.f32 %v1518, 1.0
  %v1529 = vadd.f32 %v1520, 1.0
  %v1530 = vadd.f32 %v1522, 1.0
  %v1531 = vrcp.pop %v1523
  %v1532 = vmul.f32 1.0, %v1531
  %v1533 = vrcp.pop %v1524
  %v1534 = vmul.f32 1.0, %v1533
  %v1535 = vrcp.pop %v1525
  %v1536 = vmul.f32 1.0, %v1535
  %v1537 = vrcp.pop %v1526
  %v1538 = vmul.f32 1.0, %v1537
  %v1539 = vrcp.pop %v1527
  %v1540 = vmul.f32 1.0, %v1539
  %v1541 = vrcp.pop %v1528
  %v1542 = vmul.f32 1.0, %v1541
  %v1543 = vrcp.pop %v1529
  %v1544 = vmul.f32 1.0, %v1543
  %v1545 = vrcp.pop %v1530
  %v1546 = vmul.f32 1.0, %v1545
  %v1547 = vadd.f32 %v1235, %v165
  %v1548 = vadd.f32 %v1316, %v169
  %v1549 = vadd.f32 %v1397, %v173
  %v1550 = vadd.f32 %v1478, %v177
  %v1551 = vmul.f32 %v1532, %v1547
  %v1552 = vmul.f32 %v1536, %v1548
  %v1553 = vmul.f32 %v1540, %v1549
  %v1554 = vmul.f32 %v1544, %v1550
  %v1555 = vunpack.c.l.bf16 %v1148
  %v1556 = vunpack.c.l.bf16 %v1150
  %v1557 = vunpack.c.l.bf16 %v1152
  %v1558 = vunpack.c.l.bf16 %v1154
  %v1559 = vadd.f32 %v1555, %v1551
  %v1560 = vadd.f32 %v1556, %v1552
  %v1561 = vadd.f32 %v1557, %v1553
  %v1562 = vadd.f32 %v1558, %v1554
  %v1563 = vtanh.pop %v1559
  %v1564 = vtanh.pop %v1560
  %v1565 = vtanh.pop %v1561
  %v1566 = vtanh.pop %v1562
  %v1567 = vsub.f32 1.0, %v1534
  %v1568 = vsub.f32 1.0, %v1538
  %v1569 = vsub.f32 1.0, %v1542
  %v1570 = vsub.f32 1.0, %v1546
  %v1571 = vsub.f32 %v1563, %v1142
  %v1572 = vsub.f32 %v1564, %v1143
  %v1573 = vsub.f32 %v1565, %v1144
  %v1574 = vsub.f32 %v1566, %v1145
  %v1575 = vmul.f32 %v1567, %v1571
  %v1576 = vmul.f32 %v1568, %v1572
  %v1577 = vmul.f32 %v1569, %v1573
  %v1578 = vmul.f32 %v1570, %v1574
  %vm1579 = vcmp.gt.s32.totalorder %v182, 1
  %vm1580 = vcmp.gt.s32.totalorder %v183, 1
  %vm1581 = vcmp.gt.s32.totalorder %v184, 1
  %vm1582 = vcmp.gt.s32.totalorder %v185, 1
  %v1583 = vsel %vm1579, %v1575, 0.0
  %v1584 = vsel %vm1580, %v1576, 0.0
  %v1585 = vsel %vm1581, %v1577, 0.0
  %v1586 = vsel %vm1582, %v1578, 0.0
  %v1587 = vadd.f32 %v1142, %v1583
  %v1588 = vadd.f32 %v1143, %v1584
  %v1589 = vadd.f32 %v1144, %v1585
  %v1590 = vadd.f32 %v1145, %v1586
  %s1591 = scalar_lea.vmem %s0, 96
  %v1592 = vld [vmem:[%s1591] sm:$0xff]
  %v1593 = vld [vmem:[%s1591 + $0x8] sm:$0xf]
  %v1594 = vld [vmem:[%s1591 + $0xc] sm:$0xff]
  %v1595 = vld [vmem:[%s1591 + $0x14] sm:$0xf]
  %v1596 = vld [vmem:[%s1591 + $0x18] sm:$0xff]
  %v1597 = vld [vmem:[%s1591 + $0x20] sm:$0xf]
  %v1598 = vld [vmem:[%s1591 + $0x24] sm:$0xff]
  %v1599 = vld [vmem:[%s1591 + $0x2c] sm:$0xf]
  %v1600 = vpack.c.bf16 %v1587, %v1587
  %v1601 = vpack.c.bf16 %v1588, %v1588
  %v1602 = vpack.c.bf16 %v1589, %v1589
  %v1603 = vpack.c.bf16 %v1590, %v1590
  %1604 = vmatprep.subr.bf16.mxu0 %v283
  %1605 = vmatpush1.bf16.msra.mxu0 %v282
  %1606 = vmatprep.subr.bf16.mxu0 %v286
  %1607 = vmatpush1.bf16.msra.mxu0 %v285
  %1608 = vmatprep.subr.bf16.mxu0 %v289
  %1609 = vmatpush1.bf16.msra.mxu0 %v288
  %1610 = vmatprep.subr.bf16.mxu0 %v292
  %1611 = vmatpush1.bf16.msra.mxu0 %v291
  %1612 = vmatprep.subr.bf16.mxu0 %v295
  %1613 = vmatpush1.bf16.msra.mxu0 %v294
  %1614 = vmatprep.subr.bf16.mxu0 %v298
  %1615 = vmatpush1.bf16.msra.mxu0 %v297
  %1616 = vmatprep.subr.bf16.mxu0 %v301
  %1617 = vmatpush1.bf16.msra.mxu0 %v300
  %1618 = vmatprep.subr.bf16.mxu0 %v304
  %1619 = vmatpush1.bf16.msra.mxu0 %v303
  %1620 = vmatprep.subr.bf16.mxu0 0
  %1621 = vmatpush1.bf16.msra.mxu0 0
  %1622 = vmatprep.subr.bf16.mxu0 0
  %1623 = vmatpush1.bf16.msra.mxu0 0
  %1624 = vmatprep.subr.bf16.mxu0 0
  %1625 = vmatpush1.bf16.msra.mxu0 0
  %1626 = vmatprep.subr.bf16.mxu0 0
  %1627 = vmatpush1.bf16.msra.mxu0 0
  %1628 = vmatprep.subr.bf16.mxu0 0
  %1629 = vmatpush1.bf16.msra.mxu0 0
  %1630 = vmatprep.subr.bf16.mxu0 0
  %1631 = vmatpush1.bf16.msra.mxu0 0
  %1632 = vmatprep.subr.bf16.mxu0 0
  %1633 = vmatpush1.bf16.msra.mxu0 0
  %1634 = vmatprep.subr.bf16.mxu0 0
  %1635 = vmatpush1.bf16.msra.mxu0 0
  %1636 = vmatprep.mubr.bf16.mxu0 0
  %1637 = vmatmul.mubr.bf16.gmra.mrb[0].mxu0 %v1600
  %v1638 = vpop.f32.mrb[0].mxu0
  %v1639 = vadd.f32 0.0, %v1638
  %v1640 = vpop.f32.mrb[0].mxu0
  %v1641 = vadd.f32 0.0, %v1640
  %v1642 = vpop.f32.mrb[0].mxu0
  %v1643 = vpop.f32.mrb[0].mxu0
  %1644 = vdwg.mxu0
  %1645 = vmatprep.subr.bf16.mxu0 0
  %1646 = vmatpush1.bf16.msra.mxu0 %v284
  %1647 = vmatprep.subr.bf16.mxu0 0
  %1648 = vmatpush1.bf16.msra.mxu0 %v287
  %1649 = vmatprep.subr.bf16.mxu0 0
  %1650 = vmatpush1.bf16.msra.mxu0 %v290
  %1651 = vmatprep.subr.bf16.mxu0 0
  %1652 = vmatpush1.bf16.msra.mxu0 %v293
  %1653 = vmatprep.subr.bf16.mxu0 0
  %1654 = vmatpush1.bf16.msra.mxu0 %v296
  %1655 = vmatprep.subr.bf16.mxu0 0
  %1656 = vmatpush1.bf16.msra.mxu0 %v299
  %1657 = vmatprep.subr.bf16.mxu0 0
  %1658 = vmatpush1.bf16.msra.mxu0 %v302
  %1659 = vmatprep.subr.bf16.mxu0 0
  %1660 = vmatpush1.bf16.msra.mxu0 %v305
  %1661 = vmatprep.subr.bf16.mxu0 0
  %1662 = vmatpush1.bf16.msra.mxu0 0
  %1663 = vmatprep.subr.bf16.mxu0 0
  %1664 = vmatpush1.bf16.msra.mxu0 0
  %1665 = vmatprep.subr.bf16.mxu0 0
  %1666 = vmatpush1.bf16.msra.mxu0 0
  %1667 = vmatprep.subr.bf16.mxu0 0
  %1668 = vmatpush1.bf16.msra.mxu0 0
  %1669 = vmatprep.subr.bf16.mxu0 0
  %1670 = vmatpush1.bf16.msra.mxu0 0
  %1671 = vmatprep.subr.bf16.mxu0 0
  %1672 = vmatpush1.bf16.msra.mxu0 0
  %1673 = vmatprep.subr.bf16.mxu0 0
  %1674 = vmatpush1.bf16.msra.mxu0 0
  %1675 = vmatprep.subr.bf16.mxu0 0
  %1676 = vmatpush1.bf16.msra.mxu0 0
  %1677 = vmatprep.mubr.bf16.mxu0 0
  %1678 = vmatmul.mubr.bf16.gmra.mrb[0].mxu0 %v1600
  %v1679 = vpop.f32.mrb[0].mxu0
  %v1680 = vadd.f32 0.0, %v1679
  %v1681 = vpop.f32.mrb[0].mxu0
  %v1682 = vpop.f32.mrb[0].mxu0
  %v1683 = vpop.f32.mrb[0].mxu0
  %1684 = vdwg.mxu0
  %1685 = vmatprep.subr.bf16.mxu0 %v492
  %1686 = vmatpush1.bf16.msra.mxu0 %v491
  %1687 = vmatprep.subr.bf16.mxu0 %v495
  %1688 = vmatpush1.bf16.msra.mxu0 %v494
  %1689 = vmatprep.subr.bf16.mxu0 %v498
  %1690 = vmatpush1.bf16.msra.mxu0 %v497
  %1691 = vmatprep.subr.bf16.mxu0 %v501
  %1692 = vmatpush1.bf16.msra.mxu0 %v500
  %1693 = vmatprep.subr.bf16.mxu0 %v504
  %1694 = vmatpush1.bf16.msra.mxu0 %v503
  %1695 = vmatprep.subr.bf16.mxu0 %v507
  %1696 = vmatpush1.bf16.msra.mxu0 %v506
  %1697 = vmatprep.subr.bf16.mxu0 %v510
  %1698 = vmatpush1.bf16.msra.mxu0 %v509
  %1699 = vmatprep.subr.bf16.mxu0 %v513
  %1700 = vmatpush1.bf16.msra.mxu0 %v512
  %1701 = vmatprep.subr.bf16.mxu0 0
  %1702 = vmatpush1.bf16.msra.mxu0 0
  %1703 = vmatprep.subr.bf16.mxu0 0
  %1704 = vmatpush1.bf16.msra.mxu0 0
  %1705 = vmatprep.subr.bf16.mxu0 0
  %1706 = vmatpush1.bf16.msra.mxu0 0
  %1707 = vmatprep.subr.bf16.mxu0 0
  %1708 = vmatpush1.bf16.msra.mxu0 0
  %1709 = vmatprep.subr.bf16.mxu0 0
  %1710 = vmatpush1.bf16.msra.mxu0 0
  %1711 = vmatprep.subr.bf16.mxu0 0
  %1712 = vmatpush1.bf16.msra.mxu0 0
  %1713 = vmatprep.subr.bf16.mxu0 0
  %1714 = vmatpush1.bf16.msra.mxu0 0
  %1715 = vmatprep.subr.bf16.mxu0 0
  %1716 = vmatpush1.bf16.msra.mxu0 0
  %1717 = vmatprep.mubr.bf16.mxu0 0
  %1718 = vmatmul.mubr.bf16.gmra.mrb[0].mxu0 %v1601
  %v1719 = vpop.f32.mrb[0].mxu0
  %v1720 = vadd.f32 0.0, %v1719
  %v1721 = vpop.f32.mrb[0].mxu0
  %v1722 = vadd.f32 0.0, %v1721
  %v1723 = vpop.f32.mrb[0].mxu0
  %v1724 = vpop.f32.mrb[0].mxu0
  %1725 = vdwg.mxu0
  %1726 = vmatprep.subr.bf16.mxu0 0
  %1727 = vmatpush1.bf16.msra.mxu0 %v493
  %1728 = vmatprep.subr.bf16.mxu0 0
  %1729 = vmatpush1.bf16.msra.mxu0 %v496
  %1730 = vmatprep.subr.bf16.mxu0 0
  %1731 = vmatpush1.bf16.msra.mxu0 %v499
  %1732 = vmatprep.subr.bf16.mxu0 0
  %1733 = vmatpush1.bf16.msra.mxu0 %v502
  %1734 = vmatprep.subr.bf16.mxu0 0
  %1735 = vmatpush1.bf16.msra.mxu0 %v505
  %1736 = vmatprep.subr.bf16.mxu0 0
  %1737 = vmatpush1.bf16.msra.mxu0 %v508
  %1738 = vmatprep.subr.bf16.mxu0 0
  %1739 = vmatpush1.bf16.msra.mxu0 %v511
  %1740 = vmatprep.subr.bf16.mxu0 0
  %1741 = vmatpush1.bf16.msra.mxu0 %v514
  %1742 = vmatprep.subr.bf16.mxu0 0
  %1743 = vmatpush1.bf16.msra.mxu0 0
  %1744 = vmatprep.subr.bf16.mxu0 0
  %1745 = vmatpush1.bf16.msra.mxu0 0
  %1746 = vmatprep.subr.bf16.mxu0 0
  %1747 = vmatpush1.bf16.msra.mxu0 0
  %1748 = vmatprep.subr.bf16.mxu0 0
  %1749 = vmatpush1.bf16.msra.mxu0 0
  %1750 = vmatprep.subr.bf16.mxu0 0
  %1751 = vmatpush1.bf16.msra.mxu0 0
  %1752 = vmatprep.subr.bf16.mxu0 0
  %1753 = vmatpush1.bf16.msra.mxu0 0
  %1754 = vmatprep.subr.bf16.mxu0 0
  %1755 = vmatpush1.bf16.msra.mxu0 0
  %1756 = vmatprep.subr.bf16.mxu0 0
  %1757 = vmatpush1.bf16.msra.mxu0 0
  %1758 = vmatprep.mubr.bf16.mxu0 0
  %1759 = vmatmul.mubr.bf16.gmra.mrb[0].mxu0 %v1601
  %v1760 = vpop.f32.mrb[0].mxu0
  %v1761 = vadd.f32 0.0, %v1760
  %v1762 = vpop.f32.mrb[0].mxu0
  %v1763 = vpop.f32.mrb[0].mxu0
  %v1764 = vpop.f32.mrb[0].mxu0
  %1765 = vdwg.mxu0
  %1766 = vmatprep.subr.bf16.mxu0 %v701
  %1767 = vmatpush1.bf16.msra.mxu0 %v700
  %1768 = vmatprep.subr.bf16.mxu0 %v704
  %1769 = vmatpush1.bf16.msra.mxu0 %v703
  %1770 = vmatprep.subr.bf16.mxu0 %v707
  %1771 = vmatpush1.bf16.msra.mxu0 %v706
  %1772 = vmatprep.subr.bf16.mxu0 %v710
  %1773 = vmatpush1.bf16.msra.mxu0 %v709
  %1774 = vmatprep.subr.bf16.mxu0 %v713
  %1775 = vmatpush1.bf16.msra.mxu0 %v712
  %1776 = vmatprep.subr.bf16.mxu0 %v716
  %1777 = vmatpush1.bf16.msra.mxu0 %v715
  %1778 = vmatprep.subr.bf16.mxu0 %v719
  %1779 = vmatpush1.bf16.msra.mxu0 %v718
  %1780 = vmatprep.subr.bf16.mxu0 %v722
  %1781 = vmatpush1.bf16.msra.mxu0 %v721
  %1782 = vmatprep.subr.bf16.mxu0 0
  %1783 = vmatpush1.bf16.msra.mxu0 0
  %1784 = vmatprep.subr.bf16.mxu0 0
  %1785 = vmatpush1.bf16.msra.mxu0 0
  %1786 = vmatprep.subr.bf16.mxu0 0
  %1787 = vmatpush1.bf16.msra.mxu0 0
  %1788 = vmatprep.subr.bf16.mxu0 0
  %1789 = vmatpush1.bf16.msra.mxu0 0
  %1790 = vmatprep.subr.bf16.mxu0 0
  %1791 = vmatpush1.bf16.msra.mxu0 0
  %1792 = vmatprep.subr.bf16.mxu0 0
  %1793 = vmatpush1.bf16.msra.mxu0 0
  %1794 = vmatprep.subr.bf16.mxu0 0
  %1795 = vmatpush1.bf16.msra.mxu0 0
  %1796 = vmatprep.subr.bf16.mxu0 0
  %1797 = vmatpush1.bf16.msra.mxu0 0
  %1798 = vmatprep.mubr.bf16.mxu0 0
  %1799 = vmatmul.mubr.bf16.gmra.mrb[0].mxu0 %v1602
  %v1800 = vpop.f32.mrb[0].mxu0
  %v1801 = vadd.f32 0.0, %v1800
  %v1802 = vpop.f32.mrb[0].mxu0
  %v1803 = vadd.f32 0.0, %v1802
  %v1804 = vpop.f32.mrb[0].mxu0
  %v1805 = vpop.f32.mrb[0].mxu0
  %1806 = vdwg.mxu0
  %1807 = vmatprep.subr.bf16.mxu0 0
  %1808 = vmatpush1.bf16.msra.mxu0 %v702
  %1809 = vmatprep.subr.bf16.mxu0 0
  %1810 = vmatpush1.bf16.msra.mxu0 %v705
  %1811 = vmatprep.subr.bf16.mxu0 0
  %1812 = vmatpush1.bf16.msra.mxu0 %v708
  %1813 = vmatprep.subr.bf16.mxu0 0
  %1814 = vmatpush1.bf16.msra.mxu0 %v711
  %1815 = vmatprep.subr.bf16.mxu0 0
  %1816 = vmatpush1.bf16.msra.mxu0 %v714
  %1817 = vmatprep.subr.bf16.mxu0 0
  %1818 = vmatpush1.bf16.msra.mxu0 %v717
  %1819 = vmatprep.subr.bf16.mxu0 0
  %1820 = vmatpush1.bf16.msra.mxu0 %v720
  %1821 = vmatprep.subr.bf16.mxu0 0
  %1822 = vmatpush1.bf16.msra.mxu0 %v723
  %1823 = vmatprep.subr.bf16.mxu0 0
  %1824 = vmatpush1.bf16.msra.mxu0 0
  %1825 = vmatprep.subr.bf16.mxu0 0
  %1826 = vmatpush1.bf16.msra.mxu0 0
  %1827 = vmatprep.subr.bf16.mxu0 0
  %1828 = vmatpush1.bf16.msra.mxu0 0
  %1829 = vmatprep.subr.bf16.mxu0 0
  %1830 = vmatpush1.bf16.msra.mxu0 0
  %1831 = vmatprep.subr.bf16.mxu0 0
  %1832 = vmatpush1.bf16.msra.mxu0 0
  %1833 = vmatprep.subr.bf16.mxu0 0
  %1834 = vmatpush1.bf16.msra.mxu0 0
  %1835 = vmatprep.subr.bf16.mxu0 0
  %1836 = vmatpush1.bf16.msra.mxu0 0
  %1837 = vmatprep.subr.bf16.mxu0 0
  %1838 = vmatpush1.bf16.msra.mxu0 0
  %1839 = vmatprep.mubr.bf16.mxu0 0
  %1840 = vmatmul.mubr.bf16.gmra.mrb[0].mxu0 %v1602
  %v1841 = vpop.f32.mrb[0].mxu0
  %v1842 = vadd.f32 0.0, %v1841
  %v1843 = vpop.f32.mrb[0].mxu0
  %v1844 = vpop.f32.mrb[0].mxu0
  %v1845 = vpop.f32.mrb[0].mxu0
  %1846 = vdwg.mxu0
  %1847 = vmatprep.subr.bf16.mxu0 %v910
  %1848 = vmatpush1.bf16.msra.mxu0 %v909
  %1849 = vmatprep.subr.bf16.mxu0 %v913
  %1850 = vmatpush1.bf16.msra.mxu0 %v912
  %1851 = vmatprep.subr.bf16.mxu0 %v916
  %1852 = vmatpush1.bf16.msra.mxu0 %v915
  %1853 = vmatprep.subr.bf16.mxu0 %v919
  %1854 = vmatpush1.bf16.msra.mxu0 %v918
  %1855 = vmatprep.subr.bf16.mxu0 %v922
  %1856 = vmatpush1.bf16.msra.mxu0 %v921
  %1857 = vmatprep.subr.bf16.mxu0 %v925
  %1858 = vmatpush1.bf16.msra.mxu0 %v924
  %1859 = vmatprep.subr.bf16.mxu0 %v928
  %1860 = vmatpush1.bf16.msra.mxu0 %v927
  %1861 = vmatprep.subr.bf16.mxu0 %v931
  %1862 = vmatpush1.bf16.msra.mxu0 %v930
  %1863 = vmatprep.subr.bf16.mxu0 0
  %1864 = vmatpush1.bf16.msra.mxu0 0
  %1865 = vmatprep.subr.bf16.mxu0 0
  %1866 = vmatpush1.bf16.msra.mxu0 0
  %1867 = vmatprep.subr.bf16.mxu0 0
  %1868 = vmatpush1.bf16.msra.mxu0 0
  %1869 = vmatprep.subr.bf16.mxu0 0
  %1870 = vmatpush1.bf16.msra.mxu0 0
  %1871 = vmatprep.subr.bf16.mxu0 0
  %1872 = vmatpush1.bf16.msra.mxu0 0
  %1873 = vmatprep.subr.bf16.mxu0 0
  %1874 = vmatpush1.bf16.msra.mxu0 0
  %1875 = vmatprep.subr.bf16.mxu0 0
  %1876 = vmatpush1.bf16.msra.mxu0 0
  %1877 = vmatprep.subr.bf16.mxu0 0
  %1878 = vmatpush1.bf16.msra.mxu0 0
  %1879 = vmatprep.mubr.bf16.mxu0 0
  %1880 = vmatmul.mubr.bf16.gmra.mrb[0].mxu0 %v1603
  %v1881 = vpop.f32.mrb[0].mxu0
  %v1882 = vadd.f32 0.0, %v1881
  %v1883 = vpop.f32.mrb[0].mxu0
  %v1884 = vadd.f32 0.0, %v1883
  %v1885 = vpop.f32.mrb[0].mxu0
  %v1886 = vpop.f32.mrb[0].mxu0
  %1887 = vdwg.mxu0
  %1888 = vmatprep.subr.bf16.mxu0 0
  %1889 = vmatpush1.bf16.msra.mxu0 %v911
  %1890 = vmatprep.subr.bf16.mxu0 0
  %1891 = vmatpush1.bf16.msra.mxu0 %v914
  %1892 = vmatprep.subr.bf16.mxu0 0
  %1893 = vmatpush1.bf16.msra.mxu0 %v917
  %1894 = vmatprep.subr.bf16.mxu0 0
  %1895 = vmatpush1.bf16.msra.mxu0 %v920
  %1896 = vmatprep.subr.bf16.mxu0 0
  %1897 = vmatpush1.bf16.msra.mxu0 %v923
  %1898 = vmatprep.subr.bf16.mxu0 0
  %1899 = vmatpush1.bf16.msra.mxu0 %v926
  %1900 = vmatprep.subr.bf16.mxu0 0
  %1901 = vmatpush1.bf16.msra.mxu0 %v929
  %1902 = vmatprep.subr.bf16.mxu0 0
  %1903 = vmatpush1.bf16.msra.mxu0 %v932
  %1904 = vmatprep.subr.bf16.mxu0 0
  %1905 = vmatpush1.bf16.msra.mxu0 0
  %1906 = vmatprep.subr.bf16.mxu0 0
  %1907 = vmatpush1.bf16.msra.mxu0 0
  %1908 = vmatprep.subr.bf16.mxu0 0
  %1909 = vmatpush1.bf16.msra.mxu0 0
  %1910 = vmatprep.subr.bf16.mxu0 0
  %1911 = vmatpush1.bf16.msra.mxu0 0
  %1912 = vmatprep.subr.bf16.mxu0 0
  %1913 = vmatpush1.bf16.msra.mxu0 0
  %1914 = vmatprep.subr.bf16.mxu0 0
  %1915 = vmatpush1.bf16.msra.mxu0 0
  %1916 = vmatprep.subr.bf16.mxu0 0
  %1917 = vmatpush1.bf16.msra.mxu0 0
  %1918 = vmatprep.subr.bf16.mxu0 0
  %1919 = vmatpush1.bf16.msra.mxu0 0
  %1920 = vmatprep.mubr.bf16.mxu0 0
  %1921 = vmatmul.mubr.bf16.gmra.mrb[0].mxu0 %v1603
  %v1922 = vpop.f32.mrb[0].mxu0
  %v1923 = vadd.f32 0.0, %v1922
  %v1924 = vpop.f32.mrb[0].mxu0
  %v1925 = vpop.f32.mrb[0].mxu0
  %v1926 = vpop.f32.mrb[0].mxu0
  %1927 = vdwg.mxu0
  %v1928 = vunpack.c.l.bf16 %v1592
  %v1929 = vunpack.c.h.bf16 %v1592
  %v1930 = vunpack.c.l.bf16 %v1594
  %v1931 = vunpack.c.h.bf16 %v1594
  %v1932 = vunpack.c.l.bf16 %v1596
  %v1933 = vunpack.c.h.bf16 %v1596
  %v1934 = vunpack.c.l.bf16 %v1598
  %v1935 = vunpack.c.h.bf16 %v1598
  %v1936 = vadd.f32 %v1928, %v1639
  %v1937 = vadd.f32 %v1929, %v1641
  %v1938 = vadd.f32 %v1930, %v1720
  %v1939 = vadd.f32 %v1931, %v1722
  %v1940 = vadd.f32 %v1932, %v1801
  %v1941 = vadd.f32 %v1933, %v1803
  %v1942 = vadd.f32 %v1934, %v1882
  %v1943 = vadd.f32 %v1935, %v1884
  %v1944 = vxor.u32 %v1936, 2147483648
  %v1945 = vxor.u32 %v1937, 2147483648
  %v1946 = vxor.u32 %v1938, 2147483648
  %v1947 = vxor.u32 %v1939, 2147483648
  %v1948 = vxor.u32 %v1940, 2147483648
  %v1949 = vxor.u32 %v1941, 2147483648
  %v1950 = vxor.u32 %v1942, 2147483648
  %v1951 = vxor.u32 %v1943, 2147483648
  %v1952 = vmul.f32 %v1944, 1.442695
  %v1953 = vpow.pop %v1952
  %v1954 = vmul.f32 %v1945, 1.442695
  %v1955 = vpow.pop %v1954
  %v1956 = vmul.f32 %v1946, 1.442695
  %v1957 = vpow.pop %v1956
  %v1958 = vmul.f32 %v1947, 1.442695
  %v1959 = vpow.pop %v1958
  %v1960 = vmul.f32 %v1948, 1.442695
  %v1961 = vpow.pop %v1960
  %v1962 = vmul.f32 %v1949, 1.442695
  %v1963 = vpow.pop %v1962
  %v1964 = vmul.f32 %v1950, 1.442695
  %v1965 = vpow.pop %v1964
  %v1966 = vmul.f32 %v1951, 1.442695
  %v1967 = vpow.pop %v1966
  %v1968 = vadd.f32 %v1953, 1.0
  %v1969 = vadd.f32 %v1955, 1.0
  %v1970 = vadd.f32 %v1957, 1.0
  %v1971 = vadd.f32 %v1959, 1.0
  %v1972 = vadd.f32 %v1961, 1.0
  %v1973 = vadd.f32 %v1963, 1.0
  %v1974 = vadd.f32 %v1965, 1.0
  %v1975 = vadd.f32 %v1967, 1.0
  %v1976 = vrcp.pop %v1968
  %v1977 = vmul.f32 1.0, %v1976
  %v1978 = vrcp.pop %v1969
  %v1979 = vmul.f32 1.0, %v1978
  %v1980 = vrcp.pop %v1970
  %v1981 = vmul.f32 1.0, %v1980
  %v1982 = vrcp.pop %v1971
  %v1983 = vmul.f32 1.0, %v1982
  %v1984 = vrcp.pop %v1972
  %v1985 = vmul.f32 1.0, %v1984
  %v1986 = vrcp.pop %v1973
  %v1987 = vmul.f32 1.0, %v1986
  %v1988 = vrcp.pop %v1974
  %v1989 = vmul.f32 1.0, %v1988
  %v1990 = vrcp.pop %v1975
  %v1991 = vmul.f32 1.0, %v1990
  %v1992 = vadd.f32 %v1680, %v165
  %v1993 = vadd.f32 %v1761, %v169
  %v1994 = vadd.f32 %v1842, %v173
  %v1995 = vadd.f32 %v1923, %v177
  %v1996 = vmul.f32 %v1977, %v1992
  %v1997 = vmul.f32 %v1981, %v1993
  %v1998 = vmul.f32 %v1985, %v1994
  %v1999 = vmul.f32 %v1989, %v1995
  %v2000 = vunpack.c.l.bf16 %v1593
  %v2001 = vunpack.c.l.bf16 %v1595
  %v2002 = vunpack.c.l.bf16 %v1597
  %v2003 = vunpack.c.l.bf16 %v1599
  %v2004 = vadd.f32 %v2000, %v1996
  %v2005 = vadd.f32 %v2001, %v1997
  %v2006 = vadd.f32 %v2002, %v1998
  %v2007 = vadd.f32 %v2003, %v1999
  %v2008 = vtanh.pop %v2004
  %v2009 = vtanh.pop %v2005
  %v2010 = vtanh.pop %v2006
  %v2011 = vtanh.pop %v2007
  %v2012 = vsub.f32 1.0, %v1979
  %v2013 = vsub.f32 1.0, %v1983
  %v2014 = vsub.f32 1.0, %v1987
  %v2015 = vsub.f32 1.0, %v1991
  %v2016 = vsub.f32 %v2008, %v1587
  %v2017 = vsub.f32 %v2009, %v1588
  %v2018 = vsub.f32 %v2010, %v1589
  %v2019 = vsub.f32 %v2011, %v1590
  %v2020 = vmul.f32 %v2012, %v2016
  %v2021 = vmul.f32 %v2013, %v2017
  %v2022 = vmul.f32 %v2014, %v2018
  %v2023 = vmul.f32 %v2015, %v2019
  %vm2024 = vcmp.gt.s32.totalorder %v182, 2
  %vm2025 = vcmp.gt.s32.totalorder %v183, 2
  %vm2026 = vcmp.gt.s32.totalorder %v184, 2
  %vm2027 = vcmp.gt.s32.totalorder %v185, 2
  %v2028 = vsel %vm2024, %v2020, 0.0
  %v2029 = vsel %vm2025, %v2021, 0.0
  %v2030 = vsel %vm2026, %v2022, 0.0
  %v2031 = vsel %vm2027, %v2023, 0.0
  %v2032 = vadd.f32 %v1587, %v2028
  %v2033 = vadd.f32 %v1588, %v2029
  %v2034 = vadd.f32 %v1589, %v2030
  %v2035 = vadd.f32 %v1590, %v2031
  %s2036 = scalar_lea.vmem %s0, 144
  %v2037 = vld [vmem:[%s2036] sm:$0xff]
  %v2038 = vld [vmem:[%s2036 + $0x8] sm:$0xf]
  %v2039 = vld [vmem:[%s2036 + $0xc] sm:$0xff]
  %v2040 = vld [vmem:[%s2036 + $0x14] sm:$0xf]
  %v2041 = vld [vmem:[%s2036 + $0x18] sm:$0xff]
  %v2042 = vld [vmem:[%s2036 + $0x20] sm:$0xf]
  %v2043 = vld [vmem:[%s2036 + $0x24] sm:$0xff]
  %v2044 = vld [vmem:[%s2036 + $0x2c] sm:$0xf]
  %v2045 = vpack.c.bf16 %v2032, %v2032
  %v2046 = vpack.c.bf16 %v2033, %v2033
  %v2047 = vpack.c.bf16 %v2034, %v2034
  %v2048 = vpack.c.bf16 %v2035, %v2035
  %2049 = vmatprep.subr.bf16.mxu0 %v283
  %2050 = vmatpush1.bf16.msra.mxu0 %v282
  %2051 = vmatprep.subr.bf16.mxu0 %v286
  %2052 = vmatpush1.bf16.msra.mxu0 %v285
  %2053 = vmatprep.subr.bf16.mxu0 %v289
  %2054 = vmatpush1.bf16.msra.mxu0 %v288
  %2055 = vmatprep.subr.bf16.mxu0 %v292
  %2056 = vmatpush1.bf16.msra.mxu0 %v291
  %2057 = vmatprep.subr.bf16.mxu0 %v295
  %2058 = vmatpush1.bf16.msra.mxu0 %v294
  %2059 = vmatprep.subr.bf16.mxu0 %v298
  %2060 = vmatpush1.bf16.msra.mxu0 %v297
  %2061 = vmatprep.subr.bf16.mxu0 %v301
  %2062 = vmatpush1.bf16.msra.mxu0 %v300
  %2063 = vmatprep.subr.bf16.mxu0 %v304
  %2064 = vmatpush1.bf16.msra.mxu0 %v303
  %2065 = vmatprep.subr.bf16.mxu0 0
  %2066 = vmatpush1.bf16.msra.mxu0 0
  %2067 = vmatprep.subr.bf16.mxu0 0
  %2068 = vmatpush1.bf16.msra.mxu0 0
  %2069 = vmatprep.subr.bf16.mxu0 0
  %2070 = vmatpush1.bf16.msra.mxu0 0
  %2071 = vmatprep.subr.bf16.mxu0 0
  %2072 = vmatpush1.bf16.msra.mxu0 0
  %2073 = vmatprep.subr.bf16.mxu0 0
  %2074 = vmatpush1.bf16.msra.mxu0 0
  %2075 = vmatprep.subr.bf16.mxu0 0
  %2076 = vmatpush1.bf16.msra.mxu0 0
  %2077 = vmatprep.subr.bf16.mxu0 0
  %2078 = vmatpush1.bf16.msra.mxu0 0
  %2079 = vmatprep.subr.bf16.mxu0 0
  %2080 = vmatpush1.bf16.msra.mxu0 0
  %2081 = vmatprep.mubr.bf16.mxu0 0
  %2082 = vmatmul.mubr.bf16.gmra.mrb[0].mxu0 %v2045
  %v2083 = vpop.f32.mrb[0].mxu0
  %v2084 = vadd.f32 0.0, %v2083
  %v2085 = vpop.f32.mrb[0].mxu0
  %v2086 = vadd.f32 0.0, %v2085
  %v2087 = vpop.f32.mrb[0].mxu0
  %v2088 = vpop.f32.mrb[0].mxu0
  %2089 = vdwg.mxu0
  %2090 = vmatprep.subr.bf16.mxu0 0
  %2091 = vmatpush1.bf16.msra.mxu0 %v284
  %2092 = vmatprep.subr.bf16.mxu0 0
  %2093 = vmatpush1.bf16.msra.mxu0 %v287
  %2094 = vmatprep.subr.bf16.mxu0 0
  %2095 = vmatpush1.bf16.msra.mxu0 %v290
  %2096 = vmatprep.subr.bf16.mxu0 0
  %2097 = vmatpush1.bf16.msra.mxu0 %v293
  %2098 = vmatprep.subr.bf16.mxu0 0
  %2099 = vmatpush1.bf16.msra.mxu0 %v296
  %2100 = vmatprep.subr.bf16.mxu0 0
  %2101 = vmatpush1.bf16.msra.mxu0 %v299
  %2102 = vmatprep.subr.bf16.mxu0 0
  %2103 = vmatpush1.bf16.msra.mxu0 %v302
  %2104 = vmatprep.subr.bf16.mxu0 0
  %2105 = vmatpush1.bf16.msra.mxu0 %v305
  %2106 = vmatprep.subr.bf16.mxu0 0
  %2107 = vmatpush1.bf16.msra.mxu0 0
  %2108 = vmatprep.subr.bf16.mxu0 0
  %2109 = vmatpush1.bf16.msra.mxu0 0
  %2110 = vmatprep.subr.bf16.mxu0 0
  %2111 = vmatpush1.bf16.msra.mxu0 0
  %2112 = vmatprep.subr.bf16.mxu0 0
  %2113 = vmatpush1.bf16.msra.mxu0 0
  %2114 = vmatprep.subr.bf16.mxu0 0
  %2115 = vmatpush1.bf16.msra.mxu0 0
  %2116 = vmatprep.subr.bf16.mxu0 0
  %2117 = vmatpush1.bf16.msra.mxu0 0
  %2118 = vmatprep.subr.bf16.mxu0 0
  %2119 = vmatpush1.bf16.msra.mxu0 0
  %2120 = vmatprep.subr.bf16.mxu0 0
  %2121 = vmatpush1.bf16.msra.mxu0 0
  %2122 = vmatprep.mubr.bf16.mxu0 0
  %2123 = vmatmul.mubr.bf16.gmra.mrb[0].mxu0 %v2045
  %v2124 = vpop.f32.mrb[0].mxu0
  %v2125 = vadd.f32 0.0, %v2124
  %v2126 = vpop.f32.mrb[0].mxu0
  %v2127 = vpop.f32.mrb[0].mxu0
  %v2128 = vpop.f32.mrb[0].mxu0
  %2129 = vdwg.mxu0
  %2130 = vmatprep.subr.bf16.mxu0 %v492
  %2131 = vmatpush1.bf16.msra.mxu0 %v491
  %2132 = vmatprep.subr.bf16.mxu0 %v495
  %2133 = vmatpush1.bf16.msra.mxu0 %v494
  %2134 = vmatprep.subr.bf16.mxu0 %v498
  %2135 = vmatpush1.bf16.msra.mxu0 %v497
  %2136 = vmatprep.subr.bf16.mxu0 %v501
  %2137 = vmatpush1.bf16.msra.mxu0 %v500
  %2138 = vmatprep.subr.bf16.mxu0 %v504
  %2139 = vmatpush1.bf16.msra.mxu0 %v503
  %2140 = vmatprep.subr.bf16.mxu0 %v507
  %2141 = vmatpush1.bf16.msra.mxu0 %v506
  %2142 = vmatprep.subr.bf16.mxu0 %v510
  %2143 = vmatpush1.bf16.msra.mxu0 %v509
  %2144 = vmatprep.subr.bf16.mxu0 %v513
  %2145 = vmatpush1.bf16.msra.mxu0 %v512
  %2146 = vmatprep.subr.bf16.mxu0 0
  %2147 = vmatpush1.bf16.msra.mxu0 0
  %2148 = vmatprep.subr.bf16.mxu0 0
  %2149 = vmatpush1.bf16.msra.mxu0 0
  %2150 = vmatprep.subr.bf16.mxu0 0
  %2151 = vmatpush1.bf16.msra.mxu0 0
  %2152 = vmatprep.subr.bf16.mxu0 0
  %2153 = vmatpush1.bf16.msra.mxu0 0
  %2154 = vmatprep.subr.bf16.mxu0 0
  %2155 = vmatpush1.bf16.msra.mxu0 0
  %2156 = vmatprep.subr.bf16.mxu0 0
  %2157 = vmatpush1.bf16.msra.mxu0 0
  %2158 = vmatprep.subr.bf16.mxu0 0
  %2159 = vmatpush1.bf16.msra.mxu0 0
  %2160 = vmatprep.subr.bf16.mxu0 0
  %2161 = vmatpush1.bf16.msra.mxu0 0
  %2162 = vmatprep.mubr.bf16.mxu0 0
  %2163 = vmatmul.mubr.bf16.gmra.mrb[0].mxu0 %v2046
  %v2164 = vpop.f32.mrb[0].mxu0
  %v2165 = vadd.f32 0.0, %v2164
  %v2166 = vpop.f32.mrb[0].mxu0
  %v2167 = vadd.f32 0.0, %v2166
  %v2168 = vpop.f32.mrb[0].mxu0
  %v2169 = vpop.f32.mrb[0].mxu0
  %2170 = vdwg.mxu0
  %2171 = vmatprep.subr.bf16.mxu0 0
  %2172 = vmatpush1.bf16.msra.mxu0 %v493
  %2173 = vmatprep.subr.bf16.mxu0 0
  %2174 = vmatpush1.bf16.msra.mxu0 %v496
  %2175 = vmatprep.subr.bf16.mxu0 0
  %2176 = vmatpush1.bf16.msra.mxu0 %v499
  %2177 = vmatprep.subr.bf16.mxu0 0
  %2178 = vmatpush1.bf16.msra.mxu0 %v502
  %2179 = vmatprep.subr.bf16.mxu0 0
  %2180 = vmatpush1.bf16.msra.mxu0 %v505
  %2181 = vmatprep.subr.bf16.mxu0 0
  %2182 = vmatpush1.bf16.msra.mxu0 %v508
  %2183 = vmatprep.subr.bf16.mxu0 0
  %2184 = vmatpush1.bf16.msra.mxu0 %v511
  %2185 = vmatprep.subr.bf16.mxu0 0
  %2186 = vmatpush1.bf16.msra.mxu0 %v514
  %2187 = vmatprep.subr.bf16.mxu0 0
  %2188 = vmatpush1.bf16.msra.mxu0 0
  %2189 = vmatprep.subr.bf16.mxu0 0
  %2190 = vmatpush1.bf16.msra.mxu0 0
  %2191 = vmatprep.subr.bf16.mxu0 0
  %2192 = vmatpush1.bf16.msra.mxu0 0
  %2193 = vmatprep.subr.bf16.mxu0 0
  %2194 = vmatpush1.bf16.msra.mxu0 0
  %2195 = vmatprep.subr.bf16.mxu0 0
  %2196 = vmatpush1.bf16.msra.mxu0 0
  %2197 = vmatprep.subr.bf16.mxu0 0
  %2198 = vmatpush1.bf16.msra.mxu0 0
  %2199 = vmatprep.subr.bf16.mxu0 0
  %2200 = vmatpush1.bf16.msra.mxu0 0
  %2201 = vmatprep.subr.bf16.mxu0 0
  %2202 = vmatpush1.bf16.msra.mxu0 0
  %2203 = vmatprep.mubr.bf16.mxu0 0
  %2204 = vmatmul.mubr.bf16.gmra.mrb[0].mxu0 %v2046
  %v2205 = vpop.f32.mrb[0].mxu0
  %v2206 = vadd.f32 0.0, %v2205
  %v2207 = vpop.f32.mrb[0].mxu0
  %v2208 = vpop.f32.mrb[0].mxu0
  %v2209 = vpop.f32.mrb[0].mxu0
  %2210 = vdwg.mxu0
  %2211 = vmatprep.subr.bf16.mxu0 %v701
  %2212 = vmatpush1.bf16.msra.mxu0 %v700
  %2213 = vmatprep.subr.bf16.mxu0 %v704
  %2214 = vmatpush1.bf16.msra.mxu0 %v703
  %2215 = vmatprep.subr.bf16.mxu0 %v707
  %2216 = vmatpush1.bf16.msra.mxu0 %v706
  %2217 = vmatprep.subr.bf16.mxu0 %v710
  %2218 = vmatpush1.bf16.msra.mxu0 %v709
  %2219 = vmatprep.subr.bf16.mxu0 %v713
  %2220 = vmatpush1.bf16.msra.mxu0 %v712
  %2221 = vmatprep.subr.bf16.mxu0 %v716
  %2222 = vmatpush1.bf16.msra.mxu0 %v715
  %2223 = vmatprep.subr.bf16.mxu0 %v719
  %2224 = vmatpush1.bf16.msra.mxu0 %v718
  %2225 = vmatprep.subr.bf16.mxu0 %v722
  %2226 = vmatpush1.bf16.msra.mxu0 %v721
  %2227 = vmatprep.subr.bf16.mxu0 0
  %2228 = vmatpush1.bf16.msra.mxu0 0
  %2229 = vmatprep.subr.bf16.mxu0 0
  %2230 = vmatpush1.bf16.msra.mxu0 0
  %2231 = vmatprep.subr.bf16.mxu0 0
  %2232 = vmatpush1.bf16.msra.mxu0 0
  %2233 = vmatprep.subr.bf16.mxu0 0
  %2234 = vmatpush1.bf16.msra.mxu0 0
  %2235 = vmatprep.subr.bf16.mxu0 0
  %2236 = vmatpush1.bf16.msra.mxu0 0
  %2237 = vmatprep.subr.bf16.mxu0 0
  %2238 = vmatpush1.bf16.msra.mxu0 0
  %2239 = vmatprep.subr.bf16.mxu0 0
  %2240 = vmatpush1.bf16.msra.mxu0 0
  %2241 = vmatprep.subr.bf16.mxu0 0
  %2242 = vmatpush1.bf16.msra.mxu0 0
  %2243 = vmatprep.mubr.bf16.mxu0 0
  %2244 = vmatmul.mubr.bf16.gmra.mrb[0].mxu0 %v2047
  %v2245 = vpop.f32.mrb[0].mxu0
  %v2246 = vadd.f32 0.0, %v2245
  %v2247 = vpop.f32.mrb[0].mxu0
  %v2248 = vadd.f32 0.0, %v2247
  %v2249 = vpop.f32.mrb[0].mxu0
  %v2250 = vpop.f32.mrb[0].mxu0
  %2251 = vdwg.mxu0
  %2252 = vmatprep.subr.bf16.mxu0 0
  %2253 = vmatpush1.bf16.msra.mxu0 %v702
  %2254 = vmatprep.subr.bf16.mxu0 0
  %2255 = vmatpush1.bf16.msra.mxu0 %v705
  %2256 = vmatprep.subr.bf16.mxu0 0
  %2257 = vmatpush1.bf16.msra.mxu0 %v708
  %2258 = vmatprep.subr.bf16.mxu0 0
  %2259 = vmatpush1.bf16.msra.mxu0 %v711
  %2260 = vmatprep.subr.bf16.mxu0 0
  %2261 = vmatpush1.bf16.msra.mxu0 %v714
  %2262 = vmatprep.subr.bf16.mxu0 0
  %2263 = vmatpush1.bf16.msra.mxu0 %v717
  %2264 = vmatprep.subr.bf16.mxu0 0
  %2265 = vmatpush1.bf16.msra.mxu0 %v720
  %2266 = vmatprep.subr.bf16.mxu0 0
  %2267 = vmatpush1.bf16.msra.mxu0 %v723
  %2268 = vmatprep.subr.bf16.mxu0 0
  %2269 = vmatpush1.bf16.msra.mxu0 0
  %2270 = vmatprep.subr.bf16.mxu0 0
  %2271 = vmatpush1.bf16.msra.mxu0 0
  %2272 = vmatprep.subr.bf16.mxu0 0
  %2273 = vmatpush1.bf16.msra.mxu0 0
  %2274 = vmatprep.subr.bf16.mxu0 0
  %2275 = vmatpush1.bf16.msra.mxu0 0
  %2276 = vmatprep.subr.bf16.mxu0 0
  %2277 = vmatpush1.bf16.msra.mxu0 0
  %2278 = vmatprep.subr.bf16.mxu0 0
  %2279 = vmatpush1.bf16.msra.mxu0 0
  %2280 = vmatprep.subr.bf16.mxu0 0
  %2281 = vmatpush1.bf16.msra.mxu0 0
  %2282 = vmatprep.subr.bf16.mxu0 0
  %2283 = vmatpush1.bf16.msra.mxu0 0
  %2284 = vmatprep.mubr.bf16.mxu0 0
  %2285 = vmatmul.mubr.bf16.gmra.mrb[0].mxu0 %v2047
  %v2286 = vpop.f32.mrb[0].mxu0
  %v2287 = vadd.f32 0.0, %v2286
  %v2288 = vpop.f32.mrb[0].mxu0
  %v2289 = vpop.f32.mrb[0].mxu0
  %v2290 = vpop.f32.mrb[0].mxu0
  %2291 = vdwg.mxu0
  %2292 = vmatprep.subr.bf16.mxu0 %v910
  %2293 = vmatpush1.bf16.msra.mxu0 %v909
  %2294 = vmatprep.subr.bf16.mxu0 %v913
  %2295 = vmatpush1.bf16.msra.mxu0 %v912
  %2296 = vmatprep.subr.bf16.mxu0 %v916
  %2297 = vmatpush1.bf16.msra.mxu0 %v915
  %2298 = vmatprep.subr.bf16.mxu0 %v919
  %2299 = vmatpush1.bf16.msra.mxu0 %v918
  %2300 = vmatprep.subr.bf16.mxu0 %v922
  %2301 = vmatpush1.bf16.msra.mxu0 %v921
  %2302 = vmatprep.subr.bf16.mxu0 %v925
  %2303 = vmatpush1.bf16.msra.mxu0 %v924
  %2304 = vmatprep.subr.bf16.mxu0 %v928
  %2305 = vmatpush1.bf16.msra.mxu0 %v927
  %2306 = vmatprep.subr.bf16.mxu0 %v931
  %2307 = vmatpush1.bf16.msra.mxu0 %v930
  %2308 = vmatprep.subr.bf16.mxu0 0
  %2309 = vmatpush1.bf16.msra.mxu0 0
  %2310 = vmatprep.subr.bf16.mxu0 0
  %2311 = vmatpush1.bf16.msra.mxu0 0
  %2312 = vmatprep.subr.bf16.mxu0 0
  %2313 = vmatpush1.bf16.msra.mxu0 0
  %2314 = vmatprep.subr.bf16.mxu0 0
  %2315 = vmatpush1.bf16.msra.mxu0 0
  %2316 = vmatprep.subr.bf16.mxu0 0
  %2317 = vmatpush1.bf16.msra.mxu0 0
  %2318 = vmatprep.subr.bf16.mxu0 0
  %2319 = vmatpush1.bf16.msra.mxu0 0
  %2320 = vmatprep.subr.bf16.mxu0 0
  %2321 = vmatpush1.bf16.msra.mxu0 0
  %2322 = vmatprep.subr.bf16.mxu0 0
  %2323 = vmatpush1.bf16.msra.mxu0 0
  %2324 = vmatprep.mubr.bf16.mxu0 0
  %2325 = vmatmul.mubr.bf16.gmra.mrb[0].mxu0 %v2048
  %v2326 = vpop.f32.mrb[0].mxu0
  %v2327 = vadd.f32 0.0, %v2326
  %v2328 = vpop.f32.mrb[0].mxu0
  %v2329 = vadd.f32 0.0, %v2328
  %v2330 = vpop.f32.mrb[0].mxu0
  %v2331 = vpop.f32.mrb[0].mxu0
  %2332 = vdwg.mxu0
  %2333 = vmatprep.subr.bf16.mxu0 0
  %2334 = vmatpush1.bf16.msra.mxu0 %v911
  %2335 = vmatprep.subr.bf16.mxu0 0
  %2336 = vmatpush1.bf16.msra.mxu0 %v914
  %2337 = vmatprep.subr.bf16.mxu0 0
  %2338 = vmatpush1.bf16.msra.mxu0 %v917
  %2339 = vmatprep.subr.bf16.mxu0 0
  %2340 = vmatpush1.bf16.msra.mxu0 %v920
  %2341 = vmatprep.subr.bf16.mxu0 0
  %2342 = vmatpush1.bf16.msra.mxu0 %v923
  %2343 = vmatprep.subr.bf16.mxu0 0
  %2344 = vmatpush1.bf16.msra.mxu0 %v926
  %2345 = vmatprep.subr.bf16.mxu0 0
  %2346 = vmatpush1.bf16.msra.mxu0 %v929
  %2347 = vmatprep.subr.bf16.mxu0 0
  %2348 = vmatpush1.bf16.msra.mxu0 %v932
  %2349 = vmatprep.subr.bf16.mxu0 0
  %2350 = vmatpush1.bf16.msra.mxu0 0
  %2351 = vmatprep.subr.bf16.mxu0 0
  %2352 = vmatpush1.bf16.msra.mxu0 0
  %2353 = vmatprep.subr.bf16.mxu0 0
  %2354 = vmatpush1.bf16.msra.mxu0 0
  %2355 = vmatprep.subr.bf16.mxu0 0
  %2356 = vmatpush1.bf16.msra.mxu0 0
  %2357 = vmatprep.subr.bf16.mxu0 0
  %2358 = vmatpush1.bf16.msra.mxu0 0
  %2359 = vmatprep.subr.bf16.mxu0 0
  %2360 = vmatpush1.bf16.msra.mxu0 0
  %2361 = vmatprep.subr.bf16.mxu0 0
  %2362 = vmatpush1.bf16.msra.mxu0 0
  %2363 = vmatprep.subr.bf16.mxu0 0
  %2364 = vmatpush1.bf16.msra.mxu0 0
  %2365 = vmatprep.mubr.bf16.mxu0 0
  %2366 = vmatmul.mubr.bf16.gmra.mrb[0].mxu0 %v2048
  %v2367 = vpop.f32.mrb[0].mxu0
  %v2368 = vadd.f32 0.0, %v2367
  %v2369 = vpop.f32.mrb[0].mxu0
  %v2370 = vpop.f32.mrb[0].mxu0
  %v2371 = vpop.f32.mrb[0].mxu0
  %2372 = vdwg.mxu0
  %v2373 = vunpack.c.l.bf16 %v2037
  %v2374 = vunpack.c.h.bf16 %v2037
  %v2375 = vunpack.c.l.bf16 %v2039
  %v2376 = vunpack.c.h.bf16 %v2039
  %v2377 = vunpack.c.l.bf16 %v2041
  %v2378 = vunpack.c.h.bf16 %v2041
  %v2379 = vunpack.c.l.bf16 %v2043
  %v2380 = vunpack.c.h.bf16 %v2043
  %v2381 = vadd.f32 %v2373, %v2084
  %v2382 = vadd.f32 %v2374, %v2086
  %v2383 = vadd.f32 %v2375, %v2165
  %v2384 = vadd.f32 %v2376, %v2167
  %v2385 = vadd.f32 %v2377, %v2246
  %v2386 = vadd.f32 %v2378, %v2248
  %v2387 = vadd.f32 %v2379, %v2327
  %v2388 = vadd.f32 %v2380, %v2329
  %v2389 = vxor.u32 %v2381, 2147483648
  %v2390 = vxor.u32 %v2382, 2147483648
  %v2391 = vxor.u32 %v2383, 2147483648
  %v2392 = vxor.u32 %v2384, 2147483648
  %v2393 = vxor.u32 %v2385, 2147483648
  %v2394 = vxor.u32 %v2386, 2147483648
  %v2395 = vxor.u32 %v2387, 2147483648
  %v2396 = vxor.u32 %v2388, 2147483648
  %v2397 = vmul.f32 %v2389, 1.442695
  %v2398 = vpow.pop %v2397
  %v2399 = vmul.f32 %v2390, 1.442695
  %v2400 = vpow.pop %v2399
  %v2401 = vmul.f32 %v2391, 1.442695
  %v2402 = vpow.pop %v2401
  %v2403 = vmul.f32 %v2392, 1.442695
  %v2404 = vpow.pop %v2403
  %v2405 = vmul.f32 %v2393, 1.442695
  %v2406 = vpow.pop %v2405
  %v2407 = vmul.f32 %v2394, 1.442695
  %v2408 = vpow.pop %v2407
  %v2409 = vmul.f32 %v2395, 1.442695
  %v2410 = vpow.pop %v2409
  %v2411 = vmul.f32 %v2396, 1.442695
  %v2412 = vpow.pop %v2411
  %v2413 = vadd.f32 %v2398, 1.0
  %v2414 = vadd.f32 %v2400, 1.0
  %v2415 = vadd.f32 %v2402, 1.0
  %v2416 = vadd.f32 %v2404, 1.0
  %v2417 = vadd.f32 %v2406, 1.0
  %v2418 = vadd.f32 %v2408, 1.0
  %v2419 = vadd.f32 %v2410, 1.0
  %v2420 = vadd.f32 %v2412, 1.0
  %v2421 = vrcp.pop %v2413
  %v2422 = vmul.f32 1.0, %v2421
  %v2423 = vrcp.pop %v2414
  %v2424 = vmul.f32 1.0, %v2423
  %v2425 = vrcp.pop %v2415
  %v2426 = vmul.f32 1.0, %v2425
  %v2427 = vrcp.pop %v2416
  %v2428 = vmul.f32 1.0, %v2427
  %v2429 = vrcp.pop %v2417
  %v2430 = vmul.f32 1.0, %v2429
  %v2431 = vrcp.pop %v2418
  %v2432 = vmul.f32 1.0, %v2431
  %v2433 = vrcp.pop %v2419
  %v2434 = vmul.f32 1.0, %v2433
  %v2435 = vrcp.pop %v2420
  %v2436 = vmul.f32 1.0, %v2435
  %v2437 = vadd.f32 %v2125, %v165
  %v2438 = vadd.f32 %v2206, %v169
  %v2439 = vadd.f32 %v2287, %v173
  %v2440 = vadd.f32 %v2368, %v177
  %v2441 = vmul.f32 %v2422, %v2437
  %v2442 = vmul.f32 %v2426, %v2438
  %v2443 = vmul.f32 %v2430, %v2439
  %v2444 = vmul.f32 %v2434, %v2440
  %v2445 = vunpack.c.l.bf16 %v2038
  %v2446 = vunpack.c.l.bf16 %v2040
  %v2447 = vunpack.c.l.bf16 %v2042
  %v2448 = vunpack.c.l.bf16 %v2044
  %v2449 = vadd.f32 %v2445, %v2441
  %v2450 = vadd.f32 %v2446, %v2442
  %v2451 = vadd.f32 %v2447, %v2443
  %v2452 = vadd.f32 %v2448, %v2444
  %v2453 = vtanh.pop %v2449
  %v2454 = vtanh.pop %v2450
  %v2455 = vtanh.pop %v2451
  %v2456 = vtanh.pop %v2452
  %v2457 = vsub.f32 1.0, %v2424
  %v2458 = vsub.f32 1.0, %v2428
  %v2459 = vsub.f32 1.0, %v2432
  %v2460 = vsub.f32 1.0, %v2436
  %v2461 = vsub.f32 %v2453, %v2032
  %v2462 = vsub.f32 %v2454, %v2033
  %v2463 = vsub.f32 %v2455, %v2034
  %v2464 = vsub.f32 %v2456, %v2035
  %v2465 = vmul.f32 %v2457, %v2461
  %v2466 = vmul.f32 %v2458, %v2462
  %v2467 = vmul.f32 %v2459, %v2463
  %v2468 = vmul.f32 %v2460, %v2464
  %vm2469 = vcmp.gt.s32.totalorder %v182, 3
  %vm2470 = vcmp.gt.s32.totalorder %v183, 3
  %vm2471 = vcmp.gt.s32.totalorder %v184, 3
  %vm2472 = vcmp.gt.s32.totalorder %v185, 3
  %v2473 = vsel %vm2469, %v2465, 0.0
  %v2474 = vsel %vm2470, %v2466, 0.0
  %v2475 = vsel %vm2471, %v2467, 0.0
  %v2476 = vsel %vm2472, %v2468, 0.0
  %v2477 = vadd.f32 %v2032, %v2473
  %v2478 = vadd.f32 %v2033, %v2474
  %v2479 = vadd.f32 %v2034, %v2475
  %v2480 = vadd.f32 %v2035, %v2476
  %s2481 = scalar_lea.vmem %s0, 192
  %v2482 = vld [vmem:[%s2481] sm:$0xff]
  %v2483 = vld [vmem:[%s2481 + $0x8] sm:$0xf]
  %v2484 = vld [vmem:[%s2481 + $0xc] sm:$0xff]
  %v2485 = vld [vmem:[%s2481 + $0x14] sm:$0xf]
  %v2486 = vld [vmem:[%s2481 + $0x18] sm:$0xff]
  %v2487 = vld [vmem:[%s2481 + $0x20] sm:$0xf]
  %v2488 = vld [vmem:[%s2481 + $0x24] sm:$0xff]
  %v2489 = vld [vmem:[%s2481 + $0x2c] sm:$0xf]
  %v2490 = vpack.c.bf16 %v2477, %v2477
  %v2491 = vpack.c.bf16 %v2478, %v2478
  %v2492 = vpack.c.bf16 %v2479, %v2479
  %v2493 = vpack.c.bf16 %v2480, %v2480
  %2494 = vmatprep.subr.bf16.mxu0 %v283
  %2495 = vmatpush1.bf16.msra.mxu0 %v282
  %2496 = vmatprep.subr.bf16.mxu0 %v286
  %2497 = vmatpush1.bf16.msra.mxu0 %v285
  %2498 = vmatprep.subr.bf16.mxu0 %v289
  %2499 = vmatpush1.bf16.msra.mxu0 %v288
  %2500 = vmatprep.subr.bf16.mxu0 %v292
  %2501 = vmatpush1.bf16.msra.mxu0 %v291
  %2502 = vmatprep.subr.bf16.mxu0 %v295
  %2503 = vmatpush1.bf16.msra.mxu0 %v294
  %2504 = vmatprep.subr.bf16.mxu0 %v298
  %2505 = vmatpush1.bf16.msra.mxu0 %v297
  %2506 = vmatprep.subr.bf16.mxu0 %v301
  %2507 = vmatpush1.bf16.msra.mxu0 %v300
  %2508 = vmatprep.subr.bf16.mxu0 %v304
  %2509 = vmatpush1.bf16.msra.mxu0 %v303
  %2510 = vmatprep.subr.bf16.mxu0 0
  %2511 = vmatpush1.bf16.msra.mxu0 0
  %2512 = vmatprep.subr.bf16.mxu0 0
  %2513 = vmatpush1.bf16.msra.mxu0 0
  %2514 = vmatprep.subr.bf16.mxu0 0
  %2515 = vmatpush1.bf16.msra.mxu0 0
  %2516 = vmatprep.subr.bf16.mxu0 0
  %2517 = vmatpush1.bf16.msra.mxu0 0
  %2518 = vmatprep.subr.bf16.mxu0 0
  %2519 = vmatpush1.bf16.msra.mxu0 0
  %2520 = vmatprep.subr.bf16.mxu0 0
  %2521 = vmatpush1.bf16.msra.mxu0 0
  %2522 = vmatprep.subr.bf16.mxu0 0
  %2523 = vmatpush1.bf16.msra.mxu0 0
  %2524 = vmatprep.subr.bf16.mxu0 0
  %2525 = vmatpush1.bf16.msra.mxu0 0
  %2526 = vmatprep.mubr.bf16.mxu0 0
  %2527 = vmatmul.mubr.bf16.gmra.mrb[0].mxu0 %v2490
  %v2528 = vpop.f32.mrb[0].mxu0
  %v2529 = vadd.f32 0.0, %v2528
  %v2530 = vpop.f32.mrb[0].mxu0
  %v2531 = vadd.f32 0.0, %v2530
  %v2532 = vpop.f32.mrb[0].mxu0
  %v2533 = vpop.f32.mrb[0].mxu0
  %2534 = vdwg.mxu0
  %2535 = vmatprep.subr.bf16.mxu0 0
  %2536 = vmatpush1.bf16.msra.mxu0 %v284
  %2537 = vmatprep.subr.bf16.mxu0 0
  %2538 = vmatpush1.bf16.msra.mxu0 %v287
  %2539 = vmatprep.subr.bf16.mxu0 0
  %2540 = vmatpush1.bf16.msra.mxu0 %v290
  %2541 = vmatprep.subr.bf16.mxu0 0
  %2542 = vmatpush1.bf16.msra.mxu0 %v293
  %2543 = vmatprep.subr.bf16.mxu0 0
  %2544 = vmatpush1.bf16.msra.mxu0 %v296
  %2545 = vmatprep.subr.bf16.mxu0 0
  %2546 = vmatpush1.bf16.msra.mxu0 %v299
  %2547 = vmatprep.subr.bf16.mxu0 0
  %2548 = vmatpush1.bf16.msra.mxu0 %v302
  %2549 = vmatprep.subr.bf16.mxu0 0
  %2550 = vmatpush1.bf16.msra.mxu0 %v305
  %2551 = vmatprep.subr.bf16.mxu0 0
  %2552 = vmatpush1.bf16.msra.mxu0 0
  %2553 = vmatprep.subr.bf16.mxu0 0
  %2554 = vmatpush1.bf16.msra.mxu0 0
  %2555 = vmatprep.subr.bf16.mxu0 0
  %2556 = vmatpush1.bf16.msra.mxu0 0
  %2557 = vmatprep.subr.bf16.mxu0 0
  %2558 = vmatpush1.bf16.msra.mxu0 0
  %2559 = vmatprep.subr.bf16.mxu0 0
  %2560 = vmatpush1.bf16.msra.mxu0 0
  %2561 = vmatprep.subr.bf16.mxu0 0
  %2562 = vmatpush1.bf16.msra.mxu0 0
  %2563 = vmatprep.subr.bf16.mxu0 0
  %2564 = vmatpush1.bf16.msra.mxu0 0
  %2565 = vmatprep.subr.bf16.mxu0 0
  %2566 = vmatpush1.bf16.msra.mxu0 0
  %2567 = vmatprep.mubr.bf16.mxu0 0
  %2568 = vmatmul.mubr.bf16.gmra.mrb[0].mxu0 %v2490
  %v2569 = vpop.f32.mrb[0].mxu0
  %v2570 = vadd.f32 0.0, %v2569
  %v2571 = vpop.f32.mrb[0].mxu0
  %v2572 = vpop.f32.mrb[0].mxu0
  %v2573 = vpop.f32.mrb[0].mxu0
  %2574 = vdwg.mxu0
  %2575 = vmatprep.subr.bf16.mxu0 %v492
  %2576 = vmatpush1.bf16.msra.mxu0 %v491
  %2577 = vmatprep.subr.bf16.mxu0 %v495
  %2578 = vmatpush1.bf16.msra.mxu0 %v494
  %2579 = vmatprep.subr.bf16.mxu0 %v498
  %2580 = vmatpush1.bf16.msra.mxu0 %v497
  %2581 = vmatprep.subr.bf16.mxu0 %v501
  %2582 = vmatpush1.bf16.msra.mxu0 %v500
  %2583 = vmatprep.subr.bf16.mxu0 %v504
  %2584 = vmatpush1.bf16.msra.mxu0 %v503
  %2585 = vmatprep.subr.bf16.mxu0 %v507
  %2586 = vmatpush1.bf16.msra.mxu0 %v506
  %2587 = vmatprep.subr.bf16.mxu0 %v510
  %2588 = vmatpush1.bf16.msra.mxu0 %v509
  %2589 = vmatprep.subr.bf16.mxu0 %v513
  %2590 = vmatpush1.bf16.msra.mxu0 %v512
  %2591 = vmatprep.subr.bf16.mxu0 0
  %2592 = vmatpush1.bf16.msra.mxu0 0
  %2593 = vmatprep.subr.bf16.mxu0 0
  %2594 = vmatpush1.bf16.msra.mxu0 0
  %2595 = vmatprep.subr.bf16.mxu0 0
  %2596 = vmatpush1.bf16.msra.mxu0 0
  %2597 = vmatprep.subr.bf16.mxu0 0
  %2598 = vmatpush1.bf16.msra.mxu0 0
  %2599 = vmatprep.subr.bf16.mxu0 0
  %2600 = vmatpush1.bf16.msra.mxu0 0
  %2601 = vmatprep.subr.bf16.mxu0 0
  %2602 = vmatpush1.bf16.msra.mxu0 0
  %2603 = vmatprep.subr.bf16.mxu0 0
  %2604 = vmatpush1.bf16.msra.mxu0 0
  %2605 = vmatprep.subr.bf16.mxu0 0
  %2606 = vmatpush1.bf16.msra.mxu0 0
  %2607 = vmatprep.mubr.bf16.mxu0 0
  %2608 = vmatmul.mubr.bf16.gmra.mrb[0].mxu0 %v2491
  %v2609 = vpop.f32.mrb[0].mxu0
  %v2610 = vadd.f32 0.0, %v2609
  %v2611 = vpop.f32.mrb[0].mxu0
  %v2612 = vadd.f32 0.0, %v2611
  %v2613 = vpop.f32.mrb[0].mxu0
  %v2614 = vpop.f32.mrb[0].mxu0
  %2615 = vdwg.mxu0
  %2616 = vmatprep.subr.bf16.mxu0 0
  %2617 = vmatpush1.bf16.msra.mxu0 %v493
  %2618 = vmatprep.subr.bf16.mxu0 0
  %2619 = vmatpush1.bf16.msra.mxu0 %v496
  %2620 = vmatprep.subr.bf16.mxu0 0
  %2621 = vmatpush1.bf16.msra.mxu0 %v499
  %2622 = vmatprep.subr.bf16.mxu0 0
  %2623 = vmatpush1.bf16.msra.mxu0 %v502
  %2624 = vmatprep.subr.bf16.mxu0 0
  %2625 = vmatpush1.bf16.msra.mxu0 %v505
  %2626 = vmatprep.subr.bf16.mxu0 0
  %2627 = vmatpush1.bf16.msra.mxu0 %v508
  %2628 = vmatprep.subr.bf16.mxu0 0
  %2629 = vmatpush1.bf16.msra.mxu0 %v511
  %2630 = vmatprep.subr.bf16.mxu0 0
  %2631 = vmatpush1.bf16.msra.mxu0 %v514
  %2632 = vmatprep.subr.bf16.mxu0 0
  %2633 = vmatpush1.bf16.msra.mxu0 0
  %2634 = vmatprep.subr.bf16.mxu0 0
  %2635 = vmatpush1.bf16.msra.mxu0 0
  %2636 = vmatprep.subr.bf16.mxu0 0
  %2637 = vmatpush1.bf16.msra.mxu0 0
  %2638 = vmatprep.subr.bf16.mxu0 0
  %2639 = vmatpush1.bf16.msra.mxu0 0
  %2640 = vmatprep.subr.bf16.mxu0 0
  %2641 = vmatpush1.bf16.msra.mxu0 0
  %2642 = vmatprep.subr.bf16.mxu0 0
  %2643 = vmatpush1.bf16.msra.mxu0 0
  %2644 = vmatprep.subr.bf16.mxu0 0
  %2645 = vmatpush1.bf16.msra.mxu0 0
  %2646 = vmatprep.subr.bf16.mxu0 0
  %2647 = vmatpush1.bf16.msra.mxu0 0
  %2648 = vmatprep.mubr.bf16.mxu0 0
  %2649 = vmatmul.mubr.bf16.gmra.mrb[0].mxu0 %v2491
  %v2650 = vpop.f32.mrb[0].mxu0
  %v2651 = vadd.f32 0.0, %v2650
  %v2652 = vpop.f32.mrb[0].mxu0
  %v2653 = vpop.f32.mrb[0].mxu0
  %v2654 = vpop.f32.mrb[0].mxu0
  %2655 = vdwg.mxu0
  %2656 = vmatprep.subr.bf16.mxu0 %v701
  %2657 = vmatpush1.bf16.msra.mxu0 %v700
  %2658 = vmatprep.subr.bf16.mxu0 %v704
  %2659 = vmatpush1.bf16.msra.mxu0 %v703
  %2660 = vmatprep.subr.bf16.mxu0 %v707
  %2661 = vmatpush1.bf16.msra.mxu0 %v706
  %2662 = vmatprep.subr.bf16.mxu0 %v710
  %2663 = vmatpush1.bf16.msra.mxu0 %v709
  %2664 = vmatprep.subr.bf16.mxu0 %v713
  %2665 = vmatpush1.bf16.msra.mxu0 %v712
  %2666 = vmatprep.subr.bf16.mxu0 %v716
  %2667 = vmatpush1.bf16.msra.mxu0 %v715
  %2668 = vmatprep.subr.bf16.mxu0 %v719
  %2669 = vmatpush1.bf16.msra.mxu0 %v718
  %2670 = vmatprep.subr.bf16.mxu0 %v722
  %2671 = vmatpush1.bf16.msra.mxu0 %v721
  %2672 = vmatprep.subr.bf16.mxu0 0
  %2673 = vmatpush1.bf16.msra.mxu0 0
  %2674 = vmatprep.subr.bf16.mxu0 0
  %2675 = vmatpush1.bf16.msra.mxu0 0
  %2676 = vmatprep.subr.bf16.mxu0 0
  %2677 = vmatpush1.bf16.msra.mxu0 0
  %2678 = vmatprep.subr.bf16.mxu0 0
  %2679 = vmatpush1.bf16.msra.mxu0 0
  %2680 = vmatprep.subr.bf16.mxu0 0
  %2681 = vmatpush1.bf16.msra.mxu0 0
  %2682 = vmatprep.subr.bf16.mxu0 0
  %2683 = vmatpush1.bf16.msra.mxu0 0
  %2684 = vmatprep.subr.bf16.mxu0 0
  %2685 = vmatpush1.bf16.msra.mxu0 0
  %2686 = vmatprep.subr.bf16.mxu0 0
  %2687 = vmatpush1.bf16.msra.mxu0 0
  %2688 = vmatprep.mubr.bf16.mxu0 0
  %2689 = vmatmul.mubr.bf16.gmra.mrb[0].mxu0 %v2492
  %v2690 = vpop.f32.mrb[0].mxu0
  %v2691 = vadd.f32 0.0, %v2690
  %v2692 = vpop.f32.mrb[0].mxu0
  %v2693 = vadd.f32 0.0, %v2692
  %v2694 = vpop.f32.mrb[0].mxu0
  %v2695 = vpop.f32.mrb[0].mxu0
  %2696 = vdwg.mxu0
  %2697 = vmatprep.subr.bf16.mxu0 0
  %2698 = vmatpush1.bf16.msra.mxu0 %v702
  %2699 = vmatprep.subr.bf16.mxu0 0
  %2700 = vmatpush1.bf16.msra.mxu0 %v705
  %2701 = vmatprep.subr.bf16.mxu0 0
  %2702 = vmatpush1.bf16.msra.mxu0 %v708
  %2703 = vmatprep.subr.bf16.mxu0 0
  %2704 = vmatpush1.bf16.msra.mxu0 %v711
  %2705 = vmatprep.subr.bf16.mxu0 0
  %2706 = vmatpush1.bf16.msra.mxu0 %v714
  %2707 = vmatprep.subr.bf16.mxu0 0
  %2708 = vmatpush1.bf16.msra.mxu0 %v717
  %2709 = vmatprep.subr.bf16.mxu0 0
  %2710 = vmatpush1.bf16.msra.mxu0 %v720
  %2711 = vmatprep.subr.bf16.mxu0 0
  %2712 = vmatpush1.bf16.msra.mxu0 %v723
  %2713 = vmatprep.subr.bf16.mxu0 0
  %2714 = vmatpush1.bf16.msra.mxu0 0
  %2715 = vmatprep.subr.bf16.mxu0 0
  %2716 = vmatpush1.bf16.msra.mxu0 0
  %2717 = vmatprep.subr.bf16.mxu0 0
  %2718 = vmatpush1.bf16.msra.mxu0 0
  %2719 = vmatprep.subr.bf16.mxu0 0
  %2720 = vmatpush1.bf16.msra.mxu0 0
  %2721 = vmatprep.subr.bf16.mxu0 0
  %2722 = vmatpush1.bf16.msra.mxu0 0
  %2723 = vmatprep.subr.bf16.mxu0 0
  %2724 = vmatpush1.bf16.msra.mxu0 0
  %2725 = vmatprep.subr.bf16.mxu0 0
  %2726 = vmatpush1.bf16.msra.mxu0 0
  %2727 = vmatprep.subr.bf16.mxu0 0
  %2728 = vmatpush1.bf16.msra.mxu0 0
  %2729 = vmatprep.mubr.bf16.mxu0 0
  %2730 = vmatmul.mubr.bf16.gmra.mrb[0].mxu0 %v2492
  %v2731 = vpop.f32.mrb[0].mxu0
  %v2732 = vadd.f32 0.0, %v2731
  %v2733 = vpop.f32.mrb[0].mxu0
  %v2734 = vpop.f32.mrb[0].mxu0
  %v2735 = vpop.f32.mrb[0].mxu0
  %2736 = vdwg.mxu0
  %2737 = vmatprep.subr.bf16.mxu0 %v910
  %2738 = vmatpush1.bf16.msra.mxu0 %v909
  %2739 = vmatprep.subr.bf16.mxu0 %v913
  %2740 = vmatpush1.bf16.msra.mxu0 %v912
  %2741 = vmatprep.subr.bf16.mxu0 %v916
  %2742 = vmatpush1.bf16.msra.mxu0 %v915
  %2743 = vmatprep.subr.bf16.mxu0 %v919
  %2744 = vmatpush1.bf16.msra.mxu0 %v918
  %2745 = vmatprep.subr.bf16.mxu0 %v922
  %2746 = vmatpush1.bf16.msra.mxu0 %v921
  %2747 = vmatprep.subr.bf16.mxu0 %v925
  %2748 = vmatpush1.bf16.msra.mxu0 %v924
  %2749 = vmatprep.subr.bf16.mxu0 %v928
  %2750 = vmatpush1.bf16.msra.mxu0 %v927
  %2751 = vmatprep.subr.bf16.mxu0 %v931
  %2752 = vmatpush1.bf16.msra.mxu0 %v930
  %2753 = vmatprep.subr.bf16.mxu0 0
  %2754 = vmatpush1.bf16.msra.mxu0 0
  %2755 = vmatprep.subr.bf16.mxu0 0
  %2756 = vmatpush1.bf16.msra.mxu0 0
  %2757 = vmatprep.subr.bf16.mxu0 0
  %2758 = vmatpush1.bf16.msra.mxu0 0
  %2759 = vmatprep.subr.bf16.mxu0 0
  %2760 = vmatpush1.bf16.msra.mxu0 0
  %2761 = vmatprep.subr.bf16.mxu0 0
  %2762 = vmatpush1.bf16.msra.mxu0 0
  %2763 = vmatprep.subr.bf16.mxu0 0
  %2764 = vmatpush1.bf16.msra.mxu0 0
  %2765 = vmatprep.subr.bf16.mxu0 0
  %2766 = vmatpush1.bf16.msra.mxu0 0
  %2767 = vmatprep.subr.bf16.mxu0 0
  %2768 = vmatpush1.bf16.msra.mxu0 0
  %2769 = vmatprep.mubr.bf16.mxu0 0
  %2770 = vmatmul.mubr.bf16.gmra.mrb[0].mxu0 %v2493
  %v2771 = vpop.f32.mrb[0].mxu0
  %v2772 = vadd.f32 0.0, %v2771
  %v2773 = vpop.f32.mrb[0].mxu0
  %v2774 = vadd.f32 0.0, %v2773
  %v2775 = vpop.f32.mrb[0].mxu0
  %v2776 = vpop.f32.mrb[0].mxu0
  %2777 = vdwg.mxu0
  %2778 = vmatprep.subr.bf16.mxu0 0
  %2779 = vmatpush1.bf16.msra.mxu0 %v911
  %2780 = vmatprep.subr.bf16.mxu0 0
  %2781 = vmatpush1.bf16.msra.mxu0 %v914
  %2782 = vmatprep.subr.bf16.mxu0 0
  %2783 = vmatpush1.bf16.msra.mxu0 %v917
  %2784 = vmatprep.subr.bf16.mxu0 0
  %2785 = vmatpush1.bf16.msra.mxu0 %v920
  %2786 = vmatprep.subr.bf16.mxu0 0
  %2787 = vmatpush1.bf16.msra.mxu0 %v923
  %2788 = vmatprep.subr.bf16.mxu0 0
  %2789 = vmatpush1.bf16.msra.mxu0 %v926
  %2790 = vmatprep.subr.bf16.mxu0 0
  %2791 = vmatpush1.bf16.msra.mxu0 %v929
  %2792 = vmatprep.subr.bf16.mxu0 0
  %2793 = vmatpush1.bf16.msra.mxu0 %v932
  %2794 = vmatprep.subr.bf16.mxu0 0
  %2795 = vmatpush1.bf16.msra.mxu0 0
  %2796 = vmatprep.subr.bf16.mxu0 0
  %2797 = vmatpush1.bf16.msra.mxu0 0
  %2798 = vmatprep.subr.bf16.mxu0 0
  %2799 = vmatpush1.bf16.msra.mxu0 0
  %2800 = vmatprep.subr.bf16.mxu0 0
  %2801 = vmatpush1.bf16.msra.mxu0 0
  %2802 = vmatprep.subr.bf16.mxu0 0
  %2803 = vmatpush1.bf16.msra.mxu0 0
  %2804 = vmatprep.subr.bf16.mxu0 0
  %2805 = vmatpush1.bf16.msra.mxu0 0
  %2806 = vmatprep.subr.bf16.mxu0 0
  %2807 = vmatpush1.bf16.msra.mxu0 0
  %2808 = vmatprep.subr.bf16.mxu0 0
  %2809 = vmatpush1.bf16.msra.mxu0 0
  %2810 = vmatprep.mubr.bf16.mxu0 0
  %2811 = vmatmul.mubr.bf16.gmra.mrb[0].mxu0 %v2493
  %v2812 = vpop.f32.mrb[0].mxu0
  %v2813 = vadd.f32 0.0, %v2812
  %v2814 = vpop.f32.mrb[0].mxu0
  %v2815 = vpop.f32.mrb[0].mxu0
  %v2816 = vpop.f32.mrb[0].mxu0
  %2817 = vdwg.mxu0
  %v2818 = vunpack.c.l.bf16 %v2482
  %v2819 = vunpack.c.h.bf16 %v2482
  %v2820 = vunpack.c.l.bf16 %v2484
  %v2821 = vunpack.c.h.bf16 %v2484
  %v2822 = vunpack.c.l.bf16 %v2486
  %v2823 = vunpack.c.h.bf16 %v2486
  %v2824 = vunpack.c.l.bf16 %v2488
  %v2825 = vunpack.c.h.bf16 %v2488
  %v2826 = vadd.f32 %v2818, %v2529
  %v2827 = vadd.f32 %v2819, %v2531
  %v2828 = vadd.f32 %v2820, %v2610
  %v2829 = vadd.f32 %v2821, %v2612
  %v2830 = vadd.f32 %v2822, %v2691
  %v2831 = vadd.f32 %v2823, %v2693
  %v2832 = vadd.f32 %v2824, %v2772
  %v2833 = vadd.f32 %v2825, %v2774
  %v2834 = vxor.u32 %v2826, 2147483648
  %v2835 = vxor.u32 %v2827, 2147483648
  %v2836 = vxor.u32 %v2828, 2147483648
  %v2837 = vxor.u32 %v2829, 2147483648
  %v2838 = vxor.u32 %v2830, 2147483648
  %v2839 = vxor.u32 %v2831, 2147483648
  %v2840 = vxor.u32 %v2832, 2147483648
  %v2841 = vxor.u32 %v2833, 2147483648
  %v2842 = vmul.f32 %v2834, 1.442695
  %v2843 = vpow.pop %v2842
  %v2844 = vmul.f32 %v2835, 1.442695
  %v2845 = vpow.pop %v2844
  %v2846 = vmul.f32 %v2836, 1.442695
  %v2847 = vpow.pop %v2846
  %v2848 = vmul.f32 %v2837, 1.442695
  %v2849 = vpow.pop %v2848
  %v2850 = vmul.f32 %v2838, 1.442695
  %v2851 = vpow.pop %v2850
  %v2852 = vmul.f32 %v2839, 1.442695
  %v2853 = vpow.pop %v2852
  %v2854 = vmul.f32 %v2840, 1.442695
  %v2855 = vpow.pop %v2854
  %v2856 = vmul.f32 %v2841, 1.442695
  %v2857 = vpow.pop %v2856
  %v2858 = vadd.f32 %v2843, 1.0
  %v2859 = vadd.f32 %v2845, 1.0
  %v2860 = vadd.f32 %v2847, 1.0
  %v2861 = vadd.f32 %v2849, 1.0
  %v2862 = vadd.f32 %v2851, 1.0
  %v2863 = vadd.f32 %v2853, 1.0
  %v2864 = vadd.f32 %v2855, 1.0
  %v2865 = vadd.f32 %v2857, 1.0
  %v2866 = vrcp.pop %v2858
  %v2867 = vmul.f32 1.0, %v2866
  %v2868 = vrcp.pop %v2859
  %v2869 = vmul.f32 1.0, %v2868
  %v2870 = vrcp.pop %v2860
  %v2871 = vmul.f32 1.0, %v2870
  %v2872 = vrcp.pop %v2861
  %v2873 = vmul.f32 1.0, %v2872
  %v2874 = vrcp.pop %v2862
  %v2875 = vmul.f32 1.0, %v2874
  %v2876 = vrcp.pop %v2863
  %v2877 = vmul.f32 1.0, %v2876
  %v2878 = vrcp.pop %v2864
  %v2879 = vmul.f32 1.0, %v2878
  %v2880 = vrcp.pop %v2865
  %v2881 = vmul.f32 1.0, %v2880
  %v2882 = vadd.f32 %v2570, %v165
  %v2883 = vadd.f32 %v2651, %v169
  %v2884 = vadd.f32 %v2732, %v173
  %v2885 = vadd.f32 %v2813, %v177
  %v2886 = vmul.f32 %v2867, %v2882
  %v2887 = vmul.f32 %v2871, %v2883
  %v2888 = vmul.f32 %v2875, %v2884
  %v2889 = vmul.f32 %v2879, %v2885
  %v2890 = vunpack.c.l.bf16 %v2483
  %v2891 = vunpack.c.l.bf16 %v2485
  %v2892 = vunpack.c.l.bf16 %v2487
  %v2893 = vunpack.c.l.bf16 %v2489
  %v2894 = vadd.f32 %v2890, %v2886
  %v2895 = vadd.f32 %v2891, %v2887
  %v2896 = vadd.f32 %v2892, %v2888
  %v2897 = vadd.f32 %v2893, %v2889
  %v2898 = vtanh.pop %v2894
  %v2899 = vtanh.pop %v2895
  %v2900 = vtanh.pop %v2896
  %v2901 = vtanh.pop %v2897
  %v2902 = vsub.f32 1.0, %v2869
  %v2903 = vsub.f32 1.0, %v2873
  %v2904 = vsub.f32 1.0, %v2877
  %v2905 = vsub.f32 1.0, %v2881
  %v2906 = vsub.f32 %v2898, %v2477
  %v2907 = vsub.f32 %v2899, %v2478
  %v2908 = vsub.f32 %v2900, %v2479
  %v2909 = vsub.f32 %v2901, %v2480
  %v2910 = vmul.f32 %v2902, %v2906
  %v2911 = vmul.f32 %v2903, %v2907
  %v2912 = vmul.f32 %v2904, %v2908
  %v2913 = vmul.f32 %v2905, %v2909
  %vm2914 = vcmp.gt.s32.totalorder %v182, 4
  %vm2915 = vcmp.gt.s32.totalorder %v183, 4
  %vm2916 = vcmp.gt.s32.totalorder %v184, 4
  %vm2917 = vcmp.gt.s32.totalorder %v185, 4
  %v2918 = vsel %vm2914, %v2910, 0.0
  %v2919 = vsel %vm2915, %v2911, 0.0
  %v2920 = vsel %vm2916, %v2912, 0.0
  %v2921 = vsel %vm2917, %v2913, 0.0
  %v2922 = vadd.f32 %v2477, %v2918
  %v2923 = vadd.f32 %v2478, %v2919
  %v2924 = vadd.f32 %v2479, %v2920
  %v2925 = vadd.f32 %v2480, %v2921
  %s2926 = scalar_lea.vmem %s0, 240
  %v2927 = vld [vmem:[%s2926] sm:$0xff]
  %v2928 = vld [vmem:[%s2926 + $0x8] sm:$0xf]
  %v2929 = vld [vmem:[%s2926 + $0xc] sm:$0xff]
  %v2930 = vld [vmem:[%s2926 + $0x14] sm:$0xf]
  %v2931 = vld [vmem:[%s2926 + $0x18] sm:$0xff]
  %v2932 = vld [vmem:[%s2926 + $0x20] sm:$0xf]
  %v2933 = vld [vmem:[%s2926 + $0x24] sm:$0xff]
  %v2934 = vld [vmem:[%s2926 + $0x2c] sm:$0xf]
  %v2935 = vpack.c.bf16 %v2922, %v2922
  %v2936 = vpack.c.bf16 %v2923, %v2923
  %v2937 = vpack.c.bf16 %v2924, %v2924
  %v2938 = vpack.c.bf16 %v2925, %v2925
  %2939 = vmatprep.subr.bf16.mxu0 %v283
  %2940 = vmatpush1.bf16.msra.mxu0 %v282
  %2941 = vmatprep.subr.bf16.mxu0 %v286
  %2942 = vmatpush1.bf16.msra.mxu0 %v285
  %2943 = vmatprep.subr.bf16.mxu0 %v289
  %2944 = vmatpush1.bf16.msra.mxu0 %v288
  %2945 = vmatprep.subr.bf16.mxu0 %v292
  %2946 = vmatpush1.bf16.msra.mxu0 %v291
  %2947 = vmatprep.subr.bf16.mxu0 %v295
  %2948 = vmatpush1.bf16.msra.mxu0 %v294
  %2949 = vmatprep.subr.bf16.mxu0 %v298
  %2950 = vmatpush1.bf16.msra.mxu0 %v297
  %2951 = vmatprep.subr.bf16.mxu0 %v301
  %2952 = vmatpush1.bf16.msra.mxu0 %v300
  %2953 = vmatprep.subr.bf16.mxu0 %v304
  %2954 = vmatpush1.bf16.msra.mxu0 %v303
  %2955 = vmatprep.subr.bf16.mxu0 0
  %2956 = vmatpush1.bf16.msra.mxu0 0
  %2957 = vmatprep.subr.bf16.mxu0 0
  %2958 = vmatpush1.bf16.msra.mxu0 0
  %2959 = vmatprep.subr.bf16.mxu0 0
  %2960 = vmatpush1.bf16.msra.mxu0 0
  %2961 = vmatprep.subr.bf16.mxu0 0
  %2962 = vmatpush1.bf16.msra.mxu0 0
  %2963 = vmatprep.subr.bf16.mxu0 0
  %2964 = vmatpush1.bf16.msra.mxu0 0
  %2965 = vmatprep.subr.bf16.mxu0 0
  %2966 = vmatpush1.bf16.msra.mxu0 0
  %2967 = vmatprep.subr.bf16.mxu0 0
  %2968 = vmatpush1.bf16.msra.mxu0 0
  %2969 = vmatprep.subr.bf16.mxu0 0
  %2970 = vmatpush1.bf16.msra.mxu0 0
  %2971 = vmatprep.mubr.bf16.mxu0 0
  %2972 = vmatmul.mubr.bf16.gmra.mrb[0].mxu0 %v2935
  %v2973 = vpop.f32.mrb[0].mxu0
  %v2974 = vadd.f32 0.0, %v2973
  %v2975 = vpop.f32.mrb[0].mxu0
  %v2976 = vadd.f32 0.0, %v2975
  %v2977 = vpop.f32.mrb[0].mxu0
  %v2978 = vpop.f32.mrb[0].mxu0
  %2979 = vdwg.mxu0
  %2980 = vmatprep.subr.bf16.mxu0 0
  %2981 = vmatpush1.bf16.msra.mxu0 %v284
  %2982 = vmatprep.subr.bf16.mxu0 0
  %2983 = vmatpush1.bf16.msra.mxu0 %v287
  %2984 = vmatprep.subr.bf16.mxu0 0
  %2985 = vmatpush1.bf16.msra.mxu0 %v290
  %2986 = vmatprep.subr.bf16.mxu0 0
  %2987 = vmatpush1.bf16.msra.mxu0 %v293
  %2988 = vmatprep.subr.bf16.mxu0 0
  %2989 = vmatpush1.bf16.msra.mxu0 %v296
  %2990 = vmatprep.subr.bf16.mxu0 0
  %2991 = vmatpush1.bf16.msra.mxu0 %v299
  %2992 = vmatprep.subr.bf16.mxu0 0
  %2993 = vmatpush1.bf16.msra.mxu0 %v302
  %2994 = vmatprep.subr.bf16.mxu0 0
  %2995 = vmatpush1.bf16.msra.mxu0 %v305
  %2996 = vmatprep.subr.bf16.mxu0 0
  %2997 = vmatpush1.bf16.msra.mxu0 0
  %2998 = vmatprep.subr.bf16.mxu0 0
  %2999 = vmatpush1.bf16.msra.mxu0 0
  %3000 = vmatprep.subr.bf16.mxu0 0
  %3001 = vmatpush1.bf16.msra.mxu0 0
  %3002 = vmatprep.subr.bf16.mxu0 0
  %3003 = vmatpush1.bf16.msra.mxu0 0
  %3004 = vmatprep.subr.bf16.mxu0 0
  %3005 = vmatpush1.bf16.msra.mxu0 0
  %3006 = vmatprep.subr.bf16.mxu0 0
  %3007 = vmatpush1.bf16.msra.mxu0 0
  %3008 = vmatprep.subr.bf16.mxu0 0
  %3009 = vmatpush1.bf16.msra.mxu0 0
  %3010 = vmatprep.subr.bf16.mxu0 0
  %3011 = vmatpush1.bf16.msra.mxu0 0
  %3012 = vmatprep.mubr.bf16.mxu0 0
  %3013 = vmatmul.mubr.bf16.gmra.mrb[0].mxu0 %v2935
  %v3014 = vpop.f32.mrb[0].mxu0
  %v3015 = vadd.f32 0.0, %v3014
  %v3016 = vpop.f32.mrb[0].mxu0
  %v3017 = vpop.f32.mrb[0].mxu0
  %v3018 = vpop.f32.mrb[0].mxu0
  %3019 = vdwg.mxu0
  %3020 = vmatprep.subr.bf16.mxu0 %v492
  %3021 = vmatpush1.bf16.msra.mxu0 %v491
  %3022 = vmatprep.subr.bf16.mxu0 %v495
  %3023 = vmatpush1.bf16.msra.mxu0 %v494
  %3024 = vmatprep.subr.bf16.mxu0 %v498
  %3025 = vmatpush1.bf16.msra.mxu0 %v497
  %3026 = vmatprep.subr.bf16.mxu0 %v501
  %3027 = vmatpush1.bf16.msra.mxu0 %v500
  %3028 = vmatprep.subr.bf16.mxu0 %v504
  %3029 = vmatpush1.bf16.msra.mxu0 %v503
  %3030 = vmatprep.subr.bf16.mxu0 %v507
  %3031 = vmatpush1.bf16.msra.mxu0 %v506
  %3032 = vmatprep.subr.bf16.mxu0 %v510
  %3033 = vmatpush1.bf16.msra.mxu0 %v509
  %3034 = vmatprep.subr.bf16.mxu0 %v513
  %3035 = vmatpush1.bf16.msra.mxu0 %v512
  %3036 = vmatprep.subr.bf16.mxu0 0
  %3037 = vmatpush1.bf16.msra.mxu0 0
  %3038 = vmatprep.subr.bf16.mxu0 0
  %3039 = vmatpush1.bf16.msra.mxu0 0
  %3040 = vmatprep.subr.bf16.mxu0 0
  %3041 = vmatpush1.bf16.msra.mxu0 0
  %3042 = vmatprep.subr.bf16.mxu0 0
  %3043 = vmatpush1.bf16.msra.mxu0 0
  %3044 = vmatprep.subr.bf16.mxu0 0
  %3045 = vmatpush1.bf16.msra.mxu0 0
  %3046 = vmatprep.subr.bf16.mxu0 0
  %3047 = vmatpush1.bf16.msra.mxu0 0
  %3048 = vmatprep.subr.bf16.mxu0 0
  %3049 = vmatpush1.bf16.msra.mxu0 0
  %3050 = vmatprep.subr.bf16.mxu0 0
  %3051 = vmatpush1.bf16.msra.mxu0 0
  %3052 = vmatprep.mubr.bf16.mxu0 0
  %3053 = vmatmul.mubr.bf16.gmra.mrb[0].mxu0 %v2936
  %v3054 = vpop.f32.mrb[0].mxu0
  %v3055 = vadd.f32 0.0, %v3054
  %v3056 = vpop.f32.mrb[0].mxu0
  %v3057 = vadd.f32 0.0, %v3056
  %v3058 = vpop.f32.mrb[0].mxu0
  %v3059 = vpop.f32.mrb[0].mxu0
  %3060 = vdwg.mxu0
  %3061 = vmatprep.subr.bf16.mxu0 0
  %3062 = vmatpush1.bf16.msra.mxu0 %v493
  %3063 = vmatprep.subr.bf16.mxu0 0
  %3064 = vmatpush1.bf16.msra.mxu0 %v496
  %3065 = vmatprep.subr.bf16.mxu0 0
  %3066 = vmatpush1.bf16.msra.mxu0 %v499
  %3067 = vmatprep.subr.bf16.mxu0 0
  %3068 = vmatpush1.bf16.msra.mxu0 %v502
  %3069 = vmatprep.subr.bf16.mxu0 0
  %3070 = vmatpush1.bf16.msra.mxu0 %v505
  %3071 = vmatprep.subr.bf16.mxu0 0
  %3072 = vmatpush1.bf16.msra.mxu0 %v508
  %3073 = vmatprep.subr.bf16.mxu0 0
  %3074 = vmatpush1.bf16.msra.mxu0 %v511
  %3075 = vmatprep.subr.bf16.mxu0 0
  %3076 = vmatpush1.bf16.msra.mxu0 %v514
  %3077 = vmatprep.subr.bf16.mxu0 0
  %3078 = vmatpush1.bf16.msra.mxu0 0
  %3079 = vmatprep.subr.bf16.mxu0 0
  %3080 = vmatpush1.bf16.msra.mxu0 0
  %3081 = vmatprep.subr.bf16.mxu0 0
  %3082 = vmatpush1.bf16.msra.mxu0 0
  %3083 = vmatprep.subr.bf16.mxu0 0
  %3084 = vmatpush1.bf16.msra.mxu0 0
  %3085 = vmatprep.subr.bf16.mxu0 0
  %3086 = vmatpush1.bf16.msra.mxu0 0
  %3087 = vmatprep.subr.bf16.mxu0 0
  %3088 = vmatpush1.bf16.msra.mxu0 0
  %3089 = vmatprep.subr.bf16.mxu0 0
  %3090 = vmatpush1.bf16.msra.mxu0 0
  %3091 = vmatprep.subr.bf16.mxu0 0
  %3092 = vmatpush1.bf16.msra.mxu0 0
  %3093 = vmatprep.mubr.bf16.mxu0 0
  %3094 = vmatmul.mubr.bf16.gmra.mrb[0].mxu0 %v2936
  %v3095 = vpop.f32.mrb[0].mxu0
  %v3096 = vadd.f32 0.0, %v3095
  %v3097 = vpop.f32.mrb[0].mxu0
  %v3098 = vpop.f32.mrb[0].mxu0
  %v3099 = vpop.f32.mrb[0].mxu0
  %3100 = vdwg.mxu0
  %3101 = vmatprep.subr.bf16.mxu0 %v701
  %3102 = vmatpush1.bf16.msra.mxu0 %v700
  %3103 = vmatprep.subr.bf16.mxu0 %v704
  %3104 = vmatpush1.bf16.msra.mxu0 %v703
  %3105 = vmatprep.subr.bf16.mxu0 %v707
  %3106 = vmatpush1.bf16.msra.mxu0 %v706
  %3107 = vmatprep.subr.bf16.mxu0 %v710
  %3108 = vmatpush1.bf16.msra.mxu0 %v709
  %3109 = vmatprep.subr.bf16.mxu0 %v713
  %3110 = vmatpush1.bf16.msra.mxu0 %v712
  %3111 = vmatprep.subr.bf16.mxu0 %v716
  %3112 = vmatpush1.bf16.msra.mxu0 %v715
  %3113 = vmatprep.subr.bf16.mxu0 %v719
  %3114 = vmatpush1.bf16.msra.mxu0 %v718
  %3115 = vmatprep.subr.bf16.mxu0 %v722
  %3116 = vmatpush1.bf16.msra.mxu0 %v721
  %3117 = vmatprep.subr.bf16.mxu0 0
  %3118 = vmatpush1.bf16.msra.mxu0 0
  %3119 = vmatprep.subr.bf16.mxu0 0
  %3120 = vmatpush1.bf16.msra.mxu0 0
  %3121 = vmatprep.subr.bf16.mxu0 0
  %3122 = vmatpush1.bf16.msra.mxu0 0
  %3123 = vmatprep.subr.bf16.mxu0 0
  %3124 = vmatpush1.bf16.msra.mxu0 0
  %3125 = vmatprep.subr.bf16.mxu0 0
  %3126 = vmatpush1.bf16.msra.mxu0 0
  %3127 = vmatprep.subr.bf16.mxu0 0
  %3128 = vmatpush1.bf16.msra.mxu0 0
  %3129 = vmatprep.subr.bf16.mxu0 0
  %3130 = vmatpush1.bf16.msra.mxu0 0
  %3131 = vmatprep.subr.bf16.mxu0 0
  %3132 = vmatpush1.bf16.msra.mxu0 0
  %3133 = vmatprep.mubr.bf16.mxu0 0
  %3134 = vmatmul.mubr.bf16.gmra.mrb[0].mxu0 %v2937
  %v3135 = vpop.f32.mrb[0].mxu0
  %v3136 = vadd.f32 0.0, %v3135
  %v3137 = vpop.f32.mrb[0].mxu0
  %v3138 = vadd.f32 0.0, %v3137
  %v3139 = vpop.f32.mrb[0].mxu0
  %v3140 = vpop.f32.mrb[0].mxu0
  %3141 = vdwg.mxu0
  %3142 = vmatprep.subr.bf16.mxu0 0
  %3143 = vmatpush1.bf16.msra.mxu0 %v702
  %3144 = vmatprep.subr.bf16.mxu0 0
  %3145 = vmatpush1.bf16.msra.mxu0 %v705
  %3146 = vmatprep.subr.bf16.mxu0 0
  %3147 = vmatpush1.bf16.msra.mxu0 %v708
  %3148 = vmatprep.subr.bf16.mxu0 0
  %3149 = vmatpush1.bf16.msra.mxu0 %v711
  %3150 = vmatprep.subr.bf16.mxu0 0
  %3151 = vmatpush1.bf16.msra.mxu0 %v714
  %3152 = vmatprep.subr.bf16.mxu0 0
  %3153 = vmatpush1.bf16.msra.mxu0 %v717
  %3154 = vmatprep.subr.bf16.mxu0 0
  %3155 = vmatpush1.bf16.msra.mxu0 %v720
  %3156 = vmatprep.subr.bf16.mxu0 0
  %3157 = vmatpush1.bf16.msra.mxu0 %v723
  %3158 = vmatprep.subr.bf16.mxu0 0
  %3159 = vmatpush1.bf16.msra.mxu0 0
  %3160 = vmatprep.subr.bf16.mxu0 0
  %3161 = vmatpush1.bf16.msra.mxu0 0
  %3162 = vmatprep.subr.bf16.mxu0 0
  %3163 = vmatpush1.bf16.msra.mxu0 0
  %3164 = vmatprep.subr.bf16.mxu0 0
  %3165 = vmatpush1.bf16.msra.mxu0 0
  %3166 = vmatprep.subr.bf16.mxu0 0
  %3167 = vmatpush1.bf16.msra.mxu0 0
  %3168 = vmatprep.subr.bf16.mxu0 0
  %3169 = vmatpush1.bf16.msra.mxu0 0
  %3170 = vmatprep.subr.bf16.mxu0 0
  %3171 = vmatpush1.bf16.msra.mxu0 0
  %3172 = vmatprep.subr.bf16.mxu0 0
  %3173 = vmatpush1.bf16.msra.mxu0 0
  %3174 = vmatprep.mubr.bf16.mxu0 0
  %3175 = vmatmul.mubr.bf16.gmra.mrb[0].mxu0 %v2937
  %v3176 = vpop.f32.mrb[0].mxu0
  %v3177 = vadd.f32 0.0, %v3176
  %v3178 = vpop.f32.mrb[0].mxu0
  %v3179 = vpop.f32.mrb[0].mxu0
  %v3180 = vpop.f32.mrb[0].mxu0
  %3181 = vdwg.mxu0
  %3182 = vmatprep.subr.bf16.mxu0 %v910
  %3183 = vmatpush1.bf16.msra.mxu0 %v909
  %3184 = vmatprep.subr.bf16.mxu0 %v913
  %3185 = vmatpush1.bf16.msra.mxu0 %v912
  %3186 = vmatprep.subr.bf16.mxu0 %v916
  %3187 = vmatpush1.bf16.msra.mxu0 %v915
  %3188 = vmatprep.subr.bf16.mxu0 %v919
  %3189 = vmatpush1.bf16.msra.mxu0 %v918
  %3190 = vmatprep.subr.bf16.mxu0 %v922
  %3191 = vmatpush1.bf16.msra.mxu0 %v921
  %3192 = vmatprep.subr.bf16.mxu0 %v925
  %3193 = vmatpush1.bf16.msra.mxu0 %v924
  %3194 = vmatprep.subr.bf16.mxu0 %v928
  %3195 = vmatpush1.bf16.msra.mxu0 %v927
  %3196 = vmatprep.subr.bf16.mxu0 %v931
  %3197 = vmatpush1.bf16.msra.mxu0 %v930
  %3198 = vmatprep.subr.bf16.mxu0 0
  %3199 = vmatpush1.bf16.msra.mxu0 0
  %3200 = vmatprep.subr.bf16.mxu0 0
  %3201 = vmatpush1.bf16.msra.mxu0 0
  %3202 = vmatprep.subr.bf16.mxu0 0
  %3203 = vmatpush1.bf16.msra.mxu0 0
  %3204 = vmatprep.subr.bf16.mxu0 0
  %3205 = vmatpush1.bf16.msra.mxu0 0
  %3206 = vmatprep.subr.bf16.mxu0 0
  %3207 = vmatpush1.bf16.msra.mxu0 0
  %3208 = vmatprep.subr.bf16.mxu0 0
  %3209 = vmatpush1.bf16.msra.mxu0 0
  %3210 = vmatprep.subr.bf16.mxu0 0
  %3211 = vmatpush1.bf16.msra.mxu0 0
  %3212 = vmatprep.subr.bf16.mxu0 0
  %3213 = vmatpush1.bf16.msra.mxu0 0
  %3214 = vmatprep.mubr.bf16.mxu0 0
  %3215 = vmatmul.mubr.bf16.gmra.mrb[0].mxu0 %v2938
  %v3216 = vpop.f32.mrb[0].mxu0
  %v3217 = vadd.f32 0.0, %v3216
  %v3218 = vpop.f32.mrb[0].mxu0
  %v3219 = vadd.f32 0.0, %v3218
  %v3220 = vpop.f32.mrb[0].mxu0
  %v3221 = vpop.f32.mrb[0].mxu0
  %3222 = vdwg.mxu0
  %3223 = vmatprep.subr.bf16.mxu0 0
  %3224 = vmatpush1.bf16.msra.mxu0 %v911
  %3225 = vmatprep.subr.bf16.mxu0 0
  %3226 = vmatpush1.bf16.msra.mxu0 %v914
  %3227 = vmatprep.subr.bf16.mxu0 0
  %3228 = vmatpush1.bf16.msra.mxu0 %v917
  %3229 = vmatprep.subr.bf16.mxu0 0
  %3230 = vmatpush1.bf16.msra.mxu0 %v920
  %3231 = vmatprep.subr.bf16.mxu0 0
  %3232 = vmatpush1.bf16.msra.mxu0 %v923
  %3233 = vmatprep.subr.bf16.mxu0 0
  %3234 = vmatpush1.bf16.msra.mxu0 %v926
  %3235 = vmatprep.subr.bf16.mxu0 0
  %3236 = vmatpush1.bf16.msra.mxu0 %v929
  %3237 = vmatprep.subr.bf16.mxu0 0
  %3238 = vmatpush1.bf16.msra.mxu0 %v932
  %3239 = vmatprep.subr.bf16.mxu0 0
  %3240 = vmatpush1.bf16.msra.mxu0 0
  %3241 = vmatprep.subr.bf16.mxu0 0
  %3242 = vmatpush1.bf16.msra.mxu0 0
  %3243 = vmatprep.subr.bf16.mxu0 0
  %3244 = vmatpush1.bf16.msra.mxu0 0
  %3245 = vmatprep.subr.bf16.mxu0 0
  %3246 = vmatpush1.bf16.msra.mxu0 0
  %3247 = vmatprep.subr.bf16.mxu0 0
  %3248 = vmatpush1.bf16.msra.mxu0 0
  %3249 = vmatprep.subr.bf16.mxu0 0
  %3250 = vmatpush1.bf16.msra.mxu0 0
  %3251 = vmatprep.subr.bf16.mxu0 0
  %3252 = vmatpush1.bf16.msra.mxu0 0
  %3253 = vmatprep.subr.bf16.mxu0 0
  %3254 = vmatpush1.bf16.msra.mxu0 0
  %3255 = vmatprep.mubr.bf16.mxu0 0
  %3256 = vmatmul.mubr.bf16.gmra.mrb[0].mxu0 %v2938
  %v3257 = vpop.f32.mrb[0].mxu0
  %v3258 = vadd.f32 0.0, %v3257
  %v3259 = vpop.f32.mrb[0].mxu0
  %v3260 = vpop.f32.mrb[0].mxu0
  %v3261 = vpop.f32.mrb[0].mxu0
  %3262 = vdwg.mxu0
  %v3263 = vunpack.c.l.bf16 %v2927
  %v3264 = vunpack.c.h.bf16 %v2927
  %v3265 = vunpack.c.l.bf16 %v2929
  %v3266 = vunpack.c.h.bf16 %v2929
  %v3267 = vunpack.c.l.bf16 %v2931
  %v3268 = vunpack.c.h.bf16 %v2931
  %v3269 = vunpack.c.l.bf16 %v2933
  %v3270 = vunpack.c.h.bf16 %v2933
  %v3271 = vadd.f32 %v3263, %v2974
  %v3272 = vadd.f32 %v3264, %v2976
  %v3273 = vadd.f32 %v3265, %v3055
  %v3274 = vadd.f32 %v3266, %v3057
  %v3275 = vadd.f32 %v3267, %v3136
  %v3276 = vadd.f32 %v3268, %v3138
  %v3277 = vadd.f32 %v3269, %v3217
  %v3278 = vadd.f32 %v3270, %v3219
  %v3279 = vxor.u32 %v3271, 2147483648
  %v3280 = vxor.u32 %v3272, 2147483648
  %v3281 = vxor.u32 %v3273, 2147483648
  %v3282 = vxor.u32 %v3274, 2147483648
  %v3283 = vxor.u32 %v3275, 2147483648
  %v3284 = vxor.u32 %v3276, 2147483648
  %v3285 = vxor.u32 %v3277, 2147483648
  %v3286 = vxor.u32 %v3278, 2147483648
  %v3287 = vmul.f32 %v3279, 1.442695
  %v3288 = vpow.pop %v3287
  %v3289 = vmul.f32 %v3280, 1.442695
  %v3290 = vpow.pop %v3289
  %v3291 = vmul.f32 %v3281, 1.442695
  %v3292 = vpow.pop %v3291
  %v3293 = vmul.f32 %v3282, 1.442695
  %v3294 = vpow.pop %v3293
  %v3295 = vmul.f32 %v3283, 1.442695
  %v3296 = vpow.pop %v3295
  %v3297 = vmul.f32 %v3284, 1.442695
  %v3298 = vpow.pop %v3297
  %v3299 = vmul.f32 %v3285, 1.442695
  %v3300 = vpow.pop %v3299
  %v3301 = vmul.f32 %v3286, 1.442695
  %v3302 = vpow.pop %v3301
  %v3303 = vadd.f32 %v3288, 1.0
  %v3304 = vadd.f32 %v3290, 1.0
  %v3305 = vadd.f32 %v3292, 1.0
  %v3306 = vadd.f32 %v3294, 1.0
  %v3307 = vadd.f32 %v3296, 1.0
  %v3308 = vadd.f32 %v3298, 1.0
  %v3309 = vadd.f32 %v3300, 1.0
  %v3310 = vadd.f32 %v3302, 1.0
  %v3311 = vrcp.pop %v3303
  %v3312 = vmul.f32 1.0, %v3311
  %v3313 = vrcp.pop %v3304
  %v3314 = vmul.f32 1.0, %v3313
  %v3315 = vrcp.pop %v3305
  %v3316 = vmul.f32 1.0, %v3315
  %v3317 = vrcp.pop %v3306
  %v3318 = vmul.f32 1.0, %v3317
  %v3319 = vrcp.pop %v3307
  %v3320 = vmul.f32 1.0, %v3319
  %v3321 = vrcp.pop %v3308
  %v3322 = vmul.f32 1.0, %v3321
  %v3323 = vrcp.pop %v3309
  %v3324 = vmul.f32 1.0, %v3323
  %v3325 = vrcp.pop %v3310
  %v3326 = vmul.f32 1.0, %v3325
  %v3327 = vadd.f32 %v3015, %v165
  %v3328 = vadd.f32 %v3096, %v169
  %v3329 = vadd.f32 %v3177, %v173
  %v3330 = vadd.f32 %v3258, %v177
  %v3331 = vmul.f32 %v3312, %v3327
  %v3332 = vmul.f32 %v3316, %v3328
  %v3333 = vmul.f32 %v3320, %v3329
  %v3334 = vmul.f32 %v3324, %v3330
  %v3335 = vunpack.c.l.bf16 %v2928
  %v3336 = vunpack.c.l.bf16 %v2930
  %v3337 = vunpack.c.l.bf16 %v2932
  %v3338 = vunpack.c.l.bf16 %v2934
  %v3339 = vadd.f32 %v3335, %v3331
  %v3340 = vadd.f32 %v3336, %v3332
  %v3341 = vadd.f32 %v3337, %v3333
  %v3342 = vadd.f32 %v3338, %v3334
  %v3343 = vtanh.pop %v3339
  %v3344 = vtanh.pop %v3340
  %v3345 = vtanh.pop %v3341
  %v3346 = vtanh.pop %v3342
  %v3347 = vsub.f32 1.0, %v3314
  %v3348 = vsub.f32 1.0, %v3318
  %v3349 = vsub.f32 1.0, %v3322
  %v3350 = vsub.f32 1.0, %v3326
  %v3351 = vsub.f32 %v3343, %v2922
  %v3352 = vsub.f32 %v3344, %v2923
  %v3353 = vsub.f32 %v3345, %v2924
  %v3354 = vsub.f32 %v3346, %v2925
  %v3355 = vmul.f32 %v3347, %v3351
  %v3356 = vmul.f32 %v3348, %v3352
  %v3357 = vmul.f32 %v3349, %v3353
  %v3358 = vmul.f32 %v3350, %v3354
  %vm3359 = vcmp.gt.s32.totalorder %v182, 5
  %vm3360 = vcmp.gt.s32.totalorder %v183, 5
  %vm3361 = vcmp.gt.s32.totalorder %v184, 5
  %vm3362 = vcmp.gt.s32.totalorder %v185, 5
  %v3363 = vsel %vm3359, %v3355, 0.0
  %v3364 = vsel %vm3360, %v3356, 0.0
  %v3365 = vsel %vm3361, %v3357, 0.0
  %v3366 = vsel %vm3362, %v3358, 0.0
  %v3367 = vadd.f32 %v2922, %v3363
  %v3368 = vadd.f32 %v2923, %v3364
  %v3369 = vadd.f32 %v2924, %v3365
  %v3370 = vadd.f32 %v2925, %v3366
  %s3371 = scalar_lea.vmem %s0, 288
  %v3372 = vld [vmem:[%s3371] sm:$0xff]
  %v3373 = vld [vmem:[%s3371 + $0x8] sm:$0xf]
  %v3374 = vld [vmem:[%s3371 + $0xc] sm:$0xff]
  %v3375 = vld [vmem:[%s3371 + $0x14] sm:$0xf]
  %v3376 = vld [vmem:[%s3371 + $0x18] sm:$0xff]
  %v3377 = vld [vmem:[%s3371 + $0x20] sm:$0xf]
  %v3378 = vld [vmem:[%s3371 + $0x24] sm:$0xff]
  %v3379 = vld [vmem:[%s3371 + $0x2c] sm:$0xf]
  %v3380 = vpack.c.bf16 %v3367, %v3367
  %v3381 = vpack.c.bf16 %v3368, %v3368
  %v3382 = vpack.c.bf16 %v3369, %v3369
  %v3383 = vpack.c.bf16 %v3370, %v3370
  %3384 = vmatprep.subr.bf16.mxu0 %v283
  %3385 = vmatpush1.bf16.msra.mxu0 %v282
  %3386 = vmatprep.subr.bf16.mxu0 %v286
  %3387 = vmatpush1.bf16.msra.mxu0 %v285
  %3388 = vmatprep.subr.bf16.mxu0 %v289
  %3389 = vmatpush1.bf16.msra.mxu0 %v288
  %3390 = vmatprep.subr.bf16.mxu0 %v292
  %3391 = vmatpush1.bf16.msra.mxu0 %v291
  %3392 = vmatprep.subr.bf16.mxu0 %v295
  %3393 = vmatpush1.bf16.msra.mxu0 %v294
  %3394 = vmatprep.subr.bf16.mxu0 %v298
  %3395 = vmatpush1.bf16.msra.mxu0 %v297
  %3396 = vmatprep.subr.bf16.mxu0 %v301
  %3397 = vmatpush1.bf16.msra.mxu0 %v300
  %3398 = vmatprep.subr.bf16.mxu0 %v304
  %3399 = vmatpush1.bf16.msra.mxu0 %v303
  %3400 = vmatprep.subr.bf16.mxu0 0
  %3401 = vmatpush1.bf16.msra.mxu0 0
  %3402 = vmatprep.subr.bf16.mxu0 0
  %3403 = vmatpush1.bf16.msra.mxu0 0
  %3404 = vmatprep.subr.bf16.mxu0 0
  %3405 = vmatpush1.bf16.msra.mxu0 0
  %3406 = vmatprep.subr.bf16.mxu0 0
  %3407 = vmatpush1.bf16.msra.mxu0 0
  %3408 = vmatprep.subr.bf16.mxu0 0
  %3409 = vmatpush1.bf16.msra.mxu0 0
  %3410 = vmatprep.subr.bf16.mxu0 0
  %3411 = vmatpush1.bf16.msra.mxu0 0
  %3412 = vmatprep.subr.bf16.mxu0 0
  %3413 = vmatpush1.bf16.msra.mxu0 0
  %3414 = vmatprep.subr.bf16.mxu0 0
  %3415 = vmatpush1.bf16.msra.mxu0 0
  %3416 = vmatprep.mubr.bf16.mxu0 0
  %3417 = vmatmul.mubr.bf16.gmra.mrb[0].mxu0 %v3380
  %v3418 = vpop.f32.mrb[0].mxu0
  %v3419 = vadd.f32 0.0, %v3418
  %v3420 = vpop.f32.mrb[0].mxu0
  %v3421 = vadd.f32 0.0, %v3420
  %v3422 = vpop.f32.mrb[0].mxu0
  %v3423 = vpop.f32.mrb[0].mxu0
  %3424 = vdwg.mxu0
  %3425 = vmatprep.subr.bf16.mxu0 0
  %3426 = vmatpush1.bf16.msra.mxu0 %v284
  %3427 = vmatprep.subr.bf16.mxu0 0
  %3428 = vmatpush1.bf16.msra.mxu0 %v287
  %3429 = vmatprep.subr.bf16.mxu0 0
  %3430 = vmatpush1.bf16.msra.mxu0 %v290
  %3431 = vmatprep.subr.bf16.mxu0 0
  %3432 = vmatpush1.bf16.msra.mxu0 %v293
  %3433 = vmatprep.subr.bf16.mxu0 0
  %3434 = vmatpush1.bf16.msra.mxu0 %v296
  %3435 = vmatprep.subr.bf16.mxu0 0
  %3436 = vmatpush1.bf16.msra.mxu0 %v299
  %3437 = vmatprep.subr.bf16.mxu0 0
  %3438 = vmatpush1.bf16.msra.mxu0 %v302
  %3439 = vmatprep.subr.bf16.mxu0 0
  %3440 = vmatpush1.bf16.msra.mxu0 %v305
  %3441 = vmatprep.subr.bf16.mxu0 0
  %3442 = vmatpush1.bf16.msra.mxu0 0
  %3443 = vmatprep.subr.bf16.mxu0 0
  %3444 = vmatpush1.bf16.msra.mxu0 0
  %3445 = vmatprep.subr.bf16.mxu0 0
  %3446 = vmatpush1.bf16.msra.mxu0 0
  %3447 = vmatprep.subr.bf16.mxu0 0
  %3448 = vmatpush1.bf16.msra.mxu0 0
  %3449 = vmatprep.subr.bf16.mxu0 0
  %3450 = vmatpush1.bf16.msra.mxu0 0
  %3451 = vmatprep.subr.bf16.mxu0 0
  %3452 = vmatpush1.bf16.msra.mxu0 0
  %3453 = vmatprep.subr.bf16.mxu0 0
  %3454 = vmatpush1.bf16.msra.mxu0 0
  %3455 = vmatprep.subr.bf16.mxu0 0
  %3456 = vmatpush1.bf16.msra.mxu0 0
  %3457 = vmatprep.mubr.bf16.mxu0 0
  %3458 = vmatmul.mubr.bf16.gmra.mrb[0].mxu0 %v3380
  %v3459 = vpop.f32.mrb[0].mxu0
  %v3460 = vadd.f32 0.0, %v3459
  %v3461 = vpop.f32.mrb[0].mxu0
  %v3462 = vpop.f32.mrb[0].mxu0
  %v3463 = vpop.f32.mrb[0].mxu0
  %3464 = vdwg.mxu0
  %3465 = vmatprep.subr.bf16.mxu0 %v492
  %3466 = vmatpush1.bf16.msra.mxu0 %v491
  %3467 = vmatprep.subr.bf16.mxu0 %v495
  %3468 = vmatpush1.bf16.msra.mxu0 %v494
  %3469 = vmatprep.subr.bf16.mxu0 %v498
  %3470 = vmatpush1.bf16.msra.mxu0 %v497
  %3471 = vmatprep.subr.bf16.mxu0 %v501
  %3472 = vmatpush1.bf16.msra.mxu0 %v500
  %3473 = vmatprep.subr.bf16.mxu0 %v504
  %3474 = vmatpush1.bf16.msra.mxu0 %v503
  %3475 = vmatprep.subr.bf16.mxu0 %v507
  %3476 = vmatpush1.bf16.msra.mxu0 %v506
  %3477 = vmatprep.subr.bf16.mxu0 %v510
  %3478 = vmatpush1.bf16.msra.mxu0 %v509
  %3479 = vmatprep.subr.bf16.mxu0 %v513
  %3480 = vmatpush1.bf16.msra.mxu0 %v512
  %3481 = vmatprep.subr.bf16.mxu0 0
  %3482 = vmatpush1.bf16.msra.mxu0 0
  %3483 = vmatprep.subr.bf16.mxu0 0
  %3484 = vmatpush1.bf16.msra.mxu0 0
  %3485 = vmatprep.subr.bf16.mxu0 0
  %3486 = vmatpush1.bf16.msra.mxu0 0
  %3487 = vmatprep.subr.bf16.mxu0 0
  %3488 = vmatpush1.bf16.msra.mxu0 0
  %3489 = vmatprep.subr.bf16.mxu0 0
  %3490 = vmatpush1.bf16.msra.mxu0 0
  %3491 = vmatprep.subr.bf16.mxu0 0
  %3492 = vmatpush1.bf16.msra.mxu0 0
  %3493 = vmatprep.subr.bf16.mxu0 0
  %3494 = vmatpush1.bf16.msra.mxu0 0
  %3495 = vmatprep.subr.bf16.mxu0 0
  %3496 = vmatpush1.bf16.msra.mxu0 0
  %3497 = vmatprep.mubr.bf16.mxu0 0
  %3498 = vmatmul.mubr.bf16.gmra.mrb[0].mxu0 %v3381
  %v3499 = vpop.f32.mrb[0].mxu0
  %v3500 = vadd.f32 0.0, %v3499
  %v3501 = vpop.f32.mrb[0].mxu0
  %v3502 = vadd.f32 0.0, %v3501
  %v3503 = vpop.f32.mrb[0].mxu0
  %v3504 = vpop.f32.mrb[0].mxu0
  %3505 = vdwg.mxu0
  %3506 = vmatprep.subr.bf16.mxu0 0
  %3507 = vmatpush1.bf16.msra.mxu0 %v493
  %3508 = vmatprep.subr.bf16.mxu0 0
  %3509 = vmatpush1.bf16.msra.mxu0 %v496
  %3510 = vmatprep.subr.bf16.mxu0 0
  %3511 = vmatpush1.bf16.msra.mxu0 %v499
  %3512 = vmatprep.subr.bf16.mxu0 0
  %3513 = vmatpush1.bf16.msra.mxu0 %v502
  %3514 = vmatprep.subr.bf16.mxu0 0
  %3515 = vmatpush1.bf16.msra.mxu0 %v505
  %3516 = vmatprep.subr.bf16.mxu0 0
  %3517 = vmatpush1.bf16.msra.mxu0 %v508
  %3518 = vmatprep.subr.bf16.mxu0 0
  %3519 = vmatpush1.bf16.msra.mxu0 %v511
  %3520 = vmatprep.subr.bf16.mxu0 0
  %3521 = vmatpush1.bf16.msra.mxu0 %v514
  %3522 = vmatprep.subr.bf16.mxu0 0
  %3523 = vmatpush1.bf16.msra.mxu0 0
  %3524 = vmatprep.subr.bf16.mxu0 0
  %3525 = vmatpush1.bf16.msra.mxu0 0
  %3526 = vmatprep.subr.bf16.mxu0 0
  %3527 = vmatpush1.bf16.msra.mxu0 0
  %3528 = vmatprep.subr.bf16.mxu0 0
  %3529 = vmatpush1.bf16.msra.mxu0 0
  %3530 = vmatprep.subr.bf16.mxu0 0
  %3531 = vmatpush1.bf16.msra.mxu0 0
  %3532 = vmatprep.subr.bf16.mxu0 0
  %3533 = vmatpush1.bf16.msra.mxu0 0
  %3534 = vmatprep.subr.bf16.mxu0 0
  %3535 = vmatpush1.bf16.msra.mxu0 0
  %3536 = vmatprep.subr.bf16.mxu0 0
  %3537 = vmatpush1.bf16.msra.mxu0 0
  %3538 = vmatprep.mubr.bf16.mxu0 0
  %3539 = vmatmul.mubr.bf16.gmra.mrb[0].mxu0 %v3381
  %v3540 = vpop.f32.mrb[0].mxu0
  %v3541 = vadd.f32 0.0, %v3540
  %v3542 = vpop.f32.mrb[0].mxu0
  %v3543 = vpop.f32.mrb[0].mxu0
  %v3544 = vpop.f32.mrb[0].mxu0
  %3545 = vdwg.mxu0
  %3546 = vmatprep.subr.bf16.mxu0 %v701
  %3547 = vmatpush1.bf16.msra.mxu0 %v700
  %3548 = vmatprep.subr.bf16.mxu0 %v704
  %3549 = vmatpush1.bf16.msra.mxu0 %v703
  %3550 = vmatprep.subr.bf16.mxu0 %v707
  %3551 = vmatpush1.bf16.msra.mxu0 %v706
  %3552 = vmatprep.subr.bf16.mxu0 %v710
  %3553 = vmatpush1.bf16.msra.mxu0 %v709
  %3554 = vmatprep.subr.bf16.mxu0 %v713
  %3555 = vmatpush1.bf16.msra.mxu0 %v712
  %3556 = vmatprep.subr.bf16.mxu0 %v716
  %3557 = vmatpush1.bf16.msra.mxu0 %v715
  %3558 = vmatprep.subr.bf16.mxu0 %v719
  %3559 = vmatpush1.bf16.msra.mxu0 %v718
  %3560 = vmatprep.subr.bf16.mxu0 %v722
  %3561 = vmatpush1.bf16.msra.mxu0 %v721
  %3562 = vmatprep.subr.bf16.mxu0 0
  %3563 = vmatpush1.bf16.msra.mxu0 0
  %3564 = vmatprep.subr.bf16.mxu0 0
  %3565 = vmatpush1.bf16.msra.mxu0 0
  %3566 = vmatprep.subr.bf16.mxu0 0
  %3567 = vmatpush1.bf16.msra.mxu0 0
  %3568 = vmatprep.subr.bf16.mxu0 0
  %3569 = vmatpush1.bf16.msra.mxu0 0
  %3570 = vmatprep.subr.bf16.mxu0 0
  %3571 = vmatpush1.bf16.msra.mxu0 0
  %3572 = vmatprep.subr.bf16.mxu0 0
  %3573 = vmatpush1.bf16.msra.mxu0 0
  %3574 = vmatprep.subr.bf16.mxu0 0
  %3575 = vmatpush1.bf16.msra.mxu0 0
  %3576 = vmatprep.subr.bf16.mxu0 0
  %3577 = vmatpush1.bf16.msra.mxu0 0
  %3578 = vmatprep.mubr.bf16.mxu0 0
  %3579 = vmatmul.mubr.bf16.gmra.mrb[0].mxu0 %v3382
  %v3580 = vpop.f32.mrb[0].mxu0
  %v3581 = vadd.f32 0.0, %v3580
  %v3582 = vpop.f32.mrb[0].mxu0
  %v3583 = vadd.f32 0.0, %v3582
  %v3584 = vpop.f32.mrb[0].mxu0
  %v3585 = vpop.f32.mrb[0].mxu0
  %3586 = vdwg.mxu0
  %3587 = vmatprep.subr.bf16.mxu0 0
  %3588 = vmatpush1.bf16.msra.mxu0 %v702
  %3589 = vmatprep.subr.bf16.mxu0 0
  %3590 = vmatpush1.bf16.msra.mxu0 %v705
  %3591 = vmatprep.subr.bf16.mxu0 0
  %3592 = vmatpush1.bf16.msra.mxu0 %v708
  %3593 = vmatprep.subr.bf16.mxu0 0
  %3594 = vmatpush1.bf16.msra.mxu0 %v711
  %3595 = vmatprep.subr.bf16.mxu0 0
  %3596 = vmatpush1.bf16.msra.mxu0 %v714
  %3597 = vmatprep.subr.bf16.mxu0 0
  %3598 = vmatpush1.bf16.msra.mxu0 %v717
  %3599 = vmatprep.subr.bf16.mxu0 0
  %3600 = vmatpush1.bf16.msra.mxu0 %v720
  %3601 = vmatprep.subr.bf16.mxu0 0
  %3602 = vmatpush1.bf16.msra.mxu0 %v723
  %3603 = vmatprep.subr.bf16.mxu0 0
  %3604 = vmatpush1.bf16.msra.mxu0 0
  %3605 = vmatprep.subr.bf16.mxu0 0
  %3606 = vmatpush1.bf16.msra.mxu0 0
  %3607 = vmatprep.subr.bf16.mxu0 0
  %3608 = vmatpush1.bf16.msra.mxu0 0
  %3609 = vmatprep.subr.bf16.mxu0 0
  %3610 = vmatpush1.bf16.msra.mxu0 0
  %3611 = vmatprep.subr.bf16.mxu0 0
  %3612 = vmatpush1.bf16.msra.mxu0 0
  %3613 = vmatprep.subr.bf16.mxu0 0
  %3614 = vmatpush1.bf16.msra.mxu0 0
  %3615 = vmatprep.subr.bf16.mxu0 0
  %3616 = vmatpush1.bf16.msra.mxu0 0
  %3617 = vmatprep.subr.bf16.mxu0 0
  %3618 = vmatpush1.bf16.msra.mxu0 0
  %3619 = vmatprep.mubr.bf16.mxu0 0
  %3620 = vmatmul.mubr.bf16.gmra.mrb[0].mxu0 %v3382
  %v3621 = vpop.f32.mrb[0].mxu0
  %v3622 = vadd.f32 0.0, %v3621
  %v3623 = vpop.f32.mrb[0].mxu0
  %v3624 = vpop.f32.mrb[0].mxu0
  %v3625 = vpop.f32.mrb[0].mxu0
  %3626 = vdwg.mxu0
  %3627 = vmatprep.subr.bf16.mxu0 %v910
  %3628 = vmatpush1.bf16.msra.mxu0 %v909
  %3629 = vmatprep.subr.bf16.mxu0 %v913
  %3630 = vmatpush1.bf16.msra.mxu0 %v912
  %3631 = vmatprep.subr.bf16.mxu0 %v916
  %3632 = vmatpush1.bf16.msra.mxu0 %v915
  %3633 = vmatprep.subr.bf16.mxu0 %v919
  %3634 = vmatpush1.bf16.msra.mxu0 %v918
  %3635 = vmatprep.subr.bf16.mxu0 %v922
  %3636 = vmatpush1.bf16.msra.mxu0 %v921
  %3637 = vmatprep.subr.bf16.mxu0 %v925
  %3638 = vmatpush1.bf16.msra.mxu0 %v924
  %3639 = vmatprep.subr.bf16.mxu0 %v928
  %3640 = vmatpush1.bf16.msra.mxu0 %v927
  %3641 = vmatprep.subr.bf16.mxu0 %v931
  %3642 = vmatpush1.bf16.msra.mxu0 %v930
  %3643 = vmatprep.subr.bf16.mxu0 0
  %3644 = vmatpush1.bf16.msra.mxu0 0
  %3645 = vmatprep.subr.bf16.mxu0 0
  %3646 = vmatpush1.bf16.msra.mxu0 0
  %3647 = vmatprep.subr.bf16.mxu0 0
  %3648 = vmatpush1.bf16.msra.mxu0 0
  %3649 = vmatprep.subr.bf16.mxu0 0
  %3650 = vmatpush1.bf16.msra.mxu0 0
  %3651 = vmatprep.subr.bf16.mxu0 0
  %3652 = vmatpush1.bf16.msra.mxu0 0
  %3653 = vmatprep.subr.bf16.mxu0 0
  %3654 = vmatpush1.bf16.msra.mxu0 0
  %3655 = vmatprep.subr.bf16.mxu0 0
  %3656 = vmatpush1.bf16.msra.mxu0 0
  %3657 = vmatprep.subr.bf16.mxu0 0
  %3658 = vmatpush1.bf16.msra.mxu0 0
  %3659 = vmatprep.mubr.bf16.mxu0 0
  %3660 = vmatmul.mubr.bf16.gmra.mrb[0].mxu0 %v3383
  %v3661 = vpop.f32.mrb[0].mxu0
  %v3662 = vadd.f32 0.0, %v3661
  %v3663 = vpop.f32.mrb[0].mxu0
  %v3664 = vadd.f32 0.0, %v3663
  %v3665 = vpop.f32.mrb[0].mxu0
  %v3666 = vpop.f32.mrb[0].mxu0
  %3667 = vdwg.mxu0
  %3668 = vmatprep.subr.bf16.mxu0 0
  %3669 = vmatpush1.bf16.msra.mxu0 %v911
  %3670 = vmatprep.subr.bf16.mxu0 0
  %3671 = vmatpush1.bf16.msra.mxu0 %v914
  %3672 = vmatprep.subr.bf16.mxu0 0
  %3673 = vmatpush1.bf16.msra.mxu0 %v917
  %3674 = vmatprep.subr.bf16.mxu0 0
  %3675 = vmatpush1.bf16.msra.mxu0 %v920
  %3676 = vmatprep.subr.bf16.mxu0 0
  %3677 = vmatpush1.bf16.msra.mxu0 %v923
  %3678 = vmatprep.subr.bf16.mxu0 0
  %3679 = vmatpush1.bf16.msra.mxu0 %v926
  %3680 = vmatprep.subr.bf16.mxu0 0
  %3681 = vmatpush1.bf16.msra.mxu0 %v929
  %3682 = vmatprep.subr.bf16.mxu0 0
  %3683 = vmatpush1.bf16.msra.mxu0 %v932
  %3684 = vmatprep.subr.bf16.mxu0 0
  %3685 = vmatpush1.bf16.msra.mxu0 0
  %3686 = vmatprep.subr.bf16.mxu0 0
  %3687 = vmatpush1.bf16.msra.mxu0 0
  %3688 = vmatprep.subr.bf16.mxu0 0
  %3689 = vmatpush1.bf16.msra.mxu0 0
  %3690 = vmatprep.subr.bf16.mxu0 0
  %3691 = vmatpush1.bf16.msra.mxu0 0
  %3692 = vmatprep.subr.bf16.mxu0 0
  %3693 = vmatpush1.bf16.msra.mxu0 0
  %3694 = vmatprep.subr.bf16.mxu0 0
  %3695 = vmatpush1.bf16.msra.mxu0 0
  %3696 = vmatprep.subr.bf16.mxu0 0
  %3697 = vmatpush1.bf16.msra.mxu0 0
  %3698 = vmatprep.subr.bf16.mxu0 0
  %3699 = vmatpush1.bf16.msra.mxu0 0
  %3700 = vmatprep.mubr.bf16.mxu0 0
  %3701 = vmatmul.mubr.bf16.gmra.mrb[0].mxu0 %v3383
  %v3702 = vpop.f32.mrb[0].mxu0
  %v3703 = vadd.f32 0.0, %v3702
  %v3704 = vpop.f32.mrb[0].mxu0
  %v3705 = vpop.f32.mrb[0].mxu0
  %v3706 = vpop.f32.mrb[0].mxu0
  %3707 = vdwg.mxu0
  %v3708 = vunpack.c.l.bf16 %v3372
  %v3709 = vunpack.c.h.bf16 %v3372
  %v3710 = vunpack.c.l.bf16 %v3374
  %v3711 = vunpack.c.h.bf16 %v3374
  %v3712 = vunpack.c.l.bf16 %v3376
  %v3713 = vunpack.c.h.bf16 %v3376
  %v3714 = vunpack.c.l.bf16 %v3378
  %v3715 = vunpack.c.h.bf16 %v3378
  %v3716 = vadd.f32 %v3708, %v3419
  %v3717 = vadd.f32 %v3709, %v3421
  %v3718 = vadd.f32 %v3710, %v3500
  %v3719 = vadd.f32 %v3711, %v3502
  %v3720 = vadd.f32 %v3712, %v3581
  %v3721 = vadd.f32 %v3713, %v3583
  %v3722 = vadd.f32 %v3714, %v3662
  %v3723 = vadd.f32 %v3715, %v3664
  %v3724 = vxor.u32 %v3716, 2147483648
  %v3725 = vxor.u32 %v3717, 2147483648
  %v3726 = vxor.u32 %v3718, 2147483648
  %v3727 = vxor.u32 %v3719, 2147483648
  %v3728 = vxor.u32 %v3720, 2147483648
  %v3729 = vxor.u32 %v3721, 2147483648
  %v3730 = vxor.u32 %v3722, 2147483648
  %v3731 = vxor.u32 %v3723, 2147483648
  %v3732 = vmul.f32 %v3724, 1.442695
  %v3733 = vpow.pop %v3732
  %v3734 = vmul.f32 %v3725, 1.442695
  %v3735 = vpow.pop %v3734
  %v3736 = vmul.f32 %v3726, 1.442695
  %v3737 = vpow.pop %v3736
  %v3738 = vmul.f32 %v3727, 1.442695
  %v3739 = vpow.pop %v3738
  %v3740 = vmul.f32 %v3728, 1.442695
  %v3741 = vpow.pop %v3740
  %v3742 = vmul.f32 %v3729, 1.442695
  %v3743 = vpow.pop %v3742
  %v3744 = vmul.f32 %v3730, 1.442695
  %v3745 = vpow.pop %v3744
  %v3746 = vmul.f32 %v3731, 1.442695
  %v3747 = vpow.pop %v3746
  %v3748 = vadd.f32 %v3733, 1.0
  %v3749 = vadd.f32 %v3735, 1.0
  %v3750 = vadd.f32 %v3737, 1.0
  %v3751 = vadd.f32 %v3739, 1.0
  %v3752 = vadd.f32 %v3741, 1.0
  %v3753 = vadd.f32 %v3743, 1.0
  %v3754 = vadd.f32 %v3745, 1.0
  %v3755 = vadd.f32 %v3747, 1.0
  %v3756 = vrcp.pop %v3748
  %v3757 = vmul.f32 1.0, %v3756
  %v3758 = vrcp.pop %v3749
  %v3759 = vmul.f32 1.0, %v3758
  %v3760 = vrcp.pop %v3750
  %v3761 = vmul.f32 1.0, %v3760
  %v3762 = vrcp.pop %v3751
  %v3763 = vmul.f32 1.0, %v3762
  %v3764 = vrcp.pop %v3752
  %v3765 = vmul.f32 1.0, %v3764
  %v3766 = vrcp.pop %v3753
  %v3767 = vmul.f32 1.0, %v3766
  %v3768 = vrcp.pop %v3754
  %v3769 = vmul.f32 1.0, %v3768
  %v3770 = vrcp.pop %v3755
  %v3771 = vmul.f32 1.0, %v3770
  %v3772 = vadd.f32 %v3460, %v165
  %v3773 = vadd.f32 %v3541, %v169
  %v3774 = vadd.f32 %v3622, %v173
  %v3775 = vadd.f32 %v3703, %v177
  %v3776 = vmul.f32 %v3757, %v3772
  %v3777 = vmul.f32 %v3761, %v3773
  %v3778 = vmul.f32 %v3765, %v3774
  %v3779 = vmul.f32 %v3769, %v3775
  %v3780 = vunpack.c.l.bf16 %v3373
  %v3781 = vunpack.c.l.bf16 %v3375
  %v3782 = vunpack.c.l.bf16 %v3377
  %v3783 = vunpack.c.l.bf16 %v3379
  %v3784 = vadd.f32 %v3780, %v3776
  %v3785 = vadd.f32 %v3781, %v3777
  %v3786 = vadd.f32 %v3782, %v3778
  %v3787 = vadd.f32 %v3783, %v3779
  %v3788 = vtanh.pop %v3784
  %v3789 = vtanh.pop %v3785
  %v3790 = vtanh.pop %v3786
  %v3791 = vtanh.pop %v3787
  %v3792 = vsub.f32 1.0, %v3759
  %v3793 = vsub.f32 1.0, %v3763
  %v3794 = vsub.f32 1.0, %v3767
  %v3795 = vsub.f32 1.0, %v3771
  %v3796 = vsub.f32 %v3788, %v3367
  %v3797 = vsub.f32 %v3789, %v3368
  %v3798 = vsub.f32 %v3790, %v3369
  %v3799 = vsub.f32 %v3791, %v3370
  %v3800 = vmul.f32 %v3792, %v3796
  %v3801 = vmul.f32 %v3793, %v3797
  %v3802 = vmul.f32 %v3794, %v3798
  %v3803 = vmul.f32 %v3795, %v3799
  %vm3804 = vcmp.gt.s32.totalorder %v182, 6
  %vm3805 = vcmp.gt.s32.totalorder %v183, 6
  %vm3806 = vcmp.gt.s32.totalorder %v184, 6
  %vm3807 = vcmp.gt.s32.totalorder %v185, 6
  %v3808 = vsel %vm3804, %v3800, 0.0
  %v3809 = vsel %vm3805, %v3801, 0.0
  %v3810 = vsel %vm3806, %v3802, 0.0
  %v3811 = vsel %vm3807, %v3803, 0.0
  %v3812 = vadd.f32 %v3367, %v3808
  %v3813 = vadd.f32 %v3368, %v3809
  %v3814 = vadd.f32 %v3369, %v3810
  %v3815 = vadd.f32 %v3370, %v3811
  %s3816 = scalar_lea.vmem %s0, 336
  %v3817 = vld [vmem:[%s3816] sm:$0xff]
  %v3818 = vld [vmem:[%s3816 + $0x8] sm:$0xf]
  %v3819 = vld [vmem:[%s3816 + $0xc] sm:$0xff]
  %v3820 = vld [vmem:[%s3816 + $0x14] sm:$0xf]
  %v3821 = vld [vmem:[%s3816 + $0x18] sm:$0xff]
  %v3822 = vld [vmem:[%s3816 + $0x20] sm:$0xf]
  %v3823 = vld [vmem:[%s3816 + $0x24] sm:$0xff]
  %v3824 = vld [vmem:[%s3816 + $0x2c] sm:$0xf]
  %v3825 = vpack.c.bf16 %v3812, %v3812
  %v3826 = vpack.c.bf16 %v3813, %v3813
  %v3827 = vpack.c.bf16 %v3814, %v3814
  %v3828 = vpack.c.bf16 %v3815, %v3815
  %3829 = vmatprep.subr.bf16.mxu0 %v283
  %3830 = vmatpush1.bf16.msra.mxu0 %v282
  %3831 = vmatprep.subr.bf16.mxu0 %v286
  %3832 = vmatpush1.bf16.msra.mxu0 %v285
  %3833 = vmatprep.subr.bf16.mxu0 %v289
  %3834 = vmatpush1.bf16.msra.mxu0 %v288
  %3835 = vmatprep.subr.bf16.mxu0 %v292
  %3836 = vmatpush1.bf16.msra.mxu0 %v291
  %3837 = vmatprep.subr.bf16.mxu0 %v295
  %3838 = vmatpush1.bf16.msra.mxu0 %v294
  %3839 = vmatprep.subr.bf16.mxu0 %v298
  %3840 = vmatpush1.bf16.msra.mxu0 %v297
  %3841 = vmatprep.subr.bf16.mxu0 %v301
  %3842 = vmatpush1.bf16.msra.mxu0 %v300
  %3843 = vmatprep.subr.bf16.mxu0 %v304
  %3844 = vmatpush1.bf16.msra.mxu0 %v303
  %3845 = vmatprep.subr.bf16.mxu0 0
  %3846 = vmatpush1.bf16.msra.mxu0 0
  %3847 = vmatprep.subr.bf16.mxu0 0
  %3848 = vmatpush1.bf16.msra.mxu0 0
  %3849 = vmatprep.subr.bf16.mxu0 0
  %3850 = vmatpush1.bf16.msra.mxu0 0
  %3851 = vmatprep.subr.bf16.mxu0 0
  %3852 = vmatpush1.bf16.msra.mxu0 0
  %3853 = vmatprep.subr.bf16.mxu0 0
  %3854 = vmatpush1.bf16.msra.mxu0 0
  %3855 = vmatprep.subr.bf16.mxu0 0
  %3856 = vmatpush1.bf16.msra.mxu0 0
  %3857 = vmatprep.subr.bf16.mxu0 0
  %3858 = vmatpush1.bf16.msra.mxu0 0
  %3859 = vmatprep.subr.bf16.mxu0 0
  %3860 = vmatpush1.bf16.msra.mxu0 0
  %3861 = vmatprep.mubr.bf16.mxu0 0
  %3862 = vmatmul.mubr.bf16.gmra.mrb[0].mxu0 %v3825
  %v3863 = vpop.f32.mrb[0].mxu0
  %v3864 = vadd.f32 0.0, %v3863
  %v3865 = vpop.f32.mrb[0].mxu0
  %v3866 = vadd.f32 0.0, %v3865
  %v3867 = vpop.f32.mrb[0].mxu0
  %v3868 = vpop.f32.mrb[0].mxu0
  %3869 = vdwg.mxu0
  %3870 = vmatprep.subr.bf16.mxu0 0
  %3871 = vmatpush1.bf16.msra.mxu0 %v284
  %3872 = vmatprep.subr.bf16.mxu0 0
  %3873 = vmatpush1.bf16.msra.mxu0 %v287
  %3874 = vmatprep.subr.bf16.mxu0 0
  %3875 = vmatpush1.bf16.msra.mxu0 %v290
  %3876 = vmatprep.subr.bf16.mxu0 0
  %3877 = vmatpush1.bf16.msra.mxu0 %v293
  %3878 = vmatprep.subr.bf16.mxu0 0
  %3879 = vmatpush1.bf16.msra.mxu0 %v296
  %3880 = vmatprep.subr.bf16.mxu0 0
  %3881 = vmatpush1.bf16.msra.mxu0 %v299
  %3882 = vmatprep.subr.bf16.mxu0 0
  %3883 = vmatpush1.bf16.msra.mxu0 %v302
  %3884 = vmatprep.subr.bf16.mxu0 0
  %3885 = vmatpush1.bf16.msra.mxu0 %v305
  %3886 = vmatprep.subr.bf16.mxu0 0
  %3887 = vmatpush1.bf16.msra.mxu0 0
  %3888 = vmatprep.subr.bf16.mxu0 0
  %3889 = vmatpush1.bf16.msra.mxu0 0
  %3890 = vmatprep.subr.bf16.mxu0 0
  %3891 = vmatpush1.bf16.msra.mxu0 0
  %3892 = vmatprep.subr.bf16.mxu0 0
  %3893 = vmatpush1.bf16.msra.mxu0 0
  %3894 = vmatprep.subr.bf16.mxu0 0
  %3895 = vmatpush1.bf16.msra.mxu0 0
  %3896 = vmatprep.subr.bf16.mxu0 0
  %3897 = vmatpush1.bf16.msra.mxu0 0
  %3898 = vmatprep.subr.bf16.mxu0 0
  %3899 = vmatpush1.bf16.msra.mxu0 0
  %3900 = vmatprep.subr.bf16.mxu0 0
  %3901 = vmatpush1.bf16.msra.mxu0 0
  %3902 = vmatprep.mubr.bf16.mxu0 0
  %3903 = vmatmul.mubr.bf16.gmra.mrb[0].mxu0 %v3825
  %v3904 = vpop.f32.mrb[0].mxu0
  %v3905 = vadd.f32 0.0, %v3904
  %v3906 = vpop.f32.mrb[0].mxu0
  %v3907 = vpop.f32.mrb[0].mxu0
  %v3908 = vpop.f32.mrb[0].mxu0
  %3909 = vdwg.mxu0
  %3910 = vmatprep.subr.bf16.mxu0 %v492
  %3911 = vmatpush1.bf16.msra.mxu0 %v491
  %3912 = vmatprep.subr.bf16.mxu0 %v495
  %3913 = vmatpush1.bf16.msra.mxu0 %v494
  %3914 = vmatprep.subr.bf16.mxu0 %v498
  %3915 = vmatpush1.bf16.msra.mxu0 %v497
  %3916 = vmatprep.subr.bf16.mxu0 %v501
  %3917 = vmatpush1.bf16.msra.mxu0 %v500
  %3918 = vmatprep.subr.bf16.mxu0 %v504
  %3919 = vmatpush1.bf16.msra.mxu0 %v503
  %3920 = vmatprep.subr.bf16.mxu0 %v507
  %3921 = vmatpush1.bf16.msra.mxu0 %v506
  %3922 = vmatprep.subr.bf16.mxu0 %v510
  %3923 = vmatpush1.bf16.msra.mxu0 %v509
  %3924 = vmatprep.subr.bf16.mxu0 %v513
  %3925 = vmatpush1.bf16.msra.mxu0 %v512
  %3926 = vmatprep.subr.bf16.mxu0 0
  %3927 = vmatpush1.bf16.msra.mxu0 0
  %3928 = vmatprep.subr.bf16.mxu0 0
  %3929 = vmatpush1.bf16.msra.mxu0 0
  %3930 = vmatprep.subr.bf16.mxu0 0
  %3931 = vmatpush1.bf16.msra.mxu0 0
  %3932 = vmatprep.subr.bf16.mxu0 0
  %3933 = vmatpush1.bf16.msra.mxu0 0
  %3934 = vmatprep.subr.bf16.mxu0 0
  %3935 = vmatpush1.bf16.msra.mxu0 0
  %3936 = vmatprep.subr.bf16.mxu0 0
  %3937 = vmatpush1.bf16.msra.mxu0 0
  %3938 = vmatprep.subr.bf16.mxu0 0
  %3939 = vmatpush1.bf16.msra.mxu0 0
  %3940 = vmatprep.subr.bf16.mxu0 0
  %3941 = vmatpush1.bf16.msra.mxu0 0
  %3942 = vmatprep.mubr.bf16.mxu0 0
  %3943 = vmatmul.mubr.bf16.gmra.mrb[0].mxu0 %v3826
  %v3944 = vpop.f32.mrb[0].mxu0
  %v3945 = vadd.f32 0.0, %v3944
  %v3946 = vpop.f32.mrb[0].mxu0
  %v3947 = vadd.f32 0.0, %v3946
  %v3948 = vpop.f32.mrb[0].mxu0
  %v3949 = vpop.f32.mrb[0].mxu0
  %3950 = vdwg.mxu0
  %3951 = vmatprep.subr.bf16.mxu0 0
  %3952 = vmatpush1.bf16.msra.mxu0 %v493
  %3953 = vmatprep.subr.bf16.mxu0 0
  %3954 = vmatpush1.bf16.msra.mxu0 %v496
  %3955 = vmatprep.subr.bf16.mxu0 0
  %3956 = vmatpush1.bf16.msra.mxu0 %v499
  %3957 = vmatprep.subr.bf16.mxu0 0
  %3958 = vmatpush1.bf16.msra.mxu0 %v502
  %3959 = vmatprep.subr.bf16.mxu0 0
  %3960 = vmatpush1.bf16.msra.mxu0 %v505
  %3961 = vmatprep.subr.bf16.mxu0 0
  %3962 = vmatpush1.bf16.msra.mxu0 %v508
  %3963 = vmatprep.subr.bf16.mxu0 0
  %3964 = vmatpush1.bf16.msra.mxu0 %v511
  %3965 = vmatprep.subr.bf16.mxu0 0
  %3966 = vmatpush1.bf16.msra.mxu0 %v514
  %3967 = vmatprep.subr.bf16.mxu0 0
  %3968 = vmatpush1.bf16.msra.mxu0 0
  %3969 = vmatprep.subr.bf16.mxu0 0
  %3970 = vmatpush1.bf16.msra.mxu0 0
  %3971 = vmatprep.subr.bf16.mxu0 0
  %3972 = vmatpush1.bf16.msra.mxu0 0
  %3973 = vmatprep.subr.bf16.mxu0 0
  %3974 = vmatpush1.bf16.msra.mxu0 0
  %3975 = vmatprep.subr.bf16.mxu0 0
  %3976 = vmatpush1.bf16.msra.mxu0 0
  %3977 = vmatprep.subr.bf16.mxu0 0
  %3978 = vmatpush1.bf16.msra.mxu0 0
  %3979 = vmatprep.subr.bf16.mxu0 0
  %3980 = vmatpush1.bf16.msra.mxu0 0
  %3981 = vmatprep.subr.bf16.mxu0 0
  %3982 = vmatpush1.bf16.msra.mxu0 0
  %3983 = vmatprep.mubr.bf16.mxu0 0
  %3984 = vmatmul.mubr.bf16.gmra.mrb[0].mxu0 %v3826
  %v3985 = vpop.f32.mrb[0].mxu0
  %v3986 = vadd.f32 0.0, %v3985
  %v3987 = vpop.f32.mrb[0].mxu0
  %v3988 = vpop.f32.mrb[0].mxu0
  %v3989 = vpop.f32.mrb[0].mxu0
  %3990 = vdwg.mxu0
  %3991 = vmatprep.subr.bf16.mxu0 %v701
  %3992 = vmatpush1.bf16.msra.mxu0 %v700
  %3993 = vmatprep.subr.bf16.mxu0 %v704
  %3994 = vmatpush1.bf16.msra.mxu0 %v703
  %3995 = vmatprep.subr.bf16.mxu0 %v707
  %3996 = vmatpush1.bf16.msra.mxu0 %v706
  %3997 = vmatprep.subr.bf16.mxu0 %v710
  %3998 = vmatpush1.bf16.msra.mxu0 %v709
  %3999 = vmatprep.subr.bf16.mxu0 %v713
  %4000 = vmatpush1.bf16.msra.mxu0 %v712
  %4001 = vmatprep.subr.bf16.mxu0 %v716
  %4002 = vmatpush1.bf16.msra.mxu0 %v715
  %4003 = vmatprep.subr.bf16.mxu0 %v719
  %4004 = vmatpush1.bf16.msra.mxu0 %v718
  %4005 = vmatprep.subr.bf16.mxu0 %v722
  %4006 = vmatpush1.bf16.msra.mxu0 %v721
  %4007 = vmatprep.subr.bf16.mxu0 0
  %4008 = vmatpush1.bf16.msra.mxu0 0
  %4009 = vmatprep.subr.bf16.mxu0 0
  %4010 = vmatpush1.bf16.msra.mxu0 0
  %4011 = vmatprep.subr.bf16.mxu0 0
  %4012 = vmatpush1.bf16.msra.mxu0 0
  %4013 = vmatprep.subr.bf16.mxu0 0
  %4014 = vmatpush1.bf16.msra.mxu0 0
  %4015 = vmatprep.subr.bf16.mxu0 0
  %4016 = vmatpush1.bf16.msra.mxu0 0
  %4017 = vmatprep.subr.bf16.mxu0 0
  %4018 = vmatpush1.bf16.msra.mxu0 0
  %4019 = vmatprep.subr.bf16.mxu0 0
  %4020 = vmatpush1.bf16.msra.mxu0 0
  %4021 = vmatprep.subr.bf16.mxu0 0
  %4022 = vmatpush1.bf16.msra.mxu0 0
  %4023 = vmatprep.mubr.bf16.mxu0 0
  %4024 = vmatmul.mubr.bf16.gmra.mrb[0].mxu0 %v3827
  %v4025 = vpop.f32.mrb[0].mxu0
  %v4026 = vadd.f32 0.0, %v4025
  %v4027 = vpop.f32.mrb[0].mxu0
  %v4028 = vadd.f32 0.0, %v4027
  %v4029 = vpop.f32.mrb[0].mxu0
  %v4030 = vpop.f32.mrb[0].mxu0
  %4031 = vdwg.mxu0
  %4032 = vmatprep.subr.bf16.mxu0 0
  %4033 = vmatpush1.bf16.msra.mxu0 %v702
  %4034 = vmatprep.subr.bf16.mxu0 0
  %4035 = vmatpush1.bf16.msra.mxu0 %v705
  %4036 = vmatprep.subr.bf16.mxu0 0
  %4037 = vmatpush1.bf16.msra.mxu0 %v708
  %4038 = vmatprep.subr.bf16.mxu0 0
  %4039 = vmatpush1.bf16.msra.mxu0 %v711
  %4040 = vmatprep.subr.bf16.mxu0 0
  %4041 = vmatpush1.bf16.msra.mxu0 %v714
  %4042 = vmatprep.subr.bf16.mxu0 0
  %4043 = vmatpush1.bf16.msra.mxu0 %v717
  %4044 = vmatprep.subr.bf16.mxu0 0
  %4045 = vmatpush1.bf16.msra.mxu0 %v720
  %4046 = vmatprep.subr.bf16.mxu0 0
  %4047 = vmatpush1.bf16.msra.mxu0 %v723
  %4048 = vmatprep.subr.bf16.mxu0 0
  %4049 = vmatpush1.bf16.msra.mxu0 0
  %4050 = vmatprep.subr.bf16.mxu0 0
  %4051 = vmatpush1.bf16.msra.mxu0 0
  %4052 = vmatprep.subr.bf16.mxu0 0
  %4053 = vmatpush1.bf16.msra.mxu0 0
  %4054 = vmatprep.subr.bf16.mxu0 0
  %4055 = vmatpush1.bf16.msra.mxu0 0
  %4056 = vmatprep.subr.bf16.mxu0 0
  %4057 = vmatpush1.bf16.msra.mxu0 0
  %4058 = vmatprep.subr.bf16.mxu0 0
  %4059 = vmatpush1.bf16.msra.mxu0 0
  %4060 = vmatprep.subr.bf16.mxu0 0
  %4061 = vmatpush1.bf16.msra.mxu0 0
  %4062 = vmatprep.subr.bf16.mxu0 0
  %4063 = vmatpush1.bf16.msra.mxu0 0
  %4064 = vmatprep.mubr.bf16.mxu0 0
  %4065 = vmatmul.mubr.bf16.gmra.mrb[0].mxu0 %v3827
  %v4066 = vpop.f32.mrb[0].mxu0
  %v4067 = vadd.f32 0.0, %v4066
  %v4068 = vpop.f32.mrb[0].mxu0
  %v4069 = vpop.f32.mrb[0].mxu0
  %v4070 = vpop.f32.mrb[0].mxu0
  %4071 = vdwg.mxu0
  %4072 = vmatprep.subr.bf16.mxu0 %v910
  %4073 = vmatpush1.bf16.msra.mxu0 %v909
  %4074 = vmatprep.subr.bf16.mxu0 %v913
  %4075 = vmatpush1.bf16.msra.mxu0 %v912
  %4076 = vmatprep.subr.bf16.mxu0 %v916
  %4077 = vmatpush1.bf16.msra.mxu0 %v915
  %4078 = vmatprep.subr.bf16.mxu0 %v919
  %4079 = vmatpush1.bf16.msra.mxu0 %v918
  %4080 = vmatprep.subr.bf16.mxu0 %v922
  %4081 = vmatpush1.bf16.msra.mxu0 %v921
  %4082 = vmatprep.subr.bf16.mxu0 %v925
  %4083 = vmatpush1.bf16.msra.mxu0 %v924
  %4084 = vmatprep.subr.bf16.mxu0 %v928
  %4085 = vmatpush1.bf16.msra.mxu0 %v927
  %4086 = vmatprep.subr.bf16.mxu0 %v931
  %4087 = vmatpush1.bf16.msra.mxu0 %v930
  %4088 = vmatprep.subr.bf16.mxu0 0
  %4089 = vmatpush1.bf16.msra.mxu0 0
  %4090 = vmatprep.subr.bf16.mxu0 0
  %4091 = vmatpush1.bf16.msra.mxu0 0
  %4092 = vmatprep.subr.bf16.mxu0 0
  %4093 = vmatpush1.bf16.msra.mxu0 0
  %4094 = vmatprep.subr.bf16.mxu0 0
  %4095 = vmatpush1.bf16.msra.mxu0 0
  %4096 = vmatprep.subr.bf16.mxu0 0
  %4097 = vmatpush1.bf16.msra.mxu0 0
  %4098 = vmatprep.subr.bf16.mxu0 0
  %4099 = vmatpush1.bf16.msra.mxu0 0
  %4100 = vmatprep.subr.bf16.mxu0 0
  %4101 = vmatpush1.bf16.msra.mxu0 0
  %4102 = vmatprep.subr.bf16.mxu0 0
  %4103 = vmatpush1.bf16.msra.mxu0 0
  %4104 = vmatprep.mubr.bf16.mxu0 0
  %4105 = vmatmul.mubr.bf16.gmra.mrb[0].mxu0 %v3828
  %v4106 = vpop.f32.mrb[0].mxu0
  %v4107 = vadd.f32 0.0, %v4106
  %v4108 = vpop.f32.mrb[0].mxu0
  %v4109 = vadd.f32 0.0, %v4108
  %v4110 = vpop.f32.mrb[0].mxu0
  %v4111 = vpop.f32.mrb[0].mxu0
  %4112 = vdwg.mxu0
  %4113 = vmatprep.subr.bf16.mxu0 0
  %4114 = vmatpush1.bf16.msra.mxu0 %v911
  %4115 = vmatprep.subr.bf16.mxu0 0
  %4116 = vmatpush1.bf16.msra.mxu0 %v914
  %4117 = vmatprep.subr.bf16.mxu0 0
  %4118 = vmatpush1.bf16.msra.mxu0 %v917
  %4119 = vmatprep.subr.bf16.mxu0 0
  %4120 = vmatpush1.bf16.msra.mxu0 %v920
  %4121 = vmatprep.subr.bf16.mxu0 0
  %4122 = vmatpush1.bf16.msra.mxu0 %v923
  %4123 = vmatprep.subr.bf16.mxu0 0
  %4124 = vmatpush1.bf16.msra.mxu0 %v926
  %4125 = vmatprep.subr.bf16.mxu0 0
  %4126 = vmatpush1.bf16.msra.mxu0 %v929
  %4127 = vmatprep.subr.bf16.mxu0 0
  %4128 = vmatpush1.bf16.msra.mxu0 %v932
  %4129 = vmatprep.subr.bf16.mxu0 0
  %4130 = vmatpush1.bf16.msra.mxu0 0
  %4131 = vmatprep.subr.bf16.mxu0 0
  %4132 = vmatpush1.bf16.msra.mxu0 0
  %4133 = vmatprep.subr.bf16.mxu0 0
  %4134 = vmatpush1.bf16.msra.mxu0 0
  %4135 = vmatprep.subr.bf16.mxu0 0
  %4136 = vmatpush1.bf16.msra.mxu0 0
  %4137 = vmatprep.subr.bf16.mxu0 0
  %4138 = vmatpush1.bf16.msra.mxu0 0
  %4139 = vmatprep.subr.bf16.mxu0 0
  %4140 = vmatpush1.bf16.msra.mxu0 0
  %4141 = vmatprep.subr.bf16.mxu0 0
  %4142 = vmatpush1.bf16.msra.mxu0 0
  %4143 = vmatprep.subr.bf16.mxu0 0
  %4144 = vmatpush1.bf16.msra.mxu0 0
  %4145 = vmatprep.mubr.bf16.mxu0 0
  %4146 = vmatmul.mubr.bf16.gmra.mrb[0].mxu0 %v3828
  %v4147 = vpop.f32.mrb[0].mxu0
  %v4148 = vadd.f32 0.0, %v4147
  %v4149 = vpop.f32.mrb[0].mxu0
  %v4150 = vpop.f32.mrb[0].mxu0
  %v4151 = vpop.f32.mrb[0].mxu0
  %4152 = vdwg.mxu0
  %v4153 = vunpack.c.l.bf16 %v3817
  %v4154 = vunpack.c.h.bf16 %v3817
  %v4155 = vunpack.c.l.bf16 %v3819
  %v4156 = vunpack.c.h.bf16 %v3819
  %v4157 = vunpack.c.l.bf16 %v3821
  %v4158 = vunpack.c.h.bf16 %v3821
  %v4159 = vunpack.c.l.bf16 %v3823
  %v4160 = vunpack.c.h.bf16 %v3823
  %v4161 = vadd.f32 %v4153, %v3864
  %v4162 = vadd.f32 %v4154, %v3866
  %v4163 = vadd.f32 %v4155, %v3945
  %v4164 = vadd.f32 %v4156, %v3947
  %v4165 = vadd.f32 %v4157, %v4026
  %v4166 = vadd.f32 %v4158, %v4028
  %v4167 = vadd.f32 %v4159, %v4107
  %v4168 = vadd.f32 %v4160, %v4109
  %v4169 = vxor.u32 %v4161, 2147483648
  %v4170 = vxor.u32 %v4162, 2147483648
  %v4171 = vxor.u32 %v4163, 2147483648
  %v4172 = vxor.u32 %v4164, 2147483648
  %v4173 = vxor.u32 %v4165, 2147483648
  %v4174 = vxor.u32 %v4166, 2147483648
  %v4175 = vxor.u32 %v4167, 2147483648
  %v4176 = vxor.u32 %v4168, 2147483648
  %v4177 = vmul.f32 %v4169, 1.442695
  %v4178 = vpow.pop %v4177
  %v4179 = vmul.f32 %v4170, 1.442695
  %v4180 = vpow.pop %v4179
  %v4181 = vmul.f32 %v4171, 1.442695
  %v4182 = vpow.pop %v4181
  %v4183 = vmul.f32 %v4172, 1.442695
  %v4184 = vpow.pop %v4183
  %v4185 = vmul.f32 %v4173, 1.442695
  %v4186 = vpow.pop %v4185
  %v4187 = vmul.f32 %v4174, 1.442695
  %v4188 = vpow.pop %v4187
  %v4189 = vmul.f32 %v4175, 1.442695
  %v4190 = vpow.pop %v4189
  %v4191 = vmul.f32 %v4176, 1.442695
  %v4192 = vpow.pop %v4191
  %v4193 = vadd.f32 %v4178, 1.0
  %v4194 = vadd.f32 %v4180, 1.0
  %v4195 = vadd.f32 %v4182, 1.0
  %v4196 = vadd.f32 %v4184, 1.0
  %v4197 = vadd.f32 %v4186, 1.0
  %v4198 = vadd.f32 %v4188, 1.0
  %v4199 = vadd.f32 %v4190, 1.0
  %v4200 = vadd.f32 %v4192, 1.0
  %v4201 = vrcp.pop %v4193
  %v4202 = vmul.f32 1.0, %v4201
  %v4203 = vrcp.pop %v4194
  %v4204 = vmul.f32 1.0, %v4203
  %v4205 = vrcp.pop %v4195
  %v4206 = vmul.f32 1.0, %v4205
  %v4207 = vrcp.pop %v4196
  %v4208 = vmul.f32 1.0, %v4207
  %v4209 = vrcp.pop %v4197
  %v4210 = vmul.f32 1.0, %v4209
  %v4211 = vrcp.pop %v4198
  %v4212 = vmul.f32 1.0, %v4211
  %v4213 = vrcp.pop %v4199
  %v4214 = vmul.f32 1.0, %v4213
  %v4215 = vrcp.pop %v4200
  %v4216 = vmul.f32 1.0, %v4215
  %v4217 = vadd.f32 %v3905, %v165
  %v4218 = vadd.f32 %v3986, %v169
  %v4219 = vadd.f32 %v4067, %v173
  %v4220 = vadd.f32 %v4148, %v177
  %v4221 = vmul.f32 %v4202, %v4217
  %v4222 = vmul.f32 %v4206, %v4218
  %v4223 = vmul.f32 %v4210, %v4219
  %v4224 = vmul.f32 %v4214, %v4220
  %v4225 = vunpack.c.l.bf16 %v3818
  %v4226 = vunpack.c.l.bf16 %v3820
  %v4227 = vunpack.c.l.bf16 %v3822
  %v4228 = vunpack.c.l.bf16 %v3824
  %v4229 = vadd.f32 %v4225, %v4221
  %v4230 = vadd.f32 %v4226, %v4222
  %v4231 = vadd.f32 %v4227, %v4223
  %v4232 = vadd.f32 %v4228, %v4224
  %v4233 = vtanh.pop %v4229
  %v4234 = vtanh.pop %v4230
  %v4235 = vtanh.pop %v4231
  %v4236 = vtanh.pop %v4232
  %v4237 = vsub.f32 1.0, %v4204
  %v4238 = vsub.f32 1.0, %v4208
  %v4239 = vsub.f32 1.0, %v4212
  %v4240 = vsub.f32 1.0, %v4216
  %v4241 = vsub.f32 %v4233, %v3812
  %v4242 = vsub.f32 %v4234, %v3813
  %v4243 = vsub.f32 %v4235, %v3814
  %v4244 = vsub.f32 %v4236, %v3815
  %v4245 = vmul.f32 %v4237, %v4241
  %v4246 = vmul.f32 %v4238, %v4242
  %v4247 = vmul.f32 %v4239, %v4243
  %v4248 = vmul.f32 %v4240, %v4244
  %vm4249 = vcmp.gt.s32.totalorder %v182, 7
  %vm4250 = vcmp.gt.s32.totalorder %v183, 7
  %vm4251 = vcmp.gt.s32.totalorder %v184, 7
  %vm4252 = vcmp.gt.s32.totalorder %v185, 7
  %v4253 = vsel %vm4249, %v4245, 0.0
  %v4254 = vsel %vm4250, %v4246, 0.0
  %v4255 = vsel %vm4251, %v4247, 0.0
  %v4256 = vsel %vm4252, %v4248, 0.0
  %v4257 = vadd.f32 %v3812, %v4253
  %v4258 = vadd.f32 %v3813, %v4254
  %v4259 = vadd.f32 %v3814, %v4255
  %v4260 = vadd.f32 %v3815, %v4256
  %s4261 = scalar_lea.vmem %s0, 384
  %v4262 = vld [vmem:[%s4261] sm:$0xff]
  %v4263 = vld [vmem:[%s4261 + $0x8] sm:$0xf]
  %v4264 = vld [vmem:[%s4261 + $0xc] sm:$0xff]
  %v4265 = vld [vmem:[%s4261 + $0x14] sm:$0xf]
  %v4266 = vld [vmem:[%s4261 + $0x18] sm:$0xff]
  %v4267 = vld [vmem:[%s4261 + $0x20] sm:$0xf]
  %v4268 = vld [vmem:[%s4261 + $0x24] sm:$0xff]
  %v4269 = vld [vmem:[%s4261 + $0x2c] sm:$0xf]
  %v4270 = vpack.c.bf16 %v4257, %v4257
  %v4271 = vpack.c.bf16 %v4258, %v4258
  %v4272 = vpack.c.bf16 %v4259, %v4259
  %v4273 = vpack.c.bf16 %v4260, %v4260
  %4274 = vmatprep.subr.bf16.mxu0 %v283
  %4275 = vmatpush1.bf16.msra.mxu0 %v282
  %4276 = vmatprep.subr.bf16.mxu0 %v286
  %4277 = vmatpush1.bf16.msra.mxu0 %v285
  %4278 = vmatprep.subr.bf16.mxu0 %v289
  %4279 = vmatpush1.bf16.msra.mxu0 %v288
  %4280 = vmatprep.subr.bf16.mxu0 %v292
  %4281 = vmatpush1.bf16.msra.mxu0 %v291
  %4282 = vmatprep.subr.bf16.mxu0 %v295
  %4283 = vmatpush1.bf16.msra.mxu0 %v294
  %4284 = vmatprep.subr.bf16.mxu0 %v298
  %4285 = vmatpush1.bf16.msra.mxu0 %v297
  %4286 = vmatprep.subr.bf16.mxu0 %v301
  %4287 = vmatpush1.bf16.msra.mxu0 %v300
  %4288 = vmatprep.subr.bf16.mxu0 %v304
  %4289 = vmatpush1.bf16.msra.mxu0 %v303
  %4290 = vmatprep.subr.bf16.mxu0 0
  %4291 = vmatpush1.bf16.msra.mxu0 0
  %4292 = vmatprep.subr.bf16.mxu0 0
  %4293 = vmatpush1.bf16.msra.mxu0 0
  %4294 = vmatprep.subr.bf16.mxu0 0
  %4295 = vmatpush1.bf16.msra.mxu0 0
  %4296 = vmatprep.subr.bf16.mxu0 0
  %4297 = vmatpush1.bf16.msra.mxu0 0
  %4298 = vmatprep.subr.bf16.mxu0 0
  %4299 = vmatpush1.bf16.msra.mxu0 0
  %4300 = vmatprep.subr.bf16.mxu0 0
  %4301 = vmatpush1.bf16.msra.mxu0 0
  %4302 = vmatprep.subr.bf16.mxu0 0
  %4303 = vmatpush1.bf16.msra.mxu0 0
  %4304 = vmatprep.subr.bf16.mxu0 0
  %4305 = vmatpush1.bf16.msra.mxu0 0
  %4306 = vmatprep.mubr.bf16.mxu0 0
  %4307 = vmatmul.mubr.bf16.gmra.mrb[0].mxu0 %v4270
  %v4308 = vpop.f32.mrb[0].mxu0
  %v4309 = vadd.f32 0.0, %v4308
  %v4310 = vpop.f32.mrb[0].mxu0
  %v4311 = vadd.f32 0.0, %v4310
  %v4312 = vpop.f32.mrb[0].mxu0
  %v4313 = vpop.f32.mrb[0].mxu0
  %4314 = vdwg.mxu0
  %4315 = vmatprep.subr.bf16.mxu0 0
  %4316 = vmatpush1.bf16.msra.mxu0 %v284
  %4317 = vmatprep.subr.bf16.mxu0 0
  %4318 = vmatpush1.bf16.msra.mxu0 %v287
  %4319 = vmatprep.subr.bf16.mxu0 0
  %4320 = vmatpush1.bf16.msra.mxu0 %v290
  %4321 = vmatprep.subr.bf16.mxu0 0
  %4322 = vmatpush1.bf16.msra.mxu0 %v293
  %4323 = vmatprep.subr.bf16.mxu0 0
  %4324 = vmatpush1.bf16.msra.mxu0 %v296
  %4325 = vmatprep.subr.bf16.mxu0 0
  %4326 = vmatpush1.bf16.msra.mxu0 %v299
  %4327 = vmatprep.subr.bf16.mxu0 0
  %4328 = vmatpush1.bf16.msra.mxu0 %v302
  %4329 = vmatprep.subr.bf16.mxu0 0
  %4330 = vmatpush1.bf16.msra.mxu0 %v305
  %4331 = vmatprep.subr.bf16.mxu0 0
  %4332 = vmatpush1.bf16.msra.mxu0 0
  %4333 = vmatprep.subr.bf16.mxu0 0
  %4334 = vmatpush1.bf16.msra.mxu0 0
  %4335 = vmatprep.subr.bf16.mxu0 0
  %4336 = vmatpush1.bf16.msra.mxu0 0
  %4337 = vmatprep.subr.bf16.mxu0 0
  %4338 = vmatpush1.bf16.msra.mxu0 0
  %4339 = vmatprep.subr.bf16.mxu0 0
  %4340 = vmatpush1.bf16.msra.mxu0 0
  %4341 = vmatprep.subr.bf16.mxu0 0
  %4342 = vmatpush1.bf16.msra.mxu0 0
  %4343 = vmatprep.subr.bf16.mxu0 0
  %4344 = vmatpush1.bf16.msra.mxu0 0
  %4345 = vmatprep.subr.bf16.mxu0 0
  %4346 = vmatpush1.bf16.msra.mxu0 0
  %4347 = vmatprep.mubr.bf16.mxu0 0
  %4348 = vmatmul.mubr.bf16.gmra.mrb[0].mxu0 %v4270
  %v4349 = vpop.f32.mrb[0].mxu0
  %v4350 = vadd.f32 0.0, %v4349
  %v4351 = vpop.f32.mrb[0].mxu0
  %v4352 = vpop.f32.mrb[0].mxu0
  %v4353 = vpop.f32.mrb[0].mxu0
  %4354 = vdwg.mxu0
  %4355 = vmatprep.subr.bf16.mxu0 %v492
  %4356 = vmatpush1.bf16.msra.mxu0 %v491
  %4357 = vmatprep.subr.bf16.mxu0 %v495
  %4358 = vmatpush1.bf16.msra.mxu0 %v494
  %4359 = vmatprep.subr.bf16.mxu0 %v498
  %4360 = vmatpush1.bf16.msra.mxu0 %v497
  %4361 = vmatprep.subr.bf16.mxu0 %v501
  %4362 = vmatpush1.bf16.msra.mxu0 %v500
  %4363 = vmatprep.subr.bf16.mxu0 %v504
  %4364 = vmatpush1.bf16.msra.mxu0 %v503
  %4365 = vmatprep.subr.bf16.mxu0 %v507
  %4366 = vmatpush1.bf16.msra.mxu0 %v506
  %4367 = vmatprep.subr.bf16.mxu0 %v510
  %4368 = vmatpush1.bf16.msra.mxu0 %v509
  %4369 = vmatprep.subr.bf16.mxu0 %v513
  %4370 = vmatpush1.bf16.msra.mxu0 %v512
  %4371 = vmatprep.subr.bf16.mxu0 0
  %4372 = vmatpush1.bf16.msra.mxu0 0
  %4373 = vmatprep.subr.bf16.mxu0 0
  %4374 = vmatpush1.bf16.msra.mxu0 0
  %4375 = vmatprep.subr.bf16.mxu0 0
  %4376 = vmatpush1.bf16.msra.mxu0 0
  %4377 = vmatprep.subr.bf16.mxu0 0
  %4378 = vmatpush1.bf16.msra.mxu0 0
  %4379 = vmatprep.subr.bf16.mxu0 0
  %4380 = vmatpush1.bf16.msra.mxu0 0
  %4381 = vmatprep.subr.bf16.mxu0 0
  %4382 = vmatpush1.bf16.msra.mxu0 0
  %4383 = vmatprep.subr.bf16.mxu0 0
  %4384 = vmatpush1.bf16.msra.mxu0 0
  %4385 = vmatprep.subr.bf16.mxu0 0
  %4386 = vmatpush1.bf16.msra.mxu0 0
  %4387 = vmatprep.mubr.bf16.mxu0 0
  %4388 = vmatmul.mubr.bf16.gmra.mrb[0].mxu0 %v4271
  %v4389 = vpop.f32.mrb[0].mxu0
  %v4390 = vadd.f32 0.0, %v4389
  %v4391 = vpop.f32.mrb[0].mxu0
  %v4392 = vadd.f32 0.0, %v4391
  %v4393 = vpop.f32.mrb[0].mxu0
  %v4394 = vpop.f32.mrb[0].mxu0
  %4395 = vdwg.mxu0
  %4396 = vmatprep.subr.bf16.mxu0 0
  %4397 = vmatpush1.bf16.msra.mxu0 %v493
  %4398 = vmatprep.subr.bf16.mxu0 0
  %4399 = vmatpush1.bf16.msra.mxu0 %v496
  %4400 = vmatprep.subr.bf16.mxu0 0
  %4401 = vmatpush1.bf16.msra.mxu0 %v499
  %4402 = vmatprep.subr.bf16.mxu0 0
  %4403 = vmatpush1.bf16.msra.mxu0 %v502
  %4404 = vmatprep.subr.bf16.mxu0 0
  %4405 = vmatpush1.bf16.msra.mxu0 %v505
  %4406 = vmatprep.subr.bf16.mxu0 0
  %4407 = vmatpush1.bf16.msra.mxu0 %v508
  %4408 = vmatprep.subr.bf16.mxu0 0
  %4409 = vmatpush1.bf16.msra.mxu0 %v511
  %4410 = vmatprep.subr.bf16.mxu0 0
  %4411 = vmatpush1.bf16.msra.mxu0 %v514
  %4412 = vmatprep.subr.bf16.mxu0 0
  %4413 = vmatpush1.bf16.msra.mxu0 0
  %4414 = vmatprep.subr.bf16.mxu0 0
  %4415 = vmatpush1.bf16.msra.mxu0 0
  %4416 = vmatprep.subr.bf16.mxu0 0
  %4417 = vmatpush1.bf16.msra.mxu0 0
  %4418 = vmatprep.subr.bf16.mxu0 0
  %4419 = vmatpush1.bf16.msra.mxu0 0
  %4420 = vmatprep.subr.bf16.mxu0 0
  %4421 = vmatpush1.bf16.msra.mxu0 0
  %4422 = vmatprep.subr.bf16.mxu0 0
  %4423 = vmatpush1.bf16.msra.mxu0 0
  %4424 = vmatprep.subr.bf16.mxu0 0
  %4425 = vmatpush1.bf16.msra.mxu0 0
  %4426 = vmatprep.subr.bf16.mxu0 0
  %4427 = vmatpush1.bf16.msra.mxu0 0
  %4428 = vmatprep.mubr.bf16.mxu0 0
  %4429 = vmatmul.mubr.bf16.gmra.mrb[0].mxu0 %v4271
  %v4430 = vpop.f32.mrb[0].mxu0
  %v4431 = vadd.f32 0.0, %v4430
  %v4432 = vpop.f32.mrb[0].mxu0
  %v4433 = vpop.f32.mrb[0].mxu0
  %v4434 = vpop.f32.mrb[0].mxu0
  %4435 = vdwg.mxu0
  %4436 = vmatprep.subr.bf16.mxu0 %v701
  %4437 = vmatpush1.bf16.msra.mxu0 %v700
  %4438 = vmatprep.subr.bf16.mxu0 %v704
  %4439 = vmatpush1.bf16.msra.mxu0 %v703
  %4440 = vmatprep.subr.bf16.mxu0 %v707
  %4441 = vmatpush1.bf16.msra.mxu0 %v706
  %4442 = vmatprep.subr.bf16.mxu0 %v710
  %4443 = vmatpush1.bf16.msra.mxu0 %v709
  %4444 = vmatprep.subr.bf16.mxu0 %v713
  %4445 = vmatpush1.bf16.msra.mxu0 %v712
  %4446 = vmatprep.subr.bf16.mxu0 %v716
  %4447 = vmatpush1.bf16.msra.mxu0 %v715
  %4448 = vmatprep.subr.bf16.mxu0 %v719
  %4449 = vmatpush1.bf16.msra.mxu0 %v718
  %4450 = vmatprep.subr.bf16.mxu0 %v722
  %4451 = vmatpush1.bf16.msra.mxu0 %v721
  %4452 = vmatprep.subr.bf16.mxu0 0
  %4453 = vmatpush1.bf16.msra.mxu0 0
  %4454 = vmatprep.subr.bf16.mxu0 0
  %4455 = vmatpush1.bf16.msra.mxu0 0
  %4456 = vmatprep.subr.bf16.mxu0 0
  %4457 = vmatpush1.bf16.msra.mxu0 0
  %4458 = vmatprep.subr.bf16.mxu0 0
  %4459 = vmatpush1.bf16.msra.mxu0 0
  %4460 = vmatprep.subr.bf16.mxu0 0
  %4461 = vmatpush1.bf16.msra.mxu0 0
  %4462 = vmatprep.subr.bf16.mxu0 0
  %4463 = vmatpush1.bf16.msra.mxu0 0
  %4464 = vmatprep.subr.bf16.mxu0 0
  %4465 = vmatpush1.bf16.msra.mxu0 0
  %4466 = vmatprep.subr.bf16.mxu0 0
  %4467 = vmatpush1.bf16.msra.mxu0 0
  %4468 = vmatprep.mubr.bf16.mxu0 0
  %4469 = vmatmul.mubr.bf16.gmra.mrb[0].mxu0 %v4272
  %v4470 = vpop.f32.mrb[0].mxu0
  %v4471 = vadd.f32 0.0, %v4470
  %v4472 = vpop.f32.mrb[0].mxu0
  %v4473 = vadd.f32 0.0, %v4472
  %v4474 = vpop.f32.mrb[0].mxu0
  %v4475 = vpop.f32.mrb[0].mxu0
  %4476 = vdwg.mxu0
  %4477 = vmatprep.subr.bf16.mxu0 0
  %4478 = vmatpush1.bf16.msra.mxu0 %v702
  %4479 = vmatprep.subr.bf16.mxu0 0
  %4480 = vmatpush1.bf16.msra.mxu0 %v705
  %4481 = vmatprep.subr.bf16.mxu0 0
  %4482 = vmatpush1.bf16.msra.mxu0 %v708
  %4483 = vmatprep.subr.bf16.mxu0 0
  %4484 = vmatpush1.bf16.msra.mxu0 %v711
  %4485 = vmatprep.subr.bf16.mxu0 0
  %4486 = vmatpush1.bf16.msra.mxu0 %v714
  %4487 = vmatprep.subr.bf16.mxu0 0
  %4488 = vmatpush1.bf16.msra.mxu0 %v717
  %4489 = vmatprep.subr.bf16.mxu0 0
  %4490 = vmatpush1.bf16.msra.mxu0 %v720
  %4491 = vmatprep.subr.bf16.mxu0 0
  %4492 = vmatpush1.bf16.msra.mxu0 %v723
  %4493 = vmatprep.subr.bf16.mxu0 0
  %4494 = vmatpush1.bf16.msra.mxu0 0
  %4495 = vmatprep.subr.bf16.mxu0 0
  %4496 = vmatpush1.bf16.msra.mxu0 0
  %4497 = vmatprep.subr.bf16.mxu0 0
  %4498 = vmatpush1.bf16.msra.mxu0 0
  %4499 = vmatprep.subr.bf16.mxu0 0
  %4500 = vmatpush1.bf16.msra.mxu0 0
  %4501 = vmatprep.subr.bf16.mxu0 0
  %4502 = vmatpush1.bf16.msra.mxu0 0
  %4503 = vmatprep.subr.bf16.mxu0 0
  %4504 = vmatpush1.bf16.msra.mxu0 0
  %4505 = vmatprep.subr.bf16.mxu0 0
  %4506 = vmatpush1.bf16.msra.mxu0 0
  %4507 = vmatprep.subr.bf16.mxu0 0
  %4508 = vmatpush1.bf16.msra.mxu0 0
  %4509 = vmatprep.mubr.bf16.mxu0 0
  %4510 = vmatmul.mubr.bf16.gmra.mrb[0].mxu0 %v4272
  %v4511 = vpop.f32.mrb[0].mxu0
  %v4512 = vadd.f32 0.0, %v4511
  %v4513 = vpop.f32.mrb[0].mxu0
  %v4514 = vpop.f32.mrb[0].mxu0
  %v4515 = vpop.f32.mrb[0].mxu0
  %4516 = vdwg.mxu0
  %4517 = vmatprep.subr.bf16.mxu0 %v910
  %4518 = vmatpush1.bf16.msra.mxu0 %v909
  %4519 = vmatprep.subr.bf16.mxu0 %v913
  %4520 = vmatpush1.bf16.msra.mxu0 %v912
  %4521 = vmatprep.subr.bf16.mxu0 %v916
  %4522 = vmatpush1.bf16.msra.mxu0 %v915
  %4523 = vmatprep.subr.bf16.mxu0 %v919
  %4524 = vmatpush1.bf16.msra.mxu0 %v918
  %4525 = vmatprep.subr.bf16.mxu0 %v922
  %4526 = vmatpush1.bf16.msra.mxu0 %v921
  %4527 = vmatprep.subr.bf16.mxu0 %v925
  %4528 = vmatpush1.bf16.msra.mxu0 %v924
  %4529 = vmatprep.subr.bf16.mxu0 %v928
  %4530 = vmatpush1.bf16.msra.mxu0 %v927
  %4531 = vmatprep.subr.bf16.mxu0 %v931
  %4532 = vmatpush1.bf16.msra.mxu0 %v930
  %4533 = vmatprep.subr.bf16.mxu0 0
  %4534 = vmatpush1.bf16.msra.mxu0 0
  %4535 = vmatprep.subr.bf16.mxu0 0
  %4536 = vmatpush1.bf16.msra.mxu0 0
  %4537 = vmatprep.subr.bf16.mxu0 0
  %4538 = vmatpush1.bf16.msra.mxu0 0
  %4539 = vmatprep.subr.bf16.mxu0 0
  %4540 = vmatpush1.bf16.msra.mxu0 0
  %4541 = vmatprep.subr.bf16.mxu0 0
  %4542 = vmatpush1.bf16.msra.mxu0 0
  %4543 = vmatprep.subr.bf16.mxu0 0
  %4544 = vmatpush1.bf16.msra.mxu0 0
  %4545 = vmatprep.subr.bf16.mxu0 0
  %4546 = vmatpush1.bf16.msra.mxu0 0
  %4547 = vmatprep.subr.bf16.mxu0 0
  %4548 = vmatpush1.bf16.msra.mxu0 0
  %4549 = vmatprep.mubr.bf16.mxu0 0
  %4550 = vmatmul.mubr.bf16.gmra.mrb[0].mxu0 %v4273
  %v4551 = vpop.f32.mrb[0].mxu0
  %v4552 = vadd.f32 0.0, %v4551
  %v4553 = vpop.f32.mrb[0].mxu0
  %v4554 = vadd.f32 0.0, %v4553
  %v4555 = vpop.f32.mrb[0].mxu0
  %v4556 = vpop.f32.mrb[0].mxu0
  %4557 = vdwg.mxu0
  %4558 = vmatprep.subr.bf16.mxu0 0
  %4559 = vmatpush1.bf16.msra.mxu0 %v911
  %4560 = vmatprep.subr.bf16.mxu0 0
  %4561 = vmatpush1.bf16.msra.mxu0 %v914
  %4562 = vmatprep.subr.bf16.mxu0 0
  %4563 = vmatpush1.bf16.msra.mxu0 %v917
  %4564 = vmatprep.subr.bf16.mxu0 0
  %4565 = vmatpush1.bf16.msra.mxu0 %v920
  %4566 = vmatprep.subr.bf16.mxu0 0
  %4567 = vmatpush1.bf16.msra.mxu0 %v923
  %4568 = vmatprep.subr.bf16.mxu0 0
  %4569 = vmatpush1.bf16.msra.mxu0 %v926
  %4570 = vmatprep.subr.bf16.mxu0 0
  %4571 = vmatpush1.bf16.msra.mxu0 %v929
  %4572 = vmatprep.subr.bf16.mxu0 0
  %4573 = vmatpush1.bf16.msra.mxu0 %v932
  %4574 = vmatprep.subr.bf16.mxu0 0
  %4575 = vmatpush1.bf16.msra.mxu0 0
  %4576 = vmatprep.subr.bf16.mxu0 0
  %4577 = vmatpush1.bf16.msra.mxu0 0
  %4578 = vmatprep.subr.bf16.mxu0 0
  %4579 = vmatpush1.bf16.msra.mxu0 0
  %4580 = vmatprep.subr.bf16.mxu0 0
  %4581 = vmatpush1.bf16.msra.mxu0 0
  %4582 = vmatprep.subr.bf16.mxu0 0
  %4583 = vmatpush1.bf16.msra.mxu0 0
  %4584 = vmatprep.subr.bf16.mxu0 0
  %4585 = vmatpush1.bf16.msra.mxu0 0
  %4586 = vmatprep.subr.bf16.mxu0 0
  %4587 = vmatpush1.bf16.msra.mxu0 0
  %4588 = vmatprep.subr.bf16.mxu0 0
  %4589 = vmatpush1.bf16.msra.mxu0 0
  %4590 = vmatprep.mubr.bf16.mxu0 0
  %4591 = vmatmul.mubr.bf16.gmra.mrb[0].mxu0 %v4273
  %v4592 = vpop.f32.mrb[0].mxu0
  %v4593 = vadd.f32 0.0, %v4592
  %v4594 = vpop.f32.mrb[0].mxu0
  %v4595 = vpop.f32.mrb[0].mxu0
  %v4596 = vpop.f32.mrb[0].mxu0
  %4597 = vdwg.mxu0
  %v4598 = vunpack.c.l.bf16 %v4262
  %v4599 = vunpack.c.h.bf16 %v4262
  %v4600 = vunpack.c.l.bf16 %v4264
  %v4601 = vunpack.c.h.bf16 %v4264
  %v4602 = vunpack.c.l.bf16 %v4266
  %v4603 = vunpack.c.h.bf16 %v4266
  %v4604 = vunpack.c.l.bf16 %v4268
  %v4605 = vunpack.c.h.bf16 %v4268
  %v4606 = vadd.f32 %v4598, %v4309
  %v4607 = vadd.f32 %v4599, %v4311
  %v4608 = vadd.f32 %v4600, %v4390
  %v4609 = vadd.f32 %v4601, %v4392
  %v4610 = vadd.f32 %v4602, %v4471
  %v4611 = vadd.f32 %v4603, %v4473
  %v4612 = vadd.f32 %v4604, %v4552
  %v4613 = vadd.f32 %v4605, %v4554
  %v4614 = vxor.u32 %v4606, 2147483648
  %v4615 = vxor.u32 %v4607, 2147483648
  %v4616 = vxor.u32 %v4608, 2147483648
  %v4617 = vxor.u32 %v4609, 2147483648
  %v4618 = vxor.u32 %v4610, 2147483648
  %v4619 = vxor.u32 %v4611, 2147483648
  %v4620 = vxor.u32 %v4612, 2147483648
  %v4621 = vxor.u32 %v4613, 2147483648
  %v4622 = vmul.f32 %v4614, 1.442695
  %v4623 = vpow.pop %v4622
  %v4624 = vmul.f32 %v4615, 1.442695
  %v4625 = vpow.pop %v4624
  %v4626 = vmul.f32 %v4616, 1.442695
  %v4627 = vpow.pop %v4626
  %v4628 = vmul.f32 %v4617, 1.442695
  %v4629 = vpow.pop %v4628
  %v4630 = vmul.f32 %v4618, 1.442695
  %v4631 = vpow.pop %v4630
  %v4632 = vmul.f32 %v4619, 1.442695
  %v4633 = vpow.pop %v4632
  %v4634 = vmul.f32 %v4620, 1.442695
  %v4635 = vpow.pop %v4634
  %v4636 = vmul.f32 %v4621, 1.442695
  %v4637 = vpow.pop %v4636
  %v4638 = vadd.f32 %v4623, 1.0
  %v4639 = vadd.f32 %v4625, 1.0
  %v4640 = vadd.f32 %v4627, 1.0
  %v4641 = vadd.f32 %v4629, 1.0
  %v4642 = vadd.f32 %v4631, 1.0
  %v4643 = vadd.f32 %v4633, 1.0
  %v4644 = vadd.f32 %v4635, 1.0
  %v4645 = vadd.f32 %v4637, 1.0
  %v4646 = vrcp.pop %v4638
  %v4647 = vmul.f32 1.0, %v4646
  %v4648 = vrcp.pop %v4639
  %v4649 = vmul.f32 1.0, %v4648
  %v4650 = vrcp.pop %v4640
  %v4651 = vmul.f32 1.0, %v4650
  %v4652 = vrcp.pop %v4641
  %v4653 = vmul.f32 1.0, %v4652
  %v4654 = vrcp.pop %v4642
  %v4655 = vmul.f32 1.0, %v4654
  %v4656 = vrcp.pop %v4643
  %v4657 = vmul.f32 1.0, %v4656
  %v4658 = vrcp.pop %v4644
  %v4659 = vmul.f32 1.0, %v4658
  %v4660 = vrcp.pop %v4645
  %v4661 = vmul.f32 1.0, %v4660
  %v4662 = vadd.f32 %v4350, %v165
  %v4663 = vadd.f32 %v4431, %v169
  %v4664 = vadd.f32 %v4512, %v173
  %v4665 = vadd.f32 %v4593, %v177
  %v4666 = vmul.f32 %v4647, %v4662
  %v4667 = vmul.f32 %v4651, %v4663
  %v4668 = vmul.f32 %v4655, %v4664
  %v4669 = vmul.f32 %v4659, %v4665
  %v4670 = vunpack.c.l.bf16 %v4263
  %v4671 = vunpack.c.l.bf16 %v4265
  %v4672 = vunpack.c.l.bf16 %v4267
  %v4673 = vunpack.c.l.bf16 %v4269
  %v4674 = vadd.f32 %v4670, %v4666
  %v4675 = vadd.f32 %v4671, %v4667
  %v4676 = vadd.f32 %v4672, %v4668
  %v4677 = vadd.f32 %v4673, %v4669
  %v4678 = vtanh.pop %v4674
  %v4679 = vtanh.pop %v4675
  %v4680 = vtanh.pop %v4676
  %v4681 = vtanh.pop %v4677
  %v4682 = vsub.f32 1.0, %v4649
  %v4683 = vsub.f32 1.0, %v4653
  %v4684 = vsub.f32 1.0, %v4657
  %v4685 = vsub.f32 1.0, %v4661
  %v4686 = vsub.f32 %v4678, %v4257
  %v4687 = vsub.f32 %v4679, %v4258
  %v4688 = vsub.f32 %v4680, %v4259
  %v4689 = vsub.f32 %v4681, %v4260
  %v4690 = vmul.f32 %v4682, %v4686
  %v4691 = vmul.f32 %v4683, %v4687
  %v4692 = vmul.f32 %v4684, %v4688
  %v4693 = vmul.f32 %v4685, %v4689
  %vm4694 = vcmp.gt.s32.totalorder %v182, 8
  %vm4695 = vcmp.gt.s32.totalorder %v183, 8
  %vm4696 = vcmp.gt.s32.totalorder %v184, 8
  %vm4697 = vcmp.gt.s32.totalorder %v185, 8
  %v4698 = vsel %vm4694, %v4690, 0.0
  %v4699 = vsel %vm4695, %v4691, 0.0
  %v4700 = vsel %vm4696, %v4692, 0.0
  %v4701 = vsel %vm4697, %v4693, 0.0
  %v4702 = vadd.f32 %v4257, %v4698
  %v4703 = vadd.f32 %v4258, %v4699
  %v4704 = vadd.f32 %v4259, %v4700
  %v4705 = vadd.f32 %v4260, %v4701
  %s4706 = scalar_lea.vmem %s0, 432
  %v4707 = vld [vmem:[%s4706] sm:$0xff]
  %v4708 = vld [vmem:[%s4706 + $0x8] sm:$0xf]
  %v4709 = vld [vmem:[%s4706 + $0xc] sm:$0xff]
  %v4710 = vld [vmem:[%s4706 + $0x14] sm:$0xf]
  %v4711 = vld [vmem:[%s4706 + $0x18] sm:$0xff]
  %v4712 = vld [vmem:[%s4706 + $0x20] sm:$0xf]
  %v4713 = vld [vmem:[%s4706 + $0x24] sm:$0xff]
  %v4714 = vld [vmem:[%s4706 + $0x2c] sm:$0xf]
  %v4715 = vpack.c.bf16 %v4702, %v4702
  %v4716 = vpack.c.bf16 %v4703, %v4703
  %v4717 = vpack.c.bf16 %v4704, %v4704
  %v4718 = vpack.c.bf16 %v4705, %v4705
  %4719 = vmatprep.subr.bf16.mxu0 %v283
  %4720 = vmatpush1.bf16.msra.mxu0 %v282
  %4721 = vmatprep.subr.bf16.mxu0 %v286
  %4722 = vmatpush1.bf16.msra.mxu0 %v285
  %4723 = vmatprep.subr.bf16.mxu0 %v289
  %4724 = vmatpush1.bf16.msra.mxu0 %v288
  %4725 = vmatprep.subr.bf16.mxu0 %v292
  %4726 = vmatpush1.bf16.msra.mxu0 %v291
  %4727 = vmatprep.subr.bf16.mxu0 %v295
  %4728 = vmatpush1.bf16.msra.mxu0 %v294
  %4729 = vmatprep.subr.bf16.mxu0 %v298
  %4730 = vmatpush1.bf16.msra.mxu0 %v297
  %4731 = vmatprep.subr.bf16.mxu0 %v301
  %4732 = vmatpush1.bf16.msra.mxu0 %v300
  %4733 = vmatprep.subr.bf16.mxu0 %v304
  %4734 = vmatpush1.bf16.msra.mxu0 %v303
  %4735 = vmatprep.subr.bf16.mxu0 0
  %4736 = vmatpush1.bf16.msra.mxu0 0
  %4737 = vmatprep.subr.bf16.mxu0 0
  %4738 = vmatpush1.bf16.msra.mxu0 0
  %4739 = vmatprep.subr.bf16.mxu0 0
  %4740 = vmatpush1.bf16.msra.mxu0 0
  %4741 = vmatprep.subr.bf16.mxu0 0
  %4742 = vmatpush1.bf16.msra.mxu0 0
  %4743 = vmatprep.subr.bf16.mxu0 0
  %4744 = vmatpush1.bf16.msra.mxu0 0
  %4745 = vmatprep.subr.bf16.mxu0 0
  %4746 = vmatpush1.bf16.msra.mxu0 0
  %4747 = vmatprep.subr.bf16.mxu0 0
  %4748 = vmatpush1.bf16.msra.mxu0 0
  %4749 = vmatprep.subr.bf16.mxu0 0
  %4750 = vmatpush1.bf16.msra.mxu0 0
  %4751 = vmatprep.mubr.bf16.mxu0 0
  %4752 = vmatmul.mubr.bf16.gmra.mrb[0].mxu0 %v4715
  %v4753 = vpop.f32.mrb[0].mxu0
  %v4754 = vadd.f32 0.0, %v4753
  %v4755 = vpop.f32.mrb[0].mxu0
  %v4756 = vadd.f32 0.0, %v4755
  %v4757 = vpop.f32.mrb[0].mxu0
  %v4758 = vpop.f32.mrb[0].mxu0
  %4759 = vdwg.mxu0
  %4760 = vmatprep.subr.bf16.mxu0 0
  %4761 = vmatpush1.bf16.msra.mxu0 %v284
  %4762 = vmatprep.subr.bf16.mxu0 0
  %4763 = vmatpush1.bf16.msra.mxu0 %v287
  %4764 = vmatprep.subr.bf16.mxu0 0
  %4765 = vmatpush1.bf16.msra.mxu0 %v290
  %4766 = vmatprep.subr.bf16.mxu0 0
  %4767 = vmatpush1.bf16.msra.mxu0 %v293
  %4768 = vmatprep.subr.bf16.mxu0 0
  %4769 = vmatpush1.bf16.msra.mxu0 %v296
  %4770 = vmatprep.subr.bf16.mxu0 0
  %4771 = vmatpush1.bf16.msra.mxu0 %v299
  %4772 = vmatprep.subr.bf16.mxu0 0
  %4773 = vmatpush1.bf16.msra.mxu0 %v302
  %4774 = vmatprep.subr.bf16.mxu0 0
  %4775 = vmatpush1.bf16.msra.mxu0 %v305
  %4776 = vmatprep.subr.bf16.mxu0 0
  %4777 = vmatpush1.bf16.msra.mxu0 0
  %4778 = vmatprep.subr.bf16.mxu0 0
  %4779 = vmatpush1.bf16.msra.mxu0 0
  %4780 = vmatprep.subr.bf16.mxu0 0
  %4781 = vmatpush1.bf16.msra.mxu0 0
  %4782 = vmatprep.subr.bf16.mxu0 0
  %4783 = vmatpush1.bf16.msra.mxu0 0
  %4784 = vmatprep.subr.bf16.mxu0 0
  %4785 = vmatpush1.bf16.msra.mxu0 0
  %4786 = vmatprep.subr.bf16.mxu0 0
  %4787 = vmatpush1.bf16.msra.mxu0 0
  %4788 = vmatprep.subr.bf16.mxu0 0
  %4789 = vmatpush1.bf16.msra.mxu0 0
  %4790 = vmatprep.subr.bf16.mxu0 0
  %4791 = vmatpush1.bf16.msra.mxu0 0
  %4792 = vmatprep.mubr.bf16.mxu0 0
  %4793 = vmatmul.mubr.bf16.gmra.mrb[0].mxu0 %v4715
  %v4794 = vpop.f32.mrb[0].mxu0
  %v4795 = vadd.f32 0.0, %v4794
  %v4796 = vpop.f32.mrb[0].mxu0
  %v4797 = vpop.f32.mrb[0].mxu0
  %v4798 = vpop.f32.mrb[0].mxu0
  %4799 = vdwg.mxu0
  %4800 = vmatprep.subr.bf16.mxu0 %v492
  %4801 = vmatpush1.bf16.msra.mxu0 %v491
  %4802 = vmatprep.subr.bf16.mxu0 %v495
  %4803 = vmatpush1.bf16.msra.mxu0 %v494
  %4804 = vmatprep.subr.bf16.mxu0 %v498
  %4805 = vmatpush1.bf16.msra.mxu0 %v497
  %4806 = vmatprep.subr.bf16.mxu0 %v501
  %4807 = vmatpush1.bf16.msra.mxu0 %v500
  %4808 = vmatprep.subr.bf16.mxu0 %v504
  %4809 = vmatpush1.bf16.msra.mxu0 %v503
  %4810 = vmatprep.subr.bf16.mxu0 %v507
  %4811 = vmatpush1.bf16.msra.mxu0 %v506
  %4812 = vmatprep.subr.bf16.mxu0 %v510
  %4813 = vmatpush1.bf16.msra.mxu0 %v509
  %4814 = vmatprep.subr.bf16.mxu0 %v513
  %4815 = vmatpush1.bf16.msra.mxu0 %v512
  %4816 = vmatprep.subr.bf16.mxu0 0
  %4817 = vmatpush1.bf16.msra.mxu0 0
  %4818 = vmatprep.subr.bf16.mxu0 0
  %4819 = vmatpush1.bf16.msra.mxu0 0
  %4820 = vmatprep.subr.bf16.mxu0 0
  %4821 = vmatpush1.bf16.msra.mxu0 0
  %4822 = vmatprep.subr.bf16.mxu0 0
  %4823 = vmatpush1.bf16.msra.mxu0 0
  %4824 = vmatprep.subr.bf16.mxu0 0
  %4825 = vmatpush1.bf16.msra.mxu0 0
  %4826 = vmatprep.subr.bf16.mxu0 0
  %4827 = vmatpush1.bf16.msra.mxu0 0
  %4828 = vmatprep.subr.bf16.mxu0 0
  %4829 = vmatpush1.bf16.msra.mxu0 0
  %4830 = vmatprep.subr.bf16.mxu0 0
  %4831 = vmatpush1.bf16.msra.mxu0 0
  %4832 = vmatprep.mubr.bf16.mxu0 0
  %4833 = vmatmul.mubr.bf16.gmra.mrb[0].mxu0 %v4716
  %v4834 = vpop.f32.mrb[0].mxu0
  %v4835 = vadd.f32 0.0, %v4834
  %v4836 = vpop.f32.mrb[0].mxu0
  %v4837 = vadd.f32 0.0, %v4836
  %v4838 = vpop.f32.mrb[0].mxu0
  %v4839 = vpop.f32.mrb[0].mxu0
  %4840 = vdwg.mxu0
  %4841 = vmatprep.subr.bf16.mxu0 0
  %4842 = vmatpush1.bf16.msra.mxu0 %v493
  %4843 = vmatprep.subr.bf16.mxu0 0
  %4844 = vmatpush1.bf16.msra.mxu0 %v496
  %4845 = vmatprep.subr.bf16.mxu0 0
  %4846 = vmatpush1.bf16.msra.mxu0 %v499
  %4847 = vmatprep.subr.bf16.mxu0 0
  %4848 = vmatpush1.bf16.msra.mxu0 %v502
  %4849 = vmatprep.subr.bf16.mxu0 0
  %4850 = vmatpush1.bf16.msra.mxu0 %v505
  %4851 = vmatprep.subr.bf16.mxu0 0
  %4852 = vmatpush1.bf16.msra.mxu0 %v508
  %4853 = vmatprep.subr.bf16.mxu0 0
  %4854 = vmatpush1.bf16.msra.mxu0 %v511
  %4855 = vmatprep.subr.bf16.mxu0 0
  %4856 = vmatpush1.bf16.msra.mxu0 %v514
  %4857 = vmatprep.subr.bf16.mxu0 0
  %4858 = vmatpush1.bf16.msra.mxu0 0
  %4859 = vmatprep.subr.bf16.mxu0 0
  %4860 = vmatpush1.bf16.msra.mxu0 0
  %4861 = vmatprep.subr.bf16.mxu0 0
  %4862 = vmatpush1.bf16.msra.mxu0 0
  %4863 = vmatprep.subr.bf16.mxu0 0
  %4864 = vmatpush1.bf16.msra.mxu0 0
  %4865 = vmatprep.subr.bf16.mxu0 0
  %4866 = vmatpush1.bf16.msra.mxu0 0
  %4867 = vmatprep.subr.bf16.mxu0 0
  %4868 = vmatpush1.bf16.msra.mxu0 0
  %4869 = vmatprep.subr.bf16.mxu0 0
  %4870 = vmatpush1.bf16.msra.mxu0 0
  %4871 = vmatprep.subr.bf16.mxu0 0
  %4872 = vmatpush1.bf16.msra.mxu0 0
  %4873 = vmatprep.mubr.bf16.mxu0 0
  %4874 = vmatmul.mubr.bf16.gmra.mrb[0].mxu0 %v4716
  %v4875 = vpop.f32.mrb[0].mxu0
  %v4876 = vadd.f32 0.0, %v4875
  %v4877 = vpop.f32.mrb[0].mxu0
  %v4878 = vpop.f32.mrb[0].mxu0
  %v4879 = vpop.f32.mrb[0].mxu0
  %4880 = vdwg.mxu0
  %4881 = vmatprep.subr.bf16.mxu0 %v701
  %4882 = vmatpush1.bf16.msra.mxu0 %v700
  %4883 = vmatprep.subr.bf16.mxu0 %v704
  %4884 = vmatpush1.bf16.msra.mxu0 %v703
  %4885 = vmatprep.subr.bf16.mxu0 %v707
  %4886 = vmatpush1.bf16.msra.mxu0 %v706
  %4887 = vmatprep.subr.bf16.mxu0 %v710
  %4888 = vmatpush1.bf16.msra.mxu0 %v709
  %4889 = vmatprep.subr.bf16.mxu0 %v713
  %4890 = vmatpush1.bf16.msra.mxu0 %v712
  %4891 = vmatprep.subr.bf16.mxu0 %v716
  %4892 = vmatpush1.bf16.msra.mxu0 %v715
  %4893 = vmatprep.subr.bf16.mxu0 %v719
  %4894 = vmatpush1.bf16.msra.mxu0 %v718
  %4895 = vmatprep.subr.bf16.mxu0 %v722
  %4896 = vmatpush1.bf16.msra.mxu0 %v721
  %4897 = vmatprep.subr.bf16.mxu0 0
  %4898 = vmatpush1.bf16.msra.mxu0 0
  %4899 = vmatprep.subr.bf16.mxu0 0
  %4900 = vmatpush1.bf16.msra.mxu0 0
  %4901 = vmatprep.subr.bf16.mxu0 0
  %4902 = vmatpush1.bf16.msra.mxu0 0
  %4903 = vmatprep.subr.bf16.mxu0 0
  %4904 = vmatpush1.bf16.msra.mxu0 0
  %4905 = vmatprep.subr.bf16.mxu0 0
  %4906 = vmatpush1.bf16.msra.mxu0 0
  %4907 = vmatprep.subr.bf16.mxu0 0
  %4908 = vmatpush1.bf16.msra.mxu0 0
  %4909 = vmatprep.subr.bf16.mxu0 0
  %4910 = vmatpush1.bf16.msra.mxu0 0
  %4911 = vmatprep.subr.bf16.mxu0 0
  %4912 = vmatpush1.bf16.msra.mxu0 0
  %4913 = vmatprep.mubr.bf16.mxu0 0
  %4914 = vmatmul.mubr.bf16.gmra.mrb[0].mxu0 %v4717
  %v4915 = vpop.f32.mrb[0].mxu0
  %v4916 = vadd.f32 0.0, %v4915
  %v4917 = vpop.f32.mrb[0].mxu0
  %v4918 = vadd.f32 0.0, %v4917
  %v4919 = vpop.f32.mrb[0].mxu0
  %v4920 = vpop.f32.mrb[0].mxu0
  %4921 = vdwg.mxu0
  %4922 = vmatprep.subr.bf16.mxu0 0
  %4923 = vmatpush1.bf16.msra.mxu0 %v702
  %4924 = vmatprep.subr.bf16.mxu0 0
  %4925 = vmatpush1.bf16.msra.mxu0 %v705
  %4926 = vmatprep.subr.bf16.mxu0 0
  %4927 = vmatpush1.bf16.msra.mxu0 %v708
  %4928 = vmatprep.subr.bf16.mxu0 0
  %4929 = vmatpush1.bf16.msra.mxu0 %v711
  %4930 = vmatprep.subr.bf16.mxu0 0
  %4931 = vmatpush1.bf16.msra.mxu0 %v714
  %4932 = vmatprep.subr.bf16.mxu0 0
  %4933 = vmatpush1.bf16.msra.mxu0 %v717
  %4934 = vmatprep.subr.bf16.mxu0 0
  %4935 = vmatpush1.bf16.msra.mxu0 %v720
  %4936 = vmatprep.subr.bf16.mxu0 0
  %4937 = vmatpush1.bf16.msra.mxu0 %v723
  %4938 = vmatprep.subr.bf16.mxu0 0
  %4939 = vmatpush1.bf16.msra.mxu0 0
  %4940 = vmatprep.subr.bf16.mxu0 0
  %4941 = vmatpush1.bf16.msra.mxu0 0
  %4942 = vmatprep.subr.bf16.mxu0 0
  %4943 = vmatpush1.bf16.msra.mxu0 0
  %4944 = vmatprep.subr.bf16.mxu0 0
  %4945 = vmatpush1.bf16.msra.mxu0 0
  %4946 = vmatprep.subr.bf16.mxu0 0
  %4947 = vmatpush1.bf16.msra.mxu0 0
  %4948 = vmatprep.subr.bf16.mxu0 0
  %4949 = vmatpush1.bf16.msra.mxu0 0
  %4950 = vmatprep.subr.bf16.mxu0 0
  %4951 = vmatpush1.bf16.msra.mxu0 0
  %4952 = vmatprep.subr.bf16.mxu0 0
  %4953 = vmatpush1.bf16.msra.mxu0 0
  %4954 = vmatprep.mubr.bf16.mxu0 0
  %4955 = vmatmul.mubr.bf16.gmra.mrb[0].mxu0 %v4717
  %v4956 = vpop.f32.mrb[0].mxu0
  %v4957 = vadd.f32 0.0, %v4956
  %v4958 = vpop.f32.mrb[0].mxu0
  %v4959 = vpop.f32.mrb[0].mxu0
  %v4960 = vpop.f32.mrb[0].mxu0
  %4961 = vdwg.mxu0
  %4962 = vmatprep.subr.bf16.mxu0 %v910
  %4963 = vmatpush1.bf16.msra.mxu0 %v909
  %4964 = vmatprep.subr.bf16.mxu0 %v913
  %4965 = vmatpush1.bf16.msra.mxu0 %v912
  %4966 = vmatprep.subr.bf16.mxu0 %v916
  %4967 = vmatpush1.bf16.msra.mxu0 %v915
  %4968 = vmatprep.subr.bf16.mxu0 %v919
  %4969 = vmatpush1.bf16.msra.mxu0 %v918
  %4970 = vmatprep.subr.bf16.mxu0 %v922
  %4971 = vmatpush1.bf16.msra.mxu0 %v921
  %4972 = vmatprep.subr.bf16.mxu0 %v925
  %4973 = vmatpush1.bf16.msra.mxu0 %v924
  %4974 = vmatprep.subr.bf16.mxu0 %v928
  %4975 = vmatpush1.bf16.msra.mxu0 %v927
  %4976 = vmatprep.subr.bf16.mxu0 %v931
  %4977 = vmatpush1.bf16.msra.mxu0 %v930
  %4978 = vmatprep.subr.bf16.mxu0 0
  %4979 = vmatpush1.bf16.msra.mxu0 0
  %4980 = vmatprep.subr.bf16.mxu0 0
  %4981 = vmatpush1.bf16.msra.mxu0 0
  %4982 = vmatprep.subr.bf16.mxu0 0
  %4983 = vmatpush1.bf16.msra.mxu0 0
  %4984 = vmatprep.subr.bf16.mxu0 0
  %4985 = vmatpush1.bf16.msra.mxu0 0
  %4986 = vmatprep.subr.bf16.mxu0 0
  %4987 = vmatpush1.bf16.msra.mxu0 0
  %4988 = vmatprep.subr.bf16.mxu0 0
  %4989 = vmatpush1.bf16.msra.mxu0 0
  %4990 = vmatprep.subr.bf16.mxu0 0
  %4991 = vmatpush1.bf16.msra.mxu0 0
  %4992 = vmatprep.subr.bf16.mxu0 0
  %4993 = vmatpush1.bf16.msra.mxu0 0
  %4994 = vmatprep.mubr.bf16.mxu0 0
  %4995 = vmatmul.mubr.bf16.gmra.mrb[0].mxu0 %v4718
  %v4996 = vpop.f32.mrb[0].mxu0
  %v4997 = vadd.f32 0.0, %v4996
  %v4998 = vpop.f32.mrb[0].mxu0
  %v4999 = vadd.f32 0.0, %v4998
  %v5000 = vpop.f32.mrb[0].mxu0
  %v5001 = vpop.f32.mrb[0].mxu0
  %5002 = vdwg.mxu0
  %5003 = vmatprep.subr.bf16.mxu0 0
  %5004 = vmatpush1.bf16.msra.mxu0 %v911
  %5005 = vmatprep.subr.bf16.mxu0 0
  %5006 = vmatpush1.bf16.msra.mxu0 %v914
  %5007 = vmatprep.subr.bf16.mxu0 0
  %5008 = vmatpush1.bf16.msra.mxu0 %v917
  %5009 = vmatprep.subr.bf16.mxu0 0
  %5010 = vmatpush1.bf16.msra.mxu0 %v920
  %5011 = vmatprep.subr.bf16.mxu0 0
  %5012 = vmatpush1.bf16.msra.mxu0 %v923
  %5013 = vmatprep.subr.bf16.mxu0 0
  %5014 = vmatpush1.bf16.msra.mxu0 %v926
  %5015 = vmatprep.subr.bf16.mxu0 0
  %5016 = vmatpush1.bf16.msra.mxu0 %v929
  %5017 = vmatprep.subr.bf16.mxu0 0
  %5018 = vmatpush1.bf16.msra.mxu0 %v932
  %5019 = vmatprep.subr.bf16.mxu0 0
  %5020 = vmatpush1.bf16.msra.mxu0 0
  %5021 = vmatprep.subr.bf16.mxu0 0
  %5022 = vmatpush1.bf16.msra.mxu0 0
  %5023 = vmatprep.subr.bf16.mxu0 0
  %5024 = vmatpush1.bf16.msra.mxu0 0
  %5025 = vmatprep.subr.bf16.mxu0 0
  %5026 = vmatpush1.bf16.msra.mxu0 0
  %5027 = vmatprep.subr.bf16.mxu0 0
  %5028 = vmatpush1.bf16.msra.mxu0 0
  %5029 = vmatprep.subr.bf16.mxu0 0
  %5030 = vmatpush1.bf16.msra.mxu0 0
  %5031 = vmatprep.subr.bf16.mxu0 0
  %5032 = vmatpush1.bf16.msra.mxu0 0
  %5033 = vmatprep.subr.bf16.mxu0 0
  %5034 = vmatpush1.bf16.msra.mxu0 0
  %5035 = vmatprep.mubr.bf16.mxu0 0
  %5036 = vmatmul.mubr.bf16.gmra.mrb[0].mxu0 %v4718
  %v5037 = vpop.f32.mrb[0].mxu0
  %v5038 = vadd.f32 0.0, %v5037
  %v5039 = vpop.f32.mrb[0].mxu0
  %v5040 = vpop.f32.mrb[0].mxu0
  %v5041 = vpop.f32.mrb[0].mxu0
  %5042 = vdwg.mxu0
  %v5043 = vunpack.c.l.bf16 %v4707
  %v5044 = vunpack.c.h.bf16 %v4707
  %v5045 = vunpack.c.l.bf16 %v4709
  %v5046 = vunpack.c.h.bf16 %v4709
  %v5047 = vunpack.c.l.bf16 %v4711
  %v5048 = vunpack.c.h.bf16 %v4711
  %v5049 = vunpack.c.l.bf16 %v4713
  %v5050 = vunpack.c.h.bf16 %v4713
  %v5051 = vadd.f32 %v5043, %v4754
  %v5052 = vadd.f32 %v5044, %v4756
  %v5053 = vadd.f32 %v5045, %v4835
  %v5054 = vadd.f32 %v5046, %v4837
  %v5055 = vadd.f32 %v5047, %v4916
  %v5056 = vadd.f32 %v5048, %v4918
  %v5057 = vadd.f32 %v5049, %v4997
  %v5058 = vadd.f32 %v5050, %v4999
  %v5059 = vxor.u32 %v5051, 2147483648
  %v5060 = vxor.u32 %v5052, 2147483648
  %v5061 = vxor.u32 %v5053, 2147483648
  %v5062 = vxor.u32 %v5054, 2147483648
  %v5063 = vxor.u32 %v5055, 2147483648
  %v5064 = vxor.u32 %v5056, 2147483648
  %v5065 = vxor.u32 %v5057, 2147483648
  %v5066 = vxor.u32 %v5058, 2147483648
  %v5067 = vmul.f32 %v5059, 1.442695
  %v5068 = vpow.pop %v5067
  %v5069 = vmul.f32 %v5060, 1.442695
  %v5070 = vpow.pop %v5069
  %v5071 = vmul.f32 %v5061, 1.442695
  %v5072 = vpow.pop %v5071
  %v5073 = vmul.f32 %v5062, 1.442695
  %v5074 = vpow.pop %v5073
  %v5075 = vmul.f32 %v5063, 1.442695
  %v5076 = vpow.pop %v5075
  %v5077 = vmul.f32 %v5064, 1.442695
  %v5078 = vpow.pop %v5077
  %v5079 = vmul.f32 %v5065, 1.442695
  %v5080 = vpow.pop %v5079
  %v5081 = vmul.f32 %v5066, 1.442695
  %v5082 = vpow.pop %v5081
  %v5083 = vadd.f32 %v5068, 1.0
  %v5084 = vadd.f32 %v5070, 1.0
  %v5085 = vadd.f32 %v5072, 1.0
  %v5086 = vadd.f32 %v5074, 1.0
  %v5087 = vadd.f32 %v5076, 1.0
  %v5088 = vadd.f32 %v5078, 1.0
  %v5089 = vadd.f32 %v5080, 1.0
  %v5090 = vadd.f32 %v5082, 1.0
  %v5091 = vrcp.pop %v5083
  %v5092 = vmul.f32 1.0, %v5091
  %v5093 = vrcp.pop %v5084
  %v5094 = vmul.f32 1.0, %v5093
  %v5095 = vrcp.pop %v5085
  %v5096 = vmul.f32 1.0, %v5095
  %v5097 = vrcp.pop %v5086
  %v5098 = vmul.f32 1.0, %v5097
  %v5099 = vrcp.pop %v5087
  %v5100 = vmul.f32 1.0, %v5099
  %v5101 = vrcp.pop %v5088
  %v5102 = vmul.f32 1.0, %v5101
  %v5103 = vrcp.pop %v5089
  %v5104 = vmul.f32 1.0, %v5103
  %v5105 = vrcp.pop %v5090
  %v5106 = vmul.f32 1.0, %v5105
  %v5107 = vadd.f32 %v4795, %v165
  %v5108 = vadd.f32 %v4876, %v169
  %v5109 = vadd.f32 %v4957, %v173
  %v5110 = vadd.f32 %v5038, %v177
  %v5111 = vmul.f32 %v5092, %v5107
  %v5112 = vmul.f32 %v5096, %v5108
  %v5113 = vmul.f32 %v5100, %v5109
  %v5114 = vmul.f32 %v5104, %v5110
  %v5115 = vunpack.c.l.bf16 %v4708
  %v5116 = vunpack.c.l.bf16 %v4710
  %v5117 = vunpack.c.l.bf16 %v4712
  %v5118 = vunpack.c.l.bf16 %v4714
  %v5119 = vadd.f32 %v5115, %v5111
  %v5120 = vadd.f32 %v5116, %v5112
  %v5121 = vadd.f32 %v5117, %v5113
  %v5122 = vadd.f32 %v5118, %v5114
  %v5123 = vtanh.pop %v5119
  %v5124 = vtanh.pop %v5120
  %v5125 = vtanh.pop %v5121
  %v5126 = vtanh.pop %v5122
  %v5127 = vsub.f32 1.0, %v5094
  %v5128 = vsub.f32 1.0, %v5098
  %v5129 = vsub.f32 1.0, %v5102
  %v5130 = vsub.f32 1.0, %v5106
  %v5131 = vsub.f32 %v5123, %v4702
  %v5132 = vsub.f32 %v5124, %v4703
  %v5133 = vsub.f32 %v5125, %v4704
  %v5134 = vsub.f32 %v5126, %v4705
  %v5135 = vmul.f32 %v5127, %v5131
  %v5136 = vmul.f32 %v5128, %v5132
  %v5137 = vmul.f32 %v5129, %v5133
  %v5138 = vmul.f32 %v5130, %v5134
  %vm5139 = vcmp.gt.s32.totalorder %v182, 9
  %vm5140 = vcmp.gt.s32.totalorder %v183, 9
  %vm5141 = vcmp.gt.s32.totalorder %v184, 9
  %vm5142 = vcmp.gt.s32.totalorder %v185, 9
  %v5143 = vsel %vm5139, %v5135, 0.0
  %v5144 = vsel %vm5140, %v5136, 0.0
  %v5145 = vsel %vm5141, %v5137, 0.0
  %v5146 = vsel %vm5142, %v5138, 0.0
  %v5147 = vadd.f32 %v4702, %v5143
  %v5148 = vadd.f32 %v4703, %v5144
  %v5149 = vadd.f32 %v4704, %v5145
  %v5150 = vadd.f32 %v4705, %v5146
  %s5151 = scalar_lea.vmem %s0, 480
  %v5152 = vld [vmem:[%s5151] sm:$0xff]
  %v5153 = vld [vmem:[%s5151 + $0x8] sm:$0xf]
  %v5154 = vld [vmem:[%s5151 + $0xc] sm:$0xff]
  %v5155 = vld [vmem:[%s5151 + $0x14] sm:$0xf]
  %v5156 = vld [vmem:[%s5151 + $0x18] sm:$0xff]
  %v5157 = vld [vmem:[%s5151 + $0x20] sm:$0xf]
  %v5158 = vld [vmem:[%s5151 + $0x24] sm:$0xff]
  %v5159 = vld [vmem:[%s5151 + $0x2c] sm:$0xf]
  %v5160 = vpack.c.bf16 %v5147, %v5147
  %v5161 = vpack.c.bf16 %v5148, %v5148
  %v5162 = vpack.c.bf16 %v5149, %v5149
  %v5163 = vpack.c.bf16 %v5150, %v5150
  %5164 = vmatprep.subr.bf16.mxu0 %v283
  %5165 = vmatpush1.bf16.msra.mxu0 %v282
  %5166 = vmatprep.subr.bf16.mxu0 %v286
  %5167 = vmatpush1.bf16.msra.mxu0 %v285
  %5168 = vmatprep.subr.bf16.mxu0 %v289
  %5169 = vmatpush1.bf16.msra.mxu0 %v288
  %5170 = vmatprep.subr.bf16.mxu0 %v292
  %5171 = vmatpush1.bf16.msra.mxu0 %v291
  %5172 = vmatprep.subr.bf16.mxu0 %v295
  %5173 = vmatpush1.bf16.msra.mxu0 %v294
  %5174 = vmatprep.subr.bf16.mxu0 %v298
  %5175 = vmatpush1.bf16.msra.mxu0 %v297
  %5176 = vmatprep.subr.bf16.mxu0 %v301
  %5177 = vmatpush1.bf16.msra.mxu0 %v300
  %5178 = vmatprep.subr.bf16.mxu0 %v304
  %5179 = vmatpush1.bf16.msra.mxu0 %v303
  %5180 = vmatprep.subr.bf16.mxu0 0
  %5181 = vmatpush1.bf16.msra.mxu0 0
  %5182 = vmatprep.subr.bf16.mxu0 0
  %5183 = vmatpush1.bf16.msra.mxu0 0
  %5184 = vmatprep.subr.bf16.mxu0 0
  %5185 = vmatpush1.bf16.msra.mxu0 0
  %5186 = vmatprep.subr.bf16.mxu0 0
  %5187 = vmatpush1.bf16.msra.mxu0 0
  %5188 = vmatprep.subr.bf16.mxu0 0
  %5189 = vmatpush1.bf16.msra.mxu0 0
  %5190 = vmatprep.subr.bf16.mxu0 0
  %5191 = vmatpush1.bf16.msra.mxu0 0
  %5192 = vmatprep.subr.bf16.mxu0 0
  %5193 = vmatpush1.bf16.msra.mxu0 0
  %5194 = vmatprep.subr.bf16.mxu0 0
  %5195 = vmatpush1.bf16.msra.mxu0 0
  %5196 = vmatprep.mubr.bf16.mxu0 0
  %5197 = vmatmul.mubr.bf16.gmra.mrb[0].mxu0 %v5160
  %v5198 = vpop.f32.mrb[0].mxu0
  %v5199 = vadd.f32 0.0, %v5198
  %v5200 = vpop.f32.mrb[0].mxu0
  %v5201 = vadd.f32 0.0, %v5200
  %v5202 = vpop.f32.mrb[0].mxu0
  %v5203 = vpop.f32.mrb[0].mxu0
  %5204 = vdwg.mxu0
  %5205 = vmatprep.subr.bf16.mxu0 0
  %5206 = vmatpush1.bf16.msra.mxu0 %v284
  %5207 = vmatprep.subr.bf16.mxu0 0
  %5208 = vmatpush1.bf16.msra.mxu0 %v287
  %5209 = vmatprep.subr.bf16.mxu0 0
  %5210 = vmatpush1.bf16.msra.mxu0 %v290
  %5211 = vmatprep.subr.bf16.mxu0 0
  %5212 = vmatpush1.bf16.msra.mxu0 %v293
  %5213 = vmatprep.subr.bf16.mxu0 0
  %5214 = vmatpush1.bf16.msra.mxu0 %v296
  %5215 = vmatprep.subr.bf16.mxu0 0
  %5216 = vmatpush1.bf16.msra.mxu0 %v299
  %5217 = vmatprep.subr.bf16.mxu0 0
  %5218 = vmatpush1.bf16.msra.mxu0 %v302
  %5219 = vmatprep.subr.bf16.mxu0 0
  %5220 = vmatpush1.bf16.msra.mxu0 %v305
  %5221 = vmatprep.subr.bf16.mxu0 0
  %5222 = vmatpush1.bf16.msra.mxu0 0
  %5223 = vmatprep.subr.bf16.mxu0 0
  %5224 = vmatpush1.bf16.msra.mxu0 0
  %5225 = vmatprep.subr.bf16.mxu0 0
  %5226 = vmatpush1.bf16.msra.mxu0 0
  %5227 = vmatprep.subr.bf16.mxu0 0
  %5228 = vmatpush1.bf16.msra.mxu0 0
  %5229 = vmatprep.subr.bf16.mxu0 0
  %5230 = vmatpush1.bf16.msra.mxu0 0
  %5231 = vmatprep.subr.bf16.mxu0 0
  %5232 = vmatpush1.bf16.msra.mxu0 0
  %5233 = vmatprep.subr.bf16.mxu0 0
  %5234 = vmatpush1.bf16.msra.mxu0 0
  %5235 = vmatprep.subr.bf16.mxu0 0
  %5236 = vmatpush1.bf16.msra.mxu0 0
  %5237 = vmatprep.mubr.bf16.mxu0 0
  %5238 = vmatmul.mubr.bf16.gmra.mrb[0].mxu0 %v5160
  %v5239 = vpop.f32.mrb[0].mxu0
  %v5240 = vadd.f32 0.0, %v5239
  %v5241 = vpop.f32.mrb[0].mxu0
  %v5242 = vpop.f32.mrb[0].mxu0
  %v5243 = vpop.f32.mrb[0].mxu0
  %5244 = vdwg.mxu0
  %5245 = vmatprep.subr.bf16.mxu0 %v492
  %5246 = vmatpush1.bf16.msra.mxu0 %v491
  %5247 = vmatprep.subr.bf16.mxu0 %v495
  %5248 = vmatpush1.bf16.msra.mxu0 %v494
  %5249 = vmatprep.subr.bf16.mxu0 %v498
  %5250 = vmatpush1.bf16.msra.mxu0 %v497
  %5251 = vmatprep.subr.bf16.mxu0 %v501
  %5252 = vmatpush1.bf16.msra.mxu0 %v500
  %5253 = vmatprep.subr.bf16.mxu0 %v504
  %5254 = vmatpush1.bf16.msra.mxu0 %v503
  %5255 = vmatprep.subr.bf16.mxu0 %v507
  %5256 = vmatpush1.bf16.msra.mxu0 %v506
  %5257 = vmatprep.subr.bf16.mxu0 %v510
  %5258 = vmatpush1.bf16.msra.mxu0 %v509
  %5259 = vmatprep.subr.bf16.mxu0 %v513
  %5260 = vmatpush1.bf16.msra.mxu0 %v512
  %5261 = vmatprep.subr.bf16.mxu0 0
  %5262 = vmatpush1.bf16.msra.mxu0 0
  %5263 = vmatprep.subr.bf16.mxu0 0
  %5264 = vmatpush1.bf16.msra.mxu0 0
  %5265 = vmatprep.subr.bf16.mxu0 0
  %5266 = vmatpush1.bf16.msra.mxu0 0
  %5267 = vmatprep.subr.bf16.mxu0 0
  %5268 = vmatpush1.bf16.msra.mxu0 0
  %5269 = vmatprep.subr.bf16.mxu0 0
  %5270 = vmatpush1.bf16.msra.mxu0 0
  %5271 = vmatprep.subr.bf16.mxu0 0
  %5272 = vmatpush1.bf16.msra.mxu0 0
  %5273 = vmatprep.subr.bf16.mxu0 0
  %5274 = vmatpush1.bf16.msra.mxu0 0
  %5275 = vmatprep.subr.bf16.mxu0 0
  %5276 = vmatpush1.bf16.msra.mxu0 0
  %5277 = vmatprep.mubr.bf16.mxu0 0
  %5278 = vmatmul.mubr.bf16.gmra.mrb[0].mxu0 %v5161
  %v5279 = vpop.f32.mrb[0].mxu0
  %v5280 = vadd.f32 0.0, %v5279
  %v5281 = vpop.f32.mrb[0].mxu0
  %v5282 = vadd.f32 0.0, %v5281
  %v5283 = vpop.f32.mrb[0].mxu0
  %v5284 = vpop.f32.mrb[0].mxu0
  %5285 = vdwg.mxu0
  %5286 = vmatprep.subr.bf16.mxu0 0
  %5287 = vmatpush1.bf16.msra.mxu0 %v493
  %5288 = vmatprep.subr.bf16.mxu0 0
  %5289 = vmatpush1.bf16.msra.mxu0 %v496
  %5290 = vmatprep.subr.bf16.mxu0 0
  %5291 = vmatpush1.bf16.msra.mxu0 %v499
  %5292 = vmatprep.subr.bf16.mxu0 0
  %5293 = vmatpush1.bf16.msra.mxu0 %v502
  %5294 = vmatprep.subr.bf16.mxu0 0
  %5295 = vmatpush1.bf16.msra.mxu0 %v505
  %5296 = vmatprep.subr.bf16.mxu0 0
  %5297 = vmatpush1.bf16.msra.mxu0 %v508
  %5298 = vmatprep.subr.bf16.mxu0 0
  %5299 = vmatpush1.bf16.msra.mxu0 %v511
  %5300 = vmatprep.subr.bf16.mxu0 0
  %5301 = vmatpush1.bf16.msra.mxu0 %v514
  %5302 = vmatprep.subr.bf16.mxu0 0
  %5303 = vmatpush1.bf16.msra.mxu0 0
  %5304 = vmatprep.subr.bf16.mxu0 0
  %5305 = vmatpush1.bf16.msra.mxu0 0
  %5306 = vmatprep.subr.bf16.mxu0 0
  %5307 = vmatpush1.bf16.msra.mxu0 0
  %5308 = vmatprep.subr.bf16.mxu0 0
  %5309 = vmatpush1.bf16.msra.mxu0 0
  %5310 = vmatprep.subr.bf16.mxu0 0
  %5311 = vmatpush1.bf16.msra.mxu0 0
  %5312 = vmatprep.subr.bf16.mxu0 0
  %5313 = vmatpush1.bf16.msra.mxu0 0
  %5314 = vmatprep.subr.bf16.mxu0 0
  %5315 = vmatpush1.bf16.msra.mxu0 0
  %5316 = vmatprep.subr.bf16.mxu0 0
  %5317 = vmatpush1.bf16.msra.mxu0 0
  %5318 = vmatprep.mubr.bf16.mxu0 0
  %5319 = vmatmul.mubr.bf16.gmra.mrb[0].mxu0 %v5161
  %v5320 = vpop.f32.mrb[0].mxu0
  %v5321 = vadd.f32 0.0, %v5320
  %v5322 = vpop.f32.mrb[0].mxu0
  %v5323 = vpop.f32.mrb[0].mxu0
  %v5324 = vpop.f32.mrb[0].mxu0
  %5325 = vdwg.mxu0
  %5326 = vmatprep.subr.bf16.mxu0 %v701
  %5327 = vmatpush1.bf16.msra.mxu0 %v700
  %5328 = vmatprep.subr.bf16.mxu0 %v704
  %5329 = vmatpush1.bf16.msra.mxu0 %v703
  %5330 = vmatprep.subr.bf16.mxu0 %v707
  %5331 = vmatpush1.bf16.msra.mxu0 %v706
  %5332 = vmatprep.subr.bf16.mxu0 %v710
  %5333 = vmatpush1.bf16.msra.mxu0 %v709
  %5334 = vmatprep.subr.bf16.mxu0 %v713
  %5335 = vmatpush1.bf16.msra.mxu0 %v712
  %5336 = vmatprep.subr.bf16.mxu0 %v716
  %5337 = vmatpush1.bf16.msra.mxu0 %v715
  %5338 = vmatprep.subr.bf16.mxu0 %v719
  %5339 = vmatpush1.bf16.msra.mxu0 %v718
  %5340 = vmatprep.subr.bf16.mxu0 %v722
  %5341 = vmatpush1.bf16.msra.mxu0 %v721
  %5342 = vmatprep.subr.bf16.mxu0 0
  %5343 = vmatpush1.bf16.msra.mxu0 0
  %5344 = vmatprep.subr.bf16.mxu0 0
  %5345 = vmatpush1.bf16.msra.mxu0 0
  %5346 = vmatprep.subr.bf16.mxu0 0
  %5347 = vmatpush1.bf16.msra.mxu0 0
  %5348 = vmatprep.subr.bf16.mxu0 0
  %5349 = vmatpush1.bf16.msra.mxu0 0
  %5350 = vmatprep.subr.bf16.mxu0 0
  %5351 = vmatpush1.bf16.msra.mxu0 0
  %5352 = vmatprep.subr.bf16.mxu0 0
  %5353 = vmatpush1.bf16.msra.mxu0 0
  %5354 = vmatprep.subr.bf16.mxu0 0
  %5355 = vmatpush1.bf16.msra.mxu0 0
  %5356 = vmatprep.subr.bf16.mxu0 0
  %5357 = vmatpush1.bf16.msra.mxu0 0
  %5358 = vmatprep.mubr.bf16.mxu0 0
  %5359 = vmatmul.mubr.bf16.gmra.mrb[0].mxu0 %v5162
  %v5360 = vpop.f32.mrb[0].mxu0
  %v5361 = vadd.f32 0.0, %v5360
  %v5362 = vpop.f32.mrb[0].mxu0
  %v5363 = vadd.f32 0.0, %v5362
  %v5364 = vpop.f32.mrb[0].mxu0
  %v5365 = vpop.f32.mrb[0].mxu0
  %5366 = vdwg.mxu0
  %5367 = vmatprep.subr.bf16.mxu0 0
  %5368 = vmatpush1.bf16.msra.mxu0 %v702
  %5369 = vmatprep.subr.bf16.mxu0 0
  %5370 = vmatpush1.bf16.msra.mxu0 %v705
  %5371 = vmatprep.subr.bf16.mxu0 0
  %5372 = vmatpush1.bf16.msra.mxu0 %v708
  %5373 = vmatprep.subr.bf16.mxu0 0
  %5374 = vmatpush1.bf16.msra.mxu0 %v711
  %5375 = vmatprep.subr.bf16.mxu0 0
  %5376 = vmatpush1.bf16.msra.mxu0 %v714
  %5377 = vmatprep.subr.bf16.mxu0 0
  %5378 = vmatpush1.bf16.msra.mxu0 %v717
  %5379 = vmatprep.subr.bf16.mxu0 0
  %5380 = vmatpush1.bf16.msra.mxu0 %v720
  %5381 = vmatprep.subr.bf16.mxu0 0
  %5382 = vmatpush1.bf16.msra.mxu0 %v723
  %5383 = vmatprep.subr.bf16.mxu0 0
  %5384 = vmatpush1.bf16.msra.mxu0 0
  %5385 = vmatprep.subr.bf16.mxu0 0
  %5386 = vmatpush1.bf16.msra.mxu0 0
  %5387 = vmatprep.subr.bf16.mxu0 0
  %5388 = vmatpush1.bf16.msra.mxu0 0
  %5389 = vmatprep.subr.bf16.mxu0 0
  %5390 = vmatpush1.bf16.msra.mxu0 0
  %5391 = vmatprep.subr.bf16.mxu0 0
  %5392 = vmatpush1.bf16.msra.mxu0 0
  %5393 = vmatprep.subr.bf16.mxu0 0
  %5394 = vmatpush1.bf16.msra.mxu0 0
  %5395 = vmatprep.subr.bf16.mxu0 0
  %5396 = vmatpush1.bf16.msra.mxu0 0
  %5397 = vmatprep.subr.bf16.mxu0 0
  %5398 = vmatpush1.bf16.msra.mxu0 0
  %5399 = vmatprep.mubr.bf16.mxu0 0
  %5400 = vmatmul.mubr.bf16.gmra.mrb[0].mxu0 %v5162
  %v5401 = vpop.f32.mrb[0].mxu0
  %v5402 = vadd.f32 0.0, %v5401
  %v5403 = vpop.f32.mrb[0].mxu0
  %v5404 = vpop.f32.mrb[0].mxu0
  %v5405 = vpop.f32.mrb[0].mxu0
  %5406 = vdwg.mxu0
  %5407 = vmatprep.subr.bf16.mxu0 %v910
  %5408 = vmatpush1.bf16.msra.mxu0 %v909
  %5409 = vmatprep.subr.bf16.mxu0 %v913
  %5410 = vmatpush1.bf16.msra.mxu0 %v912
  %5411 = vmatprep.subr.bf16.mxu0 %v916
  %5412 = vmatpush1.bf16.msra.mxu0 %v915
  %5413 = vmatprep.subr.bf16.mxu0 %v919
  %5414 = vmatpush1.bf16.msra.mxu0 %v918
  %5415 = vmatprep.subr.bf16.mxu0 %v922
  %5416 = vmatpush1.bf16.msra.mxu0 %v921
  %5417 = vmatprep.subr.bf16.mxu0 %v925
  %5418 = vmatpush1.bf16.msra.mxu0 %v924
  %5419 = vmatprep.subr.bf16.mxu0 %v928
  %5420 = vmatpush1.bf16.msra.mxu0 %v927
  %5421 = vmatprep.subr.bf16.mxu0 %v931
  %5422 = vmatpush1.bf16.msra.mxu0 %v930
  %5423 = vmatprep.subr.bf16.mxu0 0
  %5424 = vmatpush1.bf16.msra.mxu0 0
  %5425 = vmatprep.subr.bf16.mxu0 0
  %5426 = vmatpush1.bf16.msra.mxu0 0
  %5427 = vmatprep.subr.bf16.mxu0 0
  %5428 = vmatpush1.bf16.msra.mxu0 0
  %5429 = vmatprep.subr.bf16.mxu0 0
  %5430 = vmatpush1.bf16.msra.mxu0 0
  %5431 = vmatprep.subr.bf16.mxu0 0
  %5432 = vmatpush1.bf16.msra.mxu0 0
  %5433 = vmatprep.subr.bf16.mxu0 0
  %5434 = vmatpush1.bf16.msra.mxu0 0
  %5435 = vmatprep.subr.bf16.mxu0 0
  %5436 = vmatpush1.bf16.msra.mxu0 0
  %5437 = vmatprep.subr.bf16.mxu0 0
  %5438 = vmatpush1.bf16.msra.mxu0 0
  %5439 = vmatprep.mubr.bf16.mxu0 0
  %5440 = vmatmul.mubr.bf16.gmra.mrb[0].mxu0 %v5163
  %v5441 = vpop.f32.mrb[0].mxu0
  %v5442 = vadd.f32 0.0, %v5441
  %v5443 = vpop.f32.mrb[0].mxu0
  %v5444 = vadd.f32 0.0, %v5443
  %v5445 = vpop.f32.mrb[0].mxu0
  %v5446 = vpop.f32.mrb[0].mxu0
  %5447 = vdwg.mxu0
  %5448 = vmatprep.subr.bf16.mxu0 0
  %5449 = vmatpush1.bf16.msra.mxu0 %v911
  %5450 = vmatprep.subr.bf16.mxu0 0
  %5451 = vmatpush1.bf16.msra.mxu0 %v914
  %5452 = vmatprep.subr.bf16.mxu0 0
  %5453 = vmatpush1.bf16.msra.mxu0 %v917
  %5454 = vmatprep.subr.bf16.mxu0 0
  %5455 = vmatpush1.bf16.msra.mxu0 %v920
  %5456 = vmatprep.subr.bf16.mxu0 0
  %5457 = vmatpush1.bf16.msra.mxu0 %v923
  %5458 = vmatprep.subr.bf16.mxu0 0
  %5459 = vmatpush1.bf16.msra.mxu0 %v926
  %5460 = vmatprep.subr.bf16.mxu0 0
  %5461 = vmatpush1.bf16.msra.mxu0 %v929
  %5462 = vmatprep.subr.bf16.mxu0 0
  %5463 = vmatpush1.bf16.msra.mxu0 %v932
  %5464 = vmatprep.subr.bf16.mxu0 0
  %5465 = vmatpush1.bf16.msra.mxu0 0
  %5466 = vmatprep.subr.bf16.mxu0 0
  %5467 = vmatpush1.bf16.msra.mxu0 0
  %5468 = vmatprep.subr.bf16.mxu0 0
  %5469 = vmatpush1.bf16.msra.mxu0 0
  %5470 = vmatprep.subr.bf16.mxu0 0
  %5471 = vmatpush1.bf16.msra.mxu0 0
  %5472 = vmatprep.subr.bf16.mxu0 0
  %5473 = vmatpush1.bf16.msra.mxu0 0
  %5474 = vmatprep.subr.bf16.mxu0 0
  %5475 = vmatpush1.bf16.msra.mxu0 0
  %5476 = vmatprep.subr.bf16.mxu0 0
  %5477 = vmatpush1.bf16.msra.mxu0 0
  %5478 = vmatprep.subr.bf16.mxu0 0
  %5479 = vmatpush1.bf16.msra.mxu0 0
  %5480 = vmatprep.mubr.bf16.mxu0 0
  %5481 = vmatmul.mubr.bf16.gmra.mrb[0].mxu0 %v5163
  %v5482 = vpop.f32.mrb[0].mxu0
  %v5483 = vadd.f32 0.0, %v5482
  %v5484 = vpop.f32.mrb[0].mxu0
  %v5485 = vpop.f32.mrb[0].mxu0
  %v5486 = vpop.f32.mrb[0].mxu0
  %5487 = vdwg.mxu0
  %v5488 = vunpack.c.l.bf16 %v5152
  %v5489 = vunpack.c.h.bf16 %v5152
  %v5490 = vunpack.c.l.bf16 %v5154
  %v5491 = vunpack.c.h.bf16 %v5154
  %v5492 = vunpack.c.l.bf16 %v5156
  %v5493 = vunpack.c.h.bf16 %v5156
  %v5494 = vunpack.c.l.bf16 %v5158
  %v5495 = vunpack.c.h.bf16 %v5158
  %v5496 = vadd.f32 %v5488, %v5199
  %v5497 = vadd.f32 %v5489, %v5201
  %v5498 = vadd.f32 %v5490, %v5280
  %v5499 = vadd.f32 %v5491, %v5282
  %v5500 = vadd.f32 %v5492, %v5361
  %v5501 = vadd.f32 %v5493, %v5363
  %v5502 = vadd.f32 %v5494, %v5442
  %v5503 = vadd.f32 %v5495, %v5444
  %v5504 = vxor.u32 %v5496, 2147483648
  %v5505 = vxor.u32 %v5497, 2147483648
  %v5506 = vxor.u32 %v5498, 2147483648
  %v5507 = vxor.u32 %v5499, 2147483648
  %v5508 = vxor.u32 %v5500, 2147483648
  %v5509 = vxor.u32 %v5501, 2147483648
  %v5510 = vxor.u32 %v5502, 2147483648
  %v5511 = vxor.u32 %v5503, 2147483648
  %v5512 = vmul.f32 %v5504, 1.442695
  %v5513 = vpow.pop %v5512
  %v5514 = vmul.f32 %v5505, 1.442695
  %v5515 = vpow.pop %v5514
  %v5516 = vmul.f32 %v5506, 1.442695
  %v5517 = vpow.pop %v5516
  %v5518 = vmul.f32 %v5507, 1.442695
  %v5519 = vpow.pop %v5518
  %v5520 = vmul.f32 %v5508, 1.442695
  %v5521 = vpow.pop %v5520
  %v5522 = vmul.f32 %v5509, 1.442695
  %v5523 = vpow.pop %v5522
  %v5524 = vmul.f32 %v5510, 1.442695
  %v5525 = vpow.pop %v5524
  %v5526 = vmul.f32 %v5511, 1.442695
  %v5527 = vpow.pop %v5526
  %v5528 = vadd.f32 %v5513, 1.0
  %v5529 = vadd.f32 %v5515, 1.0
  %v5530 = vadd.f32 %v5517, 1.0
  %v5531 = vadd.f32 %v5519, 1.0
  %v5532 = vadd.f32 %v5521, 1.0
  %v5533 = vadd.f32 %v5523, 1.0
  %v5534 = vadd.f32 %v5525, 1.0
  %v5535 = vadd.f32 %v5527, 1.0
  %v5536 = vrcp.pop %v5528
  %v5537 = vmul.f32 1.0, %v5536
  %v5538 = vrcp.pop %v5529
  %v5539 = vmul.f32 1.0, %v5538
  %v5540 = vrcp.pop %v5530
  %v5541 = vmul.f32 1.0, %v5540
  %v5542 = vrcp.pop %v5531
  %v5543 = vmul.f32 1.0, %v5542
  %v5544 = vrcp.pop %v5532
  %v5545 = vmul.f32 1.0, %v5544
  %v5546 = vrcp.pop %v5533
  %v5547 = vmul.f32 1.0, %v5546
  %v5548 = vrcp.pop %v5534
  %v5549 = vmul.f32 1.0, %v5548
  %v5550 = vrcp.pop %v5535
  %v5551 = vmul.f32 1.0, %v5550
  %v5552 = vadd.f32 %v5240, %v165
  %v5553 = vadd.f32 %v5321, %v169
  %v5554 = vadd.f32 %v5402, %v173
  %v5555 = vadd.f32 %v5483, %v177
  %v5556 = vmul.f32 %v5537, %v5552
  %v5557 = vmul.f32 %v5541, %v5553
  %v5558 = vmul.f32 %v5545, %v5554
  %v5559 = vmul.f32 %v5549, %v5555
  %v5560 = vunpack.c.l.bf16 %v5153
  %v5561 = vunpack.c.l.bf16 %v5155
  %v5562 = vunpack.c.l.bf16 %v5157
  %v5563 = vunpack.c.l.bf16 %v5159
  %v5564 = vadd.f32 %v5560, %v5556
  %v5565 = vadd.f32 %v5561, %v5557
  %v5566 = vadd.f32 %v5562, %v5558
  %v5567 = vadd.f32 %v5563, %v5559
  %v5568 = vtanh.pop %v5564
  %v5569 = vtanh.pop %v5565
  %v5570 = vtanh.pop %v5566
  %v5571 = vtanh.pop %v5567
  %v5572 = vsub.f32 1.0, %v5539
  %v5573 = vsub.f32 1.0, %v5543
  %v5574 = vsub.f32 1.0, %v5547
  %v5575 = vsub.f32 1.0, %v5551
  %v5576 = vsub.f32 %v5568, %v5147
  %v5577 = vsub.f32 %v5569, %v5148
  %v5578 = vsub.f32 %v5570, %v5149
  %v5579 = vsub.f32 %v5571, %v5150
  %v5580 = vmul.f32 %v5572, %v5576
  %v5581 = vmul.f32 %v5573, %v5577
  %v5582 = vmul.f32 %v5574, %v5578
  %v5583 = vmul.f32 %v5575, %v5579
  %vm5584 = vcmp.gt.s32.totalorder %v182, 10
  %vm5585 = vcmp.gt.s32.totalorder %v183, 10
  %vm5586 = vcmp.gt.s32.totalorder %v184, 10
  %vm5587 = vcmp.gt.s32.totalorder %v185, 10
  %v5588 = vsel %vm5584, %v5580, 0.0
  %v5589 = vsel %vm5585, %v5581, 0.0
  %v5590 = vsel %vm5586, %v5582, 0.0
  %v5591 = vsel %vm5587, %v5583, 0.0
  %v5592 = vadd.f32 %v5147, %v5588
  %v5593 = vadd.f32 %v5148, %v5589
  %v5594 = vadd.f32 %v5149, %v5590
  %v5595 = vadd.f32 %v5150, %v5591
  %s5596 = scalar_lea.vmem %s0, 528
  %v5597 = vld [vmem:[%s5596] sm:$0xff]
  %v5598 = vld [vmem:[%s5596 + $0x8] sm:$0xf]
  %v5599 = vld [vmem:[%s5596 + $0xc] sm:$0xff]
  %v5600 = vld [vmem:[%s5596 + $0x14] sm:$0xf]
  %v5601 = vld [vmem:[%s5596 + $0x18] sm:$0xff]
  %v5602 = vld [vmem:[%s5596 + $0x20] sm:$0xf]
  %v5603 = vld [vmem:[%s5596 + $0x24] sm:$0xff]
  %v5604 = vld [vmem:[%s5596 + $0x2c] sm:$0xf]
  %v5605 = vpack.c.bf16 %v5592, %v5592
  %v5606 = vpack.c.bf16 %v5593, %v5593
  %v5607 = vpack.c.bf16 %v5594, %v5594
  %v5608 = vpack.c.bf16 %v5595, %v5595
  %5609 = vmatprep.subr.bf16.mxu0 %v283
  %5610 = vmatpush1.bf16.msra.mxu0 %v282
  %5611 = vmatprep.subr.bf16.mxu0 %v286
  %5612 = vmatpush1.bf16.msra.mxu0 %v285
  %5613 = vmatprep.subr.bf16.mxu0 %v289
  %5614 = vmatpush1.bf16.msra.mxu0 %v288
  %5615 = vmatprep.subr.bf16.mxu0 %v292
  %5616 = vmatpush1.bf16.msra.mxu0 %v291
  %5617 = vmatprep.subr.bf16.mxu0 %v295
  %5618 = vmatpush1.bf16.msra.mxu0 %v294
  %5619 = vmatprep.subr.bf16.mxu0 %v298
  %5620 = vmatpush1.bf16.msra.mxu0 %v297
  %5621 = vmatprep.subr.bf16.mxu0 %v301
  %5622 = vmatpush1.bf16.msra.mxu0 %v300
  %5623 = vmatprep.subr.bf16.mxu0 %v304
  %5624 = vmatpush1.bf16.msra.mxu0 %v303
  %5625 = vmatprep.subr.bf16.mxu0 0
  %5626 = vmatpush1.bf16.msra.mxu0 0
  %5627 = vmatprep.subr.bf16.mxu0 0
  %5628 = vmatpush1.bf16.msra.mxu0 0
  %5629 = vmatprep.subr.bf16.mxu0 0
  %5630 = vmatpush1.bf16.msra.mxu0 0
  %5631 = vmatprep.subr.bf16.mxu0 0
  %5632 = vmatpush1.bf16.msra.mxu0 0
  %5633 = vmatprep.subr.bf16.mxu0 0
  %5634 = vmatpush1.bf16.msra.mxu0 0
  %5635 = vmatprep.subr.bf16.mxu0 0
  %5636 = vmatpush1.bf16.msra.mxu0 0
  %5637 = vmatprep.subr.bf16.mxu0 0
  %5638 = vmatpush1.bf16.msra.mxu0 0
  %5639 = vmatprep.subr.bf16.mxu0 0
  %5640 = vmatpush1.bf16.msra.mxu0 0
  %5641 = vmatprep.mubr.bf16.mxu0 0
  %5642 = vmatmul.mubr.bf16.gmra.mrb[0].mxu0 %v5605
  %v5643 = vpop.f32.mrb[0].mxu0
  %v5644 = vadd.f32 0.0, %v5643
  %v5645 = vpop.f32.mrb[0].mxu0
  %v5646 = vadd.f32 0.0, %v5645
  %v5647 = vpop.f32.mrb[0].mxu0
  %v5648 = vpop.f32.mrb[0].mxu0
  %5649 = vdwg.mxu0
  %5650 = vmatprep.subr.bf16.mxu0 0
  %5651 = vmatpush1.bf16.msra.mxu0 %v284
  %5652 = vmatprep.subr.bf16.mxu0 0
  %5653 = vmatpush1.bf16.msra.mxu0 %v287
  %5654 = vmatprep.subr.bf16.mxu0 0
  %5655 = vmatpush1.bf16.msra.mxu0 %v290
  %5656 = vmatprep.subr.bf16.mxu0 0
  %5657 = vmatpush1.bf16.msra.mxu0 %v293
  %5658 = vmatprep.subr.bf16.mxu0 0
  %5659 = vmatpush1.bf16.msra.mxu0 %v296
  %5660 = vmatprep.subr.bf16.mxu0 0
  %5661 = vmatpush1.bf16.msra.mxu0 %v299
  %5662 = vmatprep.subr.bf16.mxu0 0
  %5663 = vmatpush1.bf16.msra.mxu0 %v302
  %5664 = vmatprep.subr.bf16.mxu0 0
  %5665 = vmatpush1.bf16.msra.mxu0 %v305
  %5666 = vmatprep.subr.bf16.mxu0 0
  %5667 = vmatpush1.bf16.msra.mxu0 0
  %5668 = vmatprep.subr.bf16.mxu0 0
  %5669 = vmatpush1.bf16.msra.mxu0 0
  %5670 = vmatprep.subr.bf16.mxu0 0
  %5671 = vmatpush1.bf16.msra.mxu0 0
  %5672 = vmatprep.subr.bf16.mxu0 0
  %5673 = vmatpush1.bf16.msra.mxu0 0
  %5674 = vmatprep.subr.bf16.mxu0 0
  %5675 = vmatpush1.bf16.msra.mxu0 0
  %5676 = vmatprep.subr.bf16.mxu0 0
  %5677 = vmatpush1.bf16.msra.mxu0 0
  %5678 = vmatprep.subr.bf16.mxu0 0
  %5679 = vmatpush1.bf16.msra.mxu0 0
  %5680 = vmatprep.subr.bf16.mxu0 0
  %5681 = vmatpush1.bf16.msra.mxu0 0
  %5682 = vmatprep.mubr.bf16.mxu0 0
  %5683 = vmatmul.mubr.bf16.gmra.mrb[0].mxu0 %v5605
  %v5684 = vpop.f32.mrb[0].mxu0
  %v5685 = vadd.f32 0.0, %v5684
  %v5686 = vpop.f32.mrb[0].mxu0
  %v5687 = vpop.f32.mrb[0].mxu0
  %v5688 = vpop.f32.mrb[0].mxu0
  %5689 = vdwg.mxu0
  %5690 = vmatprep.subr.bf16.mxu0 %v492
  %5691 = vmatpush1.bf16.msra.mxu0 %v491
  %5692 = vmatprep.subr.bf16.mxu0 %v495
  %5693 = vmatpush1.bf16.msra.mxu0 %v494
  %5694 = vmatprep.subr.bf16.mxu0 %v498
  %5695 = vmatpush1.bf16.msra.mxu0 %v497
  %5696 = vmatprep.subr.bf16.mxu0 %v501
  %5697 = vmatpush1.bf16.msra.mxu0 %v500
  %5698 = vmatprep.subr.bf16.mxu0 %v504
  %5699 = vmatpush1.bf16.msra.mxu0 %v503
  %5700 = vmatprep.subr.bf16.mxu0 %v507
  %5701 = vmatpush1.bf16.msra.mxu0 %v506
  %5702 = vmatprep.subr.bf16.mxu0 %v510
  %5703 = vmatpush1.bf16.msra.mxu0 %v509
  %5704 = vmatprep.subr.bf16.mxu0 %v513
  %5705 = vmatpush1.bf16.msra.mxu0 %v512
  %5706 = vmatprep.subr.bf16.mxu0 0
  %5707 = vmatpush1.bf16.msra.mxu0 0
  %5708 = vmatprep.subr.bf16.mxu0 0
  %5709 = vmatpush1.bf16.msra.mxu0 0
  %5710 = vmatprep.subr.bf16.mxu0 0
  %5711 = vmatpush1.bf16.msra.mxu0 0
  %5712 = vmatprep.subr.bf16.mxu0 0
  %5713 = vmatpush1.bf16.msra.mxu0 0
  %5714 = vmatprep.subr.bf16.mxu0 0
  %5715 = vmatpush1.bf16.msra.mxu0 0
  %5716 = vmatprep.subr.bf16.mxu0 0
  %5717 = vmatpush1.bf16.msra.mxu0 0
  %5718 = vmatprep.subr.bf16.mxu0 0
  %5719 = vmatpush1.bf16.msra.mxu0 0
  %5720 = vmatprep.subr.bf16.mxu0 0
  %5721 = vmatpush1.bf16.msra.mxu0 0
  %5722 = vmatprep.mubr.bf16.mxu0 0
  %5723 = vmatmul.mubr.bf16.gmra.mrb[0].mxu0 %v5606
  %v5724 = vpop.f32.mrb[0].mxu0
  %v5725 = vadd.f32 0.0, %v5724
  %v5726 = vpop.f32.mrb[0].mxu0
  %v5727 = vadd.f32 0.0, %v5726
  %v5728 = vpop.f32.mrb[0].mxu0
  %v5729 = vpop.f32.mrb[0].mxu0
  %5730 = vdwg.mxu0
  %5731 = vmatprep.subr.bf16.mxu0 0
  %5732 = vmatpush1.bf16.msra.mxu0 %v493
  %5733 = vmatprep.subr.bf16.mxu0 0
  %5734 = vmatpush1.bf16.msra.mxu0 %v496
  %5735 = vmatprep.subr.bf16.mxu0 0
  %5736 = vmatpush1.bf16.msra.mxu0 %v499
  %5737 = vmatprep.subr.bf16.mxu0 0
  %5738 = vmatpush1.bf16.msra.mxu0 %v502
  %5739 = vmatprep.subr.bf16.mxu0 0
  %5740 = vmatpush1.bf16.msra.mxu0 %v505
  %5741 = vmatprep.subr.bf16.mxu0 0
  %5742 = vmatpush1.bf16.msra.mxu0 %v508
  %5743 = vmatprep.subr.bf16.mxu0 0
  %5744 = vmatpush1.bf16.msra.mxu0 %v511
  %5745 = vmatprep.subr.bf16.mxu0 0
  %5746 = vmatpush1.bf16.msra.mxu0 %v514
  %5747 = vmatprep.subr.bf16.mxu0 0
  %5748 = vmatpush1.bf16.msra.mxu0 0
  %5749 = vmatprep.subr.bf16.mxu0 0
  %5750 = vmatpush1.bf16.msra.mxu0 0
  %5751 = vmatprep.subr.bf16.mxu0 0
  %5752 = vmatpush1.bf16.msra.mxu0 0
  %5753 = vmatprep.subr.bf16.mxu0 0
  %5754 = vmatpush1.bf16.msra.mxu0 0
  %5755 = vmatprep.subr.bf16.mxu0 0
  %5756 = vmatpush1.bf16.msra.mxu0 0
  %5757 = vmatprep.subr.bf16.mxu0 0
  %5758 = vmatpush1.bf16.msra.mxu0 0
  %5759 = vmatprep.subr.bf16.mxu0 0
  %5760 = vmatpush1.bf16.msra.mxu0 0
  %5761 = vmatprep.subr.bf16.mxu0 0
  %5762 = vmatpush1.bf16.msra.mxu0 0
  %5763 = vmatprep.mubr.bf16.mxu0 0
  %5764 = vmatmul.mubr.bf16.gmra.mrb[0].mxu0 %v5606
  %v5765 = vpop.f32.mrb[0].mxu0
  %v5766 = vadd.f32 0.0, %v5765
  %v5767 = vpop.f32.mrb[0].mxu0
  %v5768 = vpop.f32.mrb[0].mxu0
  %v5769 = vpop.f32.mrb[0].mxu0
  %5770 = vdwg.mxu0
  %5771 = vmatprep.subr.bf16.mxu0 %v701
  %5772 = vmatpush1.bf16.msra.mxu0 %v700
  %5773 = vmatprep.subr.bf16.mxu0 %v704
  %5774 = vmatpush1.bf16.msra.mxu0 %v703
  %5775 = vmatprep.subr.bf16.mxu0 %v707
  %5776 = vmatpush1.bf16.msra.mxu0 %v706
  %5777 = vmatprep.subr.bf16.mxu0 %v710
  %5778 = vmatpush1.bf16.msra.mxu0 %v709
  %5779 = vmatprep.subr.bf16.mxu0 %v713
  %5780 = vmatpush1.bf16.msra.mxu0 %v712
  %5781 = vmatprep.subr.bf16.mxu0 %v716
  %5782 = vmatpush1.bf16.msra.mxu0 %v715
  %5783 = vmatprep.subr.bf16.mxu0 %v719
  %5784 = vmatpush1.bf16.msra.mxu0 %v718
  %5785 = vmatprep.subr.bf16.mxu0 %v722
  %5786 = vmatpush1.bf16.msra.mxu0 %v721
  %5787 = vmatprep.subr.bf16.mxu0 0
  %5788 = vmatpush1.bf16.msra.mxu0 0
  %5789 = vmatprep.subr.bf16.mxu0 0
  %5790 = vmatpush1.bf16.msra.mxu0 0
  %5791 = vmatprep.subr.bf16.mxu0 0
  %5792 = vmatpush1.bf16.msra.mxu0 0
  %5793 = vmatprep.subr.bf16.mxu0 0
  %5794 = vmatpush1.bf16.msra.mxu0 0
  %5795 = vmatprep.subr.bf16.mxu0 0
  %5796 = vmatpush1.bf16.msra.mxu0 0
  %5797 = vmatprep.subr.bf16.mxu0 0
  %5798 = vmatpush1.bf16.msra.mxu0 0
  %5799 = vmatprep.subr.bf16.mxu0 0
  %5800 = vmatpush1.bf16.msra.mxu0 0
  %5801 = vmatprep.subr.bf16.mxu0 0
  %5802 = vmatpush1.bf16.msra.mxu0 0
  %5803 = vmatprep.mubr.bf16.mxu0 0
  %5804 = vmatmul.mubr.bf16.gmra.mrb[0].mxu0 %v5607
  %v5805 = vpop.f32.mrb[0].mxu0
  %v5806 = vadd.f32 0.0, %v5805
  %v5807 = vpop.f32.mrb[0].mxu0
  %v5808 = vadd.f32 0.0, %v5807
  %v5809 = vpop.f32.mrb[0].mxu0
  %v5810 = vpop.f32.mrb[0].mxu0
  %5811 = vdwg.mxu0
  %5812 = vmatprep.subr.bf16.mxu0 0
  %5813 = vmatpush1.bf16.msra.mxu0 %v702
  %5814 = vmatprep.subr.bf16.mxu0 0
  %5815 = vmatpush1.bf16.msra.mxu0 %v705
  %5816 = vmatprep.subr.bf16.mxu0 0
  %5817 = vmatpush1.bf16.msra.mxu0 %v708
  %5818 = vmatprep.subr.bf16.mxu0 0
  %5819 = vmatpush1.bf16.msra.mxu0 %v711
  %5820 = vmatprep.subr.bf16.mxu0 0
  %5821 = vmatpush1.bf16.msra.mxu0 %v714
  %5822 = vmatprep.subr.bf16.mxu0 0
  %5823 = vmatpush1.bf16.msra.mxu0 %v717
  %5824 = vmatprep.subr.bf16.mxu0 0
  %5825 = vmatpush1.bf16.msra.mxu0 %v720
  %5826 = vmatprep.subr.bf16.mxu0 0
  %5827 = vmatpush1.bf16.msra.mxu0 %v723
  %5828 = vmatprep.subr.bf16.mxu0 0
  %5829 = vmatpush1.bf16.msra.mxu0 0
  %5830 = vmatprep.subr.bf16.mxu0 0
  %5831 = vmatpush1.bf16.msra.mxu0 0
  %5832 = vmatprep.subr.bf16.mxu0 0
  %5833 = vmatpush1.bf16.msra.mxu0 0
  %5834 = vmatprep.subr.bf16.mxu0 0
  %5835 = vmatpush1.bf16.msra.mxu0 0
  %5836 = vmatprep.subr.bf16.mxu0 0
  %5837 = vmatpush1.bf16.msra.mxu0 0
  %5838 = vmatprep.subr.bf16.mxu0 0
  %5839 = vmatpush1.bf16.msra.mxu0 0
  %5840 = vmatprep.subr.bf16.mxu0 0
  %5841 = vmatpush1.bf16.msra.mxu0 0
  %5842 = vmatprep.subr.bf16.mxu0 0
  %5843 = vmatpush1.bf16.msra.mxu0 0
  %5844 = vmatprep.mubr.bf16.mxu0 0
  %5845 = vmatmul.mubr.bf16.gmra.mrb[0].mxu0 %v5607
  %v5846 = vpop.f32.mrb[0].mxu0
  %v5847 = vadd.f32 0.0, %v5846
  %v5848 = vpop.f32.mrb[0].mxu0
  %v5849 = vpop.f32.mrb[0].mxu0
  %v5850 = vpop.f32.mrb[0].mxu0
  %5851 = vdwg.mxu0
  %5852 = vmatprep.subr.bf16.mxu0 %v910
  %5853 = vmatpush1.bf16.msra.mxu0 %v909
  %5854 = vmatprep.subr.bf16.mxu0 %v913
  %5855 = vmatpush1.bf16.msra.mxu0 %v912
  %5856 = vmatprep.subr.bf16.mxu0 %v916
  %5857 = vmatpush1.bf16.msra.mxu0 %v915
  %5858 = vmatprep.subr.bf16.mxu0 %v919
  %5859 = vmatpush1.bf16.msra.mxu0 %v918
  %5860 = vmatprep.subr.bf16.mxu0 %v922
  %5861 = vmatpush1.bf16.msra.mxu0 %v921
  %5862 = vmatprep.subr.bf16.mxu0 %v925
  %5863 = vmatpush1.bf16.msra.mxu0 %v924
  %5864 = vmatprep.subr.bf16.mxu0 %v928
  %5865 = vmatpush1.bf16.msra.mxu0 %v927
  %5866 = vmatprep.subr.bf16.mxu0 %v931
  %5867 = vmatpush1.bf16.msra.mxu0 %v930
  %5868 = vmatprep.subr.bf16.mxu0 0
  %5869 = vmatpush1.bf16.msra.mxu0 0
  %5870 = vmatprep.subr.bf16.mxu0 0
  %5871 = vmatpush1.bf16.msra.mxu0 0
  %5872 = vmatprep.subr.bf16.mxu0 0
  %5873 = vmatpush1.bf16.msra.mxu0 0
  %5874 = vmatprep.subr.bf16.mxu0 0
  %5875 = vmatpush1.bf16.msra.mxu0 0
  %5876 = vmatprep.subr.bf16.mxu0 0
  %5877 = vmatpush1.bf16.msra.mxu0 0
  %5878 = vmatprep.subr.bf16.mxu0 0
  %5879 = vmatpush1.bf16.msra.mxu0 0
  %5880 = vmatprep.subr.bf16.mxu0 0
  %5881 = vmatpush1.bf16.msra.mxu0 0
  %5882 = vmatprep.subr.bf16.mxu0 0
  %5883 = vmatpush1.bf16.msra.mxu0 0
  %5884 = vmatprep.mubr.bf16.mxu0 0
  %5885 = vmatmul.mubr.bf16.gmra.mrb[0].mxu0 %v5608
  %v5886 = vpop.f32.mrb[0].mxu0
  %v5887 = vadd.f32 0.0, %v5886
  %v5888 = vpop.f32.mrb[0].mxu0
  %v5889 = vadd.f32 0.0, %v5888
  %v5890 = vpop.f32.mrb[0].mxu0
  %v5891 = vpop.f32.mrb[0].mxu0
  %5892 = vdwg.mxu0
  %5893 = vmatprep.subr.bf16.mxu0 0
  %5894 = vmatpush1.bf16.msra.mxu0 %v911
  %5895 = vmatprep.subr.bf16.mxu0 0
  %5896 = vmatpush1.bf16.msra.mxu0 %v914
  %5897 = vmatprep.subr.bf16.mxu0 0
  %5898 = vmatpush1.bf16.msra.mxu0 %v917
  %5899 = vmatprep.subr.bf16.mxu0 0
  %5900 = vmatpush1.bf16.msra.mxu0 %v920
  %5901 = vmatprep.subr.bf16.mxu0 0
  %5902 = vmatpush1.bf16.msra.mxu0 %v923
  %5903 = vmatprep.subr.bf16.mxu0 0
  %5904 = vmatpush1.bf16.msra.mxu0 %v926
  %5905 = vmatprep.subr.bf16.mxu0 0
  %5906 = vmatpush1.bf16.msra.mxu0 %v929
  %5907 = vmatprep.subr.bf16.mxu0 0
  %5908 = vmatpush1.bf16.msra.mxu0 %v932
  %5909 = vmatprep.subr.bf16.mxu0 0
  %5910 = vmatpush1.bf16.msra.mxu0 0
  %5911 = vmatprep.subr.bf16.mxu0 0
  %5912 = vmatpush1.bf16.msra.mxu0 0
  %5913 = vmatprep.subr.bf16.mxu0 0
  %5914 = vmatpush1.bf16.msra.mxu0 0
  %5915 = vmatprep.subr.bf16.mxu0 0
  %5916 = vmatpush1.bf16.msra.mxu0 0
  %5917 = vmatprep.subr.bf16.mxu0 0
  %5918 = vmatpush1.bf16.msra.mxu0 0
  %5919 = vmatprep.subr.bf16.mxu0 0
  %5920 = vmatpush1.bf16.msra.mxu0 0
  %5921 = vmatprep.subr.bf16.mxu0 0
  %5922 = vmatpush1.bf16.msra.mxu0 0
  %5923 = vmatprep.subr.bf16.mxu0 0
  %5924 = vmatpush1.bf16.msra.mxu0 0
  %5925 = vmatprep.mubr.bf16.mxu0 0
  %5926 = vmatmul.mubr.bf16.gmra.mrb[0].mxu0 %v5608
  %v5927 = vpop.f32.mrb[0].mxu0
  %v5928 = vadd.f32 0.0, %v5927
  %v5929 = vpop.f32.mrb[0].mxu0
  %v5930 = vpop.f32.mrb[0].mxu0
  %v5931 = vpop.f32.mrb[0].mxu0
  %5932 = vdwg.mxu0
  %v5933 = vunpack.c.l.bf16 %v5597
  %v5934 = vunpack.c.h.bf16 %v5597
  %v5935 = vunpack.c.l.bf16 %v5599
  %v5936 = vunpack.c.h.bf16 %v5599
  %v5937 = vunpack.c.l.bf16 %v5601
  %v5938 = vunpack.c.h.bf16 %v5601
  %v5939 = vunpack.c.l.bf16 %v5603
  %v5940 = vunpack.c.h.bf16 %v5603
  %v5941 = vadd.f32 %v5933, %v5644
  %v5942 = vadd.f32 %v5934, %v5646
  %v5943 = vadd.f32 %v5935, %v5725
  %v5944 = vadd.f32 %v5936, %v5727
  %v5945 = vadd.f32 %v5937, %v5806
  %v5946 = vadd.f32 %v5938, %v5808
  %v5947 = vadd.f32 %v5939, %v5887
  %v5948 = vadd.f32 %v5940, %v5889
  %v5949 = vxor.u32 %v5941, 2147483648
  %v5950 = vxor.u32 %v5942, 2147483648
  %v5951 = vxor.u32 %v5943, 2147483648
  %v5952 = vxor.u32 %v5944, 2147483648
  %v5953 = vxor.u32 %v5945, 2147483648
  %v5954 = vxor.u32 %v5946, 2147483648
  %v5955 = vxor.u32 %v5947, 2147483648
  %v5956 = vxor.u32 %v5948, 2147483648
  %v5957 = vmul.f32 %v5949, 1.442695
  %v5958 = vpow.pop %v5957
  %v5959 = vmul.f32 %v5950, 1.442695
  %v5960 = vpow.pop %v5959
  %v5961 = vmul.f32 %v5951, 1.442695
  %v5962 = vpow.pop %v5961
  %v5963 = vmul.f32 %v5952, 1.442695
  %v5964 = vpow.pop %v5963
  %v5965 = vmul.f32 %v5953, 1.442695
  %v5966 = vpow.pop %v5965
  %v5967 = vmul.f32 %v5954, 1.442695
  %v5968 = vpow.pop %v5967
  %v5969 = vmul.f32 %v5955, 1.442695
  %v5970 = vpow.pop %v5969
  %v5971 = vmul.f32 %v5956, 1.442695
  %v5972 = vpow.pop %v5971
  %v5973 = vadd.f32 %v5958, 1.0
  %v5974 = vadd.f32 %v5960, 1.0
  %v5975 = vadd.f32 %v5962, 1.0
  %v5976 = vadd.f32 %v5964, 1.0
  %v5977 = vadd.f32 %v5966, 1.0
  %v5978 = vadd.f32 %v5968, 1.0
  %v5979 = vadd.f32 %v5970, 1.0
  %v5980 = vadd.f32 %v5972, 1.0
  %v5981 = vrcp.pop %v5973
  %v5982 = vmul.f32 1.0, %v5981
  %v5983 = vrcp.pop %v5974
  %v5984 = vmul.f32 1.0, %v5983
  %v5985 = vrcp.pop %v5975
  %v5986 = vmul.f32 1.0, %v5985
  %v5987 = vrcp.pop %v5976
  %v5988 = vmul.f32 1.0, %v5987
  %v5989 = vrcp.pop %v5977
  %v5990 = vmul.f32 1.0, %v5989
  %v5991 = vrcp.pop %v5978
  %v5992 = vmul.f32 1.0, %v5991
  %v5993 = vrcp.pop %v5979
  %v5994 = vmul.f32 1.0, %v5993
  %v5995 = vrcp.pop %v5980
  %v5996 = vmul.f32 1.0, %v5995
  %v5997 = vadd.f32 %v5685, %v165
  %v5998 = vadd.f32 %v5766, %v169
  %v5999 = vadd.f32 %v5847, %v173
  %v6000 = vadd.f32 %v5928, %v177
  %v6001 = vmul.f32 %v5982, %v5997
  %v6002 = vmul.f32 %v5986, %v5998
  %v6003 = vmul.f32 %v5990, %v5999
  %v6004 = vmul.f32 %v5994, %v6000
  %v6005 = vunpack.c.l.bf16 %v5598
  %v6006 = vunpack.c.l.bf16 %v5600
  %v6007 = vunpack.c.l.bf16 %v5602
  %v6008 = vunpack.c.l.bf16 %v5604
  %v6009 = vadd.f32 %v6005, %v6001
  %v6010 = vadd.f32 %v6006, %v6002
  %v6011 = vadd.f32 %v6007, %v6003
  %v6012 = vadd.f32 %v6008, %v6004
  %v6013 = vtanh.pop %v6009
  %v6014 = vtanh.pop %v6010
  %v6015 = vtanh.pop %v6011
  %v6016 = vtanh.pop %v6012
  %v6017 = vsub.f32 1.0, %v5984
  %v6018 = vsub.f32 1.0, %v5988
  %v6019 = vsub.f32 1.0, %v5992
  %v6020 = vsub.f32 1.0, %v5996
  %v6021 = vsub.f32 %v6013, %v5592
  %v6022 = vsub.f32 %v6014, %v5593
  %v6023 = vsub.f32 %v6015, %v5594
  %v6024 = vsub.f32 %v6016, %v5595
  %v6025 = vmul.f32 %v6017, %v6021
  %v6026 = vmul.f32 %v6018, %v6022
  %v6027 = vmul.f32 %v6019, %v6023
  %v6028 = vmul.f32 %v6020, %v6024
  %vm6029 = vcmp.gt.s32.totalorder %v182, 11
  %vm6030 = vcmp.gt.s32.totalorder %v183, 11
  %vm6031 = vcmp.gt.s32.totalorder %v184, 11
  %vm6032 = vcmp.gt.s32.totalorder %v185, 11
  %v6033 = vsel %vm6029, %v6025, 0.0
  %v6034 = vsel %vm6030, %v6026, 0.0
  %v6035 = vsel %vm6031, %v6027, 0.0
  %v6036 = vsel %vm6032, %v6028, 0.0
  %v6037 = vadd.f32 %v5592, %v6033
  %v6038 = vadd.f32 %v5593, %v6034
  %v6039 = vadd.f32 %v5594, %v6035
  %v6040 = vadd.f32 %v5595, %v6036
  %s6041 = scalar_lea.vmem %s0, 576
  %v6042 = vld [vmem:[%s6041] sm:$0xff]
  %v6043 = vld [vmem:[%s6041 + $0x8] sm:$0xf]
  %v6044 = vld [vmem:[%s6041 + $0xc] sm:$0xff]
  %v6045 = vld [vmem:[%s6041 + $0x14] sm:$0xf]
  %v6046 = vld [vmem:[%s6041 + $0x18] sm:$0xff]
  %v6047 = vld [vmem:[%s6041 + $0x20] sm:$0xf]
  %v6048 = vld [vmem:[%s6041 + $0x24] sm:$0xff]
  %v6049 = vld [vmem:[%s6041 + $0x2c] sm:$0xf]
  %v6050 = vpack.c.bf16 %v6037, %v6037
  %v6051 = vpack.c.bf16 %v6038, %v6038
  %v6052 = vpack.c.bf16 %v6039, %v6039
  %v6053 = vpack.c.bf16 %v6040, %v6040
  %6054 = vmatprep.subr.bf16.mxu0 %v283
  %6055 = vmatpush1.bf16.msra.mxu0 %v282
  %6056 = vmatprep.subr.bf16.mxu0 %v286
  %6057 = vmatpush1.bf16.msra.mxu0 %v285
  %6058 = vmatprep.subr.bf16.mxu0 %v289
  %6059 = vmatpush1.bf16.msra.mxu0 %v288
  %6060 = vmatprep.subr.bf16.mxu0 %v292
  %6061 = vmatpush1.bf16.msra.mxu0 %v291
  %6062 = vmatprep.subr.bf16.mxu0 %v295
  %6063 = vmatpush1.bf16.msra.mxu0 %v294
  %6064 = vmatprep.subr.bf16.mxu0 %v298
  %6065 = vmatpush1.bf16.msra.mxu0 %v297
  %6066 = vmatprep.subr.bf16.mxu0 %v301
  %6067 = vmatpush1.bf16.msra.mxu0 %v300
  %6068 = vmatprep.subr.bf16.mxu0 %v304
  %6069 = vmatpush1.bf16.msra.mxu0 %v303
  %6070 = vmatprep.subr.bf16.mxu0 0
  %6071 = vmatpush1.bf16.msra.mxu0 0
  %6072 = vmatprep.subr.bf16.mxu0 0
  %6073 = vmatpush1.bf16.msra.mxu0 0
  %6074 = vmatprep.subr.bf16.mxu0 0
  %6075 = vmatpush1.bf16.msra.mxu0 0
  %6076 = vmatprep.subr.bf16.mxu0 0
  %6077 = vmatpush1.bf16.msra.mxu0 0
  %6078 = vmatprep.subr.bf16.mxu0 0
  %6079 = vmatpush1.bf16.msra.mxu0 0
  %6080 = vmatprep.subr.bf16.mxu0 0
  %6081 = vmatpush1.bf16.msra.mxu0 0
  %6082 = vmatprep.subr.bf16.mxu0 0
  %6083 = vmatpush1.bf16.msra.mxu0 0
  %6084 = vmatprep.subr.bf16.mxu0 0
  %6085 = vmatpush1.bf16.msra.mxu0 0
  %6086 = vmatprep.mubr.bf16.mxu0 0
  %6087 = vmatmul.mubr.bf16.gmra.mrb[0].mxu0 %v6050
  %v6088 = vpop.f32.mrb[0].mxu0
  %v6089 = vadd.f32 0.0, %v6088
  %v6090 = vpop.f32.mrb[0].mxu0
  %v6091 = vadd.f32 0.0, %v6090
  %v6092 = vpop.f32.mrb[0].mxu0
  %v6093 = vpop.f32.mrb[0].mxu0
  %6094 = vdwg.mxu0
  %6095 = vmatprep.subr.bf16.mxu0 0
  %6096 = vmatpush1.bf16.msra.mxu0 %v284
  %6097 = vmatprep.subr.bf16.mxu0 0
  %6098 = vmatpush1.bf16.msra.mxu0 %v287
  %6099 = vmatprep.subr.bf16.mxu0 0
  %6100 = vmatpush1.bf16.msra.mxu0 %v290
  %6101 = vmatprep.subr.bf16.mxu0 0
  %6102 = vmatpush1.bf16.msra.mxu0 %v293
  %6103 = vmatprep.subr.bf16.mxu0 0
  %6104 = vmatpush1.bf16.msra.mxu0 %v296
  %6105 = vmatprep.subr.bf16.mxu0 0
  %6106 = vmatpush1.bf16.msra.mxu0 %v299
  %6107 = vmatprep.subr.bf16.mxu0 0
  %6108 = vmatpush1.bf16.msra.mxu0 %v302
  %6109 = vmatprep.subr.bf16.mxu0 0
  %6110 = vmatpush1.bf16.msra.mxu0 %v305
  %6111 = vmatprep.subr.bf16.mxu0 0
  %6112 = vmatpush1.bf16.msra.mxu0 0
  %6113 = vmatprep.subr.bf16.mxu0 0
  %6114 = vmatpush1.bf16.msra.mxu0 0
  %6115 = vmatprep.subr.bf16.mxu0 0
  %6116 = vmatpush1.bf16.msra.mxu0 0
  %6117 = vmatprep.subr.bf16.mxu0 0
  %6118 = vmatpush1.bf16.msra.mxu0 0
  %6119 = vmatprep.subr.bf16.mxu0 0
  %6120 = vmatpush1.bf16.msra.mxu0 0
  %6121 = vmatprep.subr.bf16.mxu0 0
  %6122 = vmatpush1.bf16.msra.mxu0 0
  %6123 = vmatprep.subr.bf16.mxu0 0
  %6124 = vmatpush1.bf16.msra.mxu0 0
  %6125 = vmatprep.subr.bf16.mxu0 0
  %6126 = vmatpush1.bf16.msra.mxu0 0
  %6127 = vmatprep.mubr.bf16.mxu0 0
  %6128 = vmatmul.mubr.bf16.gmra.mrb[0].mxu0 %v6050
  %v6129 = vpop.f32.mrb[0].mxu0
  %v6130 = vadd.f32 0.0, %v6129
  %v6131 = vpop.f32.mrb[0].mxu0
  %v6132 = vpop.f32.mrb[0].mxu0
  %v6133 = vpop.f32.mrb[0].mxu0
  %6134 = vdwg.mxu0
  %6135 = vmatprep.subr.bf16.mxu0 %v492
  %6136 = vmatpush1.bf16.msra.mxu0 %v491
  %6137 = vmatprep.subr.bf16.mxu0 %v495
  %6138 = vmatpush1.bf16.msra.mxu0 %v494
  %6139 = vmatprep.subr.bf16.mxu0 %v498
  %6140 = vmatpush1.bf16.msra.mxu0 %v497
  %6141 = vmatprep.subr.bf16.mxu0 %v501
  %6142 = vmatpush1.bf16.msra.mxu0 %v500
  %6143 = vmatprep.subr.bf16.mxu0 %v504
  %6144 = vmatpush1.bf16.msra.mxu0 %v503
  %6145 = vmatprep.subr.bf16.mxu0 %v507
  %6146 = vmatpush1.bf16.msra.mxu0 %v506
  %6147 = vmatprep.subr.bf16.mxu0 %v510
  %6148 = vmatpush1.bf16.msra.mxu0 %v509
  %6149 = vmatprep.subr.bf16.mxu0 %v513
  %6150 = vmatpush1.bf16.msra.mxu0 %v512
  %6151 = vmatprep.subr.bf16.mxu0 0
  %6152 = vmatpush1.bf16.msra.mxu0 0
  %6153 = vmatprep.subr.bf16.mxu0 0
  %6154 = vmatpush1.bf16.msra.mxu0 0
  %6155 = vmatprep.subr.bf16.mxu0 0
  %6156 = vmatpush1.bf16.msra.mxu0 0
  %6157 = vmatprep.subr.bf16.mxu0 0
  %6158 = vmatpush1.bf16.msra.mxu0 0
  %6159 = vmatprep.subr.bf16.mxu0 0
  %6160 = vmatpush1.bf16.msra.mxu0 0
  %6161 = vmatprep.subr.bf16.mxu0 0
  %6162 = vmatpush1.bf16.msra.mxu0 0
  %6163 = vmatprep.subr.bf16.mxu0 0
  %6164 = vmatpush1.bf16.msra.mxu0 0
  %6165 = vmatprep.subr.bf16.mxu0 0
  %6166 = vmatpush1.bf16.msra.mxu0 0
  %6167 = vmatprep.mubr.bf16.mxu0 0
  %6168 = vmatmul.mubr.bf16.gmra.mrb[0].mxu0 %v6051
  %v6169 = vpop.f32.mrb[0].mxu0
  %v6170 = vadd.f32 0.0, %v6169
  %v6171 = vpop.f32.mrb[0].mxu0
  %v6172 = vadd.f32 0.0, %v6171
  %v6173 = vpop.f32.mrb[0].mxu0
  %v6174 = vpop.f32.mrb[0].mxu0
  %6175 = vdwg.mxu0
  %6176 = vmatprep.subr.bf16.mxu0 0
  %6177 = vmatpush1.bf16.msra.mxu0 %v493
  %6178 = vmatprep.subr.bf16.mxu0 0
  %6179 = vmatpush1.bf16.msra.mxu0 %v496
  %6180 = vmatprep.subr.bf16.mxu0 0
  %6181 = vmatpush1.bf16.msra.mxu0 %v499
  %6182 = vmatprep.subr.bf16.mxu0 0
  %6183 = vmatpush1.bf16.msra.mxu0 %v502
  %6184 = vmatprep.subr.bf16.mxu0 0
  %6185 = vmatpush1.bf16.msra.mxu0 %v505
  %6186 = vmatprep.subr.bf16.mxu0 0
  %6187 = vmatpush1.bf16.msra.mxu0 %v508
  %6188 = vmatprep.subr.bf16.mxu0 0
  %6189 = vmatpush1.bf16.msra.mxu0 %v511
  %6190 = vmatprep.subr.bf16.mxu0 0
  %6191 = vmatpush1.bf16.msra.mxu0 %v514
  %6192 = vmatprep.subr.bf16.mxu0 0
  %6193 = vmatpush1.bf16.msra.mxu0 0
  %6194 = vmatprep.subr.bf16.mxu0 0
  %6195 = vmatpush1.bf16.msra.mxu0 0
  %6196 = vmatprep.subr.bf16.mxu0 0
  %6197 = vmatpush1.bf16.msra.mxu0 0
  %6198 = vmatprep.subr.bf16.mxu0 0
  %6199 = vmatpush1.bf16.msra.mxu0 0
  %6200 = vmatprep.subr.bf16.mxu0 0
  %6201 = vmatpush1.bf16.msra.mxu0 0
  %6202 = vmatprep.subr.bf16.mxu0 0
  %6203 = vmatpush1.bf16.msra.mxu0 0
  %6204 = vmatprep.subr.bf16.mxu0 0
  %6205 = vmatpush1.bf16.msra.mxu0 0
  %6206 = vmatprep.subr.bf16.mxu0 0
  %6207 = vmatpush1.bf16.msra.mxu0 0
  %6208 = vmatprep.mubr.bf16.mxu0 0
  %6209 = vmatmul.mubr.bf16.gmra.mrb[0].mxu0 %v6051
  %v6210 = vpop.f32.mrb[0].mxu0
  %v6211 = vadd.f32 0.0, %v6210
  %v6212 = vpop.f32.mrb[0].mxu0
  %v6213 = vpop.f32.mrb[0].mxu0
  %v6214 = vpop.f32.mrb[0].mxu0
  %6215 = vdwg.mxu0
  %6216 = vmatprep.subr.bf16.mxu0 %v701
  %6217 = vmatpush1.bf16.msra.mxu0 %v700
  %6218 = vmatprep.subr.bf16.mxu0 %v704
  %6219 = vmatpush1.bf16.msra.mxu0 %v703
  %6220 = vmatprep.subr.bf16.mxu0 %v707
  %6221 = vmatpush1.bf16.msra.mxu0 %v706
  %6222 = vmatprep.subr.bf16.mxu0 %v710
  %6223 = vmatpush1.bf16.msra.mxu0 %v709
  %6224 = vmatprep.subr.bf16.mxu0 %v713
  %6225 = vmatpush1.bf16.msra.mxu0 %v712
  %6226 = vmatprep.subr.bf16.mxu0 %v716
  %6227 = vmatpush1.bf16.msra.mxu0 %v715
  %6228 = vmatprep.subr.bf16.mxu0 %v719
  %6229 = vmatpush1.bf16.msra.mxu0 %v718
  %6230 = vmatprep.subr.bf16.mxu0 %v722
  %6231 = vmatpush1.bf16.msra.mxu0 %v721
  %6232 = vmatprep.subr.bf16.mxu0 0
  %6233 = vmatpush1.bf16.msra.mxu0 0
  %6234 = vmatprep.subr.bf16.mxu0 0
  %6235 = vmatpush1.bf16.msra.mxu0 0
  %6236 = vmatprep.subr.bf16.mxu0 0
  %6237 = vmatpush1.bf16.msra.mxu0 0
  %6238 = vmatprep.subr.bf16.mxu0 0
  %6239 = vmatpush1.bf16.msra.mxu0 0
  %6240 = vmatprep.subr.bf16.mxu0 0
  %6241 = vmatpush1.bf16.msra.mxu0 0
  %6242 = vmatprep.subr.bf16.mxu0 0
  %6243 = vmatpush1.bf16.msra.mxu0 0
  %6244 = vmatprep.subr.bf16.mxu0 0
  %6245 = vmatpush1.bf16.msra.mxu0 0
  %6246 = vmatprep.subr.bf16.mxu0 0
  %6247 = vmatpush1.bf16.msra.mxu0 0
  %6248 = vmatprep.mubr.bf16.mxu0 0
  %6249 = vmatmul.mubr.bf16.gmra.mrb[0].mxu0 %v6052
  %v6250 = vpop.f32.mrb[0].mxu0
  %v6251 = vadd.f32 0.0, %v6250
  %v6252 = vpop.f32.mrb[0].mxu0
  %v6253 = vadd.f32 0.0, %v6252
  %v6254 = vpop.f32.mrb[0].mxu0
  %v6255 = vpop.f32.mrb[0].mxu0
  %6256 = vdwg.mxu0
  %6257 = vmatprep.subr.bf16.mxu0 0
  %6258 = vmatpush1.bf16.msra.mxu0 %v702
  %6259 = vmatprep.subr.bf16.mxu0 0
  %6260 = vmatpush1.bf16.msra.mxu0 %v705
  %6261 = vmatprep.subr.bf16.mxu0 0
  %6262 = vmatpush1.bf16.msra.mxu0 %v708
  %6263 = vmatprep.subr.bf16.mxu0 0
  %6264 = vmatpush1.bf16.msra.mxu0 %v711
  %6265 = vmatprep.subr.bf16.mxu0 0
  %6266 = vmatpush1.bf16.msra.mxu0 %v714
  %6267 = vmatprep.subr.bf16.mxu0 0
  %6268 = vmatpush1.bf16.msra.mxu0 %v717
  %6269 = vmatprep.subr.bf16.mxu0 0
  %6270 = vmatpush1.bf16.msra.mxu0 %v720
  %6271 = vmatprep.subr.bf16.mxu0 0
  %6272 = vmatpush1.bf16.msra.mxu0 %v723
  %6273 = vmatprep.subr.bf16.mxu0 0
  %6274 = vmatpush1.bf16.msra.mxu0 0
  %6275 = vmatprep.subr.bf16.mxu0 0
  %6276 = vmatpush1.bf16.msra.mxu0 0
  %6277 = vmatprep.subr.bf16.mxu0 0
  %6278 = vmatpush1.bf16.msra.mxu0 0
  %6279 = vmatprep.subr.bf16.mxu0 0
  %6280 = vmatpush1.bf16.msra.mxu0 0
  %6281 = vmatprep.subr.bf16.mxu0 0
  %6282 = vmatpush1.bf16.msra.mxu0 0
  %6283 = vmatprep.subr.bf16.mxu0 0
  %6284 = vmatpush1.bf16.msra.mxu0 0
  %6285 = vmatprep.subr.bf16.mxu0 0
  %6286 = vmatpush1.bf16.msra.mxu0 0
  %6287 = vmatprep.subr.bf16.mxu0 0
  %6288 = vmatpush1.bf16.msra.mxu0 0
  %6289 = vmatprep.mubr.bf16.mxu0 0
  %6290 = vmatmul.mubr.bf16.gmra.mrb[0].mxu0 %v6052
  %v6291 = vpop.f32.mrb[0].mxu0
  %v6292 = vadd.f32 0.0, %v6291
  %v6293 = vpop.f32.mrb[0].mxu0
  %v6294 = vpop.f32.mrb[0].mxu0
  %v6295 = vpop.f32.mrb[0].mxu0
  %6296 = vdwg.mxu0
  %6297 = vmatprep.subr.bf16.mxu0 %v910
  %6298 = vmatpush1.bf16.msra.mxu0 %v909
  %6299 = vmatprep.subr.bf16.mxu0 %v913
  %6300 = vmatpush1.bf16.msra.mxu0 %v912
  %6301 = vmatprep.subr.bf16.mxu0 %v916
  %6302 = vmatpush1.bf16.msra.mxu0 %v915
  %6303 = vmatprep.subr.bf16.mxu0 %v919
  %6304 = vmatpush1.bf16.msra.mxu0 %v918
  %6305 = vmatprep.subr.bf16.mxu0 %v922
  %6306 = vmatpush1.bf16.msra.mxu0 %v921
  %6307 = vmatprep.subr.bf16.mxu0 %v925
  %6308 = vmatpush1.bf16.msra.mxu0 %v924
  %6309 = vmatprep.subr.bf16.mxu0 %v928
  %6310 = vmatpush1.bf16.msra.mxu0 %v927
  %6311 = vmatprep.subr.bf16.mxu0 %v931
  %6312 = vmatpush1.bf16.msra.mxu0 %v930
  %6313 = vmatprep.subr.bf16.mxu0 0
  %6314 = vmatpush1.bf16.msra.mxu0 0
  %6315 = vmatprep.subr.bf16.mxu0 0
  %6316 = vmatpush1.bf16.msra.mxu0 0
  %6317 = vmatprep.subr.bf16.mxu0 0
  %6318 = vmatpush1.bf16.msra.mxu0 0
  %6319 = vmatprep.subr.bf16.mxu0 0
  %6320 = vmatpush1.bf16.msra.mxu0 0
  %6321 = vmatprep.subr.bf16.mxu0 0
  %6322 = vmatpush1.bf16.msra.mxu0 0
  %6323 = vmatprep.subr.bf16.mxu0 0
  %6324 = vmatpush1.bf16.msra.mxu0 0
  %6325 = vmatprep.subr.bf16.mxu0 0
  %6326 = vmatpush1.bf16.msra.mxu0 0
  %6327 = vmatprep.subr.bf16.mxu0 0
  %6328 = vmatpush1.bf16.msra.mxu0 0
  %6329 = vmatprep.mubr.bf16.mxu0 0
  %6330 = vmatmul.mubr.bf16.gmra.mrb[0].mxu0 %v6053
  %v6331 = vpop.f32.mrb[0].mxu0
  %v6332 = vadd.f32 0.0, %v6331
  %v6333 = vpop.f32.mrb[0].mxu0
  %v6334 = vadd.f32 0.0, %v6333
  %v6335 = vpop.f32.mrb[0].mxu0
  %v6336 = vpop.f32.mrb[0].mxu0
  %6337 = vdwg.mxu0
  %6338 = vmatprep.subr.bf16.mxu0 0
  %6339 = vmatpush1.bf16.msra.mxu0 %v911
  %6340 = vmatprep.subr.bf16.mxu0 0
  %6341 = vmatpush1.bf16.msra.mxu0 %v914
  %6342 = vmatprep.subr.bf16.mxu0 0
  %6343 = vmatpush1.bf16.msra.mxu0 %v917
  %6344 = vmatprep.subr.bf16.mxu0 0
  %6345 = vmatpush1.bf16.msra.mxu0 %v920
  %6346 = vmatprep.subr.bf16.mxu0 0
  %6347 = vmatpush1.bf16.msra.mxu0 %v923
  %6348 = vmatprep.subr.bf16.mxu0 0
  %6349 = vmatpush1.bf16.msra.mxu0 %v926
  %6350 = vmatprep.subr.bf16.mxu0 0
  %6351 = vmatpush1.bf16.msra.mxu0 %v929
  %6352 = vmatprep.subr.bf16.mxu0 0
  %6353 = vmatpush1.bf16.msra.mxu0 %v932
  %6354 = vmatprep.subr.bf16.mxu0 0
  %6355 = vmatpush1.bf16.msra.mxu0 0
  %6356 = vmatprep.subr.bf16.mxu0 0
  %6357 = vmatpush1.bf16.msra.mxu0 0
  %6358 = vmatprep.subr.bf16.mxu0 0
  %6359 = vmatpush1.bf16.msra.mxu0 0
  %6360 = vmatprep.subr.bf16.mxu0 0
  %6361 = vmatpush1.bf16.msra.mxu0 0
  %6362 = vmatprep.subr.bf16.mxu0 0
  %6363 = vmatpush1.bf16.msra.mxu0 0
  %6364 = vmatprep.subr.bf16.mxu0 0
  %6365 = vmatpush1.bf16.msra.mxu0 0
  %6366 = vmatprep.subr.bf16.mxu0 0
  %6367 = vmatpush1.bf16.msra.mxu0 0
  %6368 = vmatprep.subr.bf16.mxu0 0
  %6369 = vmatpush1.bf16.msra.mxu0 0
  %6370 = vmatprep.mubr.bf16.mxu0 0
  %6371 = vmatmul.mubr.bf16.gmra.mrb[0].mxu0 %v6053
  %v6372 = vpop.f32.mrb[0].mxu0
  %v6373 = vadd.f32 0.0, %v6372
  %v6374 = vpop.f32.mrb[0].mxu0
  %v6375 = vpop.f32.mrb[0].mxu0
  %v6376 = vpop.f32.mrb[0].mxu0
  %6377 = vdwg.mxu0
  %v6378 = vunpack.c.l.bf16 %v6042
  %v6379 = vunpack.c.h.bf16 %v6042
  %v6380 = vunpack.c.l.bf16 %v6044
  %v6381 = vunpack.c.h.bf16 %v6044
  %v6382 = vunpack.c.l.bf16 %v6046
  %v6383 = vunpack.c.h.bf16 %v6046
  %v6384 = vunpack.c.l.bf16 %v6048
  %v6385 = vunpack.c.h.bf16 %v6048
  %v6386 = vadd.f32 %v6378, %v6089
  %v6387 = vadd.f32 %v6379, %v6091
  %v6388 = vadd.f32 %v6380, %v6170
  %v6389 = vadd.f32 %v6381, %v6172
  %v6390 = vadd.f32 %v6382, %v6251
  %v6391 = vadd.f32 %v6383, %v6253
  %v6392 = vadd.f32 %v6384, %v6332
  %v6393 = vadd.f32 %v6385, %v6334
  %v6394 = vxor.u32 %v6386, 2147483648
  %v6395 = vxor.u32 %v6387, 2147483648
  %v6396 = vxor.u32 %v6388, 2147483648
  %v6397 = vxor.u32 %v6389, 2147483648
  %v6398 = vxor.u32 %v6390, 2147483648
  %v6399 = vxor.u32 %v6391, 2147483648
  %v6400 = vxor.u32 %v6392, 2147483648
  %v6401 = vxor.u32 %v6393, 2147483648
  %v6402 = vmul.f32 %v6394, 1.442695
  %v6403 = vpow.pop %v6402
  %v6404 = vmul.f32 %v6395, 1.442695
  %v6405 = vpow.pop %v6404
  %v6406 = vmul.f32 %v6396, 1.442695
  %v6407 = vpow.pop %v6406
  %v6408 = vmul.f32 %v6397, 1.442695
  %v6409 = vpow.pop %v6408
  %v6410 = vmul.f32 %v6398, 1.442695
  %v6411 = vpow.pop %v6410
  %v6412 = vmul.f32 %v6399, 1.442695
  %v6413 = vpow.pop %v6412
  %v6414 = vmul.f32 %v6400, 1.442695
  %v6415 = vpow.pop %v6414
  %v6416 = vmul.f32 %v6401, 1.442695
  %v6417 = vpow.pop %v6416
  %v6418 = vadd.f32 %v6403, 1.0
  %v6419 = vadd.f32 %v6405, 1.0
  %v6420 = vadd.f32 %v6407, 1.0
  %v6421 = vadd.f32 %v6409, 1.0
  %v6422 = vadd.f32 %v6411, 1.0
  %v6423 = vadd.f32 %v6413, 1.0
  %v6424 = vadd.f32 %v6415, 1.0
  %v6425 = vadd.f32 %v6417, 1.0
  %v6426 = vrcp.pop %v6418
  %v6427 = vmul.f32 1.0, %v6426
  %v6428 = vrcp.pop %v6419
  %v6429 = vmul.f32 1.0, %v6428
  %v6430 = vrcp.pop %v6420
  %v6431 = vmul.f32 1.0, %v6430
  %v6432 = vrcp.pop %v6421
  %v6433 = vmul.f32 1.0, %v6432
  %v6434 = vrcp.pop %v6422
  %v6435 = vmul.f32 1.0, %v6434
  %v6436 = vrcp.pop %v6423
  %v6437 = vmul.f32 1.0, %v6436
  %v6438 = vrcp.pop %v6424
  %v6439 = vmul.f32 1.0, %v6438
  %v6440 = vrcp.pop %v6425
  %v6441 = vmul.f32 1.0, %v6440
  %v6442 = vadd.f32 %v6130, %v165
  %v6443 = vadd.f32 %v6211, %v169
  %v6444 = vadd.f32 %v6292, %v173
  %v6445 = vadd.f32 %v6373, %v177
  %v6446 = vmul.f32 %v6427, %v6442
  %v6447 = vmul.f32 %v6431, %v6443
  %v6448 = vmul.f32 %v6435, %v6444
  %v6449 = vmul.f32 %v6439, %v6445
  %v6450 = vunpack.c.l.bf16 %v6043
  %v6451 = vunpack.c.l.bf16 %v6045
  %v6452 = vunpack.c.l.bf16 %v6047
  %v6453 = vunpack.c.l.bf16 %v6049
  %v6454 = vadd.f32 %v6450, %v6446
  %v6455 = vadd.f32 %v6451, %v6447
  %v6456 = vadd.f32 %v6452, %v6448
  %v6457 = vadd.f32 %v6453, %v6449
  %v6458 = vtanh.pop %v6454
  %v6459 = vtanh.pop %v6455
  %v6460 = vtanh.pop %v6456
  %v6461 = vtanh.pop %v6457
  %v6462 = vsub.f32 1.0, %v6429
  %v6463 = vsub.f32 1.0, %v6433
  %v6464 = vsub.f32 1.0, %v6437
  %v6465 = vsub.f32 1.0, %v6441
  %v6466 = vsub.f32 %v6458, %v6037
  %v6467 = vsub.f32 %v6459, %v6038
  %v6468 = vsub.f32 %v6460, %v6039
  %v6469 = vsub.f32 %v6461, %v6040
  %v6470 = vmul.f32 %v6462, %v6466
  %v6471 = vmul.f32 %v6463, %v6467
  %v6472 = vmul.f32 %v6464, %v6468
  %v6473 = vmul.f32 %v6465, %v6469
  %vm6474 = vcmp.gt.s32.totalorder %v182, 12
  %vm6475 = vcmp.gt.s32.totalorder %v183, 12
  %vm6476 = vcmp.gt.s32.totalorder %v184, 12
  %vm6477 = vcmp.gt.s32.totalorder %v185, 12
  %v6478 = vsel %vm6474, %v6470, 0.0
  %v6479 = vsel %vm6475, %v6471, 0.0
  %v6480 = vsel %vm6476, %v6472, 0.0
  %v6481 = vsel %vm6477, %v6473, 0.0
  %v6482 = vadd.f32 %v6037, %v6478
  %v6483 = vadd.f32 %v6038, %v6479
  %v6484 = vadd.f32 %v6039, %v6480
  %v6485 = vadd.f32 %v6040, %v6481
  %s6486 = scalar_lea.vmem %s0, 624
  %v6487 = vld [vmem:[%s6486] sm:$0xff]
  %v6488 = vld [vmem:[%s6486 + $0x8] sm:$0xf]
  %v6489 = vld [vmem:[%s6486 + $0xc] sm:$0xff]
  %v6490 = vld [vmem:[%s6486 + $0x14] sm:$0xf]
  %v6491 = vld [vmem:[%s6486 + $0x18] sm:$0xff]
  %v6492 = vld [vmem:[%s6486 + $0x20] sm:$0xf]
  %v6493 = vld [vmem:[%s6486 + $0x24] sm:$0xff]
  %v6494 = vld [vmem:[%s6486 + $0x2c] sm:$0xf]
  %v6495 = vpack.c.bf16 %v6482, %v6482
  %v6496 = vpack.c.bf16 %v6483, %v6483
  %v6497 = vpack.c.bf16 %v6484, %v6484
  %v6498 = vpack.c.bf16 %v6485, %v6485
  %6499 = vmatprep.subr.bf16.mxu0 %v283
  %6500 = vmatpush1.bf16.msra.mxu0 %v282
  %6501 = vmatprep.subr.bf16.mxu0 %v286
  %6502 = vmatpush1.bf16.msra.mxu0 %v285
  %6503 = vmatprep.subr.bf16.mxu0 %v289
  %6504 = vmatpush1.bf16.msra.mxu0 %v288
  %6505 = vmatprep.subr.bf16.mxu0 %v292
  %6506 = vmatpush1.bf16.msra.mxu0 %v291
  %6507 = vmatprep.subr.bf16.mxu0 %v295
  %6508 = vmatpush1.bf16.msra.mxu0 %v294
  %6509 = vmatprep.subr.bf16.mxu0 %v298
  %6510 = vmatpush1.bf16.msra.mxu0 %v297
  %6511 = vmatprep.subr.bf16.mxu0 %v301
  %6512 = vmatpush1.bf16.msra.mxu0 %v300
  %6513 = vmatprep.subr.bf16.mxu0 %v304
  %6514 = vmatpush1.bf16.msra.mxu0 %v303
  %6515 = vmatprep.subr.bf16.mxu0 0
  %6516 = vmatpush1.bf16.msra.mxu0 0
  %6517 = vmatprep.subr.bf16.mxu0 0
  %6518 = vmatpush1.bf16.msra.mxu0 0
  %6519 = vmatprep.subr.bf16.mxu0 0
  %6520 = vmatpush1.bf16.msra.mxu0 0
  %6521 = vmatprep.subr.bf16.mxu0 0
  %6522 = vmatpush1.bf16.msra.mxu0 0
  %6523 = vmatprep.subr.bf16.mxu0 0
  %6524 = vmatpush1.bf16.msra.mxu0 0
  %6525 = vmatprep.subr.bf16.mxu0 0
  %6526 = vmatpush1.bf16.msra.mxu0 0
  %6527 = vmatprep.subr.bf16.mxu0 0
  %6528 = vmatpush1.bf16.msra.mxu0 0
  %6529 = vmatprep.subr.bf16.mxu0 0
  %6530 = vmatpush1.bf16.msra.mxu0 0
  %6531 = vmatprep.mubr.bf16.mxu0 0
  %6532 = vmatmul.mubr.bf16.gmra.mrb[0].mxu0 %v6495
  %v6533 = vpop.f32.mrb[0].mxu0
  %v6534 = vadd.f32 0.0, %v6533
  %v6535 = vpop.f32.mrb[0].mxu0
  %v6536 = vadd.f32 0.0, %v6535
  %v6537 = vpop.f32.mrb[0].mxu0
  %v6538 = vpop.f32.mrb[0].mxu0
  %6539 = vdwg.mxu0
  %6540 = vmatprep.subr.bf16.mxu0 0
  %6541 = vmatpush1.bf16.msra.mxu0 %v284
  %6542 = vmatprep.subr.bf16.mxu0 0
  %6543 = vmatpush1.bf16.msra.mxu0 %v287
  %6544 = vmatprep.subr.bf16.mxu0 0
  %6545 = vmatpush1.bf16.msra.mxu0 %v290
  %6546 = vmatprep.subr.bf16.mxu0 0
  %6547 = vmatpush1.bf16.msra.mxu0 %v293
  %6548 = vmatprep.subr.bf16.mxu0 0
  %6549 = vmatpush1.bf16.msra.mxu0 %v296
  %6550 = vmatprep.subr.bf16.mxu0 0
  %6551 = vmatpush1.bf16.msra.mxu0 %v299
  %6552 = vmatprep.subr.bf16.mxu0 0
  %6553 = vmatpush1.bf16.msra.mxu0 %v302
  %6554 = vmatprep.subr.bf16.mxu0 0
  %6555 = vmatpush1.bf16.msra.mxu0 %v305
  %6556 = vmatprep.subr.bf16.mxu0 0
  %6557 = vmatpush1.bf16.msra.mxu0 0
  %6558 = vmatprep.subr.bf16.mxu0 0
  %6559 = vmatpush1.bf16.msra.mxu0 0
  %6560 = vmatprep.subr.bf16.mxu0 0
  %6561 = vmatpush1.bf16.msra.mxu0 0
  %6562 = vmatprep.subr.bf16.mxu0 0
  %6563 = vmatpush1.bf16.msra.mxu0 0
  %6564 = vmatprep.subr.bf16.mxu0 0
  %6565 = vmatpush1.bf16.msra.mxu0 0
  %6566 = vmatprep.subr.bf16.mxu0 0
  %6567 = vmatpush1.bf16.msra.mxu0 0
  %6568 = vmatprep.subr.bf16.mxu0 0
  %6569 = vmatpush1.bf16.msra.mxu0 0
  %6570 = vmatprep.subr.bf16.mxu0 0
  %6571 = vmatpush1.bf16.msra.mxu0 0
  %6572 = vmatprep.mubr.bf16.mxu0 0
  %6573 = vmatmul.mubr.bf16.gmra.mrb[0].mxu0 %v6495
  %v6574 = vpop.f32.mrb[0].mxu0
  %v6575 = vadd.f32 0.0, %v6574
  %v6576 = vpop.f32.mrb[0].mxu0
  %v6577 = vpop.f32.mrb[0].mxu0
  %v6578 = vpop.f32.mrb[0].mxu0
  %6579 = vdwg.mxu0
  %6580 = vmatprep.subr.bf16.mxu0 %v492
  %6581 = vmatpush1.bf16.msra.mxu0 %v491
  %6582 = vmatprep.subr.bf16.mxu0 %v495
  %6583 = vmatpush1.bf16.msra.mxu0 %v494
  %6584 = vmatprep.subr.bf16.mxu0 %v498
  %6585 = vmatpush1.bf16.msra.mxu0 %v497
  %6586 = vmatprep.subr.bf16.mxu0 %v501
  %6587 = vmatpush1.bf16.msra.mxu0 %v500
  %6588 = vmatprep.subr.bf16.mxu0 %v504
  %6589 = vmatpush1.bf16.msra.mxu0 %v503
  %6590 = vmatprep.subr.bf16.mxu0 %v507
  %6591 = vmatpush1.bf16.msra.mxu0 %v506
  %6592 = vmatprep.subr.bf16.mxu0 %v510
  %6593 = vmatpush1.bf16.msra.mxu0 %v509
  %6594 = vmatprep.subr.bf16.mxu0 %v513
  %6595 = vmatpush1.bf16.msra.mxu0 %v512
  %6596 = vmatprep.subr.bf16.mxu0 0
  %6597 = vmatpush1.bf16.msra.mxu0 0
  %6598 = vmatprep.subr.bf16.mxu0 0
  %6599 = vmatpush1.bf16.msra.mxu0 0
  %6600 = vmatprep.subr.bf16.mxu0 0
  %6601 = vmatpush1.bf16.msra.mxu0 0
  %6602 = vmatprep.subr.bf16.mxu0 0
  %6603 = vmatpush1.bf16.msra.mxu0 0
  %6604 = vmatprep.subr.bf16.mxu0 0
  %6605 = vmatpush1.bf16.msra.mxu0 0
  %6606 = vmatprep.subr.bf16.mxu0 0
  %6607 = vmatpush1.bf16.msra.mxu0 0
  %6608 = vmatprep.subr.bf16.mxu0 0
  %6609 = vmatpush1.bf16.msra.mxu0 0
  %6610 = vmatprep.subr.bf16.mxu0 0
  %6611 = vmatpush1.bf16.msra.mxu0 0
  %6612 = vmatprep.mubr.bf16.mxu0 0
  %6613 = vmatmul.mubr.bf16.gmra.mrb[0].mxu0 %v6496
  %v6614 = vpop.f32.mrb[0].mxu0
  %v6615 = vadd.f32 0.0, %v6614
  %v6616 = vpop.f32.mrb[0].mxu0
  %v6617 = vadd.f32 0.0, %v6616
  %v6618 = vpop.f32.mrb[0].mxu0
  %v6619 = vpop.f32.mrb[0].mxu0
  %6620 = vdwg.mxu0
  %6621 = vmatprep.subr.bf16.mxu0 0
  %6622 = vmatpush1.bf16.msra.mxu0 %v493
  %6623 = vmatprep.subr.bf16.mxu0 0
  %6624 = vmatpush1.bf16.msra.mxu0 %v496
  %6625 = vmatprep.subr.bf16.mxu0 0
  %6626 = vmatpush1.bf16.msra.mxu0 %v499
  %6627 = vmatprep.subr.bf16.mxu0 0
  %6628 = vmatpush1.bf16.msra.mxu0 %v502
  %6629 = vmatprep.subr.bf16.mxu0 0
  %6630 = vmatpush1.bf16.msra.mxu0 %v505
  %6631 = vmatprep.subr.bf16.mxu0 0
  %6632 = vmatpush1.bf16.msra.mxu0 %v508
  %6633 = vmatprep.subr.bf16.mxu0 0
  %6634 = vmatpush1.bf16.msra.mxu0 %v511
  %6635 = vmatprep.subr.bf16.mxu0 0
  %6636 = vmatpush1.bf16.msra.mxu0 %v514
  %6637 = vmatprep.subr.bf16.mxu0 0
  %6638 = vmatpush1.bf16.msra.mxu0 0
  %6639 = vmatprep.subr.bf16.mxu0 0
  %6640 = vmatpush1.bf16.msra.mxu0 0
  %6641 = vmatprep.subr.bf16.mxu0 0
  %6642 = vmatpush1.bf16.msra.mxu0 0
  %6643 = vmatprep.subr.bf16.mxu0 0
  %6644 = vmatpush1.bf16.msra.mxu0 0
  %6645 = vmatprep.subr.bf16.mxu0 0
  %6646 = vmatpush1.bf16.msra.mxu0 0
  %6647 = vmatprep.subr.bf16.mxu0 0
  %6648 = vmatpush1.bf16.msra.mxu0 0
  %6649 = vmatprep.subr.bf16.mxu0 0
  %6650 = vmatpush1.bf16.msra.mxu0 0
  %6651 = vmatprep.subr.bf16.mxu0 0
  %6652 = vmatpush1.bf16.msra.mxu0 0
  %6653 = vmatprep.mubr.bf16.mxu0 0
  %6654 = vmatmul.mubr.bf16.gmra.mrb[0].mxu0 %v6496
  %v6655 = vpop.f32.mrb[0].mxu0
  %v6656 = vadd.f32 0.0, %v6655
  %v6657 = vpop.f32.mrb[0].mxu0
  %v6658 = vpop.f32.mrb[0].mxu0
  %v6659 = vpop.f32.mrb[0].mxu0
  %6660 = vdwg.mxu0
  %6661 = vmatprep.subr.bf16.mxu0 %v701
  %6662 = vmatpush1.bf16.msra.mxu0 %v700
  %6663 = vmatprep.subr.bf16.mxu0 %v704
  %6664 = vmatpush1.bf16.msra.mxu0 %v703
  %6665 = vmatprep.subr.bf16.mxu0 %v707
  %6666 = vmatpush1.bf16.msra.mxu0 %v706
  %6667 = vmatprep.subr.bf16.mxu0 %v710
  %6668 = vmatpush1.bf16.msra.mxu0 %v709
  %6669 = vmatprep.subr.bf16.mxu0 %v713
  %6670 = vmatpush1.bf16.msra.mxu0 %v712
  %6671 = vmatprep.subr.bf16.mxu0 %v716
  %6672 = vmatpush1.bf16.msra.mxu0 %v715
  %6673 = vmatprep.subr.bf16.mxu0 %v719
  %6674 = vmatpush1.bf16.msra.mxu0 %v718
  %6675 = vmatprep.subr.bf16.mxu0 %v722
  %6676 = vmatpush1.bf16.msra.mxu0 %v721
  %6677 = vmatprep.subr.bf16.mxu0 0
  %6678 = vmatpush1.bf16.msra.mxu0 0
  %6679 = vmatprep.subr.bf16.mxu0 0
  %6680 = vmatpush1.bf16.msra.mxu0 0
  %6681 = vmatprep.subr.bf16.mxu0 0
  %6682 = vmatpush1.bf16.msra.mxu0 0
  %6683 = vmatprep.subr.bf16.mxu0 0
  %6684 = vmatpush1.bf16.msra.mxu0 0
  %6685 = vmatprep.subr.bf16.mxu0 0
  %6686 = vmatpush1.bf16.msra.mxu0 0
  %6687 = vmatprep.subr.bf16.mxu0 0
  %6688 = vmatpush1.bf16.msra.mxu0 0
  %6689 = vmatprep.subr.bf16.mxu0 0
  %6690 = vmatpush1.bf16.msra.mxu0 0
  %6691 = vmatprep.subr.bf16.mxu0 0
  %6692 = vmatpush1.bf16.msra.mxu0 0
  %6693 = vmatprep.mubr.bf16.mxu0 0
  %6694 = vmatmul.mubr.bf16.gmra.mrb[0].mxu0 %v6497
  %v6695 = vpop.f32.mrb[0].mxu0
  %v6696 = vadd.f32 0.0, %v6695
  %v6697 = vpop.f32.mrb[0].mxu0
  %v6698 = vadd.f32 0.0, %v6697
  %v6699 = vpop.f32.mrb[0].mxu0
  %v6700 = vpop.f32.mrb[0].mxu0
  %6701 = vdwg.mxu0
  %6702 = vmatprep.subr.bf16.mxu0 0
  %6703 = vmatpush1.bf16.msra.mxu0 %v702
  %6704 = vmatprep.subr.bf16.mxu0 0
  %6705 = vmatpush1.bf16.msra.mxu0 %v705
  %6706 = vmatprep.subr.bf16.mxu0 0
  %6707 = vmatpush1.bf16.msra.mxu0 %v708
  %6708 = vmatprep.subr.bf16.mxu0 0
  %6709 = vmatpush1.bf16.msra.mxu0 %v711
  %6710 = vmatprep.subr.bf16.mxu0 0
  %6711 = vmatpush1.bf16.msra.mxu0 %v714
  %6712 = vmatprep.subr.bf16.mxu0 0
  %6713 = vmatpush1.bf16.msra.mxu0 %v717
  %6714 = vmatprep.subr.bf16.mxu0 0
  %6715 = vmatpush1.bf16.msra.mxu0 %v720
  %6716 = vmatprep.subr.bf16.mxu0 0
  %6717 = vmatpush1.bf16.msra.mxu0 %v723
  %6718 = vmatprep.subr.bf16.mxu0 0
  %6719 = vmatpush1.bf16.msra.mxu0 0
  %6720 = vmatprep.subr.bf16.mxu0 0
  %6721 = vmatpush1.bf16.msra.mxu0 0
  %6722 = vmatprep.subr.bf16.mxu0 0
  %6723 = vmatpush1.bf16.msra.mxu0 0
  %6724 = vmatprep.subr.bf16.mxu0 0
  %6725 = vmatpush1.bf16.msra.mxu0 0
  %6726 = vmatprep.subr.bf16.mxu0 0
  %6727 = vmatpush1.bf16.msra.mxu0 0
  %6728 = vmatprep.subr.bf16.mxu0 0
  %6729 = vmatpush1.bf16.msra.mxu0 0
  %6730 = vmatprep.subr.bf16.mxu0 0
  %6731 = vmatpush1.bf16.msra.mxu0 0
  %6732 = vmatprep.subr.bf16.mxu0 0
  %6733 = vmatpush1.bf16.msra.mxu0 0
  %6734 = vmatprep.mubr.bf16.mxu0 0
  %6735 = vmatmul.mubr.bf16.gmra.mrb[0].mxu0 %v6497
  %v6736 = vpop.f32.mrb[0].mxu0
  %v6737 = vadd.f32 0.0, %v6736
  %v6738 = vpop.f32.mrb[0].mxu0
  %v6739 = vpop.f32.mrb[0].mxu0
  %v6740 = vpop.f32.mrb[0].mxu0
  %6741 = vdwg.mxu0
  %6742 = vmatprep.subr.bf16.mxu0 %v910
  %6743 = vmatpush1.bf16.msra.mxu0 %v909
  %6744 = vmatprep.subr.bf16.mxu0 %v913
  %6745 = vmatpush1.bf16.msra.mxu0 %v912
  %6746 = vmatprep.subr.bf16.mxu0 %v916
  %6747 = vmatpush1.bf16.msra.mxu0 %v915
  %6748 = vmatprep.subr.bf16.mxu0 %v919
  %6749 = vmatpush1.bf16.msra.mxu0 %v918
  %6750 = vmatprep.subr.bf16.mxu0 %v922
  %6751 = vmatpush1.bf16.msra.mxu0 %v921
  %6752 = vmatprep.subr.bf16.mxu0 %v925
  %6753 = vmatpush1.bf16.msra.mxu0 %v924
  %6754 = vmatprep.subr.bf16.mxu0 %v928
  %6755 = vmatpush1.bf16.msra.mxu0 %v927
  %6756 = vmatprep.subr.bf16.mxu0 %v931
  %6757 = vmatpush1.bf16.msra.mxu0 %v930
  %6758 = vmatprep.subr.bf16.mxu0 0
  %6759 = vmatpush1.bf16.msra.mxu0 0
  %6760 = vmatprep.subr.bf16.mxu0 0
  %6761 = vmatpush1.bf16.msra.mxu0 0
  %6762 = vmatprep.subr.bf16.mxu0 0
  %6763 = vmatpush1.bf16.msra.mxu0 0
  %6764 = vmatprep.subr.bf16.mxu0 0
  %6765 = vmatpush1.bf16.msra.mxu0 0
  %6766 = vmatprep.subr.bf16.mxu0 0
  %6767 = vmatpush1.bf16.msra.mxu0 0
  %6768 = vmatprep.subr.bf16.mxu0 0
  %6769 = vmatpush1.bf16.msra.mxu0 0
  %6770 = vmatprep.subr.bf16.mxu0 0
  %6771 = vmatpush1.bf16.msra.mxu0 0
  %6772 = vmatprep.subr.bf16.mxu0 0
  %6773 = vmatpush1.bf16.msra.mxu0 0
  %6774 = vmatprep.mubr.bf16.mxu0 0
  %6775 = vmatmul.mubr.bf16.gmra.mrb[0].mxu0 %v6498
  %v6776 = vpop.f32.mrb[0].mxu0
  %v6777 = vadd.f32 0.0, %v6776
  %v6778 = vpop.f32.mrb[0].mxu0
  %v6779 = vadd.f32 0.0, %v6778
  %v6780 = vpop.f32.mrb[0].mxu0
  %v6781 = vpop.f32.mrb[0].mxu0
  %6782 = vdwg.mxu0
  %6783 = vmatprep.subr.bf16.mxu0 0
  %6784 = vmatpush1.bf16.msra.mxu0 %v911
  %6785 = vmatprep.subr.bf16.mxu0 0
  %6786 = vmatpush1.bf16.msra.mxu0 %v914
  %6787 = vmatprep.subr.bf16.mxu0 0
  %6788 = vmatpush1.bf16.msra.mxu0 %v917
  %6789 = vmatprep.subr.bf16.mxu0 0
  %6790 = vmatpush1.bf16.msra.mxu0 %v920
  %6791 = vmatprep.subr.bf16.mxu0 0
  %6792 = vmatpush1.bf16.msra.mxu0 %v923
  %6793 = vmatprep.subr.bf16.mxu0 0
  %6794 = vmatpush1.bf16.msra.mxu0 %v926
  %6795 = vmatprep.subr.bf16.mxu0 0
  %6796 = vmatpush1.bf16.msra.mxu0 %v929
  %6797 = vmatprep.subr.bf16.mxu0 0
  %6798 = vmatpush1.bf16.msra.mxu0 %v932
  %6799 = vmatprep.subr.bf16.mxu0 0
  %6800 = vmatpush1.bf16.msra.mxu0 0
  %6801 = vmatprep.subr.bf16.mxu0 0
  %6802 = vmatpush1.bf16.msra.mxu0 0
  %6803 = vmatprep.subr.bf16.mxu0 0
  %6804 = vmatpush1.bf16.msra.mxu0 0
  %6805 = vmatprep.subr.bf16.mxu0 0
  %6806 = vmatpush1.bf16.msra.mxu0 0
  %6807 = vmatprep.subr.bf16.mxu0 0
  %6808 = vmatpush1.bf16.msra.mxu0 0
  %6809 = vmatprep.subr.bf16.mxu0 0
  %6810 = vmatpush1.bf16.msra.mxu0 0
  %6811 = vmatprep.subr.bf16.mxu0 0
  %6812 = vmatpush1.bf16.msra.mxu0 0
  %6813 = vmatprep.subr.bf16.mxu0 0
  %6814 = vmatpush1.bf16.msra.mxu0 0
  %6815 = vmatprep.mubr.bf16.mxu0 0
  %6816 = vmatmul.mubr.bf16.gmra.mrb[0].mxu0 %v6498
  %v6817 = vpop.f32.mrb[0].mxu0
  %v6818 = vadd.f32 0.0, %v6817
  %v6819 = vpop.f32.mrb[0].mxu0
  %v6820 = vpop.f32.mrb[0].mxu0
  %v6821 = vpop.f32.mrb[0].mxu0
  %6822 = vdwg.mxu0
  %v6823 = vunpack.c.l.bf16 %v6487
  %v6824 = vunpack.c.h.bf16 %v6487
  %v6825 = vunpack.c.l.bf16 %v6489
  %v6826 = vunpack.c.h.bf16 %v6489
  %v6827 = vunpack.c.l.bf16 %v6491
  %v6828 = vunpack.c.h.bf16 %v6491
  %v6829 = vunpack.c.l.bf16 %v6493
  %v6830 = vunpack.c.h.bf16 %v6493
  %v6831 = vadd.f32 %v6823, %v6534
  %v6832 = vadd.f32 %v6824, %v6536
  %v6833 = vadd.f32 %v6825, %v6615
  %v6834 = vadd.f32 %v6826, %v6617
  %v6835 = vadd.f32 %v6827, %v6696
  %v6836 = vadd.f32 %v6828, %v6698
  %v6837 = vadd.f32 %v6829, %v6777
  %v6838 = vadd.f32 %v6830, %v6779
  %v6839 = vxor.u32 %v6831, 2147483648
  %v6840 = vxor.u32 %v6832, 2147483648
  %v6841 = vxor.u32 %v6833, 2147483648
  %v6842 = vxor.u32 %v6834, 2147483648
  %v6843 = vxor.u32 %v6835, 2147483648
  %v6844 = vxor.u32 %v6836, 2147483648
  %v6845 = vxor.u32 %v6837, 2147483648
  %v6846 = vxor.u32 %v6838, 2147483648
  %v6847 = vmul.f32 %v6839, 1.442695
  %v6848 = vpow.pop %v6847
  %v6849 = vmul.f32 %v6840, 1.442695
  %v6850 = vpow.pop %v6849
  %v6851 = vmul.f32 %v6841, 1.442695
  %v6852 = vpow.pop %v6851
  %v6853 = vmul.f32 %v6842, 1.442695
  %v6854 = vpow.pop %v6853
  %v6855 = vmul.f32 %v6843, 1.442695
  %v6856 = vpow.pop %v6855
  %v6857 = vmul.f32 %v6844, 1.442695
  %v6858 = vpow.pop %v6857
  %v6859 = vmul.f32 %v6845, 1.442695
  %v6860 = vpow.pop %v6859
  %v6861 = vmul.f32 %v6846, 1.442695
  %v6862 = vpow.pop %v6861
  %v6863 = vadd.f32 %v6848, 1.0
  %v6864 = vadd.f32 %v6850, 1.0
  %v6865 = vadd.f32 %v6852, 1.0
  %v6866 = vadd.f32 %v6854, 1.0
  %v6867 = vadd.f32 %v6856, 1.0
  %v6868 = vadd.f32 %v6858, 1.0
  %v6869 = vadd.f32 %v6860, 1.0
  %v6870 = vadd.f32 %v6862, 1.0
  %v6871 = vrcp.pop %v6863
  %v6872 = vmul.f32 1.0, %v6871
  %v6873 = vrcp.pop %v6864
  %v6874 = vmul.f32 1.0, %v6873
  %v6875 = vrcp.pop %v6865
  %v6876 = vmul.f32 1.0, %v6875
  %v6877 = vrcp.pop %v6866
  %v6878 = vmul.f32 1.0, %v6877
  %v6879 = vrcp.pop %v6867
  %v6880 = vmul.f32 1.0, %v6879
  %v6881 = vrcp.pop %v6868
  %v6882 = vmul.f32 1.0, %v6881
  %v6883 = vrcp.pop %v6869
  %v6884 = vmul.f32 1.0, %v6883
  %v6885 = vrcp.pop %v6870
  %v6886 = vmul.f32 1.0, %v6885
  %v6887 = vadd.f32 %v6575, %v165
  %v6888 = vadd.f32 %v6656, %v169
  %v6889 = vadd.f32 %v6737, %v173
  %v6890 = vadd.f32 %v6818, %v177
  %v6891 = vmul.f32 %v6872, %v6887
  %v6892 = vmul.f32 %v6876, %v6888
  %v6893 = vmul.f32 %v6880, %v6889
  %v6894 = vmul.f32 %v6884, %v6890
  %v6895 = vunpack.c.l.bf16 %v6488
  %v6896 = vunpack.c.l.bf16 %v6490
  %v6897 = vunpack.c.l.bf16 %v6492
  %v6898 = vunpack.c.l.bf16 %v6494
  %v6899 = vadd.f32 %v6895, %v6891
  %v6900 = vadd.f32 %v6896, %v6892
  %v6901 = vadd.f32 %v6897, %v6893
  %v6902 = vadd.f32 %v6898, %v6894
  %v6903 = vtanh.pop %v6899
  %v6904 = vtanh.pop %v6900
  %v6905 = vtanh.pop %v6901
  %v6906 = vtanh.pop %v6902
  %v6907 = vsub.f32 1.0, %v6874
  %v6908 = vsub.f32 1.0, %v6878
  %v6909 = vsub.f32 1.0, %v6882
  %v6910 = vsub.f32 1.0, %v6886
  %v6911 = vsub.f32 %v6903, %v6482
  %v6912 = vsub.f32 %v6904, %v6483
  %v6913 = vsub.f32 %v6905, %v6484
  %v6914 = vsub.f32 %v6906, %v6485
  %v6915 = vmul.f32 %v6907, %v6911
  %v6916 = vmul.f32 %v6908, %v6912
  %v6917 = vmul.f32 %v6909, %v6913
  %v6918 = vmul.f32 %v6910, %v6914
  %vm6919 = vcmp.gt.s32.totalorder %v182, 13
  %vm6920 = vcmp.gt.s32.totalorder %v183, 13
  %vm6921 = vcmp.gt.s32.totalorder %v184, 13
  %vm6922 = vcmp.gt.s32.totalorder %v185, 13
  %v6923 = vsel %vm6919, %v6915, 0.0
  %v6924 = vsel %vm6920, %v6916, 0.0
  %v6925 = vsel %vm6921, %v6917, 0.0
  %v6926 = vsel %vm6922, %v6918, 0.0
  %v6927 = vadd.f32 %v6482, %v6923
  %v6928 = vadd.f32 %v6483, %v6924
  %v6929 = vadd.f32 %v6484, %v6925
  %v6930 = vadd.f32 %v6485, %v6926
  %s6931 = scalar_lea.vmem %s0, 672
  %v6932 = vld [vmem:[%s6931] sm:$0xff]
  %v6933 = vld [vmem:[%s6931 + $0x8] sm:$0xf]
  %v6934 = vld [vmem:[%s6931 + $0xc] sm:$0xff]
  %v6935 = vld [vmem:[%s6931 + $0x14] sm:$0xf]
  %v6936 = vld [vmem:[%s6931 + $0x18] sm:$0xff]
  %v6937 = vld [vmem:[%s6931 + $0x20] sm:$0xf]
  %v6938 = vld [vmem:[%s6931 + $0x24] sm:$0xff]
  %v6939 = vld [vmem:[%s6931 + $0x2c] sm:$0xf]
  %v6940 = vpack.c.bf16 %v6927, %v6927
  %v6941 = vpack.c.bf16 %v6928, %v6928
  %v6942 = vpack.c.bf16 %v6929, %v6929
  %v6943 = vpack.c.bf16 %v6930, %v6930
  %6944 = vmatprep.subr.bf16.mxu0 %v283
  %6945 = vmatpush1.bf16.msra.mxu0 %v282
  %6946 = vmatprep.subr.bf16.mxu0 %v286
  %6947 = vmatpush1.bf16.msra.mxu0 %v285
  %6948 = vmatprep.subr.bf16.mxu0 %v289
  %6949 = vmatpush1.bf16.msra.mxu0 %v288
  %6950 = vmatprep.subr.bf16.mxu0 %v292
  %6951 = vmatpush1.bf16.msra.mxu0 %v291
  %6952 = vmatprep.subr.bf16.mxu0 %v295
  %6953 = vmatpush1.bf16.msra.mxu0 %v294
  %6954 = vmatprep.subr.bf16.mxu0 %v298
  %6955 = vmatpush1.bf16.msra.mxu0 %v297
  %6956 = vmatprep.subr.bf16.mxu0 %v301
  %6957 = vmatpush1.bf16.msra.mxu0 %v300
  %6958 = vmatprep.subr.bf16.mxu0 %v304
  %6959 = vmatpush1.bf16.msra.mxu0 %v303
  %6960 = vmatprep.subr.bf16.mxu0 0
  %6961 = vmatpush1.bf16.msra.mxu0 0
  %6962 = vmatprep.subr.bf16.mxu0 0
  %6963 = vmatpush1.bf16.msra.mxu0 0
  %6964 = vmatprep.subr.bf16.mxu0 0
  %6965 = vmatpush1.bf16.msra.mxu0 0
  %6966 = vmatprep.subr.bf16.mxu0 0
  %6967 = vmatpush1.bf16.msra.mxu0 0
  %6968 = vmatprep.subr.bf16.mxu0 0
  %6969 = vmatpush1.bf16.msra.mxu0 0
  %6970 = vmatprep.subr.bf16.mxu0 0
  %6971 = vmatpush1.bf16.msra.mxu0 0
  %6972 = vmatprep.subr.bf16.mxu0 0
  %6973 = vmatpush1.bf16.msra.mxu0 0
  %6974 = vmatprep.subr.bf16.mxu0 0
  %6975 = vmatpush1.bf16.msra.mxu0 0
  %6976 = vmatprep.mubr.bf16.mxu0 0
  %6977 = vmatmul.mubr.bf16.gmra.mrb[0].mxu0 %v6940
  %v6978 = vpop.f32.mrb[0].mxu0
  %v6979 = vadd.f32 0.0, %v6978
  %v6980 = vpop.f32.mrb[0].mxu0
  %v6981 = vadd.f32 0.0, %v6980
  %v6982 = vpop.f32.mrb[0].mxu0
  %v6983 = vpop.f32.mrb[0].mxu0
  %6984 = vdwg.mxu0
  %6985 = vmatprep.subr.bf16.mxu0 0
  %6986 = vmatpush1.bf16.msra.mxu0 %v284
  %6987 = vmatprep.subr.bf16.mxu0 0
  %6988 = vmatpush1.bf16.msra.mxu0 %v287
  %6989 = vmatprep.subr.bf16.mxu0 0
  %6990 = vmatpush1.bf16.msra.mxu0 %v290
  %6991 = vmatprep.subr.bf16.mxu0 0
  %6992 = vmatpush1.bf16.msra.mxu0 %v293
  %6993 = vmatprep.subr.bf16.mxu0 0
  %6994 = vmatpush1.bf16.msra.mxu0 %v296
  %6995 = vmatprep.subr.bf16.mxu0 0
  %6996 = vmatpush1.bf16.msra.mxu0 %v299
  %6997 = vmatprep.subr.bf16.mxu0 0
  %6998 = vmatpush1.bf16.msra.mxu0 %v302
  %6999 = vmatprep.subr.bf16.mxu0 0
  %7000 = vmatpush1.bf16.msra.mxu0 %v305
  %7001 = vmatprep.subr.bf16.mxu0 0
  %7002 = vmatpush1.bf16.msra.mxu0 0
  %7003 = vmatprep.subr.bf16.mxu0 0
  %7004 = vmatpush1.bf16.msra.mxu0 0
  %7005 = vmatprep.subr.bf16.mxu0 0
  %7006 = vmatpush1.bf16.msra.mxu0 0
  %7007 = vmatprep.subr.bf16.mxu0 0
  %7008 = vmatpush1.bf16.msra.mxu0 0
  %7009 = vmatprep.subr.bf16.mxu0 0
  %7010 = vmatpush1.bf16.msra.mxu0 0
  %7011 = vmatprep.subr.bf16.mxu0 0
  %7012 = vmatpush1.bf16.msra.mxu0 0
  %7013 = vmatprep.subr.bf16.mxu0 0
  %7014 = vmatpush1.bf16.msra.mxu0 0
  %7015 = vmatprep.subr.bf16.mxu0 0
  %7016 = vmatpush1.bf16.msra.mxu0 0
  %7017 = vmatprep.mubr.bf16.mxu0 0
  %7018 = vmatmul.mubr.bf16.gmra.mrb[0].mxu0 %v6940
  %v7019 = vpop.f32.mrb[0].mxu0
  %v7020 = vadd.f32 0.0, %v7019
  %v7021 = vpop.f32.mrb[0].mxu0
  %v7022 = vpop.f32.mrb[0].mxu0
  %v7023 = vpop.f32.mrb[0].mxu0
  %7024 = vdwg.mxu0
  %7025 = vmatprep.subr.bf16.mxu0 %v492
  %7026 = vmatpush1.bf16.msra.mxu0 %v491
  %7027 = vmatprep.subr.bf16.mxu0 %v495
  %7028 = vmatpush1.bf16.msra.mxu0 %v494
  %7029 = vmatprep.subr.bf16.mxu0 %v498
  %7030 = vmatpush1.bf16.msra.mxu0 %v497
  %7031 = vmatprep.subr.bf16.mxu0 %v501
  %7032 = vmatpush1.bf16.msra.mxu0 %v500
  %7033 = vmatprep.subr.bf16.mxu0 %v504
  %7034 = vmatpush1.bf16.msra.mxu0 %v503
  %7035 = vmatprep.subr.bf16.mxu0 %v507
  %7036 = vmatpush1.bf16.msra.mxu0 %v506
  %7037 = vmatprep.subr.bf16.mxu0 %v510
  %7038 = vmatpush1.bf16.msra.mxu0 %v509
  %7039 = vmatprep.subr.bf16.mxu0 %v513
  %7040 = vmatpush1.bf16.msra.mxu0 %v512
  %7041 = vmatprep.subr.bf16.mxu0 0
  %7042 = vmatpush1.bf16.msra.mxu0 0
  %7043 = vmatprep.subr.bf16.mxu0 0
  %7044 = vmatpush1.bf16.msra.mxu0 0
  %7045 = vmatprep.subr.bf16.mxu0 0
  %7046 = vmatpush1.bf16.msra.mxu0 0
  %7047 = vmatprep.subr.bf16.mxu0 0
  %7048 = vmatpush1.bf16.msra.mxu0 0
  %7049 = vmatprep.subr.bf16.mxu0 0
  %7050 = vmatpush1.bf16.msra.mxu0 0
  %7051 = vmatprep.subr.bf16.mxu0 0
  %7052 = vmatpush1.bf16.msra.mxu0 0
  %7053 = vmatprep.subr.bf16.mxu0 0
  %7054 = vmatpush1.bf16.msra.mxu0 0
  %7055 = vmatprep.subr.bf16.mxu0 0
  %7056 = vmatpush1.bf16.msra.mxu0 0
  %7057 = vmatprep.mubr.bf16.mxu0 0
  %7058 = vmatmul.mubr.bf16.gmra.mrb[0].mxu0 %v6941
  %v7059 = vpop.f32.mrb[0].mxu0
  %v7060 = vadd.f32 0.0, %v7059
  %v7061 = vpop.f32.mrb[0].mxu0
  %v7062 = vadd.f32 0.0, %v7061
  %v7063 = vpop.f32.mrb[0].mxu0
  %v7064 = vpop.f32.mrb[0].mxu0
  %7065 = vdwg.mxu0
  %7066 = vmatprep.subr.bf16.mxu0 0
  %7067 = vmatpush1.bf16.msra.mxu0 %v493
  %7068 = vmatprep.subr.bf16.mxu0 0
  %7069 = vmatpush1.bf16.msra.mxu0 %v496
  %7070 = vmatprep.subr.bf16.mxu0 0
  %7071 = vmatpush1.bf16.msra.mxu0 %v499
  %7072 = vmatprep.subr.bf16.mxu0 0
  %7073 = vmatpush1.bf16.msra.mxu0 %v502
  %7074 = vmatprep.subr.bf16.mxu0 0
  %7075 = vmatpush1.bf16.msra.mxu0 %v505
  %7076 = vmatprep.subr.bf16.mxu0 0
  %7077 = vmatpush1.bf16.msra.mxu0 %v508
  %7078 = vmatprep.subr.bf16.mxu0 0
  %7079 = vmatpush1.bf16.msra.mxu0 %v511
  %7080 = vmatprep.subr.bf16.mxu0 0
  %7081 = vmatpush1.bf16.msra.mxu0 %v514
  %7082 = vmatprep.subr.bf16.mxu0 0
  %7083 = vmatpush1.bf16.msra.mxu0 0
  %7084 = vmatprep.subr.bf16.mxu0 0
  %7085 = vmatpush1.bf16.msra.mxu0 0
  %7086 = vmatprep.subr.bf16.mxu0 0
  %7087 = vmatpush1.bf16.msra.mxu0 0
  %7088 = vmatprep.subr.bf16.mxu0 0
  %7089 = vmatpush1.bf16.msra.mxu0 0
  %7090 = vmatprep.subr.bf16.mxu0 0
  %7091 = vmatpush1.bf16.msra.mxu0 0
  %7092 = vmatprep.subr.bf16.mxu0 0
  %7093 = vmatpush1.bf16.msra.mxu0 0
  %7094 = vmatprep.subr.bf16.mxu0 0
  %7095 = vmatpush1.bf16.msra.mxu0 0
  %7096 = vmatprep.subr.bf16.mxu0 0
  %7097 = vmatpush1.bf16.msra.mxu0 0
  %7098 = vmatprep.mubr.bf16.mxu0 0
  %7099 = vmatmul.mubr.bf16.gmra.mrb[0].mxu0 %v6941
  %v7100 = vpop.f32.mrb[0].mxu0
  %v7101 = vadd.f32 0.0, %v7100
  %v7102 = vpop.f32.mrb[0].mxu0
  %v7103 = vpop.f32.mrb[0].mxu0
  %v7104 = vpop.f32.mrb[0].mxu0
  %7105 = vdwg.mxu0
  %7106 = vmatprep.subr.bf16.mxu0 %v701
  %7107 = vmatpush1.bf16.msra.mxu0 %v700
  %7108 = vmatprep.subr.bf16.mxu0 %v704
  %7109 = vmatpush1.bf16.msra.mxu0 %v703
  %7110 = vmatprep.subr.bf16.mxu0 %v707
  %7111 = vmatpush1.bf16.msra.mxu0 %v706
  %7112 = vmatprep.subr.bf16.mxu0 %v710
  %7113 = vmatpush1.bf16.msra.mxu0 %v709
  %7114 = vmatprep.subr.bf16.mxu0 %v713
  %7115 = vmatpush1.bf16.msra.mxu0 %v712
  %7116 = vmatprep.subr.bf16.mxu0 %v716
  %7117 = vmatpush1.bf16.msra.mxu0 %v715
  %7118 = vmatprep.subr.bf16.mxu0 %v719
  %7119 = vmatpush1.bf16.msra.mxu0 %v718
  %7120 = vmatprep.subr.bf16.mxu0 %v722
  %7121 = vmatpush1.bf16.msra.mxu0 %v721
  %7122 = vmatprep.subr.bf16.mxu0 0
  %7123 = vmatpush1.bf16.msra.mxu0 0
  %7124 = vmatprep.subr.bf16.mxu0 0
  %7125 = vmatpush1.bf16.msra.mxu0 0
  %7126 = vmatprep.subr.bf16.mxu0 0
  %7127 = vmatpush1.bf16.msra.mxu0 0
  %7128 = vmatprep.subr.bf16.mxu0 0
  %7129 = vmatpush1.bf16.msra.mxu0 0
  %7130 = vmatprep.subr.bf16.mxu0 0
  %7131 = vmatpush1.bf16.msra.mxu0 0
  %7132 = vmatprep.subr.bf16.mxu0 0
  %7133 = vmatpush1.bf16.msra.mxu0 0
  %7134 = vmatprep.subr.bf16.mxu0 0
  %7135 = vmatpush1.bf16.msra.mxu0 0
  %7136 = vmatprep.subr.bf16.mxu0 0
  %7137 = vmatpush1.bf16.msra.mxu0 0
  %7138 = vmatprep.mubr.bf16.mxu0 0
  %7139 = vmatmul.mubr.bf16.gmra.mrb[0].mxu0 %v6942
  %v7140 = vpop.f32.mrb[0].mxu0
  %v7141 = vadd.f32 0.0, %v7140
  %v7142 = vpop.f32.mrb[0].mxu0
  %v7143 = vadd.f32 0.0, %v7142
  %v7144 = vpop.f32.mrb[0].mxu0
  %v7145 = vpop.f32.mrb[0].mxu0
  %7146 = vdwg.mxu0
  %7147 = vmatprep.subr.bf16.mxu0 0
  %7148 = vmatpush1.bf16.msra.mxu0 %v702
  %7149 = vmatprep.subr.bf16.mxu0 0
  %7150 = vmatpush1.bf16.msra.mxu0 %v705
  %7151 = vmatprep.subr.bf16.mxu0 0
  %7152 = vmatpush1.bf16.msra.mxu0 %v708
  %7153 = vmatprep.subr.bf16.mxu0 0
  %7154 = vmatpush1.bf16.msra.mxu0 %v711
  %7155 = vmatprep.subr.bf16.mxu0 0
  %7156 = vmatpush1.bf16.msra.mxu0 %v714
  %7157 = vmatprep.subr.bf16.mxu0 0
  %7158 = vmatpush1.bf16.msra.mxu0 %v717
  %7159 = vmatprep.subr.bf16.mxu0 0
  %7160 = vmatpush1.bf16.msra.mxu0 %v720
  %7161 = vmatprep.subr.bf16.mxu0 0
  %7162 = vmatpush1.bf16.msra.mxu0 %v723
  %7163 = vmatprep.subr.bf16.mxu0 0
  %7164 = vmatpush1.bf16.msra.mxu0 0
  %7165 = vmatprep.subr.bf16.mxu0 0
  %7166 = vmatpush1.bf16.msra.mxu0 0
  %7167 = vmatprep.subr.bf16.mxu0 0
  %7168 = vmatpush1.bf16.msra.mxu0 0
  %7169 = vmatprep.subr.bf16.mxu0 0
  %7170 = vmatpush1.bf16.msra.mxu0 0
  %7171 = vmatprep.subr.bf16.mxu0 0
  %7172 = vmatpush1.bf16.msra.mxu0 0
  %7173 = vmatprep.subr.bf16.mxu0 0
  %7174 = vmatpush1.bf16.msra.mxu0 0
  %7175 = vmatprep.subr.bf16.mxu0 0
  %7176 = vmatpush1.bf16.msra.mxu0 0
  %7177 = vmatprep.subr.bf16.mxu0 0
  %7178 = vmatpush1.bf16.msra.mxu0 0
  %7179 = vmatprep.mubr.bf16.mxu0 0
  %7180 = vmatmul.mubr.bf16.gmra.mrb[0].mxu0 %v6942
  %v7181 = vpop.f32.mrb[0].mxu0
  %v7182 = vadd.f32 0.0, %v7181
  %v7183 = vpop.f32.mrb[0].mxu0
  %v7184 = vpop.f32.mrb[0].mxu0
  %v7185 = vpop.f32.mrb[0].mxu0
  %7186 = vdwg.mxu0
  %7187 = vmatprep.subr.bf16.mxu0 %v910
  %7188 = vmatpush1.bf16.msra.mxu0 %v909
  %7189 = vmatprep.subr.bf16.mxu0 %v913
  %7190 = vmatpush1.bf16.msra.mxu0 %v912
  %7191 = vmatprep.subr.bf16.mxu0 %v916
  %7192 = vmatpush1.bf16.msra.mxu0 %v915
  %7193 = vmatprep.subr.bf16.mxu0 %v919
  %7194 = vmatpush1.bf16.msra.mxu0 %v918
  %7195 = vmatprep.subr.bf16.mxu0 %v922
  %7196 = vmatpush1.bf16.msra.mxu0 %v921
  %7197 = vmatprep.subr.bf16.mxu0 %v925
  %7198 = vmatpush1.bf16.msra.mxu0 %v924
  %7199 = vmatprep.subr.bf16.mxu0 %v928
  %7200 = vmatpush1.bf16.msra.mxu0 %v927
  %7201 = vmatprep.subr.bf16.mxu0 %v931
  %7202 = vmatpush1.bf16.msra.mxu0 %v930
  %7203 = vmatprep.subr.bf16.mxu0 0
  %7204 = vmatpush1.bf16.msra.mxu0 0
  %7205 = vmatprep.subr.bf16.mxu0 0
  %7206 = vmatpush1.bf16.msra.mxu0 0
  %7207 = vmatprep.subr.bf16.mxu0 0
  %7208 = vmatpush1.bf16.msra.mxu0 0
  %7209 = vmatprep.subr.bf16.mxu0 0
  %7210 = vmatpush1.bf16.msra.mxu0 0
  %7211 = vmatprep.subr.bf16.mxu0 0
  %7212 = vmatpush1.bf16.msra.mxu0 0
  %7213 = vmatprep.subr.bf16.mxu0 0
  %7214 = vmatpush1.bf16.msra.mxu0 0
  %7215 = vmatprep.subr.bf16.mxu0 0
  %7216 = vmatpush1.bf16.msra.mxu0 0
  %7217 = vmatprep.subr.bf16.mxu0 0
  %7218 = vmatpush1.bf16.msra.mxu0 0
  %7219 = vmatprep.mubr.bf16.mxu0 0
  %7220 = vmatmul.mubr.bf16.gmra.mrb[0].mxu0 %v6943
  %v7221 = vpop.f32.mrb[0].mxu0
  %v7222 = vadd.f32 0.0, %v7221
  %v7223 = vpop.f32.mrb[0].mxu0
  %v7224 = vadd.f32 0.0, %v7223
  %v7225 = vpop.f32.mrb[0].mxu0
  %v7226 = vpop.f32.mrb[0].mxu0
  %7227 = vdwg.mxu0
  %7228 = vmatprep.subr.bf16.mxu0 0
  %7229 = vmatpush1.bf16.msra.mxu0 %v911
  %7230 = vmatprep.subr.bf16.mxu0 0
  %7231 = vmatpush1.bf16.msra.mxu0 %v914
  %7232 = vmatprep.subr.bf16.mxu0 0
  %7233 = vmatpush1.bf16.msra.mxu0 %v917
  %7234 = vmatprep.subr.bf16.mxu0 0
  %7235 = vmatpush1.bf16.msra.mxu0 %v920
  %7236 = vmatprep.subr.bf16.mxu0 0
  %7237 = vmatpush1.bf16.msra.mxu0 %v923
  %7238 = vmatprep.subr.bf16.mxu0 0
  %7239 = vmatpush1.bf16.msra.mxu0 %v926
  %7240 = vmatprep.subr.bf16.mxu0 0
  %7241 = vmatpush1.bf16.msra.mxu0 %v929
  %7242 = vmatprep.subr.bf16.mxu0 0
  %7243 = vmatpush1.bf16.msra.mxu0 %v932
  %7244 = vmatprep.subr.bf16.mxu0 0
  %7245 = vmatpush1.bf16.msra.mxu0 0
  %7246 = vmatprep.subr.bf16.mxu0 0
  %7247 = vmatpush1.bf16.msra.mxu0 0
  %7248 = vmatprep.subr.bf16.mxu0 0
  %7249 = vmatpush1.bf16.msra.mxu0 0
  %7250 = vmatprep.subr.bf16.mxu0 0
  %7251 = vmatpush1.bf16.msra.mxu0 0
  %7252 = vmatprep.subr.bf16.mxu0 0
  %7253 = vmatpush1.bf16.msra.mxu0 0
  %7254 = vmatprep.subr.bf16.mxu0 0
  %7255 = vmatpush1.bf16.msra.mxu0 0
  %7256 = vmatprep.subr.bf16.mxu0 0
  %7257 = vmatpush1.bf16.msra.mxu0 0
  %7258 = vmatprep.subr.bf16.mxu0 0
  %7259 = vmatpush1.bf16.msra.mxu0 0
  %7260 = vmatprep.mubr.bf16.mxu0 0
  %7261 = vmatmul.mubr.bf16.gmra.mrb[0].mxu0 %v6943
  %v7262 = vpop.f32.mrb[0].mxu0
  %v7263 = vadd.f32 0.0, %v7262
  %v7264 = vpop.f32.mrb[0].mxu0
  %v7265 = vpop.f32.mrb[0].mxu0
  %v7266 = vpop.f32.mrb[0].mxu0
  %7267 = vdwg.mxu0
  %v7268 = vunpack.c.l.bf16 %v6932
  %v7269 = vunpack.c.h.bf16 %v6932
  %v7270 = vunpack.c.l.bf16 %v6934
  %v7271 = vunpack.c.h.bf16 %v6934
  %v7272 = vunpack.c.l.bf16 %v6936
  %v7273 = vunpack.c.h.bf16 %v6936
  %v7274 = vunpack.c.l.bf16 %v6938
  %v7275 = vunpack.c.h.bf16 %v6938
  %v7276 = vadd.f32 %v7268, %v6979
  %v7277 = vadd.f32 %v7269, %v6981
  %v7278 = vadd.f32 %v7270, %v7060
  %v7279 = vadd.f32 %v7271, %v7062
  %v7280 = vadd.f32 %v7272, %v7141
  %v7281 = vadd.f32 %v7273, %v7143
  %v7282 = vadd.f32 %v7274, %v7222
  %v7283 = vadd.f32 %v7275, %v7224
  %v7284 = vxor.u32 %v7276, 2147483648
  %v7285 = vxor.u32 %v7277, 2147483648
  %v7286 = vxor.u32 %v7278, 2147483648
  %v7287 = vxor.u32 %v7279, 2147483648
  %v7288 = vxor.u32 %v7280, 2147483648
  %v7289 = vxor.u32 %v7281, 2147483648
  %v7290 = vxor.u32 %v7282, 2147483648
  %v7291 = vxor.u32 %v7283, 2147483648
  %v7292 = vmul.f32 %v7284, 1.442695
  %v7293 = vpow.pop %v7292
  %v7294 = vmul.f32 %v7285, 1.442695
  %v7295 = vpow.pop %v7294
  %v7296 = vmul.f32 %v7286, 1.442695
  %v7297 = vpow.pop %v7296
  %v7298 = vmul.f32 %v7287, 1.442695
  %v7299 = vpow.pop %v7298
  %v7300 = vmul.f32 %v7288, 1.442695
  %v7301 = vpow.pop %v7300
  %v7302 = vmul.f32 %v7289, 1.442695
  %v7303 = vpow.pop %v7302
  %v7304 = vmul.f32 %v7290, 1.442695
  %v7305 = vpow.pop %v7304
  %v7306 = vmul.f32 %v7291, 1.442695
  %v7307 = vpow.pop %v7306
  %v7308 = vadd.f32 %v7293, 1.0
  %v7309 = vadd.f32 %v7295, 1.0
  %v7310 = vadd.f32 %v7297, 1.0
  %v7311 = vadd.f32 %v7299, 1.0
  %v7312 = vadd.f32 %v7301, 1.0
  %v7313 = vadd.f32 %v7303, 1.0
  %v7314 = vadd.f32 %v7305, 1.0
  %v7315 = vadd.f32 %v7307, 1.0
  %v7316 = vrcp.pop %v7308
  %v7317 = vmul.f32 1.0, %v7316
  %v7318 = vrcp.pop %v7309
  %v7319 = vmul.f32 1.0, %v7318
  %v7320 = vrcp.pop %v7310
  %v7321 = vmul.f32 1.0, %v7320
  %v7322 = vrcp.pop %v7311
  %v7323 = vmul.f32 1.0, %v7322
  %v7324 = vrcp.pop %v7312
  %v7325 = vmul.f32 1.0, %v7324
  %v7326 = vrcp.pop %v7313
  %v7327 = vmul.f32 1.0, %v7326
  %v7328 = vrcp.pop %v7314
  %v7329 = vmul.f32 1.0, %v7328
  %v7330 = vrcp.pop %v7315
  %v7331 = vmul.f32 1.0, %v7330
  %v7332 = vadd.f32 %v7020, %v165
  %v7333 = vadd.f32 %v7101, %v169
  %v7334 = vadd.f32 %v7182, %v173
  %v7335 = vadd.f32 %v7263, %v177
  %v7336 = vmul.f32 %v7317, %v7332
  %v7337 = vmul.f32 %v7321, %v7333
  %v7338 = vmul.f32 %v7325, %v7334
  %v7339 = vmul.f32 %v7329, %v7335
  %v7340 = vunpack.c.l.bf16 %v6933
  %v7341 = vunpack.c.l.bf16 %v6935
  %v7342 = vunpack.c.l.bf16 %v6937
  %v7343 = vunpack.c.l.bf16 %v6939
  %v7344 = vadd.f32 %v7340, %v7336
  %v7345 = vadd.f32 %v7341, %v7337
  %v7346 = vadd.f32 %v7342, %v7338
  %v7347 = vadd.f32 %v7343, %v7339
  %v7348 = vtanh.pop %v7344
  %v7349 = vtanh.pop %v7345
  %v7350 = vtanh.pop %v7346
  %v7351 = vtanh.pop %v7347
  %v7352 = vsub.f32 1.0, %v7319
  %v7353 = vsub.f32 1.0, %v7323
  %v7354 = vsub.f32 1.0, %v7327
  %v7355 = vsub.f32 1.0, %v7331
  %v7356 = vsub.f32 %v7348, %v6927
  %v7357 = vsub.f32 %v7349, %v6928
  %v7358 = vsub.f32 %v7350, %v6929
  %v7359 = vsub.f32 %v7351, %v6930
  %v7360 = vmul.f32 %v7352, %v7356
  %v7361 = vmul.f32 %v7353, %v7357
  %v7362 = vmul.f32 %v7354, %v7358
  %v7363 = vmul.f32 %v7355, %v7359
  %vm7364 = vcmp.gt.s32.totalorder %v182, 14
  %vm7365 = vcmp.gt.s32.totalorder %v183, 14
  %vm7366 = vcmp.gt.s32.totalorder %v184, 14
  %vm7367 = vcmp.gt.s32.totalorder %v185, 14
  %v7368 = vsel %vm7364, %v7360, 0.0
  %v7369 = vsel %vm7365, %v7361, 0.0
  %v7370 = vsel %vm7366, %v7362, 0.0
  %v7371 = vsel %vm7367, %v7363, 0.0
  %v7372 = vadd.f32 %v6927, %v7368
  %v7373 = vadd.f32 %v6928, %v7369
  %v7374 = vadd.f32 %v6929, %v7370
  %v7375 = vadd.f32 %v6930, %v7371
  %s7376 = scalar_lea.vmem %s0, 720
  %v7377 = vld [vmem:[%s7376] sm:$0xff]
  %v7378 = vld [vmem:[%s7376 + $0x8] sm:$0xf]
  %v7379 = vld [vmem:[%s7376 + $0xc] sm:$0xff]
  %v7380 = vld [vmem:[%s7376 + $0x14] sm:$0xf]
  %v7381 = vld [vmem:[%s7376 + $0x18] sm:$0xff]
  %v7382 = vld [vmem:[%s7376 + $0x20] sm:$0xf]
  %v7383 = vld [vmem:[%s7376 + $0x24] sm:$0xff]
  %v7384 = vld [vmem:[%s7376 + $0x2c] sm:$0xf]
  %v7385 = vpack.c.bf16 %v7372, %v7372
  %v7386 = vpack.c.bf16 %v7373, %v7373
  %v7387 = vpack.c.bf16 %v7374, %v7374
  %v7388 = vpack.c.bf16 %v7375, %v7375
  %7389 = vmatprep.subr.bf16.mxu0 %v283
  %7390 = vmatpush1.bf16.msra.mxu0 %v282
  %7391 = vmatprep.subr.bf16.mxu0 %v286
  %7392 = vmatpush1.bf16.msra.mxu0 %v285
  %7393 = vmatprep.subr.bf16.mxu0 %v289
  %7394 = vmatpush1.bf16.msra.mxu0 %v288
  %7395 = vmatprep.subr.bf16.mxu0 %v292
  %7396 = vmatpush1.bf16.msra.mxu0 %v291
  %7397 = vmatprep.subr.bf16.mxu0 %v295
  %7398 = vmatpush1.bf16.msra.mxu0 %v294
  %7399 = vmatprep.subr.bf16.mxu0 %v298
  %7400 = vmatpush1.bf16.msra.mxu0 %v297
  %7401 = vmatprep.subr.bf16.mxu0 %v301
  %7402 = vmatpush1.bf16.msra.mxu0 %v300
  %7403 = vmatprep.subr.bf16.mxu0 %v304
  %7404 = vmatpush1.bf16.msra.mxu0 %v303
  %7405 = vmatprep.subr.bf16.mxu0 0
  %7406 = vmatpush1.bf16.msra.mxu0 0
  %7407 = vmatprep.subr.bf16.mxu0 0
  %7408 = vmatpush1.bf16.msra.mxu0 0
  %7409 = vmatprep.subr.bf16.mxu0 0
  %7410 = vmatpush1.bf16.msra.mxu0 0
  %7411 = vmatprep.subr.bf16.mxu0 0
  %7412 = vmatpush1.bf16.msra.mxu0 0
  %7413 = vmatprep.subr.bf16.mxu0 0
  %7414 = vmatpush1.bf16.msra.mxu0 0
  %7415 = vmatprep.subr.bf16.mxu0 0
  %7416 = vmatpush1.bf16.msra.mxu0 0
  %7417 = vmatprep.subr.bf16.mxu0 0
  %7418 = vmatpush1.bf16.msra.mxu0 0
  %7419 = vmatprep.subr.bf16.mxu0 0
  %7420 = vmatpush1.bf16.msra.mxu0 0
  %7421 = vmatprep.mubr.bf16.mxu0 0
  %7422 = vmatmul.mubr.bf16.gmra.mrb[0].mxu0 %v7385
  %v7423 = vpop.f32.mrb[0].mxu0
  %v7424 = vadd.f32 0.0, %v7423
  %v7425 = vpop.f32.mrb[0].mxu0
  %v7426 = vadd.f32 0.0, %v7425
  %v7427 = vpop.f32.mrb[0].mxu0
  %v7428 = vpop.f32.mrb[0].mxu0
  %7429 = vdwg.mxu0
  %7430 = vmatprep.subr.bf16.mxu0 0
  %7431 = vmatpush1.bf16.msra.mxu0 %v284
  %7432 = vmatprep.subr.bf16.mxu0 0
  %7433 = vmatpush1.bf16.msra.mxu0 %v287
  %7434 = vmatprep.subr.bf16.mxu0 0
  %7435 = vmatpush1.bf16.msra.mxu0 %v290
  %7436 = vmatprep.subr.bf16.mxu0 0
  %7437 = vmatpush1.bf16.msra.mxu0 %v293
  %7438 = vmatprep.subr.bf16.mxu0 0
  %7439 = vmatpush1.bf16.msra.mxu0 %v296
  %7440 = vmatprep.subr.bf16.mxu0 0
  %7441 = vmatpush1.bf16.msra.mxu0 %v299
  %7442 = vmatprep.subr.bf16.mxu0 0
  %7443 = vmatpush1.bf16.msra.mxu0 %v302
  %7444 = vmatprep.subr.bf16.mxu0 0
  %7445 = vmatpush1.bf16.msra.mxu0 %v305
  %7446 = vmatprep.subr.bf16.mxu0 0
  %7447 = vmatpush1.bf16.msra.mxu0 0
  %7448 = vmatprep.subr.bf16.mxu0 0
  %7449 = vmatpush1.bf16.msra.mxu0 0
  %7450 = vmatprep.subr.bf16.mxu0 0
  %7451 = vmatpush1.bf16.msra.mxu0 0
  %7452 = vmatprep.subr.bf16.mxu0 0
  %7453 = vmatpush1.bf16.msra.mxu0 0
  %7454 = vmatprep.subr.bf16.mxu0 0
  %7455 = vmatpush1.bf16.msra.mxu0 0
  %7456 = vmatprep.subr.bf16.mxu0 0
  %7457 = vmatpush1.bf16.msra.mxu0 0
  %7458 = vmatprep.subr.bf16.mxu0 0
  %7459 = vmatpush1.bf16.msra.mxu0 0
  %7460 = vmatprep.subr.bf16.mxu0 0
  %7461 = vmatpush1.bf16.msra.mxu0 0
  %7462 = vmatprep.mubr.bf16.mxu0 0
  %7463 = vmatmul.mubr.bf16.gmra.mrb[0].mxu0 %v7385
  %v7464 = vpop.f32.mrb[0].mxu0
  %v7465 = vadd.f32 0.0, %v7464
  %v7466 = vpop.f32.mrb[0].mxu0
  %v7467 = vpop.f32.mrb[0].mxu0
  %v7468 = vpop.f32.mrb[0].mxu0
  %7469 = vdwg.mxu0
  %7470 = vmatprep.subr.bf16.mxu0 %v492
  %7471 = vmatpush1.bf16.msra.mxu0 %v491
  %7472 = vmatprep.subr.bf16.mxu0 %v495
  %7473 = vmatpush1.bf16.msra.mxu0 %v494
  %7474 = vmatprep.subr.bf16.mxu0 %v498
  %7475 = vmatpush1.bf16.msra.mxu0 %v497
  %7476 = vmatprep.subr.bf16.mxu0 %v501
  %7477 = vmatpush1.bf16.msra.mxu0 %v500
  %7478 = vmatprep.subr.bf16.mxu0 %v504
  %7479 = vmatpush1.bf16.msra.mxu0 %v503
  %7480 = vmatprep.subr.bf16.mxu0 %v507
  %7481 = vmatpush1.bf16.msra.mxu0 %v506
  %7482 = vmatprep.subr.bf16.mxu0 %v510
  %7483 = vmatpush1.bf16.msra.mxu0 %v509
  %7484 = vmatprep.subr.bf16.mxu0 %v513
  %7485 = vmatpush1.bf16.msra.mxu0 %v512
  %7486 = vmatprep.subr.bf16.mxu0 0
  %7487 = vmatpush1.bf16.msra.mxu0 0
  %7488 = vmatprep.subr.bf16.mxu0 0
  %7489 = vmatpush1.bf16.msra.mxu0 0
  %7490 = vmatprep.subr.bf16.mxu0 0
  %7491 = vmatpush1.bf16.msra.mxu0 0
  %7492 = vmatprep.subr.bf16.mxu0 0
  %7493 = vmatpush1.bf16.msra.mxu0 0
  %7494 = vmatprep.subr.bf16.mxu0 0
  %7495 = vmatpush1.bf16.msra.mxu0 0
  %7496 = vmatprep.subr.bf16.mxu0 0
  %7497 = vmatpush1.bf16.msra.mxu0 0
  %7498 = vmatprep.subr.bf16.mxu0 0
  %7499 = vmatpush1.bf16.msra.mxu0 0
  %7500 = vmatprep.subr.bf16.mxu0 0
  %7501 = vmatpush1.bf16.msra.mxu0 0
  %7502 = vmatprep.mubr.bf16.mxu0 0
  %7503 = vmatmul.mubr.bf16.gmra.mrb[0].mxu0 %v7386
  %v7504 = vpop.f32.mrb[0].mxu0
  %v7505 = vadd.f32 0.0, %v7504
  %v7506 = vpop.f32.mrb[0].mxu0
  %v7507 = vadd.f32 0.0, %v7506
  %v7508 = vpop.f32.mrb[0].mxu0
  %v7509 = vpop.f32.mrb[0].mxu0
  %7510 = vdwg.mxu0
  %7511 = vmatprep.subr.bf16.mxu0 0
  %7512 = vmatpush1.bf16.msra.mxu0 %v493
  %7513 = vmatprep.subr.bf16.mxu0 0
  %7514 = vmatpush1.bf16.msra.mxu0 %v496
  %7515 = vmatprep.subr.bf16.mxu0 0
  %7516 = vmatpush1.bf16.msra.mxu0 %v499
  %7517 = vmatprep.subr.bf16.mxu0 0
  %7518 = vmatpush1.bf16.msra.mxu0 %v502
  %7519 = vmatprep.subr.bf16.mxu0 0
  %7520 = vmatpush1.bf16.msra.mxu0 %v505
  %7521 = vmatprep.subr.bf16.mxu0 0
  %7522 = vmatpush1.bf16.msra.mxu0 %v508
  %7523 = vmatprep.subr.bf16.mxu0 0
  %7524 = vmatpush1.bf16.msra.mxu0 %v511
  %7525 = vmatprep.subr.bf16.mxu0 0
  %7526 = vmatpush1.bf16.msra.mxu0 %v514
  %7527 = vmatprep.subr.bf16.mxu0 0
  %7528 = vmatpush1.bf16.msra.mxu0 0
  %7529 = vmatprep.subr.bf16.mxu0 0
  %7530 = vmatpush1.bf16.msra.mxu0 0
  %7531 = vmatprep.subr.bf16.mxu0 0
  %7532 = vmatpush1.bf16.msra.mxu0 0
  %7533 = vmatprep.subr.bf16.mxu0 0
  %7534 = vmatpush1.bf16.msra.mxu0 0
  %7535 = vmatprep.subr.bf16.mxu0 0
  %7536 = vmatpush1.bf16.msra.mxu0 0
  %7537 = vmatprep.subr.bf16.mxu0 0
  %7538 = vmatpush1.bf16.msra.mxu0 0
  %7539 = vmatprep.subr.bf16.mxu0 0
  %7540 = vmatpush1.bf16.msra.mxu0 0
  %7541 = vmatprep.subr.bf16.mxu0 0
  %7542 = vmatpush1.bf16.msra.mxu0 0
  %7543 = vmatprep.mubr.bf16.mxu0 0
  %7544 = vmatmul.mubr.bf16.gmra.mrb[0].mxu0 %v7386
  %v7545 = vpop.f32.mrb[0].mxu0
  %v7546 = vadd.f32 0.0, %v7545
  %v7547 = vpop.f32.mrb[0].mxu0
  %v7548 = vpop.f32.mrb[0].mxu0
  %v7549 = vpop.f32.mrb[0].mxu0
  %7550 = vdwg.mxu0
  %7551 = vmatprep.subr.bf16.mxu0 %v701
  %7552 = vmatpush1.bf16.msra.mxu0 %v700
  %7553 = vmatprep.subr.bf16.mxu0 %v704
  %7554 = vmatpush1.bf16.msra.mxu0 %v703
  %7555 = vmatprep.subr.bf16.mxu0 %v707
  %7556 = vmatpush1.bf16.msra.mxu0 %v706
  %7557 = vmatprep.subr.bf16.mxu0 %v710
  %7558 = vmatpush1.bf16.msra.mxu0 %v709
  %7559 = vmatprep.subr.bf16.mxu0 %v713
  %7560 = vmatpush1.bf16.msra.mxu0 %v712
  %7561 = vmatprep.subr.bf16.mxu0 %v716
  %7562 = vmatpush1.bf16.msra.mxu0 %v715
  %7563 = vmatprep.subr.bf16.mxu0 %v719
  %7564 = vmatpush1.bf16.msra.mxu0 %v718
  %7565 = vmatprep.subr.bf16.mxu0 %v722
  %7566 = vmatpush1.bf16.msra.mxu0 %v721
  %7567 = vmatprep.subr.bf16.mxu0 0
  %7568 = vmatpush1.bf16.msra.mxu0 0
  %7569 = vmatprep.subr.bf16.mxu0 0
  %7570 = vmatpush1.bf16.msra.mxu0 0
  %7571 = vmatprep.subr.bf16.mxu0 0
  %7572 = vmatpush1.bf16.msra.mxu0 0
  %7573 = vmatprep.subr.bf16.mxu0 0
  %7574 = vmatpush1.bf16.msra.mxu0 0
  %7575 = vmatprep.subr.bf16.mxu0 0
  %7576 = vmatpush1.bf16.msra.mxu0 0
  %7577 = vmatprep.subr.bf16.mxu0 0
  %7578 = vmatpush1.bf16.msra.mxu0 0
  %7579 = vmatprep.subr.bf16.mxu0 0
  %7580 = vmatpush1.bf16.msra.mxu0 0
  %7581 = vmatprep.subr.bf16.mxu0 0
  %7582 = vmatpush1.bf16.msra.mxu0 0
  %7583 = vmatprep.mubr.bf16.mxu0 0
  %7584 = vmatmul.mubr.bf16.gmra.mrb[0].mxu0 %v7387
  %v7585 = vpop.f32.mrb[0].mxu0
  %v7586 = vadd.f32 0.0, %v7585
  %v7587 = vpop.f32.mrb[0].mxu0
  %v7588 = vadd.f32 0.0, %v7587
  %v7589 = vpop.f32.mrb[0].mxu0
  %v7590 = vpop.f32.mrb[0].mxu0
  %7591 = vdwg.mxu0
  %7592 = vmatprep.subr.bf16.mxu0 0
  %7593 = vmatpush1.bf16.msra.mxu0 %v702
  %7594 = vmatprep.subr.bf16.mxu0 0
  %7595 = vmatpush1.bf16.msra.mxu0 %v705
  %7596 = vmatprep.subr.bf16.mxu0 0
  %7597 = vmatpush1.bf16.msra.mxu0 %v708
  %7598 = vmatprep.subr.bf16.mxu0 0
  %7599 = vmatpush1.bf16.msra.mxu0 %v711
  %7600 = vmatprep.subr.bf16.mxu0 0
  %7601 = vmatpush1.bf16.msra.mxu0 %v714
  %7602 = vmatprep.subr.bf16.mxu0 0
  %7603 = vmatpush1.bf16.msra.mxu0 %v717
  %7604 = vmatprep.subr.bf16.mxu0 0
  %7605 = vmatpush1.bf16.msra.mxu0 %v720
  %7606 = vmatprep.subr.bf16.mxu0 0
  %7607 = vmatpush1.bf16.msra.mxu0 %v723
  %7608 = vmatprep.subr.bf16.mxu0 0
  %7609 = vmatpush1.bf16.msra.mxu0 0
  %7610 = vmatprep.subr.bf16.mxu0 0
  %7611 = vmatpush1.bf16.msra.mxu0 0
  %7612 = vmatprep.subr.bf16.mxu0 0
  %7613 = vmatpush1.bf16.msra.mxu0 0
  %7614 = vmatprep.subr.bf16.mxu0 0
  %7615 = vmatpush1.bf16.msra.mxu0 0
  %7616 = vmatprep.subr.bf16.mxu0 0
  %7617 = vmatpush1.bf16.msra.mxu0 0
  %7618 = vmatprep.subr.bf16.mxu0 0
  %7619 = vmatpush1.bf16.msra.mxu0 0
  %7620 = vmatprep.subr.bf16.mxu0 0
  %7621 = vmatpush1.bf16.msra.mxu0 0
  %7622 = vmatprep.subr.bf16.mxu0 0
  %7623 = vmatpush1.bf16.msra.mxu0 0
  %7624 = vmatprep.mubr.bf16.mxu0 0
  %7625 = vmatmul.mubr.bf16.gmra.mrb[0].mxu0 %v7387
  %v7626 = vpop.f32.mrb[0].mxu0
  %v7627 = vadd.f32 0.0, %v7626
  %v7628 = vpop.f32.mrb[0].mxu0
  %v7629 = vpop.f32.mrb[0].mxu0
  %v7630 = vpop.f32.mrb[0].mxu0
  %7631 = vdwg.mxu0
  %7632 = vmatprep.subr.bf16.mxu0 %v910
  %7633 = vmatpush1.bf16.msra.mxu0 %v909
  %7634 = vmatprep.subr.bf16.mxu0 %v913
  %7635 = vmatpush1.bf16.msra.mxu0 %v912
  %7636 = vmatprep.subr.bf16.mxu0 %v916
  %7637 = vmatpush1.bf16.msra.mxu0 %v915
  %7638 = vmatprep.subr.bf16.mxu0 %v919
  %7639 = vmatpush1.bf16.msra.mxu0 %v918
  %7640 = vmatprep.subr.bf16.mxu0 %v922
  %7641 = vmatpush1.bf16.msra.mxu0 %v921
  %7642 = vmatprep.subr.bf16.mxu0 %v925
  %7643 = vmatpush1.bf16.msra.mxu0 %v924
  %7644 = vmatprep.subr.bf16.mxu0 %v928
  %7645 = vmatpush1.bf16.msra.mxu0 %v927
  %7646 = vmatprep.subr.bf16.mxu0 %v931
  %7647 = vmatpush1.bf16.msra.mxu0 %v930
  %7648 = vmatprep.subr.bf16.mxu0 0
  %7649 = vmatpush1.bf16.msra.mxu0 0
  %7650 = vmatprep.subr.bf16.mxu0 0
  %7651 = vmatpush1.bf16.msra.mxu0 0
  %7652 = vmatprep.subr.bf16.mxu0 0
  %7653 = vmatpush1.bf16.msra.mxu0 0
  %7654 = vmatprep.subr.bf16.mxu0 0
  %7655 = vmatpush1.bf16.msra.mxu0 0
  %7656 = vmatprep.subr.bf16.mxu0 0
  %7657 = vmatpush1.bf16.msra.mxu0 0
  %7658 = vmatprep.subr.bf16.mxu0 0
  %7659 = vmatpush1.bf16.msra.mxu0 0
  %7660 = vmatprep.subr.bf16.mxu0 0
  %7661 = vmatpush1.bf16.msra.mxu0 0
  %7662 = vmatprep.subr.bf16.mxu0 0
  %7663 = vmatpush1.bf16.msra.mxu0 0
  %7664 = vmatprep.mubr.bf16.mxu0 0
  %7665 = vmatmul.mubr.bf16.gmra.mrb[0].mxu0 %v7388
  %v7666 = vpop.f32.mrb[0].mxu0
  %v7667 = vadd.f32 0.0, %v7666
  %v7668 = vpop.f32.mrb[0].mxu0
  %v7669 = vadd.f32 0.0, %v7668
  %v7670 = vpop.f32.mrb[0].mxu0
  %v7671 = vpop.f32.mrb[0].mxu0
  %7672 = vdwg.mxu0
  %7673 = vmatprep.subr.bf16.mxu0 0
  %7674 = vmatpush1.bf16.msra.mxu0 %v911
  %7675 = vmatprep.subr.bf16.mxu0 0
  %7676 = vmatpush1.bf16.msra.mxu0 %v914
  %7677 = vmatprep.subr.bf16.mxu0 0
  %7678 = vmatpush1.bf16.msra.mxu0 %v917
  %7679 = vmatprep.subr.bf16.mxu0 0
  %7680 = vmatpush1.bf16.msra.mxu0 %v920
  %7681 = vmatprep.subr.bf16.mxu0 0
  %7682 = vmatpush1.bf16.msra.mxu0 %v923
  %7683 = vmatprep.subr.bf16.mxu0 0
  %7684 = vmatpush1.bf16.msra.mxu0 %v926
  %7685 = vmatprep.subr.bf16.mxu0 0
  %7686 = vmatpush1.bf16.msra.mxu0 %v929
  %7687 = vmatprep.subr.bf16.mxu0 0
  %7688 = vmatpush1.bf16.msra.mxu0 %v932
  %7689 = vmatprep.subr.bf16.mxu0 0
  %7690 = vmatpush1.bf16.msra.mxu0 0
  %7691 = vmatprep.subr.bf16.mxu0 0
  %7692 = vmatpush1.bf16.msra.mxu0 0
  %7693 = vmatprep.subr.bf16.mxu0 0
  %7694 = vmatpush1.bf16.msra.mxu0 0
  %7695 = vmatprep.subr.bf16.mxu0 0
  %7696 = vmatpush1.bf16.msra.mxu0 0
  %7697 = vmatprep.subr.bf16.mxu0 0
  %7698 = vmatpush1.bf16.msra.mxu0 0
  %7699 = vmatprep.subr.bf16.mxu0 0
  %7700 = vmatpush1.bf16.msra.mxu0 0
  %7701 = vmatprep.subr.bf16.mxu0 0
  %7702 = vmatpush1.bf16.msra.mxu0 0
  %7703 = vmatprep.subr.bf16.mxu0 0
  %7704 = vmatpush1.bf16.msra.mxu0 0
  %7705 = vmatprep.mubr.bf16.mxu0 0
  %7706 = vmatmul.mubr.bf16.gmra.mrb[0].mxu0 %v7388
  %v7707 = vpop.f32.mrb[0].mxu0
  %v7708 = vadd.f32 0.0, %v7707
  %v7709 = vpop.f32.mrb[0].mxu0
  %v7710 = vpop.f32.mrb[0].mxu0
  %v7711 = vpop.f32.mrb[0].mxu0
  %7712 = vdwg.mxu0
  %v7713 = vunpack.c.l.bf16 %v7377
  %v7714 = vunpack.c.h.bf16 %v7377
  %v7715 = vunpack.c.l.bf16 %v7379
  %v7716 = vunpack.c.h.bf16 %v7379
  %v7717 = vunpack.c.l.bf16 %v7381
  %v7718 = vunpack.c.h.bf16 %v7381
  %v7719 = vunpack.c.l.bf16 %v7383
  %v7720 = vunpack.c.h.bf16 %v7383
  %v7721 = vadd.f32 %v7713, %v7424
  %v7722 = vadd.f32 %v7714, %v7426
  %v7723 = vadd.f32 %v7715, %v7505
  %v7724 = vadd.f32 %v7716, %v7507
  %v7725 = vadd.f32 %v7717, %v7586
  %v7726 = vadd.f32 %v7718, %v7588
  %v7727 = vadd.f32 %v7719, %v7667
  %v7728 = vadd.f32 %v7720, %v7669
  %v7729 = vxor.u32 %v7721, 2147483648
  %v7730 = vxor.u32 %v7722, 2147483648
  %v7731 = vxor.u32 %v7723, 2147483648
  %v7732 = vxor.u32 %v7724, 2147483648
  %v7733 = vxor.u32 %v7725, 2147483648
  %v7734 = vxor.u32 %v7726, 2147483648
  %v7735 = vxor.u32 %v7727, 2147483648
  %v7736 = vxor.u32 %v7728, 2147483648
  %v7737 = vmul.f32 %v7729, 1.442695
  %v7738 = vpow.pop %v7737
  %v7739 = vmul.f32 %v7730, 1.442695
  %v7740 = vpow.pop %v7739
  %v7741 = vmul.f32 %v7731, 1.442695
  %v7742 = vpow.pop %v7741
  %v7743 = vmul.f32 %v7732, 1.442695
  %v7744 = vpow.pop %v7743
  %v7745 = vmul.f32 %v7733, 1.442695
  %v7746 = vpow.pop %v7745
  %v7747 = vmul.f32 %v7734, 1.442695
  %v7748 = vpow.pop %v7747
  %v7749 = vmul.f32 %v7735, 1.442695
  %v7750 = vpow.pop %v7749
  %v7751 = vmul.f32 %v7736, 1.442695
  %v7752 = vpow.pop %v7751
  %v7753 = vadd.f32 %v7738, 1.0
  %v7754 = vadd.f32 %v7740, 1.0
  %v7755 = vadd.f32 %v7742, 1.0
  %v7756 = vadd.f32 %v7744, 1.0
  %v7757 = vadd.f32 %v7746, 1.0
  %v7758 = vadd.f32 %v7748, 1.0
  %v7759 = vadd.f32 %v7750, 1.0
  %v7760 = vadd.f32 %v7752, 1.0
  %v7761 = vrcp.pop %v7753
  %v7762 = vmul.f32 1.0, %v7761
  %v7763 = vrcp.pop %v7754
  %v7764 = vmul.f32 1.0, %v7763
  %v7765 = vrcp.pop %v7755
  %v7766 = vmul.f32 1.0, %v7765
  %v7767 = vrcp.pop %v7756
  %v7768 = vmul.f32 1.0, %v7767
  %v7769 = vrcp.pop %v7757
  %v7770 = vmul.f32 1.0, %v7769
  %v7771 = vrcp.pop %v7758
  %v7772 = vmul.f32 1.0, %v7771
  %v7773 = vrcp.pop %v7759
  %v7774 = vmul.f32 1.0, %v7773
  %v7775 = vrcp.pop %v7760
  %v7776 = vmul.f32 1.0, %v7775
  %v7777 = vadd.f32 %v7465, %v165
  %v7778 = vadd.f32 %v7546, %v169
  %v7779 = vadd.f32 %v7627, %v173
  %v7780 = vadd.f32 %v7708, %v177
  %v7781 = vmul.f32 %v7762, %v7777
  %v7782 = vmul.f32 %v7766, %v7778
  %v7783 = vmul.f32 %v7770, %v7779
  %v7784 = vmul.f32 %v7774, %v7780
  %v7785 = vunpack.c.l.bf16 %v7378
  %v7786 = vunpack.c.l.bf16 %v7380
  %v7787 = vunpack.c.l.bf16 %v7382
  %v7788 = vunpack.c.l.bf16 %v7384
  %v7789 = vadd.f32 %v7785, %v7781
  %v7790 = vadd.f32 %v7786, %v7782
  %v7791 = vadd.f32 %v7787, %v7783
  %v7792 = vadd.f32 %v7788, %v7784
  %v7793 = vtanh.pop %v7789
  %v7794 = vtanh.pop %v7790
  %v7795 = vtanh.pop %v7791
  %v7796 = vtanh.pop %v7792
  %v7797 = vsub.f32 1.0, %v7764
  %v7798 = vsub.f32 1.0, %v7768
  %v7799 = vsub.f32 1.0, %v7772
  %v7800 = vsub.f32 1.0, %v7776
  %v7801 = vsub.f32 %v7793, %v7372
  %v7802 = vsub.f32 %v7794, %v7373
  %v7803 = vsub.f32 %v7795, %v7374
  %v7804 = vsub.f32 %v7796, %v7375
  %v7805 = vmul.f32 %v7797, %v7801
  %v7806 = vmul.f32 %v7798, %v7802
  %v7807 = vmul.f32 %v7799, %v7803
  %v7808 = vmul.f32 %v7800, %v7804
  %vm7809 = vcmp.gt.s32.totalorder %v182, 15
  %vm7810 = vcmp.gt.s32.totalorder %v183, 15
  %vm7811 = vcmp.gt.s32.totalorder %v184, 15
  %vm7812 = vcmp.gt.s32.totalorder %v185, 15
  %v7813 = vsel %vm7809, %v7805, 0.0
  %v7814 = vsel %vm7810, %v7806, 0.0
  %v7815 = vsel %vm7811, %v7807, 0.0
  %v7816 = vsel %vm7812, %v7808, 0.0
  %v7817 = vadd.f32 %v7372, %v7813
  %v7818 = vadd.f32 %v7373, %v7814
  %v7819 = vadd.f32 %v7374, %v7815
  %v7820 = vadd.f32 %v7375, %v7816
  %7821 = vst [vmem:[%s6] sm:$0xff] %v7817
  %7822 = vst [vmem:[%s6 + $0x8] sm:$0xff] %v7818
  %7823 = vst [vmem:[%s6 + $0x10] sm:$0xff] %v7819
  %7824 = vst [vmem:[%s6 + $0x18] sm:$0xff] %v7820
  %v7825 = vpack.c.bf16 %v7817, %v7817
  %v7826 = vpack.c.bf16 %v7818, %v7818
  %v7827 = vpack.c.bf16 %v7819, %v7819
  %v7828 = vpack.c.bf16 %v7820, %v7820
  %v7829 = vld [vmem:[%s5] sm:$0xf]
  %v7830 = vld [vmem:[%s5 + $0x4] sm:$0xf]
  %v7831 = vld [vmem:[%s5 + $0x8] sm:$0xf]
  %v7832 = vld [vmem:[%s5 + $0xc] sm:$0xf]
  %v7833 = vld [vmem:[%s5 + $0x10] sm:$0xf]
  %v7834 = vld [vmem:[%s5 + $0x14] sm:$0xf]
  %v7835 = vld [vmem:[%s5 + $0x18] sm:$0xf]
  %v7836 = vld [vmem:[%s5 + $0x1c] sm:$0xf]
  %v7837 = vld [vmem:[%s5 + $0x20] sm:$0xf]
  %v7838 = vld [vmem:[%s5 + $0x24] sm:$0xf]
  %v7839 = vld [vmem:[%s5 + $0x28] sm:$0xf]
  %v7840 = vld [vmem:[%s5 + $0x2c] sm:$0xf]
  %v7841 = vld [vmem:[%s5 + $0x30] sm:$0xf]
  %v7842 = vld [vmem:[%s5 + $0x34] sm:$0xf]
  %v7843 = vld [vmem:[%s5 + $0x38] sm:$0xf]
  %v7844 = vld [vmem:[%s5 + $0x3c] sm:$0xf]
  %v7845 = vld [vmem:[%s5 + $0x40] sm:$0xf]
  %v7846 = vld [vmem:[%s5 + $0x44] sm:$0xf]
  %v7847 = vld [vmem:[%s5 + $0x48] sm:$0xf]
  %v7848 = vld [vmem:[%s5 + $0x4c] sm:$0xf]
  %v7849 = vld [vmem:[%s5 + $0x50] sm:$0xf]
  %v7850 = vld [vmem:[%s5 + $0x54] sm:$0xf]
  %v7851 = vld [vmem:[%s5 + $0x58] sm:$0xf]
  %v7852 = vld [vmem:[%s5 + $0x5c] sm:$0xf]
  %v7853 = vld [vmem:[%s5 + $0x60] sm:$0xf]
  %v7854 = vld [vmem:[%s5 + $0x64] sm:$0xf]
  %v7855 = vld [vmem:[%s5 + $0x68] sm:$0xf]
  %v7856 = vld [vmem:[%s5 + $0x6c] sm:$0xf]
  %v7857 = vld [vmem:[%s5 + $0x70] sm:$0xf]
  %v7858 = vld [vmem:[%s5 + $0x74] sm:$0xf]
  %v7859 = vld [vmem:[%s5 + $0x78] sm:$0xf]
  %v7860 = vld [vmem:[%s5 + $0x7c] sm:$0xf]
  %v7861 = vld [vmem:[%s5 + $0x80] sm:$0xf]
  %v7862 = vld [vmem:[%s5 + $0x84] sm:$0xf]
  %v7863 = vld [vmem:[%s5 + $0x88] sm:$0xf]
  %v7864 = vld [vmem:[%s5 + $0x8c] sm:$0xf]
  %v7865 = vld [vmem:[%s5 + $0x90] sm:$0xf]
  %v7866 = vld [vmem:[%s5 + $0x94] sm:$0xf]
  %v7867 = vld [vmem:[%s5 + $0x98] sm:$0xf]
  %v7868 = vld [vmem:[%s5 + $0x9c] sm:$0xf]
  %v7869 = vld [vmem:[%s5 + $0xa0] sm:$0xf]
  %v7870 = vld [vmem:[%s5 + $0xa4] sm:$0xf]
  %v7871 = vld [vmem:[%s5 + $0xa8] sm:$0xf]
  %v7872 = vld [vmem:[%s5 + $0xac] sm:$0xf]
  %v7873 = vld [vmem:[%s5 + $0xb0] sm:$0xf]
  %v7874 = vld [vmem:[%s5 + $0xb4] sm:$0xf]
  %v7875 = vld [vmem:[%s5 + $0xb8] sm:$0xf]
  %v7876 = vld [vmem:[%s5 + $0xbc] sm:$0xf]
  %v7877 = vld [vmem:[%s5 + $0xc0] sm:$0xf]
  %v7878 = vld [vmem:[%s5 + $0xc4] sm:$0xf]
  %v7879 = vld [vmem:[%s5 + $0xc8] sm:$0xf]
  %v7880 = vld [vmem:[%s5 + $0xcc] sm:$0xf]
  %v7881 = vld [vmem:[%s5 + $0xd0] sm:$0xf]
  %v7882 = vld [vmem:[%s5 + $0xd4] sm:$0xf]
  %v7883 = vld [vmem:[%s5 + $0xd8] sm:$0xf]
  %v7884 = vld [vmem:[%s5 + $0xdc] sm:$0xf]
  %v7885 = vld [vmem:[%s5 + $0xe0] sm:$0xf]
  %v7886 = vld [vmem:[%s5 + $0xe4] sm:$0xf]
  %v7887 = vld [vmem:[%s5 + $0xe8] sm:$0xf]
  %v7888 = vld [vmem:[%s5 + $0xec] sm:$0xf]
  %v7889 = vld [vmem:[%s5 + $0xf0] sm:$0xf]
  %v7890 = vld [vmem:[%s5 + $0xf4] sm:$0xf]
  %v7891 = vld [vmem:[%s5 + $0xf8] sm:$0xf]
  %v7892 = vld [vmem:[%s5 + $0xfc] sm:$0xf]
  %v7909 = vunpack.c.l.b16 %v7845
  %v7910 = vunpack.c.l.b16 %v7846
  %v7911 = vunpack.c.l.b16 %v7847
  %v7912 = vunpack.c.l.b16 %v7848
  %v7913 = vunpack.c.l.b16 %v7849
  %v7914 = vunpack.c.l.b16 %v7850
  %v7915 = vunpack.c.l.b16 %v7851
  %v7916 = vunpack.c.l.b16 %v7852
  %v7917 = vunpack.c.l.b16 %v7853
  %v7918 = vunpack.c.l.b16 %v7854
  %v7919 = vunpack.c.l.b16 %v7855
  %v7920 = vunpack.c.l.b16 %v7856
  %v7921 = vunpack.c.l.b16 %v7857
  %v7922 = vunpack.c.l.b16 %v7858
  %v7923 = vunpack.c.l.b16 %v7859
  %v7924 = vunpack.c.l.b16 %v7860
  %v7925 = vpack.c.b16 %v7910, %v7909
  %v7926 = vpack.c.b16 %v7912, %v7911
  %v7927 = vpack.c.b16 %v7914, %v7913
  %v7928 = vpack.c.b16 %v7916, %v7915
  %v7929 = vpack.c.b16 %v7918, %v7917
  %v7930 = vpack.c.b16 %v7920, %v7919
  %v7931 = vpack.c.b16 %v7922, %v7921
  %v7932 = vpack.c.b16 %v7924, %v7923
  %7941 = vmatprep.subr.bf16.mxu0 0
  %7942 = vmatpush1.bf16.msra.mxu0 %v7925
  %7943 = vmatprep.subr.bf16.mxu0 0
  %7944 = vmatpush1.bf16.msra.mxu0 %v7926
  %7945 = vmatprep.subr.bf16.mxu0 0
  %7946 = vmatpush1.bf16.msra.mxu0 %v7927
  %7947 = vmatprep.subr.bf16.mxu0 0
  %7948 = vmatpush1.bf16.msra.mxu0 %v7928
  %7949 = vmatprep.subr.bf16.mxu0 0
  %7950 = vmatpush1.bf16.msra.mxu0 %v7929
  %7951 = vmatprep.subr.bf16.mxu0 0
  %7952 = vmatpush1.bf16.msra.mxu0 %v7930
  %7953 = vmatprep.subr.bf16.mxu0 0
  %7954 = vmatpush1.bf16.msra.mxu0 %v7931
  %7955 = vmatprep.subr.bf16.mxu0 0
  %7956 = vmatpush1.bf16.msra.mxu0 %v7932
  %7957 = vmatprep.subr.bf16.mxu0 0
  %7958 = vmatpush1.bf16.msra.mxu0 0
  %7959 = vmatprep.subr.bf16.mxu0 0
  %7960 = vmatpush1.bf16.msra.mxu0 0
  %7961 = vmatprep.subr.bf16.mxu0 0
  %7962 = vmatpush1.bf16.msra.mxu0 0
  %7963 = vmatprep.subr.bf16.mxu0 0
  %7964 = vmatpush1.bf16.msra.mxu0 0
  %7965 = vmatprep.subr.bf16.mxu0 0
  %7966 = vmatpush1.bf16.msra.mxu0 0
  %7967 = vmatprep.subr.bf16.mxu0 0
  %7968 = vmatpush1.bf16.msra.mxu0 0
  %7969 = vmatprep.subr.bf16.mxu0 0
  %7970 = vmatpush1.bf16.msra.mxu0 0
  %7971 = vmatprep.subr.bf16.mxu0 0
  %7972 = vmatpush1.bf16.msra.mxu0 0
  %7973 = vmatprep.mubr.bf16.mxu0 0
  %7974 = vmatmul.mubr.bf16.gmra.mrb[0].mxu0 %v7826
  %v7975 = vpop.f32.mrb[0].mxu0
  %v7976 = vadd.f32 0.0, %v7975
  %v7977 = vpop.f32.mrb[0].mxu0
  %v7978 = vpop.f32.mrb[0].mxu0
  %v7979 = vpop.f32.mrb[0].mxu0
  %7980 = vdwg.mxu0
  %v7997 = vunpack.c.l.b16 %v7829
  %v7998 = vunpack.c.l.b16 %v7830
  %v7999 = vunpack.c.l.b16 %v7831
  %v8000 = vunpack.c.l.b16 %v7832
  %v8001 = vunpack.c.l.b16 %v7833
  %v8002 = vunpack.c.l.b16 %v7834
  %v8003 = vunpack.c.l.b16 %v7835
  %v8004 = vunpack.c.l.b16 %v7836
  %v8005 = vunpack.c.l.b16 %v7837
  %v8006 = vunpack.c.l.b16 %v7838
  %v8007 = vunpack.c.l.b16 %v7839
  %v8008 = vunpack.c.l.b16 %v7840
  %v8009 = vunpack.c.l.b16 %v7841
  %v8010 = vunpack.c.l.b16 %v7842
  %v8011 = vunpack.c.l.b16 %v7843
  %v8012 = vunpack.c.l.b16 %v7844
  %v8013 = vpack.c.b16 %v7998, %v7997
  %v8014 = vpack.c.b16 %v8000, %v7999
  %v8015 = vpack.c.b16 %v8002, %v8001
  %v8016 = vpack.c.b16 %v8004, %v8003
  %v8017 = vpack.c.b16 %v8006, %v8005
  %v8018 = vpack.c.b16 %v8008, %v8007
  %v8019 = vpack.c.b16 %v8010, %v8009
  %v8020 = vpack.c.b16 %v8012, %v8011
  %8029 = vmatprep.subr.bf16.mxu0 0
  %8030 = vmatpush1.bf16.msra.mxu0 %v8013
  %8031 = vmatprep.subr.bf16.mxu0 0
  %8032 = vmatpush1.bf16.msra.mxu0 %v8014
  %8033 = vmatprep.subr.bf16.mxu0 0
  %8034 = vmatpush1.bf16.msra.mxu0 %v8015
  %8035 = vmatprep.subr.bf16.mxu0 0
  %8036 = vmatpush1.bf16.msra.mxu0 %v8016
  %8037 = vmatprep.subr.bf16.mxu0 0
  %8038 = vmatpush1.bf16.msra.mxu0 %v8017
  %8039 = vmatprep.subr.bf16.mxu0 0
  %8040 = vmatpush1.bf16.msra.mxu0 %v8018
  %8041 = vmatprep.subr.bf16.mxu0 0
  %8042 = vmatpush1.bf16.msra.mxu0 %v8019
  %8043 = vmatprep.subr.bf16.mxu0 0
  %8044 = vmatpush1.bf16.msra.mxu0 %v8020
  %8045 = vmatprep.subr.bf16.mxu0 0
  %8046 = vmatpush1.bf16.msra.mxu0 0
  %8047 = vmatprep.subr.bf16.mxu0 0
  %8048 = vmatpush1.bf16.msra.mxu0 0
  %8049 = vmatprep.subr.bf16.mxu0 0
  %8050 = vmatpush1.bf16.msra.mxu0 0
  %8051 = vmatprep.subr.bf16.mxu0 0
  %8052 = vmatpush1.bf16.msra.mxu0 0
  %8053 = vmatprep.subr.bf16.mxu0 0
  %8054 = vmatpush1.bf16.msra.mxu0 0
  %8055 = vmatprep.subr.bf16.mxu0 0
  %8056 = vmatpush1.bf16.msra.mxu0 0
  %8057 = vmatprep.subr.bf16.mxu0 0
  %8058 = vmatpush1.bf16.msra.mxu0 0
  %8059 = vmatprep.subr.bf16.mxu0 0
  %8060 = vmatpush1.bf16.msra.mxu0 0
  %8061 = vmatprep.mubr.bf16.mxu0 0
  %8062 = vmatmul.mubr.bf16.gmra.mrb[0].mxu0 %v7825
  %v8063 = vpop.f32.mrb[0].mxu0
  %v8064 = vadd.f32 %v7976, %v8063
  %v8065 = vpop.f32.mrb[0].mxu0
  %v8066 = vpop.f32.mrb[0].mxu0
  %v8067 = vpop.f32.mrb[0].mxu0
  %8068 = vdwg.mxu0
  %v8085 = vunpack.c.l.b16 %v7861
  %v8086 = vunpack.c.l.b16 %v7862
  %v8087 = vunpack.c.l.b16 %v7863
  %v8088 = vunpack.c.l.b16 %v7864
  %v8089 = vunpack.c.l.b16 %v7865
  %v8090 = vunpack.c.l.b16 %v7866
  %v8091 = vunpack.c.l.b16 %v7867
  %v8092 = vunpack.c.l.b16 %v7868
  %v8093 = vunpack.c.l.b16 %v7869
  %v8094 = vunpack.c.l.b16 %v7870
  %v8095 = vunpack.c.l.b16 %v7871
  %v8096 = vunpack.c.l.b16 %v7872
  %v8097 = vunpack.c.l.b16 %v7873
  %v8098 = vunpack.c.l.b16 %v7874
  %v8099 = vunpack.c.l.b16 %v7875
  %v8100 = vunpack.c.l.b16 %v7876
  %v8101 = vpack.c.b16 %v8086, %v8085
  %v8102 = vpack.c.b16 %v8088, %v8087
  %v8103 = vpack.c.b16 %v8090, %v8089
  %v8104 = vpack.c.b16 %v8092, %v8091
  %v8105 = vpack.c.b16 %v8094, %v8093
  %v8106 = vpack.c.b16 %v8096, %v8095
  %v8107 = vpack.c.b16 %v8098, %v8097
  %v8108 = vpack.c.b16 %v8100, %v8099
  %8117 = vmatprep.subr.bf16.mxu0 0
  %8118 = vmatpush1.bf16.msra.mxu0 %v8101
  %8119 = vmatprep.subr.bf16.mxu0 0
  %8120 = vmatpush1.bf16.msra.mxu0 %v8102
  %8121 = vmatprep.subr.bf16.mxu0 0
  %8122 = vmatpush1.bf16.msra.mxu0 %v8103
  %8123 = vmatprep.subr.bf16.mxu0 0
  %8124 = vmatpush1.bf16.msra.mxu0 %v8104
  %8125 = vmatprep.subr.bf16.mxu0 0
  %8126 = vmatpush1.bf16.msra.mxu0 %v8105
  %8127 = vmatprep.subr.bf16.mxu0 0
  %8128 = vmatpush1.bf16.msra.mxu0 %v8106
  %8129 = vmatprep.subr.bf16.mxu0 0
  %8130 = vmatpush1.bf16.msra.mxu0 %v8107
  %8131 = vmatprep.subr.bf16.mxu0 0
  %8132 = vmatpush1.bf16.msra.mxu0 %v8108
  %8133 = vmatprep.subr.bf16.mxu0 0
  %8134 = vmatpush1.bf16.msra.mxu0 0
  %8135 = vmatprep.subr.bf16.mxu0 0
  %8136 = vmatpush1.bf16.msra.mxu0 0
  %8137 = vmatprep.subr.bf16.mxu0 0
  %8138 = vmatpush1.bf16.msra.mxu0 0
  %8139 = vmatprep.subr.bf16.mxu0 0
  %8140 = vmatpush1.bf16.msra.mxu0 0
  %8141 = vmatprep.subr.bf16.mxu0 0
  %8142 = vmatpush1.bf16.msra.mxu0 0
  %8143 = vmatprep.subr.bf16.mxu0 0
  %8144 = vmatpush1.bf16.msra.mxu0 0
  %8145 = vmatprep.subr.bf16.mxu0 0
  %8146 = vmatpush1.bf16.msra.mxu0 0
  %8147 = vmatprep.subr.bf16.mxu0 0
  %8148 = vmatpush1.bf16.msra.mxu0 0
  %8149 = vmatprep.mubr.bf16.mxu0 0
  %8150 = vmatmul.mubr.bf16.gmra.mrb[0].mxu0 %v7827
  %v8151 = vpop.f32.mrb[0].mxu0
  %v8152 = vadd.f32 0.0, %v8151
  %v8153 = vpop.f32.mrb[0].mxu0
  %v8154 = vpop.f32.mrb[0].mxu0
  %v8155 = vpop.f32.mrb[0].mxu0
  %8156 = vdwg.mxu0
  %v8157 = vadd.f32 %v8064, %v8152
  %v8174 = vunpack.c.l.b16 %v7877
  %v8175 = vunpack.c.l.b16 %v7878
  %v8176 = vunpack.c.l.b16 %v7879
  %v8177 = vunpack.c.l.b16 %v7880
  %v8178 = vunpack.c.l.b16 %v7881
  %v8179 = vunpack.c.l.b16 %v7882
  %v8180 = vunpack.c.l.b16 %v7883
  %v8181 = vunpack.c.l.b16 %v7884
  %v8182 = vunpack.c.l.b16 %v7885
  %v8183 = vunpack.c.l.b16 %v7886
  %v8184 = vunpack.c.l.b16 %v7887
  %v8185 = vunpack.c.l.b16 %v7888
  %v8186 = vunpack.c.l.b16 %v7889
  %v8187 = vunpack.c.l.b16 %v7890
  %v8188 = vunpack.c.l.b16 %v7891
  %v8189 = vunpack.c.l.b16 %v7892
  %v8190 = vpack.c.b16 %v8175, %v8174
  %v8191 = vpack.c.b16 %v8177, %v8176
  %v8192 = vpack.c.b16 %v8179, %v8178
  %v8193 = vpack.c.b16 %v8181, %v8180
  %v8194 = vpack.c.b16 %v8183, %v8182
  %v8195 = vpack.c.b16 %v8185, %v8184
  %v8196 = vpack.c.b16 %v8187, %v8186
  %v8197 = vpack.c.b16 %v8189, %v8188
  %8206 = vmatprep.subr.bf16.mxu0 0
  %8207 = vmatpush1.bf16.msra.mxu0 %v8190
  %8208 = vmatprep.subr.bf16.mxu0 0
  %8209 = vmatpush1.bf16.msra.mxu0 %v8191
  %8210 = vmatprep.subr.bf16.mxu0 0
  %8211 = vmatpush1.bf16.msra.mxu0 %v8192
  %8212 = vmatprep.subr.bf16.mxu0 0
  %8213 = vmatpush1.bf16.msra.mxu0 %v8193
  %8214 = vmatprep.subr.bf16.mxu0 0
  %8215 = vmatpush1.bf16.msra.mxu0 %v8194
  %8216 = vmatprep.subr.bf16.mxu0 0
  %8217 = vmatpush1.bf16.msra.mxu0 %v8195
  %8218 = vmatprep.subr.bf16.mxu0 0
  %8219 = vmatpush1.bf16.msra.mxu0 %v8196
  %8220 = vmatprep.subr.bf16.mxu0 0
  %8221 = vmatpush1.bf16.msra.mxu0 %v8197
  %8222 = vmatprep.subr.bf16.mxu0 0
  %8223 = vmatpush1.bf16.msra.mxu0 0
  %8224 = vmatprep.subr.bf16.mxu0 0
  %8225 = vmatpush1.bf16.msra.mxu0 0
  %8226 = vmatprep.subr.bf16.mxu0 0
  %8227 = vmatpush1.bf16.msra.mxu0 0
  %8228 = vmatprep.subr.bf16.mxu0 0
  %8229 = vmatpush1.bf16.msra.mxu0 0
  %8230 = vmatprep.subr.bf16.mxu0 0
  %8231 = vmatpush1.bf16.msra.mxu0 0
  %8232 = vmatprep.subr.bf16.mxu0 0
  %8233 = vmatpush1.bf16.msra.mxu0 0
  %8234 = vmatprep.subr.bf16.mxu0 0
  %8235 = vmatpush1.bf16.msra.mxu0 0
  %8236 = vmatprep.subr.bf16.mxu0 0
  %8237 = vmatpush1.bf16.msra.mxu0 0
  %8238 = vmatprep.mubr.bf16.mxu0 0
  %8239 = vmatmul.mubr.bf16.gmra.mrb[0].mxu0 %v7828
  %v8240 = vpop.f32.mrb[0].mxu0
  %v8241 = vadd.f32 0.0, %v8240
  %v8242 = vpop.f32.mrb[0].mxu0
  %v8243 = vpop.f32.mrb[0].mxu0
  %v8244 = vpop.f32.mrb[0].mxu0
  %8245 = vdwg.mxu0
  %v8246 = vadd.f32 %v8157, %v8241
  %8247 = vst [vmem:[%s7] sm:$0xff] %v8246
  // Predicated region
  $region26: #{_lambda_.1} parent=0 // pred_check
    _
  $region27: #{_lambda_.1} parent=0 // pred_check_branch
    %8249 = sbr.rel (0) target = $region29
  $region28: #{_lambda_.1} parent=0 // pred_region
    _
  $region29: #{_lambda_.1} parent=0 // pred_fallthru
    _
  // Predicated region
  $region30: #{_lambda_.1} parent=0 // pred_check
    _
  $region31: #{_lambda_.1} parent=0 // pred_check_branch
    %8251 = sbr.rel (0) target = $region33
  $region32: #{_lambda_.1} parent=0 // pred_region
    _
  $region33: #{_lambda_.1} parent=0 // pred_fallthru
    _
  // Predicated region
  $region34: #{_lambda_.1} parent=0 // pred_check
    _
  $region35: #{_lambda_.1} parent=0 // pred_check_branch
    %8253 = sbr.rel (0) target = $region37
  $region36: #{_lambda_.1} parent=0 // pred_region
    _
  $region37: #{_lambda_.1} parent=0 // pred_fallthru
    _
  // Predicated region
  $region38: #{_lambda_.1} parent=0 // pred_check
    _
  $region39: #{_lambda_.1} parent=0 // pred_check_branch
    %8255 = sbr.rel (0) target = $region41
  $region40: #{_lambda_.1} parent=0 // pred_region
    _
  $region41: #{_lambda_.1} parent=0 // pred_fallthru
    _

</llo_original>
